<compile_context>
chip_gen: v6e
topology: v6e:2x2x1
jax: 0.10.0
libtpu: 0.0.40
codegen_flags: <defaults>
</compile_context>

<pallas_src>
import jax
import jax.numpy as jnp
from jax.experimental import pallas as pl
from jax.experimental.pallas import tpu as pltpu

K_NEIGHBORS = 16
LEAKY_SLOPE = 0.2     # position_embding uses negative_slope=0.2 (explicit in ref)
BN_EPS = 1e-5
_F32_MAX = float(jnp.finfo(jnp.float32).max)

# Row layout of the packed (24, 128) bf16 small-weight slab.
_R_GE_W, _R_GE_B = 0, 3     # global-encoder point MLP  (3,128) + (1,128)
_R_LE_W, _R_LE_B = 4, 7     # local-encoder point MLP   (3,128) + (1,128)
_R_WP,  _R_BP = 8, 11       # position_embding Conv1d + folded eval-BN
_R_WA,  _R_BA = 12, 15      # attentionnet position encoding
_R_GVB, _R_FVB = 16, 17     # voxel-branch biases
_SLAB_ROWS = 24


def _leaky(x):
    return jnp.where(x > 0, x, LEAKY_SLOPE * x)


# --------------------------------------------------------------------------
# Fused batch-blocked forward kernel (one grid step == BB batch elements).
# --------------------------------------------------------------------------
def _fused_onet_kernel(q_ref, pc_ref, lpc_ref, gvox_ref, fvox_ref,
                       w_ref, gvw_ref, fvw_ref, dec_ref,
                       o_ref, oh_ref):
    f32, bf16 = jnp.float32, jnp.bfloat16
    q = q_ref[...]                                    # (BB, 3)  f32
    pc = pc_ref[...]                                  # (BB, N, 3) f32
    bb, n, _ = pc.shape
    k = oh_ref.shape[1]                               # 16 neighbours

    # ---- global encoder: per-point feature, bf16 MXU / f32 accumulation
    # TODO(synk): global_encoder architecture is a constructor arg not given in
    # the reference; synthetic 1x1-conv point MLP.  Its global_c output is
    # permuted but never consumed by the reference forward, so it is skipped.
    pc2 = pc.reshape(bb * n, 3)
    pf = jnp.dot(pc2.astype(bf16), w_ref[_R_GE_W:_R_GE_W + 3, :],
                 preferred_element_type=f32)
    pf = _leaky(pf + w_ref[_R_GE_B:_R_GE_B + 1, :].astype(f32))
    pf3 = pf.reshape(bb, n, 128)                      # (BB, N, 128)

    # ---- knn(query, global_pc, 16): exact squared distances (BB, N)
    diff = pc - q[:, None, :]                         # (BB, N, 3)
    d2 = jnp.sum(diff * diff, axis=-1)                # (BB, N) f32, >= 0

    # Pack (truncated distance, lane index) into one monotone f32 key so each
    # argmin step needs a single cross-lane min (16 XLU reductions, not 32).
    # Ties (after ~log2(N) mantissa-bit truncation) break toward lowest index.
    n_pow2 = pl.next_power_of_2(n)
    lane_mask = n_pow2 - 1
    lane_idx = jax.lax.broadcasted_iota(jnp.int32, (bb, n), 1)
    bits = pltpu.bitcast(jnp.maximum(d2, 0.0), jnp.int32)
    key = pltpu.bitcast(
        jnp.bitwise_or(jnp.bitwise_and(bits, jnp.int32(~lane_mask)), lane_idx),
        f32)                                          # (BB, N)
    for kk in range(k):                               # 16 unrolled argmin steps
        mn = jnp.min(key, axis=-1, keepdims=True)     # (BB, 1): ONE XLU min
        idx = jnp.bitwise_and(pltpu.bitcast(mn, jnp.int32), lane_mask)
        hit = lane_idx == idx                         # (BB, N) one-hot row
        oh_ref[:, kk:kk + 1, :] = hit.astype(f32)[:, None, :]
        key = jnp.where(hit, _F32_MAX, key)
    onehot = oh_ref[...]                              # (BB, K, N)

    # One-hot gathers on the MXU (no HBM gather): positions exact in f32
    # (feeds the position residual), features in bf16.
    knn_pts = jnp.einsum('bkn,bnc->bkc', onehot, pc,
                         preferred_element_type=f32)  # (BB, K, 3)
    knn_pos = q[:, None, :] - knn_pts                 # (BB, K, 3) f32
    knn_feat = jnp.einsum('bkn,bnf->bkf', onehot.astype(bf16), pf3.astype(bf16),
                          preferred_element_type=f32)  # (BB, K, 128)

    # ---- position_embding: Conv1d(3,128,1) + eval-BN (folded) + LeakyReLU(0.2)
    pos = jnp.dot(q.astype(bf16), w_ref[_R_WP:_R_WP + 3, :],
                  preferred_element_type=f32)
    pos = _leaky(pos + w_ref[_R_BP:_R_BP + 1, :].astype(f32))    # (BB, 128)

    # ---- fc_query = attentionnet(128, 128, 128)
    # TODO(synk): attentionnet architecture not given; synthetic 1x1-conv
    # position encoding + softmax attention over the 16 neighbours.
    pe = jnp.dot(knn_pos.reshape(bb * k, 3).astype(bf16),
                 w_ref[_R_WA:_R_WA + 3, :], preferred_element_type=f32)
    pe = _leaky(pe + w_ref[_R_BA:_R_BA + 1, :].astype(f32)).reshape(bb, k, 128)
    score = jnp.sum(pe * knn_feat, axis=-1, keepdims=True)       # (BB, K, 1)
    score = score - jnp.max(score, axis=1, keepdims=True)
    ex = jnp.exp(score)
    attn = ex * pl.reciprocal(jnp.sum(ex, axis=1, keepdims=True), approx=True)
    qfeat = jnp.sum(attn * knn_feat, axis=1)                     # (BB, 128)

    # ---- local encoder + max pool
    # TODO(synk): local_encoder architecture not given; synthetic point MLP.
    lpc = lpc_ref[...]                                # (BB, M, 3)
    m = lpc.shape[1]
    lc = jnp.dot(lpc.reshape(bb * m, 3).astype(bf16),
                 w_ref[_R_LE_W:_R_LE_W + 3, :], preferred_element_type=f32)
    lc = _leaky(lc + w_ref[_R_LE_B:_R_LE_B + 1, :].astype(f32)).reshape(bb, m, 128)
    lpool = jnp.max(lc, axis=1)                       # (BB, 128)

    # ---- voxel branches (bf16 activations cast in the wrapper, bf16 weights)
    # TODO(synk): voxelcnn / gc_voxelcnn 3D-conv architectures not given;
    # synthetic flatten + linear stand-ins.
    gvf = _leaky(jnp.dot(gvox_ref[...], gvw_ref[...], preferred_element_type=f32)
                 + w_ref[_R_GVB:_R_GVB + 1, :].astype(f32))      # (BB, 128)
    fvf = _leaky(jnp.dot(fvox_ref[...], fvw_ref[...], preferred_element_type=f32)
                 + w_ref[_R_FVB:_R_FVB + 1, :].astype(f32))      # (BB, 128)

    # ---- decoder head: one packed (BB, 640) row x one (1, 640) weight slab,
    # single cross-lane reduce (was 4 serial reduces).
    # TODO(synk): decoder architecture not given; synthetic linear head over
    # [pc_voxel_feature, local_c, query_feature(=[attn, position]), voxel_feature].
    feat = jnp.concatenate([gvf, lpool, qfeat, pos, fvf], axis=-1)   # (BB, 640)
    out = (jnp.sum(feat * dec_ref[0:1, :], axis=-1, keepdims=True)
           + dec_ref[1:2, 0:1])                                      # (BB, 1)

    # Emit lane-dense: (BB, 1) -> (1, BB) via identity-select + sublane reduce
    # (avoids a width-1 masked store and any reshape/transpose lowering).
    r_io = jax.lax.broadcasted_iota(jnp.int32, (bb, bb), 0)
    c_io = jax.lax.broadcasted_iota(jnp.int32, (bb, bb), 1)
    eye = (r_io == c_io).astype(f32)
    o_ref[...] = jnp.sum(out * eye, axis=0, keepdims=True).astype(o_ref.dtype)


# --------------------------------------------------------------------------
# Parameters (deterministic, from PRNGKey), packed into lane-dense slabs.
# --------------------------------------------------------------------------
def init_params(key, vox_elems):
    ks = jax.random.split(key, 13)

    def w(k, shape, scale=0.1):
        return scale * jax.random.normal(k, shape, dtype=jnp.float32)

    # TODO(synk): global/local encoder, attentionnet and decoder architectures
    # are constructor args not given in the reference; synthetic per-point MLPs
    # / linear heads with matching interfaces are used.
    ge_w, ge_b = w(ks[0], (3, 128)), w(ks[1], (1, 128))
    le_w, le_b = w(ks[2], (3, 128)), w(ks[3], (1, 128))

    # position_embding: Conv1d(3,128,1) + BatchNorm1d(128); eval-mode BN folded
    # into the conv weights/bias.  Default running stats assumed (mean=0, var=1,
    # gamma=1, beta=0) — re-fold here if real checkpoint stats are loaded.
    wp, bp = w(ks[4], (3, 128)), w(ks[5], (1, 128))
    bn_scale = 1.0 / jnp.sqrt(1.0 + BN_EPS)
    wp_f, bp_f = wp * bn_scale, bp * bn_scale

    wa = w(ks[6], (3, 128))
    ba = jnp.zeros((1, 128), jnp.float32)
    gvb = jnp.zeros((1, 128), jnp.float32)
    fvb = jnp.zeros((1, 128), jnp.float32)

    rows = jnp.concatenate(
        [ge_w, ge_b, le_w, le_b, wp_f, bp_f, wa, ba, gvb, fvb], axis=0)  # (18,128)
    slab = jnp.concatenate(
        [rows, jnp.zeros((_SLAB_ROWS - rows.shape[0], 128), jnp.float32)], axis=0)

    dec_w = jnp.concatenate([w(ks[7], (1, 128)),     # pc_voxel_feature
                             w(ks[8], (1, 128)),     # local_c (max-pooled)
                             w(ks[9], (1, 256)),     # query_feature = [attn, pos]
                             w(ks[10], (1, 128))],   # voxel_feature
                            axis=1)                  # (1, 640)
    dec_b = jnp.zeros((1, dec_w.shape[1]), jnp.float32)   # bias stored at [1, 0]

    return {
        # packed small weights/biases, bf16 (exactly one tiny constant DMA)
        "w_slab": slab.astype(jnp.bfloat16),                      # (24, 128)
        # big voxel weights, bf16 with f32 MXU accumulation
        "gc_vox_w": w(ks[11], (vox_elems, 128)).astype(jnp.bfloat16),
        "fc_vox_w": w(ks[12], (vox_elems, 128)).astype(jnp.bfloat16),
        # fused decoder weight/bias slab, f32
        "dec_slab": jnp.concatenate([dec_w, dec_b], axis=0),      # (2, 640)
    }


# --------------------------------------------------------------------------
# Full forward pass (mirrors OnetPlusPlus.forward) — ONE pallas_call.
# --------------------------------------------------------------------------
def onet_plus_plus_forward(params, pc_voxel, global_pc, local_pc, query, voxel,
                           *, block_b=8):
    b, n, _ = global_pc.shape
    m = local_pc.shape[1]
    assert n >= K_NEIGHBORS
    assert pl.next_power_of_2(n) <= (1 << 20)   # knn index bits must fit mantissa

    bb = max(8, block_b - block_b % 8)          # sublane-aligned batch block
    pad = (-b) % bb
    nb = (b + pad) // bb

    def pad_b(x):
        if pad == 0:
            return x
        return jnp.pad(x, ((0, pad),) + ((0, 0),) * (x.ndim - 1))

    q2 = pad_b(query.reshape(b, 3))
    gpc = pad_b(global_pc)
    lpc = pad_b(local_pc)
    # Flatten + bf16-cast the voxel grids outside the kernel: halves their
    # per-step DMA bytes (the flatten matches the synthetic voxel-CNN stand-ins).
    gvox = pad_b(pc_voxel.reshape(b, -1).astype(jnp.bfloat16))
    fvox = pad_b(voxel.reshape(b, -1).astype(jnp.bfloat16))
    v = gvox.shape[1]
    assert params["gc_vox_w"].shape[0] == v and params["fc_vox_w"].shape[0] == v

    # Scoped-VMEM budget: the two (V, 128) bf16 voxel weight slabs are resident
    # for the whole grid; raise the limit only when they actually need it,
    # staying under v7x's 64 MiB physical VMEM.
    # TODO(synk): for very large V, add a reduction grid axis over V marked
    # "arbitrary" with an f32 accumulator instead of loading (V, 128) whole.
    resident = 2 * v * 128 * 2 + 4 * bb * v * 2 + (2 << 20)
    cp_kwargs = dict(dimension_semantics=("parallel",))
    # TODO(synk): on v7x, pltpu.CORE_PARALLEL on this batch axis engages both
    # TensorCores; kept "parallel" here for portability across v5e/v6e/v7x.
    if resident > (16 << 20):
        cp_kwargs["vmem_limit_bytes"] = min(2 * resident, 56 << 20)

    out3 = pl.pallas_call(
        _fused_onet_kernel,
        out_shape=jax.ShapeDtypeStruct((nb, 1, bb), jnp.float32),
        grid_spec=pltpu.PrefetchScalarGridSpec(
            num_scalar_prefetch=0,
            grid=(nb,),
            in_specs=[
                pl.BlockSpec((bb, 3), lambda i: (i, 0)),          # query
                pl.BlockSpec((bb, n, 3), lambda i: (i, 0, 0)),    # global_pc
                pl.BlockSpec((bb, m, 3), lambda i: (i, 0, 0)),    # local_pc
                pl.BlockSpec((bb, v), lambda i: (i, 0)),          # pc_voxel flat
                pl.BlockSpec((bb, v), lambda i: (i, 0)),          # voxel flat
                # weights: constant block index -> DMA'd once across the grid
                pl.BlockSpec(params["w_slab"].shape, lambda i: (0, 0)),
                pl.BlockSpec((v, 128), lambda i: (0, 0)),
                pl.BlockSpec((v, 128), lambda i: (0, 0)),
                pl.BlockSpec(params["dec_slab"].shape, lambda i: (0, 0)),
            ],
            out_specs=pl.BlockSpec((None, 1, bb), lambda i: (i, 0, 0)),
            scratch_shapes=[pltpu.VMEM((bb, K_NEIGHBORS, n), jnp.float32)],
        ),
        compiler_params=pltpu.CompilerParams(**cp_kwargs),
    )(q2, gpc, lpc, gvox, fvox,
      params["w_slab"], params["gc_vox_w"], params["fc_vox_w"], params["dec_slab"])

    return out3.reshape(nb * bb)[:b].reshape(b, 1)


if __name__ == "__main__":
    key = jax.random.PRNGKey(0)
    kp, k1, k2, k3, k4, k5 = jax.random.split(key, 6)

    B, N, M = 16, 64, 32
    D = H = W = 8
    C_VOX = 1

    params = init_params(kp, vox_elems=D * H * W * C_VOX)

    global_pc = jax.random.normal(k1, (B, N, 3), jnp.float32)
    local_pc = jax.random.normal(k2, (B, M, 3), jnp.float32)
    query = jax.random.normal(k3, (B, 1, 3), jnp.float32)    # one query point per batch
    pc_voxel = jax.random.normal(k4, (B, D, H, W, C_VOX), jnp.float32)
    voxel = jax.random.normal(k5, (B, D, H, W, C_VOX), jnp.float32)

    out = jax.jit(onet_plus_plus_forward)(params, pc_voxel, global_pc, local_pc,
                                          query, voxel)
    jax.block_until_ready(out)
    assert out.shape == (B, 1) and out.dtype == jnp.float32
    assert bool(jnp.all(jnp.isfinite(out)))
    print("KERNEL_OK")
</pallas_src>

<mosaic_0001>
module attributes {stable_mosaic.version = 11 : i64} {
  func.func @_fused_onet_kernel(%arg0: i32, %arg1: memref<8x3xf32, #tpu.memory_space<vmem>>, %arg2: memref<8x64x3xf32, #tpu.memory_space<vmem>>, %arg3: memref<8x32x3xf32, #tpu.memory_space<vmem>>, %arg4: memref<8x512xbf16, #tpu.memory_space<vmem>>, %arg5: memref<8x512xbf16, #tpu.memory_space<vmem>>, %arg6: memref<24x128xbf16, #tpu.memory_space<vmem>>, %arg7: memref<512x128xbf16, #tpu.memory_space<vmem>>, %arg8: memref<512x128xbf16, #tpu.memory_space<vmem>>, %arg9: memref<2x640xf32, #tpu.memory_space<vmem>>, %arg10: memref<1x1x8xf32, #tpu.memory_space<vmem>>, %arg11: memref<8x16x64xf32, #tpu.memory_space<vmem>>) attributes {dimension_semantics = [#tpu.dimension_semantics<parallel>], iteration_bounds = array<i64: 2>, scalar_prefetch = 0 : i64, scratch_operands = 1 : i64, tpu.core_type = #tpu.core_type<tc>, window_params = [{transform_indices = @transform_0, window_bounds = array<i64: 8, 3>}, {transform_indices = @transform_1, window_bounds = array<i64: 8, 64, 3>}, {transform_indices = @transform_2, window_bounds = array<i64: 8, 32, 3>}, {transform_indices = @transform_3, window_bounds = array<i64: 8, 512>}, {transform_indices = @transform_4, window_bounds = array<i64: 8, 512>}, {pipeline_mode = #tpu.pipeline_mode<synchronous>, transform_indices = @transform_5, window_bounds = array<i64: 24, 128>}, {pipeline_mode = #tpu.pipeline_mode<synchronous>, transform_indices = @transform_6, window_bounds = array<i64: 512, 128>}, {pipeline_mode = #tpu.pipeline_mode<synchronous>, transform_indices = @transform_7, window_bounds = array<i64: 512, 128>}, {pipeline_mode = #tpu.pipeline_mode<synchronous>, transform_indices = @transform_8, window_bounds = array<i64: 2, 640>}, {transform_indices = @transform_9, window_bounds = array<i64: 1, 1, 8>}]} {
    %c0 = arith.constant 0 : index
    %c0_0 = arith.constant 0 : index
    %0 = vector.load %arg1[%c0, %c0_0] : memref<8x3xf32, #tpu.memory_space<vmem>>, vector<8x3xf32>
    %c0_1 = arith.constant 0 : index
    %c0_2 = arith.constant 0 : index
    %c0_3 = arith.constant 0 : index
    %1 = vector.load %arg2[%c0_1, %c0_2, %c0_3] : memref<8x64x3xf32, #tpu.memory_space<vmem>>, vector<8x64x3xf32>
    %2 = vector.shape_cast %1 : vector<8x64x3xf32> to vector<512x3xf32>
    %3 = arith.truncf %2 : vector<512x3xf32> to vector<512x3xbf16>
    %c0_4 = arith.constant 0 : index
    %c0_5 = arith.constant 0 : index
    %4 = vector.load %arg6[%c0_4, %c0_5] : memref<24x128xbf16, #tpu.memory_space<vmem>>, vector<3x128xbf16>
    %cst = arith.constant dense<0.000000e+00> : vector<512x128xf32>
    %5 = tpu.matmul %3, %4, %cst {dimension_numbers = #tpu.dot_dimension_numbers<[1], [0], [0], [1], [0, 0, 1, 1], [], []>} : vector<512x3xbf16>, vector<3x128xbf16>, vector<512x128xf32> -> vector<512x128xf32>
    %c3 = arith.constant 3 : index
    %c0_6 = arith.constant 0 : index
    %6 = vector.load %arg6[%c3, %c0_6] : memref<24x128xbf16, #tpu.memory_space<vmem>>, vector<1x128xbf16>
    %7 = arith.extf %6 : vector<1x128xbf16> to vector<1x128xf32>
    %8 = vector.broadcast %7 : vector<1x128xf32> to vector<512x128xf32>
    %9 = arith.addf %5, %8 : vector<512x128xf32>
    %cst_7 = arith.constant 0.000000e+00 : f32
    %10 = vector.broadcast %cst_7 : f32 to vector<512x128xf32>
    %11 = arith.cmpf ogt, %9, %10 : vector<512x128xf32>
    %cst_8 = arith.constant 2.000000e-01 : f32
    %12 = vector.broadcast %cst_8 : f32 to vector<512x128xf32>
    %13 = arith.mulf %12, %9 : vector<512x128xf32>
    %14 = arith.select %11, %9, %13 : vector<512x128xi1>, vector<512x128xf32>
    %15 = vector.shape_cast %14 : vector<512x128xf32> to vector<8x64x128xf32>
    %16 = vector.shape_cast %0 : vector<8x3xf32> to vector<8x1x3xf32>
    %17 = vector.broadcast %16 : vector<8x1x3xf32> to vector<8x64x3xf32>
    %18 = arith.subf %1, %17 : vector<8x64x3xf32>
    %19 = arith.mulf %18, %18 : vector<8x64x3xf32>
    %cst_9 = arith.constant dense<0.000000e+00> : vector<8x64xf32>
    %20 = vector.multi_reduction <add>, %19, %cst_9 [2] : vector<8x64x3xf32> to vector<8x64xf32>
    %21 = tpu.iota {dimensions = array<i32: 1>} : vector<8x64xi32>
    %cst_10 = arith.constant 0.000000e+00 : f32
    %22 = vector.broadcast %cst_10 : f32 to vector<8x64xf32>
    %23 = arith.maximumf %20, %22 : vector<8x64xf32>
    %24 = tpu.bitcast %23 : vector<8x64xf32> -> vector<8x64xi32>
    %c-64_i32 = arith.constant -64 : i32
    %25 = vector.broadcast %c-64_i32 : i32 to vector<8x64xi32>
    %26 = arith.andi %24, %25 : vector<8x64xi32>
    %27 = arith.ori %26, %21 : vector<8x64xi32>
    %28 = tpu.bitcast %27 : vector<8x64xi32> -> vector<8x64xf32>
    %cst_11 = arith.constant dense<0x7F800000> : vector<8xf32>
    %29 = vector.multi_reduction <minimumf>, %28, %cst_11 [1] : vector<8x64xf32> to vector<8xf32>
    %30 = vector.shape_cast %29 : vector<8xf32> to vector<8x1xf32>
    %31 = tpu.bitcast %30 : vector<8x1xf32> -> vector<8x1xi32>
    %c63_i32 = arith.constant 63 : i32
    %32 = vector.broadcast %c63_i32 : i32 to vector<8x1xi32>
    %33 = arith.andi %31, %32 : vector<8x1xi32>
    %34 = vector.broadcast %33 : vector<8x1xi32> to vector<8x64xi32>
    %35 = arith.cmpi eq, %21, %34 : vector<8x64xi32>
    %36 = arith.extui %35 : vector<8x64xi1> to vector<8x64xi32>
    %37 = arith.sitofp %36 : vector<8x64xi32> to vector<8x64xf32>
    %38 = vector.shape_cast %37 : vector<8x64xf32> to vector<8x1x64xf32>
    %c0_12 = arith.constant 0 : index
    %c0_13 = arith.constant 0 : index
    %c0_14 = arith.constant 0 : index
    %39 = vector.load %arg11[%c0_12, %c0_13, %c0_14] : memref<8x16x64xf32, #tpu.memory_space<vmem>>, vector<8x1x64xf32>
    tpu.vector_store %arg11[%c0_12, %c0_13, %c0_14], %38 {strides = array<i32>} : memref<8x16x64xf32, #tpu.memory_space<vmem>>, vector<8x1x64xf32>,
    %cst_15 = arith.constant 3.40282347E+38 : f32
    %40 = vector.broadcast %cst_15 : f32 to vector<8x64xf32>
    %41 = arith.select %35, %40, %28 : vector<8x64xi1>, vector<8x64xf32>
    %cst_16 = arith.constant dense<0x7F800000> : vector<8xf32>
    %42 = vector.multi_reduction <minimumf>, %41, %cst_16 [1] : vector<8x64xf32> to vector<8xf32>
    %43 = vector.shape_cast %42 : vector<8xf32> to vector<8x1xf32>
    %44 = tpu.bitcast %43 : vector<8x1xf32> -> vector<8x1xi32>
    %c63_i32_17 = arith.constant 63 : i32
    %45 = vector.broadcast %c63_i32_17 : i32 to vector<8x1xi32>
    %46 = arith.andi %44, %45 : vector<8x1xi32>
    %47 = vector.broadcast %46 : vector<8x1xi32> to vector<8x64xi32>
    %48 = arith.cmpi eq, %21, %47 : vector<8x64xi32>
    %49 = arith.extui %48 : vector<8x64xi1> to vector<8x64xi32>
    %50 = arith.sitofp %49 : vector<8x64xi32> to vector<8x64xf32>
    %51 = vector.shape_cast %50 : vector<8x64xf32> to vector<8x1x64xf32>
    %c0_18 = arith.constant 0 : index
    %c1 = arith.constant 1 : index
    %c0_19 = arith.constant 0 : index
    %52 = vector.load %arg11[%c0_18, %c1, %c0_19] : memref<8x16x64xf32, #tpu.memory_space<vmem>>, vector<8x1x64xf32>
    tpu.vector_store %arg11[%c0_18, %c1, %c0_19], %51 {strides = array<i32>} : memref<8x16x64xf32, #tpu.memory_space<vmem>>, vector<8x1x64xf32>,
    %cst_20 = arith.constant 3.40282347E+38 : f32
    %53 = vector.broadcast %cst_20 : f32 to vector<8x64xf32>
    %54 = arith.select %48, %53, %41 : vector<8x64xi1>, vector<8x64xf32>
    %cst_21 = arith.constant dense<0x7F800000> : vector<8xf32>
    %55 = vector.multi_reduction <minimumf>, %54, %cst_21 [1] : vector<8x64xf32> to vector<8xf32>
    %56 = vector.shape_cast %55 : vector<8xf32> to vector<8x1xf32>
    %57 = tpu.bitcast %56 : vector<8x1xf32> -> vector<8x1xi32>
    %c63_i32_22 = arith.constant 63 : i32
    %58 = vector.broadcast %c63_i32_22 : i32 to vector<8x1xi32>
    %59 = arith.andi %57, %58 : vector<8x1xi32>
    %60 = vector.broadcast %59 : vector<8x1xi32> to vector<8x64xi32>
    %61 = arith.cmpi eq, %21, %60 : vector<8x64xi32>
    %62 = arith.extui %61 : vector<8x64xi1> to vector<8x64xi32>
    %63 = arith.sitofp %62 : vector<8x64xi32> to vector<8x64xf32>
    %64 = vector.shape_cast %63 : vector<8x64xf32> to vector<8x1x64xf32>
    %c0_23 = arith.constant 0 : index
    %c2 = arith.constant 2 : index
    %c0_24 = arith.constant 0 : index
    %65 = vector.load %arg11[%c0_23, %c2, %c0_24] : memref<8x16x64xf32, #tpu.memory_space<vmem>>, vector<8x1x64xf32>
    tpu.vector_store %arg11[%c0_23, %c2, %c0_24], %64 {strides = array<i32>} : memref<8x16x64xf32, #tpu.memory_space<vmem>>, vector<8x1x64xf32>,
    %cst_25 = arith.constant 3.40282347E+38 : f32
    %66 = vector.broadcast %cst_25 : f32 to vector<8x64xf32>
    %67 = arith.select %61, %66, %54 : vector<8x64xi1>, vector<8x64xf32>
    %cst_26 = arith.constant dense<0x7F800000> : vector<8xf32>
    %68 = vector.multi_reduction <minimumf>, %67, %cst_26 [1] : vector<8x64xf32> to vector<8xf32>
    %69 = vector.shape_cast %68 : vector<8xf32> to vector<8x1xf32>
    %70 = tpu.bitcast %69 : vector<8x1xf32> -> vector<8x1xi32>
    %c63_i32_27 = arith.constant 63 : i32
    %71 = vector.broadcast %c63_i32_27 : i32 to vector<8x1xi32>
    %72 = arith.andi %70, %71 : vector<8x1xi32>
    %73 = vector.broadcast %72 : vector<8x1xi32> to vector<8x64xi32>
    %74 = arith.cmpi eq, %21, %73 : vector<8x64xi32>
    %75 = arith.extui %74 : vector<8x64xi1> to vector<8x64xi32>
    %76 = arith.sitofp %75 : vector<8x64xi32> to vector<8x64xf32>
    %77 = vector.shape_cast %76 : vector<8x64xf32> to vector<8x1x64xf32>
    %c0_28 = arith.constant 0 : index
    %c3_29 = arith.constant 3 : index
    %c0_30 = arith.constant 0 : index
    %78 = vector.load %arg11[%c0_28, %c3_29, %c0_30] : memref<8x16x64xf32, #tpu.memory_space<vmem>>, vector<8x1x64xf32>
    tpu.vector_store %arg11[%c0_28, %c3_29, %c0_30], %77 {strides = array<i32>} : memref<8x16x64xf32, #tpu.memory_space<vmem>>, vector<8x1x64xf32>,
    %cst_31 = arith.constant 3.40282347E+38 : f32
    %79 = vector.broadcast %cst_31 : f32 to vector<8x64xf32>
    %80 = arith.select %74, %79, %67 : vector<8x64xi1>, vector<8x64xf32>
    %cst_32 = arith.constant dense<0x7F800000> : vector<8xf32>
    %81 = vector.multi_reduction <minimumf>, %80, %cst_32 [1] : vector<8x64xf32> to vector<8xf32>
    %82 = vector.shape_cast %81 : vector<8xf32> to vector<8x1xf32>
    %83 = tpu.bitcast %82 : vector<8x1xf32> -> vector<8x1xi32>
    %c63_i32_33 = arith.constant 63 : i32
    %84 = vector.broadcast %c63_i32_33 : i32 to vector<8x1xi32>
    %85 = arith.andi %83, %84 : vector<8x1xi32>
    %86 = vector.broadcast %85 : vector<8x1xi32> to vector<8x64xi32>
    %87 = arith.cmpi eq, %21, %86 : vector<8x64xi32>
    %88 = arith.extui %87 : vector<8x64xi1> to vector<8x64xi32>
    %89 = arith.sitofp %88 : vector<8x64xi32> to vector<8x64xf32>
    %90 = vector.shape_cast %89 : vector<8x64xf32> to vector<8x1x64xf32>
    %c0_34 = arith.constant 0 : index
    %c4 = arith.constant 4 : index
    %c0_35 = arith.constant 0 : index
    %91 = vector.load %arg11[%c0_34, %c4, %c0_35] : memref<8x16x64xf32, #tpu.memory_space<vmem>>, vector<8x1x64xf32>
    tpu.vector_store %arg11[%c0_34, %c4, %c0_35], %90 {strides = array<i32>} : memref<8x16x64xf32, #tpu.memory_space<vmem>>, vector<8x1x64xf32>,
    %cst_36 = arith.constant 3.40282347E+38 : f32
    %92 = vector.broadcast %cst_36 : f32 to vector<8x64xf32>
    %93 = arith.select %87, %92, %80 : vector<8x64xi1>, vector<8x64xf32>
    %cst_37 = arith.constant dense<0x7F800000> : vector<8xf32>
    %94 = vector.multi_reduction <minimumf>, %93, %cst_37 [1] : vector<8x64xf32> to vector<8xf32>
    %95 = vector.shape_cast %94 : vector<8xf32> to vector<8x1xf32>
    %96 = tpu.bitcast %95 : vector<8x1xf32> -> vector<8x1xi32>
    %c63_i32_38 = arith.constant 63 : i32
    %97 = vector.broadcast %c63_i32_38 : i32 to vector<8x1xi32>
    %98 = arith.andi %96, %97 : vector<8x1xi32>
    %99 = vector.broadcast %98 : vector<8x1xi32> to vector<8x64xi32>
    %100 = arith.cmpi eq, %21, %99 : vector<8x64xi32>
    %101 = arith.extui %100 : vector<8x64xi1> to vector<8x64xi32>
    %102 = arith.sitofp %101 : vector<8x64xi32> to vector<8x64xf32>
    %103 = vector.shape_cast %102 : vector<8x64xf32> to vector<8x1x64xf32>
    %c0_39 = arith.constant 0 : index
    %c5 = arith.constant 5 : index
    %c0_40 = arith.constant 0 : index
    %104 = vector.load %arg11[%c0_39, %c5, %c0_40] : memref<8x16x64xf32, #tpu.memory_space<vmem>>, vector<8x1x64xf32>
    tpu.vector_store %arg11[%c0_39, %c5, %c0_40], %103 {strides = array<i32>} : memref<8x16x64xf32, #tpu.memory_space<vmem>>, vector<8x1x64xf32>,
    %cst_41 = arith.constant 3.40282347E+38 : f32
    %105 = vector.broadcast %cst_41 : f32 to vector<8x64xf32>
    %106 = arith.select %100, %105, %93 : vector<8x64xi1>, vector<8x64xf32>
    %cst_42 = arith.constant dense<0x7F800000> : vector<8xf32>
    %107 = vector.multi_reduction <minimumf>, %106, %cst_42 [1] : vector<8x64xf32> to vector<8xf32>
    %108 = vector.shape_cast %107 : vector<8xf32> to vector<8x1xf32>
    %109 = tpu.bitcast %108 : vector<8x1xf32> -> vector<8x1xi32>
    %c63_i32_43 = arith.constant 63 : i32
    %110 = vector.broadcast %c63_i32_43 : i32 to vector<8x1xi32>
    %111 = arith.andi %109, %110 : vector<8x1xi32>
    %112 = vector.broadcast %111 : vector<8x1xi32> to vector<8x64xi32>
    %113 = arith.cmpi eq, %21, %112 : vector<8x64xi32>
    %114 = arith.extui %113 : vector<8x64xi1> to vector<8x64xi32>
    %115 = arith.sitofp %114 : vector<8x64xi32> to vector<8x64xf32>
    %116 = vector.shape_cast %115 : vector<8x64xf32> to vector<8x1x64xf32>
    %c0_44 = arith.constant 0 : index
    %c6 = arith.constant 6 : index
    %c0_45 = arith.constant 0 : index
    %117 = vector.load %arg11[%c0_44, %c6, %c0_45] : memref<8x16x64xf32, #tpu.memory_space<vmem>>, vector<8x1x64xf32>
    tpu.vector_store %arg11[%c0_44, %c6, %c0_45], %116 {strides = array<i32>} : memref<8x16x64xf32, #tpu.memory_space<vmem>>, vector<8x1x64xf32>,
    %cst_46 = arith.constant 3.40282347E+38 : f32
    %118 = vector.broadcast %cst_46 : f32 to vector<8x64xf32>
    %119 = arith.select %113, %118, %106 : vector<8x64xi1>, vector<8x64xf32>
    %cst_47 = arith.constant dense<0x7F800000> : vector<8xf32>
    %120 = vector.multi_reduction <minimumf>, %119, %cst_47 [1] : vector<8x64xf32> to vector<8xf32>
    %121 = vector.shape_cast %120 : vector<8xf32> to vector<8x1xf32>
    %122 = tpu.bitcast %121 : vector<8x1xf32> -> vector<8x1xi32>
    %c63_i32_48 = arith.constant 63 : i32
    %123 = vector.broadcast %c63_i32_48 : i32 to vector<8x1xi32>
    %124 = arith.andi %122, %123 : vector<8x1xi32>
    %125 = vector.broadcast %124 : vector<8x1xi32> to vector<8x64xi32>
    %126 = arith.cmpi eq, %21, %125 : vector<8x64xi32>
    %127 = arith.extui %126 : vector<8x64xi1> to vector<8x64xi32>
    %128 = arith.sitofp %127 : vector<8x64xi32> to vector<8x64xf32>
    %129 = vector.shape_cast %128 : vector<8x64xf32> to vector<8x1x64xf32>
    %c0_49 = arith.constant 0 : index
    %c7 = arith.constant 7 : index
    %c0_50 = arith.constant 0 : index
    %130 = vector.load %arg11[%c0_49, %c7, %c0_50] : memref<8x16x64xf32, #tpu.memory_space<vmem>>, vector<8x1x64xf32>
    tpu.vector_store %arg11[%c0_49, %c7, %c0_50], %129 {strides = array<i32>} : memref<8x16x64xf32, #tpu.memory_space<vmem>>, vector<8x1x64xf32>,
    %cst_51 = arith.constant 3.40282347E+38 : f32
    %131 = vector.broadcast %cst_51 : f32 to vector<8x64xf32>
    %132 = arith.select %126, %131, %119 : vector<8x64xi1>, vector<8x64xf32>
    %cst_52 = arith.constant dense<0x7F800000> : vector<8xf32>
    %133 = vector.multi_reduction <minimumf>, %132, %cst_52 [1] : vector<8x64xf32> to vector<8xf32>
    %134 = vector.shape_cast %133 : vector<8xf32> to vector<8x1xf32>
    %135 = tpu.bitcast %134 : vector<8x1xf32> -> vector<8x1xi32>
    %c63_i32_53 = arith.constant 63 : i32
    %136 = vector.broadcast %c63_i32_53 : i32 to vector<8x1xi32>
    %137 = arith.andi %135, %136 : vector<8x1xi32>
    %138 = vector.broadcast %137 : vector<8x1xi32> to vector<8x64xi32>
    %139 = arith.cmpi eq, %21, %138 : vector<8x64xi32>
    %140 = arith.extui %139 : vector<8x64xi1> to vector<8x64xi32>
    %141 = arith.sitofp %140 : vector<8x64xi32> to vector<8x64xf32>
    %142 = vector.shape_cast %141 : vector<8x64xf32> to vector<8x1x64xf32>
    %c0_54 = arith.constant 0 : index
    %c8 = arith.constant 8 : index
    %c0_55 = arith.constant 0 : index
    %143 = vector.load %arg11[%c0_54, %c8, %c0_55] : memref<8x16x64xf32, #tpu.memory_space<vmem>>, vector<8x1x64xf32>
    tpu.vector_store %arg11[%c0_54, %c8, %c0_55], %142 {strides = array<i32>} : memref<8x16x64xf32, #tpu.memory_space<vmem>>, vector<8x1x64xf32>,
    %cst_56 = arith.constant 3.40282347E+38 : f32
    %144 = vector.broadcast %cst_56 : f32 to vector<8x64xf32>
    %145 = arith.select %139, %144, %132 : vector<8x64xi1>, vector<8x64xf32>
    %cst_57 = arith.constant dense<0x7F800000> : vector<8xf32>
    %146 = vector.multi_reduction <minimumf>, %145, %cst_57 [1] : vector<8x64xf32> to vector<8xf32>
    %147 = vector.shape_cast %146 : vector<8xf32> to vector<8x1xf32>
    %148 = tpu.bitcast %147 : vector<8x1xf32> -> vector<8x1xi32>
    %c63_i32_58 = arith.constant 63 : i32
    %149 = vector.broadcast %c63_i32_58 : i32 to vector<8x1xi32>
    %150 = arith.andi %148, %149 : vector<8x1xi32>
    %151 = vector.broadcast %150 : vector<8x1xi32> to vector<8x64xi32>
    %152 = arith.cmpi eq, %21, %151 : vector<8x64xi32>
    %153 = arith.extui %152 : vector<8x64xi1> to vector<8x64xi32>
    %154 = arith.sitofp %153 : vector<8x64xi32> to vector<8x64xf32>
    %155 = vector.shape_cast %154 : vector<8x64xf32> to vector<8x1x64xf32>
    %c0_59 = arith.constant 0 : index
    %c9 = arith.constant 9 : index
    %c0_60 = arith.constant 0 : index
    %156 = vector.load %arg11[%c0_59, %c9, %c0_60] : memref<8x16x64xf32, #tpu.memory_space<vmem>>, vector<8x1x64xf32>
    tpu.vector_store %arg11[%c0_59, %c9, %c0_60], %155 {strides = array<i32>} : memref<8x16x64xf32, #tpu.memory_space<vmem>>, vector<8x1x64xf32>,
    %cst_61 = arith.constant 3.40282347E+38 : f32
    %157 = vector.broadcast %cst_61 : f32 to vector<8x64xf32>
    %158 = arith.select %152, %157, %145 : vector<8x64xi1>, vector<8x64xf32>
    %cst_62 = arith.constant dense<0x7F800000> : vector<8xf32>
    %159 = vector.multi_reduction <minimumf>, %158, %cst_62 [1] : vector<8x64xf32> to vector<8xf32>
    %160 = vector.shape_cast %159 : vector<8xf32> to vector<8x1xf32>
    %161 = tpu.bitcast %160 : vector<8x1xf32> -> vector<8x1xi32>
    %c63_i32_63 = arith.constant 63 : i32
    %162 = vector.broadcast %c63_i32_63 : i32 to vector<8x1xi32>
    %163 = arith.andi %161, %162 : vector<8x1xi32>
    %164 = vector.broadcast %163 : vector<8x1xi32> to vector<8x64xi32>
    %165 = arith.cmpi eq, %21, %164 : vector<8x64xi32>
    %166 = arith.extui %165 : vector<8x64xi1> to vector<8x64xi32>
    %167 = arith.sitofp %166 : vector<8x64xi32> to vector<8x64xf32>
    %168 = vector.shape_cast %167 : vector<8x64xf32> to vector<8x1x64xf32>
    %c0_64 = arith.constant 0 : index
    %c10 = arith.constant 10 : index
    %c0_65 = arith.constant 0 : index
    %169 = vector.load %arg11[%c0_64, %c10, %c0_65] : memref<8x16x64xf32, #tpu.memory_space<vmem>>, vector<8x1x64xf32>
    tpu.vector_store %arg11[%c0_64, %c10, %c0_65], %168 {strides = array<i32>} : memref<8x16x64xf32, #tpu.memory_space<vmem>>, vector<8x1x64xf32>,
    %cst_66 = arith.constant 3.40282347E+38 : f32
    %170 = vector.broadcast %cst_66 : f32 to vector<8x64xf32>
    %171 = arith.select %165, %170, %158 : vector<8x64xi1>, vector<8x64xf32>
    %cst_67 = arith.constant dense<0x7F800000> : vector<8xf32>
    %172 = vector.multi_reduction <minimumf>, %171, %cst_67 [1] : vector<8x64xf32> to vector<8xf32>
    %173 = vector.shape_cast %172 : vector<8xf32> to vector<8x1xf32>
    %174 = tpu.bitcast %173 : vector<8x1xf32> -> vector<8x1xi32>
    %c63_i32_68 = arith.constant 63 : i32
    %175 = vector.broadcast %c63_i32_68 : i32 to vector<8x1xi32>
    %176 = arith.andi %174, %175 : vector<8x1xi32>
    %177 = vector.broadcast %176 : vector<8x1xi32> to vector<8x64xi32>
    %178 = arith.cmpi eq, %21, %177 : vector<8x64xi32>
    %179 = arith.extui %178 : vector<8x64xi1> to vector<8x64xi32>
    %180 = arith.sitofp %179 : vector<8x64xi32> to vector<8x64xf32>
    %181 = vector.shape_cast %180 : vector<8x64xf32> to vector<8x1x64xf32>
    %c0_69 = arith.constant 0 : index
    %c11 = arith.constant 11 : index
    %c0_70 = arith.constant 0 : index
    %182 = vector.load %arg11[%c0_69, %c11, %c0_70] : memref<8x16x64xf32, #tpu.memory_space<vmem>>, vector<8x1x64xf32>
    tpu.vector_store %arg11[%c0_69, %c11, %c0_70], %181 {strides = array<i32>} : memref<8x16x64xf32, #tpu.memory_space<vmem>>, vector<8x1x64xf32>,
    %cst_71 = arith.constant 3.40282347E+38 : f32
    %183 = vector.broadcast %cst_71 : f32 to vector<8x64xf32>
    %184 = arith.select %178, %183, %171 : vector<8x64xi1>, vector<8x64xf32>
    %cst_72 = arith.constant dense<0x7F800000> : vector<8xf32>
    %185 = vector.multi_reduction <minimumf>, %184, %cst_72 [1] : vector<8x64xf32> to vector<8xf32>
    %186 = vector.shape_cast %185 : vector<8xf32> to vector<8x1xf32>
    %187 = tpu.bitcast %186 : vector<8x1xf32> -> vector<8x1xi32>
    %c63_i32_73 = arith.constant 63 : i32
    %188 = vector.broadcast %c63_i32_73 : i32 to vector<8x1xi32>
    %189 = arith.andi %187, %188 : vector<8x1xi32>
    %190 = vector.broadcast %189 : vector<8x1xi32> to vector<8x64xi32>
    %191 = arith.cmpi eq, %21, %190 : vector<8x64xi32>
    %192 = arith.extui %191 : vector<8x64xi1> to vector<8x64xi32>
    %193 = arith.sitofp %192 : vector<8x64xi32> to vector<8x64xf32>
    %194 = vector.shape_cast %193 : vector<8x64xf32> to vector<8x1x64xf32>
    %c0_74 = arith.constant 0 : index
    %c12 = arith.constant 12 : index
    %c0_75 = arith.constant 0 : index
    %195 = vector.load %arg11[%c0_74, %c12, %c0_75] : memref<8x16x64xf32, #tpu.memory_space<vmem>>, vector<8x1x64xf32>
    tpu.vector_store %arg11[%c0_74, %c12, %c0_75], %194 {strides = array<i32>} : memref<8x16x64xf32, #tpu.memory_space<vmem>>, vector<8x1x64xf32>,
    %cst_76 = arith.constant 3.40282347E+38 : f32
    %196 = vector.broadcast %cst_76 : f32 to vector<8x64xf32>
    %197 = arith.select %191, %196, %184 : vector<8x64xi1>, vector<8x64xf32>
    %cst_77 = arith.constant dense<0x7F800000> : vector<8xf32>
    %198 = vector.multi_reduction <minimumf>, %197, %cst_77 [1] : vector<8x64xf32> to vector<8xf32>
    %199 = vector.shape_cast %198 : vector<8xf32> to vector<8x1xf32>
    %200 = tpu.bitcast %199 : vector<8x1xf32> -> vector<8x1xi32>
    %c63_i32_78 = arith.constant 63 : i32
    %201 = vector.broadcast %c63_i32_78 : i32 to vector<8x1xi32>
    %202 = arith.andi %200, %201 : vector<8x1xi32>
    %203 = vector.broadcast %202 : vector<8x1xi32> to vector<8x64xi32>
    %204 = arith.cmpi eq, %21, %203 : vector<8x64xi32>
    %205 = arith.extui %204 : vector<8x64xi1> to vector<8x64xi32>
    %206 = arith.sitofp %205 : vector<8x64xi32> to vector<8x64xf32>
    %207 = vector.shape_cast %206 : vector<8x64xf32> to vector<8x1x64xf32>
    %c0_79 = arith.constant 0 : index
    %c13 = arith.constant 13 : index
    %c0_80 = arith.constant 0 : index
    %208 = vector.load %arg11[%c0_79, %c13, %c0_80] : memref<8x16x64xf32, #tpu.memory_space<vmem>>, vector<8x1x64xf32>
    tpu.vector_store %arg11[%c0_79, %c13, %c0_80], %207 {strides = array<i32>} : memref<8x16x64xf32, #tpu.memory_space<vmem>>, vector<8x1x64xf32>,
    %cst_81 = arith.constant 3.40282347E+38 : f32
    %209 = vector.broadcast %cst_81 : f32 to vector<8x64xf32>
    %210 = arith.select %204, %209, %197 : vector<8x64xi1>, vector<8x64xf32>
    %cst_82 = arith.constant dense<0x7F800000> : vector<8xf32>
    %211 = vector.multi_reduction <minimumf>, %210, %cst_82 [1] : vector<8x64xf32> to vector<8xf32>
    %212 = vector.shape_cast %211 : vector<8xf32> to vector<8x1xf32>
    %213 = tpu.bitcast %212 : vector<8x1xf32> -> vector<8x1xi32>
    %c63_i32_83 = arith.constant 63 : i32
    %214 = vector.broadcast %c63_i32_83 : i32 to vector<8x1xi32>
    %215 = arith.andi %213, %214 : vector<8x1xi32>
    %216 = vector.broadcast %215 : vector<8x1xi32> to vector<8x64xi32>
    %217 = arith.cmpi eq, %21, %216 : vector<8x64xi32>
    %218 = arith.extui %217 : vector<8x64xi1> to vector<8x64xi32>
    %219 = arith.sitofp %218 : vector<8x64xi32> to vector<8x64xf32>
    %220 = vector.shape_cast %219 : vector<8x64xf32> to vector<8x1x64xf32>
    %c0_84 = arith.constant 0 : index
    %c14 = arith.constant 14 : index
    %c0_85 = arith.constant 0 : index
    %221 = vector.load %arg11[%c0_84, %c14, %c0_85] : memref<8x16x64xf32, #tpu.memory_space<vmem>>, vector<8x1x64xf32>
    tpu.vector_store %arg11[%c0_84, %c14, %c0_85], %220 {strides = array<i32>} : memref<8x16x64xf32, #tpu.memory_space<vmem>>, vector<8x1x64xf32>,
    %cst_86 = arith.constant 3.40282347E+38 : f32
    %222 = vector.broadcast %cst_86 : f32 to vector<8x64xf32>
    %223 = arith.select %217, %222, %210 : vector<8x64xi1>, vector<8x64xf32>
    %cst_87 = arith.constant dense<0x7F800000> : vector<8xf32>
    %224 = vector.multi_reduction <minimumf>, %223, %cst_87 [1] : vector<8x64xf32> to vector<8xf32>
    %225 = vector.shape_cast %224 : vector<8xf32> to vector<8x1xf32>
    %226 = tpu.bitcast %225 : vector<8x1xf32> -> vector<8x1xi32>
    %c63_i32_88 = arith.constant 63 : i32
    %227 = vector.broadcast %c63_i32_88 : i32 to vector<8x1xi32>
    %228 = arith.andi %226, %227 : vector<8x1xi32>
    %229 = vector.broadcast %228 : vector<8x1xi32> to vector<8x64xi32>
    %230 = arith.cmpi eq, %21, %229 : vector<8x64xi32>
    %231 = arith.extui %230 : vector<8x64xi1> to vector<8x64xi32>
    %232 = arith.sitofp %231 : vector<8x64xi32> to vector<8x64xf32>
    %233 = vector.shape_cast %232 : vector<8x64xf32> to vector<8x1x64xf32>
    %c0_89 = arith.constant 0 : index
    %c15 = arith.constant 15 : index
    %c0_90 = arith.constant 0 : index
    %234 = vector.load %arg11[%c0_89, %c15, %c0_90] : memref<8x16x64xf32, #tpu.memory_space<vmem>>, vector<8x1x64xf32>
    tpu.vector_store %arg11[%c0_89, %c15, %c0_90], %233 {strides = array<i32>} : memref<8x16x64xf32, #tpu.memory_space<vmem>>, vector<8x1x64xf32>,
    %c0_91 = arith.constant 0 : index
    %c0_92 = arith.constant 0 : index
    %c0_93 = arith.constant 0 : index
    %235 = vector.load %arg11[%c0_91, %c0_92, %c0_93] : memref<8x16x64xf32, #tpu.memory_space<vmem>>, vector<8x16x64xf32>
    "tpu.trace_start"() <{level = 10 : i32, message = "bkn,bnc->bkc"}> : () -> ()
    %cst_94 = arith.constant dense<0.000000e+00> : vector<8x16x3xf32>
    %236 = tpu.matmul %235, %1, %cst_94 {dimension_numbers = #tpu.dot_dimension_numbers<[2], [1], [1], [2], [0, 0, 0, 1, 1, 2], [0], [0]>} : vector<8x16x64xf32>, vector<8x64x3xf32>, vector<8x16x3xf32> -> vector<8x16x3xf32>
    "tpu.trace_stop"() : () -> ()
    %237 = vector.shape_cast %0 : vector<8x3xf32> to vector<8x1x3xf32>
    %238 = vector.broadcast %237 : vector<8x1x3xf32> to vector<8x16x3xf32>
    %239 = arith.subf %238, %236 : vector<8x16x3xf32>
    %240 = arith.truncf %235 : vector<8x16x64xf32> to vector<8x16x64xbf16>
    %241 = arith.truncf %15 : vector<8x64x128xf32> to vector<8x64x128xbf16>
    "tpu.trace_start"() <{level = 10 : i32, message = "bkn,bnf->bkf"}> : () -> ()
    %cst_95 = arith.constant dense<0.000000e+00> : vector<8x16x128xf32>
    %242 = tpu.matmul %240, %241, %cst_95 {dimension_numbers = #tpu.dot_dimension_numbers<[2], [1], [1], [2], [0, 0, 0, 1, 1, 2], [0], [0]>} : vector<8x16x64xbf16>, vector<8x64x128xbf16>, vector<8x16x128xf32> -> vector<8x16x128xf32>
    "tpu.trace_stop"() : () -> ()
    %243 = arith.truncf %0 : vector<8x3xf32> to vector<8x3xbf16>
    %c8_96 = arith.constant 8 : index
    %c0_97 = arith.constant 0 : index
    %244 = vector.load %arg6[%c8_96, %c0_97] : memref<24x128xbf16, #tpu.memory_space<vmem>>, vector<3x128xbf16>
    %cst_98 = arith.constant dense<0.000000e+00> : vector<8x128xf32>
    %245 = tpu.matmul %243, %244, %cst_98 {dimension_numbers = #tpu.dot_dimension_numbers<[1], [0], [0], [1], [0, 0, 1, 1], [], []>} : vector<8x3xbf16>, vector<3x128xbf16>, vector<8x128xf32> -> vector<8x128xf32>
    %c11_99 = arith.constant 11 : index
    %c0_100 = arith.constant 0 : index
    %246 = vector.load %arg6[%c11_99, %c0_100] : memref<24x128xbf16, #tpu.memory_space<vmem>>, vector<1x128xbf16>
    %247 = arith.extf %246 : vector<1x128xbf16> to vector<1x128xf32>
    %248 = vector.broadcast %247 : vector<1x128xf32> to vector<8x128xf32>
    %249 = arith.addf %245, %248 : vector<8x128xf32>
    %cst_101 = arith.constant 0.000000e+00 : f32
    %250 = vector.broadcast %cst_101 : f32 to vector<8x128xf32>
    %251 = arith.cmpf ogt, %249, %250 : vector<8x128xf32>
    %cst_102 = arith.constant 2.000000e-01 : f32
    %252 = vector.broadcast %cst_102 : f32 to vector<8x128xf32>
    %253 = arith.mulf %252, %249 : vector<8x128xf32>
    %254 = arith.select %251, %249, %253 : vector<8x128xi1>, vector<8x128xf32>
    %255 = vector.shape_cast %239 : vector<8x16x3xf32> to vector<128x3xf32>
    %256 = arith.truncf %255 : vector<128x3xf32> to vector<128x3xbf16>
    %c12_103 = arith.constant 12 : index
    %c0_104 = arith.constant 0 : index
    %257 = vector.load %arg6[%c12_103, %c0_104] : memref<24x128xbf16, #tpu.memory_space<vmem>>, vector<3x128xbf16>
    %cst_105 = arith.constant dense<0.000000e+00> : vector<128x128xf32>
    %258 = tpu.matmul %256, %257, %cst_105 {dimension_numbers = #tpu.dot_dimension_numbers<[1], [0], [0], [1], [0, 0, 1, 1], [], []>} : vector<128x3xbf16>, vector<3x128xbf16>, vector<128x128xf32> -> vector<128x128xf32>
    %c15_106 = arith.constant 15 : index
    %c0_107 = arith.constant 0 : index
    %259 = vector.load %arg6[%c15_106, %c0_107] : memref<24x128xbf16, #tpu.memory_space<vmem>>, vector<1x128xbf16>
    %260 = arith.extf %259 : vector<1x128xbf16> to vector<1x128xf32>
    %261 = vector.broadcast %260 : vector<1x128xf32> to vector<128x128xf32>
    %262 = arith.addf %258, %261 : vector<128x128xf32>
    %cst_108 = arith.constant 0.000000e+00 : f32
    %263 = vector.broadcast %cst_108 : f32 to vector<128x128xf32>
    %264 = arith.cmpf ogt, %262, %263 : vector<128x128xf32>
    %cst_109 = arith.constant 2.000000e-01 : f32
    %265 = vector.broadcast %cst_109 : f32 to vector<128x128xf32>
    %266 = arith.mulf %265, %262 : vector<128x128xf32>
    %267 = arith.select %264, %262, %266 : vector<128x128xi1>, vector<128x128xf32>
    %268 = vector.shape_cast %267 : vector<128x128xf32> to vector<8x16x128xf32>
    %269 = arith.mulf %268, %242 : vector<8x16x128xf32>
    %cst_110 = arith.constant dense<0.000000e+00> : vector<8x16xf32>
    %270 = vector.multi_reduction <add>, %269, %cst_110 [2] : vector<8x16x128xf32> to vector<8x16xf32>
    %271 = vector.shape_cast %270 : vector<8x16xf32> to vector<8x16x1xf32>
    %cst_111 = arith.constant dense<0xFF800000> : vector<8x1xf32>
    %272 = vector.multi_reduction <maximumf>, %271, %cst_111 [1] : vector<8x16x1xf32> to vector<8x1xf32>
    %273 = vector.shape_cast %272 : vector<8x1xf32> to vector<8x1x1xf32>
    %274 = vector.broadcast %273 : vector<8x1x1xf32> to vector<8x16x1xf32>
    %275 = arith.subf %271, %274 : vector<8x16x1xf32>
    %276 = math.exp %275 : vector<8x16x1xf32>
    %cst_112 = arith.constant dense<0.000000e+00> : vector<8x1xf32>
    %277 = vector.multi_reduction <add>, %276, %cst_112 [1] : vector<8x16x1xf32> to vector<8x1xf32>
    %278 = vector.shape_cast %277 : vector<8x1xf32> to vector<8x1x1xf32>
    %279 = tpu.reciprocal %278 {approx = true} : vector<8x1x1xf32> -> vector<8x1x1xf32>
    %280 = vector.broadcast %279 : vector<8x1x1xf32> to vector<8x16x1xf32>
    %281 = arith.mulf %276, %280 : vector<8x16x1xf32>
    %282 = vector.broadcast %281 : vector<8x16x1xf32> to vector<8x16x128xf32>
    %283 = arith.mulf %282, %242 : vector<8x16x128xf32>
    %cst_113 = arith.constant dense<0.000000e+00> : vector<8x128xf32>
    %284 = vector.multi_reduction <add>, %283, %cst_113 [1] : vector<8x16x128xf32> to vector<8x128xf32>
    %c0_114 = arith.constant 0 : index
    %c0_115 = arith.constant 0 : index
    %c0_116 = arith.constant 0 : index
    %285 = vector.load %arg3[%c0_114, %c0_115, %c0_116] : memref<8x32x3xf32, #tpu.memory_space<vmem>>, vector<8x32x3xf32>
    %286 = vector.shape_cast %285 : vector<8x32x3xf32> to vector<256x3xf32>
    %287 = arith.truncf %286 : vector<256x3xf32> to vector<256x3xbf16>
    %c4_117 = arith.constant 4 : index
    %c0_118 = arith.constant 0 : index
    %288 = vector.load %arg6[%c4_117, %c0_118] : memref<24x128xbf16, #tpu.memory_space<vmem>>, vector<3x128xbf16>
    %cst_119 = arith.constant dense<0.000000e+00> : vector<256x128xf32>
    %289 = tpu.matmul %287, %288, %cst_119 {dimension_numbers = #tpu.dot_dimension_numbers<[1], [0], [0], [1], [0, 0, 1, 1], [], []>} : vector<256x3xbf16>, vector<3x128xbf16>, vector<256x128xf32> -> vector<256x128xf32>
    %c7_120 = arith.constant 7 : index
    %c0_121 = arith.constant 0 : index
    %290 = vector.load %arg6[%c7_120, %c0_121] : memref<24x128xbf16, #tpu.memory_space<vmem>>, vector<1x128xbf16>
    %291 = arith.extf %290 : vector<1x128xbf16> to vector<1x128xf32>
    %292 = vector.broadcast %291 : vector<1x128xf32> to vector<256x128xf32>
    %293 = arith.addf %289, %292 : vector<256x128xf32>
    %cst_122 = arith.constant 0.000000e+00 : f32
    %294 = vector.broadcast %cst_122 : f32 to vector<256x128xf32>
    %295 = arith.cmpf ogt, %293, %294 : vector<256x128xf32>
    %cst_123 = arith.constant 2.000000e-01 : f32
    %296 = vector.broadcast %cst_123 : f32 to vector<256x128xf32>
    %297 = arith.mulf %296, %293 : vector<256x128xf32>
    %298 = arith.select %295, %293, %297 : vector<256x128xi1>, vector<256x128xf32>
    %299 = vector.shape_cast %298 : vector<256x128xf32> to vector<8x32x128xf32>
    %cst_124 = arith.constant dense<0xFF800000> : vector<8x128xf32>
    %300 = vector.multi_reduction <maximumf>, %299, %cst_124 [1] : vector<8x32x128xf32> to vector<8x128xf32>
    %c0_125 = arith.constant 0 : index
    %c0_126 = arith.constant 0 : index
    %301 = vector.load %arg4[%c0_125, %c0_126] : memref<8x512xbf16, #tpu.memory_space<vmem>>, vector<8x512xbf16>
    %c0_127 = arith.constant 0 : index
    %c0_128 = arith.constant 0 : index
    %302 = vector.load %arg7[%c0_127, %c0_128] : memref<512x128xbf16, #tpu.memory_space<vmem>>, vector<512x128xbf16>
    %cst_129 = arith.constant dense<0.000000e+00> : vector<8x128xf32>
    %303 = tpu.matmul %301, %302, %cst_129 {dimension_numbers = #tpu.dot_dimension_numbers<[1], [0], [0], [1], [0, 0, 1, 1], [], []>} : vector<8x512xbf16>, vector<512x128xbf16>, vector<8x128xf32> -> vector<8x128xf32>
    %c16 = arith.constant 16 : index
    %c0_130 = arith.constant 0 : index
    %304 = vector.load %arg6[%c16, %c0_130] : memref<24x128xbf16, #tpu.memory_space<vmem>>, vector<1x128xbf16>
    %305 = arith.extf %304 : vector<1x128xbf16> to vector<1x128xf32>
    %306 = vector.broadcast %305 : vector<1x128xf32> to vector<8x128xf32>
    %307 = arith.addf %303, %306 : vector<8x128xf32>
    %cst_131 = arith.constant 0.000000e+00 : f32
    %308 = vector.broadcast %cst_131 : f32 to vector<8x128xf32>
    %309 = arith.cmpf ogt, %307, %308 : vector<8x128xf32>
    %cst_132 = arith.constant 2.000000e-01 : f32
    %310 = vector.broadcast %cst_132 : f32 to vector<8x128xf32>
    %311 = arith.mulf %310, %307 : vector<8x128xf32>
    %312 = arith.select %309, %307, %311 : vector<8x128xi1>, vector<8x128xf32>
    %c0_133 = arith.constant 0 : index
    %c0_134 = arith.constant 0 : index
    %313 = vector.load %arg5[%c0_133, %c0_134] : memref<8x512xbf16, #tpu.memory_space<vmem>>, vector<8x512xbf16>
    %c0_135 = arith.constant 0 : index
    %c0_136 = arith.constant 0 : index
    %314 = vector.load %arg8[%c0_135, %c0_136] : memref<512x128xbf16, #tpu.memory_space<vmem>>, vector<512x128xbf16>
    %cst_137 = arith.constant dense<0.000000e+00> : vector<8x128xf32>
    %315 = tpu.matmul %313, %314, %cst_137 {dimension_numbers = #tpu.dot_dimension_numbers<[1], [0], [0], [1], [0, 0, 1, 1], [], []>} : vector<8x512xbf16>, vector<512x128xbf16>, vector<8x128xf32> -> vector<8x128xf32>
    %c17 = arith.constant 17 : index
    %c0_138 = arith.constant 0 : index
    %316 = vector.load %arg6[%c17, %c0_138] : memref<24x128xbf16, #tpu.memory_space<vmem>>, vector<1x128xbf16>
    %317 = arith.extf %316 : vector<1x128xbf16> to vector<1x128xf32>
    %318 = vector.broadcast %317 : vector<1x128xf32> to vector<8x128xf32>
    %319 = arith.addf %315, %318 : vector<8x128xf32>
    %cst_139 = arith.constant 0.000000e+00 : f32
    %320 = vector.broadcast %cst_139 : f32 to vector<8x128xf32>
    %321 = arith.cmpf ogt, %319, %320 : vector<8x128xf32>
    %cst_140 = arith.constant 2.000000e-01 : f32
    %322 = vector.broadcast %cst_140 : f32 to vector<8x128xf32>
    %323 = arith.mulf %322, %319 : vector<8x128xf32>
    %324 = arith.select %321, %319, %323 : vector<8x128xi1>, vector<8x128xf32>
    %325 = tpu.concatenate %312, %300, %284, %254, %324 in 1 : vector<8x128xf32>, vector<8x128xf32>, vector<8x128xf32>, vector<8x128xf32>, vector<8x128xf32> -> vector<8x640xf32>
    %c0_141 = arith.constant 0 : index
    %c0_142 = arith.constant 0 : index
    %326 = vector.load %arg9[%c0_141, %c0_142] : memref<2x640xf32, #tpu.memory_space<vmem>>, vector<1x640xf32>
    %327 = vector.broadcast %326 : vector<1x640xf32> to vector<8x640xf32>
    %328 = arith.mulf %325, %327 : vector<8x640xf32>
    %cst_143 = arith.constant dense<0.000000e+00> : vector<8xf32>
    %329 = vector.multi_reduction <add>, %328, %cst_143 [1] : vector<8x640xf32> to vector<8xf32>
    %330 = vector.shape_cast %329 : vector<8xf32> to vector<8x1xf32>
    %c1_144 = arith.constant 1 : index
    %c0_145 = arith.constant 0 : index
    %331 = vector.load %arg9[%c1_144, %c0_145] : memref<2x640xf32, #tpu.memory_space<vmem>>, vector<1x1xf32>
    %332 = vector.broadcast %331 : vector<1x1xf32> to vector<8x1xf32>
    %333 = arith.addf %330, %332 : vector<8x1xf32>
    %334 = tpu.iota {dimensions = array<i32: 0>} : vector<8x8xi32>
    %335 = tpu.iota {dimensions = array<i32: 1>} : vector<8x8xi32>
    %336 = arith.cmpi eq, %334, %335 : vector<8x8xi32>
    %337 = arith.extui %336 : vector<8x8xi1> to vector<8x8xi32>
    %338 = arith.sitofp %337 : vector<8x8xi32> to vector<8x8xf32>
    %339 = vector.broadcast %333 : vector<8x1xf32> to vector<8x8xf32>
    %340 = arith.mulf %339, %338 : vector<8x8xf32>
    %cst_146 = arith.constant dense<0.000000e+00> : vector<8xf32>
    %341 = vector.multi_reduction <add>, %340, %cst_146 [0] : vector<8x8xf32> to vector<8xf32>
    %342 = vector.shape_cast %341 : vector<8xf32> to vector<1x8xf32>
    %c0_147 = arith.constant 0 : index
    %c0_148 = arith.constant 0 : index
    %c0_149 = arith.constant 0 : index
    %343 = vector.load %arg10[%c0_147, %c0_148, %c0_149] : memref<1x1x8xf32, #tpu.memory_space<vmem>>, vector<1x1x8xf32>
    %344 = vector.shape_cast %343 : vector<1x1x8xf32> to vector<1x8xf32>
    %345 = vector.shape_cast %342 : vector<1x8xf32> to vector<1x1x8xf32>
    tpu.vector_store %arg10[%c0_147, %c0_148, %c0_149], %345 {strides = array<i32>} : memref<1x1x8xf32, #tpu.memory_space<vmem>>, vector<1x1x8xf32>,
    return
  }
  func.func @transform_0(%arg0: i32) -> (i32, i32) {
    %c0_i32 = arith.constant 0 : i32
    %c0_i32_0 = arith.constant 0 : i32
    return %arg0, %c0_i32 : i32, i32
  }
  func.func @transform_1(%arg0: i32) -> (i32, i32, i32) {
    %c0_i32 = arith.constant 0 : i32
    %c0_i32_0 = arith.constant 0 : i32
    %c0_i32_1 = arith.constant 0 : i32
    return %arg0, %c0_i32, %c0_i32_0 : i32, i32, i32
  }
  func.func @transform_2(%arg0: i32) -> (i32, i32, i32) {
    %c0_i32 = arith.constant 0 : i32
    %c0_i32_0 = arith.constant 0 : i32
    %c0_i32_1 = arith.constant 0 : i32
    return %arg0, %c0_i32, %c0_i32_0 : i32, i32, i32
  }
  func.func @transform_3(%arg0: i32) -> (i32, i32) {
    %c0_i32 = arith.constant 0 : i32
    %c0_i32_0 = arith.constant 0 : i32
    return %arg0, %c0_i32 : i32, i32
  }
  func.func @transform_4(%arg0: i32) -> (i32, i32) {
    %c0_i32 = arith.constant 0 : i32
    %c0_i32_0 = arith.constant 0 : i32
    return %arg0, %c0_i32 : i32, i32
  }
  func.func @transform_5(%arg0: i32) -> (i32, i32) {
    %c0_i32 = arith.constant 0 : i32
    %c0_i32_0 = arith.constant 0 : i32
    %c0_i32_1 = arith.constant 0 : i32
    return %c0_i32, %c0_i32_0 : i32, i32
  }
  func.func @transform_6(%arg0: i32) -> (i32, i32) {
    %c0_i32 = arith.constant 0 : i32
    %c0_i32_0 = arith.constant 0 : i32
    %c0_i32_1 = arith.constant 0 : i32
    return %c0_i32, %c0_i32_0 : i32, i32
  }
  func.func @transform_7(%arg0: i32) -> (i32, i32) {
    %c0_i32 = arith.constant 0 : i32
    %c0_i32_0 = arith.constant 0 : i32
    %c0_i32_1 = arith.constant 0 : i32
    return %c0_i32, %c0_i32_0 : i32, i32
  }
  func.func @transform_8(%arg0: i32) -> (i32, i32) {
    %c0_i32 = arith.constant 0 : i32
    %c0_i32_0 = arith.constant 0 : i32
    %c0_i32_1 = arith.constant 0 : i32
    return %c0_i32, %c0_i32_0 : i32, i32
  }
  func.func @transform_9(%arg0: i32) -> (i32, i32, i32) {
    %c0_i32 = arith.constant 0 : i32
    %c0_i32_0 = arith.constant 0 : i32
    %c0_i32_1 = arith.constant 0 : i32
    return %arg0, %c0_i32, %c0_i32_0 : i32, i32, i32
  }
}

</mosaic_0001>

<llo_original>
// kernel: onet_plus_plus_forward.1
$region0: #{onet_plus_plus_forward.1}
  #allocation0 [shape = 'u32[]', space=smem, size = 0x4, offset = 0x4, fixed_abs, tag = 'smem constant byte address 0x4 - core index']
  #allocation1 [shape = 'u32[144,128]{1,0:T(1,128)}', space=vmem, size = 0x12000, scoped, tag = 'internal scratch']
  #allocation2 [shape = 'f32[8,16,64]{2,1,0:T(8,128)}', space=vmem, size = 0x10000, scoped, tag = 'scratch operand']
  %s0 = inlined_call_operand.vmem [shape: f32[16,3], index: 0, kind: input, shape index: {}]
  %s1 = inlined_call_operand.vmem [shape: f32[16,64,3], index: 1, kind: input, shape index: {}]
  %s2 = inlined_call_operand.vmem [shape: f32[16,32,3], index: 2, kind: input, shape index: {}]
  %s3 = inlined_call_operand.vmem [shape: bf16[16,512], index: 3, kind: input, shape index: {}]
  %s4 = inlined_call_operand.vmem [shape: bf16[16,512], index: 4, kind: input, shape index: {}]
  %s5 = inlined_call_operand.vmem [shape: bf16[24,128], index: 5, kind: input, shape index: {}]
  %s6 = inlined_call_operand.vmem [shape: bf16[512,128], index: 6, kind: input, shape index: {}]
  %s7 = inlined_call_operand.vmem [shape: bf16[512,128], index: 7, kind: input, shape index: {}]
  %s8 = inlined_call_operand.vmem [shape: f32[2,640], index: 8, kind: input, shape index: {}]
  %s9 = inlined_call_operand.vmem [shape: f32[2,1,8], index: 9, kind: output, shape index: {}]
  %s10 = sld [smem:[#allocation0]]
  $region69: #{onet_plus_plus_forward.1} parent=0
    _
  %s12 = ssub.s32 1, %s10
  %s13 = scalar_select 0, %s12, %s10
  loop: start=0, step=1, limit=4
  $region2: #{onet_plus_plus_forward.1} parent=0 // loop_pre_header
    _
  $region3: #{onet_plus_plus_forward.1} parent=0 // loop_header
    %s15 = sphi 0, %s19
    %p16 = scmp.ge.s32.totalorder %s15, 4
    %s25 = sphi 0, %s27
    %s28 = sphi 0, %s25
    %s29 = sphi 0, %s28
    %s45 = sphi 0, %s29
    %s51 = sphi 0, %s53
    %s54 = sphi 0, %s51
    %s55 = sphi 0, %s54
    %s71 = sphi 0, %s55
    %s77 = sphi 0, %s79
    %s80 = sphi 0, %s77
    %s81 = sphi 0, %s80
    %s97 = sphi 0, %s81
    %s103 = sphi 0, %s105
    %s106 = sphi 0, %s103
    %s107 = sphi 0, %s106
    %s123 = sphi 0, %s107
    %s129 = sphi 0, %s131
    %s132 = sphi 0, %s129
    %s133 = sphi 0, %s132
    %s149 = sphi 0, %s133
    %s153 = sphi 0, %s153
    %s155 = sphi 0, %s153
    %s156 = sphi 0, %s155
    %s170 = sphi 0, %s156
    %s174 = sphi 0, %s174
    %s176 = sphi 0, %s174
    %s177 = sphi 0, %s176
    %s191 = sphi 0, %s177
    %s195 = sphi 0, %s195
    %s197 = sphi 0, %s195
    %s198 = sphi 0, %s197
    %s212 = sphi 0, %s198
    %s216 = sphi 0, %s216
    %s218 = sphi 0, %s216
    %s219 = sphi 0, %s218
    %s233 = sphi 0, %s219
    %s239 = sphi 0, %s241
    %s242 = sphi 0, %s239
    %s243 = sphi 0, %s242
    %s259 = sphi 0, %s243
  $region4: #{onet_plus_plus_forward.1} parent=0 // loop_header_branch
    %18 = sbr.rel (%p16) target = $region8
  $region5: #{onet_plus_plus_forward.1} parent=0 // loop_body
    %s20 = ssub.s32 %s15, 1
    %s21 = ssub.s32 %s15, 2
    %s22 = sadd.s32 %s15, 1
    %s23 = ssub.s32 %s15, %s22
    %p24 = scmp.eq.s32.totalorder %s23, 0
    %s26 = sadd.s32 %s25, 1
    %s27 = scalar_select %p24, %s25, %s26
    %p30 = pneg %p24
    %p31 = scmp.eq.s32.totalorder %s15, 1
    %p32 = por %p30, %p31
    %p33 = scmp.ne.s32.totalorder %s25, %s28
    %p34 = scmp.eq.s32.totalorder %s15, 0
    %p35 = por %p33, %p34
    %p36 = scmp.ne.s32.totalorder %s25, %s28
    %p37 = scmp.eq.s32.totalorder %s20, 1
    %p38 = por %p36, %p37
    %p39 = scmp.ne.s32.totalorder %s28, %s29
    %p40 = scmp.eq.s32.totalorder %s20, 0
    %p41 = por %p39, %p40
    %p42 = scmp.ne.s32.totalorder %s28, %s29
    %p43 = scmp.eq.s32.totalorder %s21, 1
    %p44 = por %p42, %p43
    %p46 = scmp.ne.s32.totalorder %s29, %s45
    %p47 = scmp.eq.s32.totalorder %s21, 0
    %p48 = por %p46, %p47
    %s49 = ssub.s32 %s15, %s22
    %p50 = scmp.eq.s32.totalorder %s49, 0
    %s52 = sadd.s32 %s51, 1
    %s53 = scalar_select %p50, %s51, %s52
    %p56 = pneg %p50
    %p57 = scmp.eq.s32.totalorder %s15, 1
    %p58 = por %p56, %p57
    %p59 = scmp.ne.s32.totalorder %s51, %s54
    %p60 = scmp.eq.s32.totalorder %s15, 0
    %p61 = por %p59, %p60
    %p62 = scmp.ne.s32.totalorder %s51, %s54
    %p63 = scmp.eq.s32.totalorder %s20, 1
    %p64 = por %p62, %p63
    %p65 = scmp.ne.s32.totalorder %s54, %s55
    %p66 = scmp.eq.s32.totalorder %s20, 0
    %p67 = por %p65, %p66
    %p68 = scmp.ne.s32.totalorder %s54, %s55
    %p69 = scmp.eq.s32.totalorder %s21, 1
    %p70 = por %p68, %p69
    %p72 = scmp.ne.s32.totalorder %s55, %s71
    %p73 = scmp.eq.s32.totalorder %s21, 0
    %p74 = por %p72, %p73
    %s75 = ssub.s32 %s15, %s22
    %p76 = scmp.eq.s32.totalorder %s75, 0
    %s78 = sadd.s32 %s77, 1
    %s79 = scalar_select %p76, %s77, %s78
    %p82 = pneg %p76
    %p83 = scmp.eq.s32.totalorder %s15, 1
    %p84 = por %p82, %p83
    %p85 = scmp.ne.s32.totalorder %s77, %s80
    %p86 = scmp.eq.s32.totalorder %s15, 0
    %p87 = por %p85, %p86
    %p88 = scmp.ne.s32.totalorder %s77, %s80
    %p89 = scmp.eq.s32.totalorder %s20, 1
    %p90 = por %p88, %p89
    %p91 = scmp.ne.s32.totalorder %s80, %s81
    %p92 = scmp.eq.s32.totalorder %s20, 0
    %p93 = por %p91, %p92
    %p94 = scmp.ne.s32.totalorder %s80, %s81
    %p95 = scmp.eq.s32.totalorder %s21, 1
    %p96 = por %p94, %p95
    %p98 = scmp.ne.s32.totalorder %s81, %s97
    %p99 = scmp.eq.s32.totalorder %s21, 0
    %p100 = por %p98, %p99
    %s101 = ssub.s32 %s15, %s22
    %p102 = scmp.eq.s32.totalorder %s101, 0
    %s104 = sadd.s32 %s103, 1
    %s105 = scalar_select %p102, %s103, %s104
    %p108 = pneg %p102
    %p109 = scmp.eq.s32.totalorder %s15, 1
    %p110 = por %p108, %p109
    %p111 = scmp.ne.s32.totalorder %s103, %s106
    %p112 = scmp.eq.s32.totalorder %s15, 0
    %p113 = por %p111, %p112
    %p114 = scmp.ne.s32.totalorder %s103, %s106
    %p115 = scmp.eq.s32.totalorder %s20, 1
    %p116 = por %p114, %p115
    %p117 = scmp.ne.s32.totalorder %s106, %s107
    %p118 = scmp.eq.s32.totalorder %s20, 0
    %p119 = por %p117, %p118
    %p120 = scmp.ne.s32.totalorder %s106, %s107
    %p121 = scmp.eq.s32.totalorder %s21, 1
    %p122 = por %p120, %p121
    %p124 = scmp.ne.s32.totalorder %s107, %s123
    %p125 = scmp.eq.s32.totalorder %s21, 0
    %p126 = por %p124, %p125
    %s127 = ssub.s32 %s15, %s22
    %p128 = scmp.eq.s32.totalorder %s127, 0
    %s130 = sadd.s32 %s129, 1
    %s131 = scalar_select %p128, %s129, %s130
    %p134 = pneg %p128
    %p135 = scmp.eq.s32.totalorder %s15, 1
    %p136 = por %p134, %p135
    %p137 = scmp.ne.s32.totalorder %s129, %s132
    %p138 = scmp.eq.s32.totalorder %s15, 0
    %p139 = por %p137, %p138
    %p140 = scmp.ne.s32.totalorder %s129, %s132
    %p141 = scmp.eq.s32.totalorder %s20, 1
    %p142 = por %p140, %p141
    %p143 = scmp.ne.s32.totalorder %s132, %s133
    %p144 = scmp.eq.s32.totalorder %s20, 0
    %p145 = por %p143, %p144
    %p146 = scmp.ne.s32.totalorder %s132, %s133
    %p147 = scmp.eq.s32.totalorder %s21, 1
    %p148 = por %p146, %p147
    %p150 = scmp.ne.s32.totalorder %s133, %s149
    %p151 = scmp.eq.s32.totalorder %s21, 0
    %p152 = por %p150, %p151
    %s154 = sadd.s32 %s153, 1
    %p157 = scmp.eq.s32.totalorder %s15, 1
    %p158 = scmp.ne.s32.totalorder %s153, %s155
    %p159 = scmp.eq.s32.totalorder %s15, 0
    %p160 = por %p158, %p159
    %p161 = scmp.ne.s32.totalorder %s153, %s155
    %p162 = scmp.eq.s32.totalorder %s20, 1
    %p163 = por %p161, %p162
    %p164 = scmp.ne.s32.totalorder %s155, %s156
    %p165 = scmp.eq.s32.totalorder %s20, 0
    %p166 = por %p164, %p165
    %p167 = scmp.ne.s32.totalorder %s155, %s156
    %p168 = scmp.eq.s32.totalorder %s21, 1
    %p169 = por %p167, %p168
    %p171 = scmp.ne.s32.totalorder %s156, %s170
    %p172 = scmp.eq.s32.totalorder %s21, 0
    %p173 = por %p171, %p172
    %s175 = sadd.s32 %s174, 1
    %p178 = scmp.eq.s32.totalorder %s15, 1
    %p179 = scmp.ne.s32.totalorder %s174, %s176
    %p180 = scmp.eq.s32.totalorder %s15, 0
    %p181 = por %p179, %p180
    %p182 = scmp.ne.s32.totalorder %s174, %s176
    %p183 = scmp.eq.s32.totalorder %s20, 1
    %p184 = por %p182, %p183
    %p185 = scmp.ne.s32.totalorder %s176, %s177
    %p186 = scmp.eq.s32.totalorder %s20, 0
    %p187 = por %p185, %p186
    %p188 = scmp.ne.s32.totalorder %s176, %s177
    %p189 = scmp.eq.s32.totalorder %s21, 1
    %p190 = por %p188, %p189
    %p192 = scmp.ne.s32.totalorder %s177, %s191
    %p193 = scmp.eq.s32.totalorder %s21, 0
    %p194 = por %p192, %p193
    %s196 = sadd.s32 %s195, 1
    %p199 = scmp.eq.s32.totalorder %s15, 1
    %p200 = scmp.ne.s32.totalorder %s195, %s197
    %p201 = scmp.eq.s32.totalorder %s15, 0
    %p202 = por %p200, %p201
    %p203 = scmp.ne.s32.totalorder %s195, %s197
    %p204 = scmp.eq.s32.totalorder %s20, 1
    %p205 = por %p203, %p204
    %p206 = scmp.ne.s32.totalorder %s197, %s198
    %p207 = scmp.eq.s32.totalorder %s20, 0
    %p208 = por %p206, %p207
    %p209 = scmp.ne.s32.totalorder %s197, %s198
    %p210 = scmp.eq.s32.totalorder %s21, 1
    %p211 = por %p209, %p210
    %p213 = scmp.ne.s32.totalorder %s198, %s212
    %p214 = scmp.eq.s32.totalorder %s21, 0
    %p215 = por %p213, %p214
    %s217 = sadd.s32 %s216, 1
    %p220 = scmp.eq.s32.totalorder %s15, 1
    %p221 = scmp.ne.s32.totalorder %s216, %s218
    %p222 = scmp.eq.s32.totalorder %s15, 0
    %p223 = por %p221, %p222
    %p224 = scmp.ne.s32.totalorder %s216, %s218
    %p225 = scmp.eq.s32.totalorder %s20, 1
    %p226 = por %p224, %p225
    %p227 = scmp.ne.s32.totalorder %s218, %s219
    %p228 = scmp.eq.s32.totalorder %s20, 0
    %p229 = por %p227, %p228
    %p230 = scmp.ne.s32.totalorder %s218, %s219
    %p231 = scmp.eq.s32.totalorder %s21, 1
    %p232 = por %p230, %p231
    %p234 = scmp.ne.s32.totalorder %s219, %s233
    %p235 = scmp.eq.s32.totalorder %s21, 0
    %p236 = por %p234, %p235
    %s237 = ssub.s32 %s15, %s22
    %p238 = scmp.eq.s32.totalorder %s237, 0
    %s240 = sadd.s32 %s239, 1
    %s241 = scalar_select %p238, %s239, %s240
    %p244 = pneg %p238
    %p245 = scmp.eq.s32.totalorder %s15, 1
    %p246 = por %p244, %p245
    %p247 = scmp.ne.s32.totalorder %s239, %s242
    %p248 = scmp.eq.s32.totalorder %s15, 0
    %p249 = por %p247, %p248
    %p250 = scmp.ne.s32.totalorder %s239, %s242
    %p251 = scmp.eq.s32.totalorder %s20, 1
    %p252 = por %p250, %p251
    %p253 = scmp.ne.s32.totalorder %s242, %s243
    %p254 = scmp.eq.s32.totalorder %s20, 0
    %p255 = por %p253, %p254
    %p256 = scmp.ne.s32.totalorder %s242, %s243
    %p257 = scmp.eq.s32.totalorder %s21, 1
    %p258 = por %p256, %p257
    %p260 = scmp.ne.s32.totalorder %s243, %s259
    %p261 = scmp.eq.s32.totalorder %s21, 0
    %p262 = por %p260, %p261
    %p263 = scmp.le.s32.totalorder 1, %s15
    %p264 = scmp.lt.s32.totalorder %s15, 3
    %p265 = pnand %p263, %p264
    %p266 = pneg %p265
    // Predicated region
    $region9: #{onet_plus_plus_forward.1} parent=5 // pred_check
      _
    $region10: #{onet_plus_plus_forward.1} parent=5 // pred_check_branch
      %268 = sbr.rel (%p265) target = $region12
    $region11: #{onet_plus_plus_forward.1} parent=5 // pred_region
      %s269 = ssub.s32 %s15, 1
      // Predicated region
      $region13: #{onet_plus_plus_forward.1} parent=11 // pred_check
        %p270 = pneg %p166
      $region14: #{onet_plus_plus_forward.1} parent=11 // pred_check_branch
        %272 = sbr.rel (%p270) target = $region16
      $region15: #{onet_plus_plus_forward.1} parent=11 // pred_region
        _
      $region16: #{onet_plus_plus_forward.1} parent=11 // pred_fallthru
        _
      // Predicated region
      $region17: #{onet_plus_plus_forward.1} parent=11 // pred_check
        %p273 = pneg %p187
      $region18: #{onet_plus_plus_forward.1} parent=11 // pred_check_branch
        %275 = sbr.rel (%p273) target = $region20
      $region19: #{onet_plus_plus_forward.1} parent=11 // pred_region
        _
      $region20: #{onet_plus_plus_forward.1} parent=11 // pred_fallthru
        _
      // Predicated region
      $region21: #{onet_plus_plus_forward.1} parent=11 // pred_check
        %p276 = pneg %p208
      $region22: #{onet_plus_plus_forward.1} parent=11 // pred_check_branch
        %278 = sbr.rel (%p276) target = $region24
      $region23: #{onet_plus_plus_forward.1} parent=11 // pred_region
        _
      $region24: #{onet_plus_plus_forward.1} parent=11 // pred_fallthru
        _
      // Predicated region
      $region25: #{onet_plus_plus_forward.1} parent=11 // pred_check
        %p279 = pneg %p229
      $region26: #{onet_plus_plus_forward.1} parent=11 // pred_check_branch
        %281 = sbr.rel (%p279) target = $region28
      $region27: #{onet_plus_plus_forward.1} parent=11 // pred_region
        _
      $region28: #{onet_plus_plus_forward.1} parent=11 // pred_fallthru
        _
    $region12: #{onet_plus_plus_forward.1} parent=5 // pred_fallthru
      _
    %p282 = scmp.lt.s32.totalorder %s15, 2
    // Predicated region
    $region29: #{onet_plus_plus_forward.1} parent=5 // pred_check
      %p283 = pneg %p282
    $region30: #{onet_plus_plus_forward.1} parent=5 // pred_check_branch
      %285 = sbr.rel (%p283) target = $region32
    $region31: #{onet_plus_plus_forward.1} parent=5 // pred_region
      // Predicated region
      $region33: #{onet_plus_plus_forward.1} parent=31 // pred_check
        %p286 = pneg %p35
      $region34: #{onet_plus_plus_forward.1} parent=31 // pred_check_branch
        %288 = sbr.rel (%p286) target = $region36
      $region35: #{onet_plus_plus_forward.1} parent=31 // pred_region
        %p289 = scmp.lt.s32.totalorder %s15, 1
        %s290 = scalar_select %p289, %s15, 1
        %s291 = smul.addr %s290, 8
        %s292 = scalar_lea.vmem %s0, %s291
      $region36: #{onet_plus_plus_forward.1} parent=31 // pred_fallthru
        _
      // Predicated region
      $region37: #{onet_plus_plus_forward.1} parent=31 // pred_check
        %p293 = pneg %p61
      $region38: #{onet_plus_plus_forward.1} parent=31 // pred_check_branch
        %295 = sbr.rel (%p293) target = $region40
      $region39: #{onet_plus_plus_forward.1} parent=31 // pred_region
        %s296 = smul.u32 8, %s15
        %p297 = scmp.lt.s32.totalorder %s296, 15
        %s298 = scalar_select %p297, %s296, 15
        %s299 = smul.addr %s298, 8
        %s300 = smul.addr %s299, 8
        %s301 = scalar_lea.vmem %s1, %s300
        %s302 = smul.u32 8, %s15
      $region40: #{onet_plus_plus_forward.1} parent=31 // pred_fallthru
        _
      // Predicated region
      $region41: #{onet_plus_plus_forward.1} parent=31 // pred_check
        %p303 = pneg %p87
      $region42: #{onet_plus_plus_forward.1} parent=31 // pred_check_branch
        %305 = sbr.rel (%p303) target = $region44
      $region43: #{onet_plus_plus_forward.1} parent=31 // pred_region
        %s306 = smul.u32 8, %s15
        %p307 = scmp.lt.s32.totalorder %s306, 15
        %s308 = scalar_select %p307, %s306, 15
        %s309 = smul.addr %s308, 4
        %s310 = smul.addr %s309, 8
        %s311 = scalar_lea.vmem %s2, %s310
        %s312 = smul.u32 8, %s15
      $region44: #{onet_plus_plus_forward.1} parent=31 // pred_fallthru
        _
      // Predicated region
      $region45: #{onet_plus_plus_forward.1} parent=31 // pred_check
        %p313 = pneg %p113
      $region46: #{onet_plus_plus_forward.1} parent=31 // pred_check_branch
        %315 = sbr.rel (%p313) target = $region48
      $region47: #{onet_plus_plus_forward.1} parent=31 // pred_region
        %p316 = scmp.lt.s32.totalorder %s15, 1
        %s317 = scalar_select %p316, %s15, 1
        %s318 = smul.addr %s317, 4
        %s319 = smul.addr %s318, 4
        %s320 = scalar_lea.vmem %s3, %s319
      $region48: #{onet_plus_plus_forward.1} parent=31 // pred_fallthru
        _
      // Predicated region
      $region49: #{onet_plus_plus_forward.1} parent=31 // pred_check
        %p321 = pneg %p139
      $region50: #{onet_plus_plus_forward.1} parent=31 // pred_check_branch
        %323 = sbr.rel (%p321) target = $region52
      $region51: #{onet_plus_plus_forward.1} parent=31 // pred_region
        %p324 = scmp.lt.s32.totalorder %s15, 1
        %s325 = scalar_select %p324, %s15, 1
        %s326 = smul.addr %s325, 4
        %s327 = smul.addr %s326, 4
        %s328 = scalar_lea.vmem %s4, %s327
      $region52: #{onet_plus_plus_forward.1} parent=31 // pred_fallthru
        _
    $region32: #{onet_plus_plus_forward.1} parent=5 // pred_fallthru
      _
    %p329 = scmp.le.s32.totalorder 1, %s15
    %p330 = scmp.lt.s32.totalorder %s15, 3
    %p331 = pnand %p329, %p330
    %p332 = pneg %p331
    // Predicated region
    $region53: #{onet_plus_plus_forward.1} parent=5 // pred_check
      _
    $region54: #{onet_plus_plus_forward.1} parent=5 // pred_check_branch
      %334 = sbr.rel (%p331) target = $region56
    $region55: #{onet_plus_plus_forward.1} parent=5 // pred_region
      %s335 = ssub.s32 %s15, 1
      %p336 = scmp.lt.s32.totalorder %s20, 1
      %s337 = scalar_select %p336, %s20, 1
      %s338 = smul.addr %s337, 8
      %s339 = scalar_lea.vmem %s0, %s338
      %p340 = pneg %p41
      %p341 = pneg %p38
      %s342 = smul.u32 8, %s20
      %p343 = scmp.lt.s32.totalorder %s342, 15
      %s344 = scalar_select %p343, %s342, 15
      %s345 = smul.addr %s344, 8
      %s346 = smul.addr %s345, 8
      %s347 = scalar_lea.vmem %s1, %s346
      %p348 = pneg %p67
      %p349 = pneg %p64
      %s350 = smul.u32 8, %s20
      %p351 = scmp.lt.s32.totalorder %s350, 15
      %s352 = scalar_select %p351, %s350, 15
      %s353 = smul.addr %s352, 4
      %s354 = smul.addr %s353, 8
      %s355 = scalar_lea.vmem %s2, %s354
      %p356 = pneg %p93
      %p357 = pneg %p90
      %p358 = scmp.lt.s32.totalorder %s20, 1
      %s359 = scalar_select %p358, %s20, 1
      %s360 = smul.addr %s359, 4
      %s361 = smul.addr %s360, 4
      %s362 = scalar_lea.vmem %s3, %s361
      %p363 = pneg %p119
      %p364 = pneg %p116
      %p365 = scmp.lt.s32.totalorder %s20, 1
      %s366 = scalar_select %p365, %s20, 1
      %s367 = smul.addr %s366, 4
      %s368 = smul.addr %s367, 4
      %s369 = scalar_lea.vmem %s4, %s368
      %p370 = pneg %p145
      %p371 = pneg %p142
      %p372 = pneg %p166
      %p373 = pneg %p163
      %p374 = pneg %p187
      %p375 = pneg %p184
      %p376 = pneg %p208
      %p377 = pneg %p205
      %p378 = pneg %p229
      %p379 = pneg %p226
      %p380 = pneg %p255
      %p381 = pneg %p252
      %p382 = scmp.lt.s32.totalorder %s20, 1
      %s383 = scalar_select %p382, %s20, 1
      %s384 = scalar_lea.vmem %s9, %s383
      %p385 = scmp.lt.s32.totalorder %s20, 1
      %s386 = scalar_select %p385, %s20, 1
      %s387 = smul.addr %s386, 8
      %s388 = scalar_lea.vmem %s0, %s387
      %s389 = smul.u32 8, %s20
      %p390 = scmp.lt.s32.totalorder %s389, 15
      %s391 = scalar_select %p390, %s389, 15
      %s392 = smul.addr %s391, 8
      %s393 = smul.addr %s392, 8
      %s394 = scalar_lea.vmem %s1, %s393
      %s395 = smul.u32 8, %s20
      %s396 = smul.u32 8, %s20
      %p397 = scmp.lt.s32.totalorder %s396, 15
      %s398 = scalar_select %p397, %s396, 15
      %s399 = smul.addr %s398, 4
      %s400 = smul.addr %s399, 8
      %s401 = scalar_lea.vmem %s2, %s400
      %s402 = smul.u32 8, %s20
      %p403 = scmp.lt.s32.totalorder %s20, 1
      %s404 = scalar_select %p403, %s20, 1
      %s405 = smul.addr %s404, 4
      %s406 = smul.addr %s405, 4
      %s407 = scalar_lea.vmem %s3, %s406
      %p408 = scmp.lt.s32.totalorder %s20, 1
      %s409 = scalar_select %p408, %s20, 1
      %s410 = smul.addr %s409, 4
      %s411 = smul.addr %s410, 4
      %s412 = scalar_lea.vmem %s4, %s411
      %p413 = scmp.lt.s32.totalorder %s20, 1
      %s414 = scalar_select %p413, %s20, 1
      %s415 = scalar_lea.vmem %s9, %s414
      %v417 = vld [vmem:[%s388] sm:$0xff]
      %v418 = vld [vmem:[%s394] sm:$0xff]
      %v419 = vld [vmem:[%s394 + $0x8] sm:$0xff]
      %v420 = vld [vmem:[%s394 + $0x10] sm:$0xff]
      %v421 = vld [vmem:[%s394 + $0x18] sm:$0xff]
      %v422 = vld [vmem:[%s394 + $0x20] sm:$0xff]
      %v423 = vld [vmem:[%s394 + $0x28] sm:$0xff]
      %v424 = vld [vmem:[%s394 + $0x30] sm:$0xff]
      %v425 = vld [vmem:[%s394 + $0x38] sm:$0xff]
      %v426 = vld [vmem:[%s394 + $0x40] sm:$0xff]
      %v427 = vld [vmem:[%s394 + $0x48] sm:$0xff]
      %v428 = vld [vmem:[%s394 + $0x50] sm:$0xff]
      %v429 = vld [vmem:[%s394 + $0x58] sm:$0xff]
      %v430 = vld [vmem:[%s394 + $0x60] sm:$0xff]
      %v431 = vld [vmem:[%s394 + $0x68] sm:$0xff]
      %v432 = vld [vmem:[%s394 + $0x70] sm:$0xff]
      %v433 = vld [vmem:[%s394 + $0x78] sm:$0xff]
      %v434 = vld [vmem:[%s394 + $0x80] sm:$0xff]
      %v435 = vld [vmem:[%s394 + $0x88] sm:$0xff]
      %v436 = vld [vmem:[%s394 + $0x90] sm:$0xff]
      %v437 = vld [vmem:[%s394 + $0x98] sm:$0xff]
      %v438 = vld [vmem:[%s394 + $0xa0] sm:$0xff]
      %v439 = vld [vmem:[%s394 + $0xa8] sm:$0xff]
      %v440 = vld [vmem:[%s394 + $0xb0] sm:$0xff]
      %v441 = vld [vmem:[%s394 + $0xb8] sm:$0xff]
      %v442 = vld [vmem:[%s394 + $0xc0] sm:$0xff]
      %v443 = vld [vmem:[%s394 + $0xc8] sm:$0xff]
      %v444 = vld [vmem:[%s394 + $0xd0] sm:$0xff]
      %v445 = vld [vmem:[%s394 + $0xd8] sm:$0xff]
      %v446 = vld [vmem:[%s394 + $0xe0] sm:$0xff]
      %v447 = vld [vmem:[%s394 + $0xe8] sm:$0xff]
      %v448 = vld [vmem:[%s394 + $0xf0] sm:$0xff]
      %v449 = vld [vmem:[%s394 + $0xf8] sm:$0xff]
      %v450 = vld [vmem:[%s394 + $0x100] sm:$0xff]
      %v451 = vld [vmem:[%s394 + $0x108] sm:$0xff]
      %v452 = vld [vmem:[%s394 + $0x110] sm:$0xff]
      %v453 = vld [vmem:[%s394 + $0x118] sm:$0xff]
      %v454 = vld [vmem:[%s394 + $0x120] sm:$0xff]
      %v455 = vld [vmem:[%s394 + $0x128] sm:$0xff]
      %v456 = vld [vmem:[%s394 + $0x130] sm:$0xff]
      %v457 = vld [vmem:[%s394 + $0x138] sm:$0xff]
      %v458 = vld [vmem:[%s394 + $0x140] sm:$0xff]
      %v459 = vld [vmem:[%s394 + $0x148] sm:$0xff]
      %v460 = vld [vmem:[%s394 + $0x150] sm:$0xff]
      %v461 = vld [vmem:[%s394 + $0x158] sm:$0xff]
      %v462 = vld [vmem:[%s394 + $0x160] sm:$0xff]
      %v463 = vld [vmem:[%s394 + $0x168] sm:$0xff]
      %v464 = vld [vmem:[%s394 + $0x170] sm:$0xff]
      %v465 = vld [vmem:[%s394 + $0x178] sm:$0xff]
      %v466 = vld [vmem:[%s394 + $0x180] sm:$0xff]
      %v467 = vld [vmem:[%s394 + $0x188] sm:$0xff]
      %v468 = vld [vmem:[%s394 + $0x190] sm:$0xff]
      %v469 = vld [vmem:[%s394 + $0x198] sm:$0xff]
      %v470 = vld [vmem:[%s394 + $0x1a0] sm:$0xff]
      %v471 = vld [vmem:[%s394 + $0x1a8] sm:$0xff]
      %v472 = vld [vmem:[%s394 + $0x1b0] sm:$0xff]
      %v473 = vld [vmem:[%s394 + $0x1b8] sm:$0xff]
      %v474 = vld [vmem:[%s394 + $0x1c0] sm:$0xff]
      %v475 = vld [vmem:[%s394 + $0x1c8] sm:$0xff]
      %v476 = vld [vmem:[%s394 + $0x1d0] sm:$0xff]
      %v477 = vld [vmem:[%s394 + $0x1d8] sm:$0xff]
      %v478 = vld [vmem:[%s394 + $0x1e0] sm:$0xff]
      %v479 = vld [vmem:[%s394 + $0x1e8] sm:$0xff]
      %v480 = vld [vmem:[%s394 + $0x1f0] sm:$0xff]
      %v481 = vld [vmem:[%s394 + $0x1f8] sm:$0xff]
      %v482 = vpack.c.bf16 %v419, %v418
      %v483 = vpack.c.bf16 %v421, %v420
      %v484 = vpack.c.bf16 %v423, %v422
      %v485 = vpack.c.bf16 %v425, %v424
      %v486 = vpack.c.bf16 %v427, %v426
      %v487 = vpack.c.bf16 %v429, %v428
      %v488 = vpack.c.bf16 %v431, %v430
      %v489 = vpack.c.bf16 %v433, %v432
      %v490 = vpack.c.bf16 %v435, %v434
      %v491 = vpack.c.bf16 %v437, %v436
      %v492 = vpack.c.bf16 %v439, %v438
      %v493 = vpack.c.bf16 %v441, %v440
      %v494 = vpack.c.bf16 %v443, %v442
      %v495 = vpack.c.bf16 %v445, %v444
      %v496 = vpack.c.bf16 %v447, %v446
      %v497 = vpack.c.bf16 %v449, %v448
      %v498 = vpack.c.bf16 %v451, %v450
      %v499 = vpack.c.bf16 %v453, %v452
      %v500 = vpack.c.bf16 %v455, %v454
      %v501 = vpack.c.bf16 %v457, %v456
      %v502 = vpack.c.bf16 %v459, %v458
      %v503 = vpack.c.bf16 %v461, %v460
      %v504 = vpack.c.bf16 %v463, %v462
      %v505 = vpack.c.bf16 %v465, %v464
      %v506 = vpack.c.bf16 %v467, %v466
      %v507 = vpack.c.bf16 %v469, %v468
      %v508 = vpack.c.bf16 %v471, %v470
      %v509 = vpack.c.bf16 %v473, %v472
      %v510 = vpack.c.bf16 %v475, %v474
      %v511 = vpack.c.bf16 %v477, %v476
      %v512 = vpack.c.bf16 %v479, %v478
      %v513 = vpack.c.bf16 %v481, %v480
      %v514 = vld [vmem:[%s5] sm:$0x3]
      %v515 = vld [vmem:[%s5] sm:$0x2]
      %v516 = vunpack.c.l.bf16 %v515
      %v517 = vlaneseq
      %v518 = vshrl.u32 %v517, 7
      %v519 = vsub.s32 3, %v518
      %v520 = vrot.slane %v516, %v519
      %vm521 = vcmask 23552
      %v523 = vsel %vm521, %v482, 0
      %v526 = vsel %vm521, %v483, 0
      %v529 = vsel %vm521, %v484, 0
      %v532 = vsel %vm521, %v485, 0
      %v535 = vsel %vm521, %v486, 0
      %v538 = vsel %vm521, %v487, 0
      %v541 = vsel %vm521, %v488, 0
      %v544 = vsel %vm521, %v489, 0
      %v547 = vsel %vm521, %v490, 0
      %v550 = vsel %vm521, %v491, 0
      %v553 = vsel %vm521, %v492, 0
      %v556 = vsel %vm521, %v493, 0
      %v559 = vsel %vm521, %v494, 0
      %v562 = vsel %vm521, %v495, 0
      %v565 = vsel %vm521, %v496, 0
      %v568 = vsel %vm521, %v497, 0
      %v571 = vsel %vm521, %v498, 0
      %v574 = vsel %vm521, %v499, 0
      %v577 = vsel %vm521, %v500, 0
      %v580 = vsel %vm521, %v501, 0
      %v583 = vsel %vm521, %v502, 0
      %v586 = vsel %vm521, %v503, 0
      %v589 = vsel %vm521, %v504, 0
      %v592 = vsel %vm521, %v505, 0
      %v595 = vsel %vm521, %v506, 0
      %v598 = vsel %vm521, %v507, 0
      %v601 = vsel %vm521, %v508, 0
      %v604 = vsel %vm521, %v509, 0
      %v607 = vsel %vm521, %v510, 0
      %v610 = vsel %vm521, %v511, 0
      %v613 = vsel %vm521, %v512, 0
      %v616 = vsel %vm521, %v513, 0
      %vm618 = vcmask 1040384
      %vm619 = vcmask 1041408
      %v620 = vsel %vm618, 4294967295, 65535
      %v621 = vsel %vm619, %v620, 0
      %v623 = vand.u32 %v514, %v621
      %625 = vmatprep.subr.bf16.mxu0 0
      %626 = vmatpush1.bf16.msra.mxu0 0
      %627 = vmatprep.subr.bf16.mxu0 0
      %628 = vmatpush1.bf16.msra.mxu0 0
      %629 = vmatprep.subr.bf16.mxu0 0
      %630 = vmatpush1.bf16.msra.mxu0 0
      %631 = vmatprep.subr.bf16.mxu0 0
      %632 = vmatpush1.bf16.msra.mxu0 0
      %633 = vmatprep.subr.bf16.mxu0 0
      %634 = vmatpush1.bf16.msra.mxu0 0
      %635 = vmatprep.subr.bf16.mxu0 0
      %636 = vmatpush1.bf16.msra.mxu0 0
      %637 = vmatprep.subr.bf16.mxu0 0
      %638 = vmatpush1.bf16.msra.mxu0 0
      %639 = vmatprep.subr.bf16.mxu0 0
      %640 = vmatpush1.bf16.msra.mxu0 %v623
      %641 = vmatprep.subr.bf16.mxu0 0
      %642 = vmatpush2.bf16.msra.mxu0 0
      %643 = vmatprep.subr.bf16.mxu0 0
      %644 = vmatpush2.bf16.msra.mxu0 0
      %645 = vmatprep.subr.bf16.mxu0 0
      %646 = vmatpush2.bf16.msra.mxu0 0
      %647 = vmatprep.subr.bf16.mxu0 0
      %648 = vmatpush2.bf16.msra.mxu0 0
      %649 = vmatprep.subr.bf16.mxu0 0
      %650 = vmatpush2.bf16.msra.mxu0 0
      %651 = vmatprep.subr.bf16.mxu0 0
      %652 = vmatpush2.bf16.msra.mxu0 0
      %653 = vmatprep.subr.bf16.mxu0 0
      %654 = vmatpush2.bf16.msra.mxu0 0
      %655 = vmatprep.subr.bf16.mxu0 0
      %656 = vmatpush2.bf16.msra.mxu0 0
      %657 = vmatprep.mubr.bf16.mxu0 0
      %658 = vmatmul.mubr.bf16.gmra.mxu0 %v523
      %v659 = vpop.f32.mrf.mxu0
      %v660 = vadd.f32 %v520, %v659
      %v661 = vpop.f32.mrf.mxu0
      %v662 = vpop.f32.mrf.mxu0
      %v663 = vadd.f32 %v520, %v662
      %v664 = vpop.f32.mrf.mxu0
      %665 = vmatprep.mubr.bf16.mxu0 0
      %666 = vmatmul.mubr.bf16.gmra.mxu0 %v526
      %v667 = vpop.f32.mrf.mxu0
      %v668 = vadd.f32 %v520, %v667
      %v669 = vpop.f32.mrf.mxu0
      %v670 = vpop.f32.mrf.mxu0
      %v671 = vadd.f32 %v520, %v670
      %v672 = vpop.f32.mrf.mxu0
      %673 = vmatprep.mubr.bf16.mxu0 0
      %674 = vmatmul.mubr.bf16.gmra.mxu0 %v529
      %v675 = vpop.f32.mrf.mxu0
      %v676 = vadd.f32 %v520, %v675
      %v677 = vpop.f32.mrf.mxu0
      %v678 = vpop.f32.mrf.mxu0
      %v679 = vadd.f32 %v520, %v678
      %v680 = vpop.f32.mrf.mxu0
      %681 = vmatprep.mubr.bf16.mxu0 0
      %682 = vmatmul.mubr.bf16.gmra.mxu0 %v532
      %v683 = vpop.f32.mrf.mxu0
      %v684 = vadd.f32 %v520, %v683
      %v685 = vpop.f32.mrf.mxu0
      %v686 = vpop.f32.mrf.mxu0
      %v687 = vadd.f32 %v520, %v686
      %v688 = vpop.f32.mrf.mxu0
      %689 = vmatprep.mubr.bf16.mxu0 0
      %690 = vmatmul.mubr.bf16.gmra.mxu0 %v535
      %v691 = vpop.f32.mrf.mxu0
      %v692 = vadd.f32 %v520, %v691
      %v693 = vpop.f32.mrf.mxu0
      %v694 = vpop.f32.mrf.mxu0
      %v695 = vadd.f32 %v520, %v694
      %v696 = vpop.f32.mrf.mxu0
      %697 = vmatprep.mubr.bf16.mxu0 0
      %698 = vmatmul.mubr.bf16.gmra.mxu0 %v538
      %v699 = vpop.f32.mrf.mxu0
      %v700 = vadd.f32 %v520, %v699
      %v701 = vpop.f32.mrf.mxu0
      %v702 = vpop.f32.mrf.mxu0
      %v703 = vadd.f32 %v520, %v702
      %v704 = vpop.f32.mrf.mxu0
      %705 = vmatprep.mubr.bf16.mxu0 0
      %706 = vmatmul.mubr.bf16.gmra.mxu0 %v541
      %v707 = vpop.f32.mrf.mxu0
      %v708 = vadd.f32 %v520, %v707
      %v709 = vpop.f32.mrf.mxu0
      %v710 = vpop.f32.mrf.mxu0
      %v711 = vadd.f32 %v520, %v710
      %v712 = vpop.f32.mrf.mxu0
      %713 = vmatprep.mubr.bf16.mxu0 0
      %714 = vmatmul.mubr.bf16.gmra.mxu0 %v544
      %v715 = vpop.f32.mrf.mxu0
      %v716 = vadd.f32 %v520, %v715
      %v717 = vpop.f32.mrf.mxu0
      %v718 = vpop.f32.mrf.mxu0
      %v719 = vadd.f32 %v520, %v718
      %v720 = vpop.f32.mrf.mxu0
      %721 = vmatprep.mubr.bf16.mxu0 0
      %722 = vmatmul.mubr.bf16.gmra.mxu0 %v547
      %v723 = vpop.f32.mrf.mxu0
      %v724 = vadd.f32 %v520, %v723
      %v725 = vpop.f32.mrf.mxu0
      %v726 = vpop.f32.mrf.mxu0
      %v727 = vadd.f32 %v520, %v726
      %v728 = vpop.f32.mrf.mxu0
      %729 = vmatprep.mubr.bf16.mxu0 0
      %730 = vmatmul.mubr.bf16.gmra.mxu0 %v550
      %v731 = vpop.f32.mrf.mxu0
      %v732 = vadd.f32 %v520, %v731
      %v733 = vpop.f32.mrf.mxu0
      %v734 = vpop.f32.mrf.mxu0
      %v735 = vadd.f32 %v520, %v734
      %v736 = vpop.f32.mrf.mxu0
      %737 = vmatprep.mubr.bf16.mxu0 0
      %738 = vmatmul.mubr.bf16.gmra.mxu0 %v553
      %v739 = vpop.f32.mrf.mxu0
      %v740 = vadd.f32 %v520, %v739
      %v741 = vpop.f32.mrf.mxu0
      %v742 = vpop.f32.mrf.mxu0
      %v743 = vadd.f32 %v520, %v742
      %v744 = vpop.f32.mrf.mxu0
      %745 = vmatprep.mubr.bf16.mxu0 0
      %746 = vmatmul.mubr.bf16.gmra.mxu0 %v556
      %v747 = vpop.f32.mrf.mxu0
      %v748 = vadd.f32 %v520, %v747
      %v749 = vpop.f32.mrf.mxu0
      %v750 = vpop.f32.mrf.mxu0
      %v751 = vadd.f32 %v520, %v750
      %v752 = vpop.f32.mrf.mxu0
      %753 = vmatprep.mubr.bf16.mxu0 0
      %754 = vmatmul.mubr.bf16.gmra.mxu0 %v559
      %v755 = vpop.f32.mrf.mxu0
      %v756 = vadd.f32 %v520, %v755
      %v757 = vpop.f32.mrf.mxu0
      %v758 = vpop.f32.mrf.mxu0
      %v759 = vadd.f32 %v520, %v758
      %v760 = vpop.f32.mrf.mxu0
      %761 = vmatprep.mubr.bf16.mxu0 0
      %762 = vmatmul.mubr.bf16.gmra.mxu0 %v562
      %v763 = vpop.f32.mrf.mxu0
      %v764 = vadd.f32 %v520, %v763
      %v765 = vpop.f32.mrf.mxu0
      %v766 = vpop.f32.mrf.mxu0
      %v767 = vadd.f32 %v520, %v766
      %v768 = vpop.f32.mrf.mxu0
      %769 = vmatprep.mubr.bf16.mxu0 0
      %770 = vmatmul.mubr.bf16.gmra.mxu0 %v565
      %v771 = vpop.f32.mrf.mxu0
      %v772 = vadd.f32 %v520, %v771
      %v773 = vpop.f32.mrf.mxu0
      %v774 = vpop.f32.mrf.mxu0
      %v775 = vadd.f32 %v520, %v774
      %v776 = vpop.f32.mrf.mxu0
      %777 = vmatprep.mubr.bf16.mxu0 0
      %778 = vmatmul.mubr.bf16.gmra.mxu0 %v568
      %v779 = vpop.f32.mrf.mxu0
      %v780 = vadd.f32 %v520, %v779
      %v781 = vpop.f32.mrf.mxu0
      %v782 = vpop.f32.mrf.mxu0
      %v783 = vadd.f32 %v520, %v782
      %v784 = vpop.f32.mrf.mxu0
      %785 = vmatprep.mubr.bf16.mxu0 0
      %786 = vmatmul.mubr.bf16.gmra.mxu0 %v571
      %v787 = vpop.f32.mrf.mxu0
      %v788 = vadd.f32 %v520, %v787
      %v789 = vpop.f32.mrf.mxu0
      %v790 = vpop.f32.mrf.mxu0
      %v791 = vadd.f32 %v520, %v790
      %v792 = vpop.f32.mrf.mxu0
      %793 = vmatprep.mubr.bf16.mxu0 0
      %794 = vmatmul.mubr.bf16.gmra.mxu0 %v574
      %v795 = vpop.f32.mrf.mxu0
      %v796 = vadd.f32 %v520, %v795
      %v797 = vpop.f32.mrf.mxu0
      %v798 = vpop.f32.mrf.mxu0
      %v799 = vadd.f32 %v520, %v798
      %v800 = vpop.f32.mrf.mxu0
      %801 = vmatprep.mubr.bf16.mxu0 0
      %802 = vmatmul.mubr.bf16.gmra.mxu0 %v577
      %v803 = vpop.f32.mrf.mxu0
      %v804 = vadd.f32 %v520, %v803
      %v805 = vpop.f32.mrf.mxu0
      %v806 = vpop.f32.mrf.mxu0
      %v807 = vadd.f32 %v520, %v806
      %v808 = vpop.f32.mrf.mxu0
      %809 = vmatprep.mubr.bf16.mxu0 0
      %810 = vmatmul.mubr.bf16.gmra.mxu0 %v580
      %v811 = vpop.f32.mrf.mxu0
      %v812 = vadd.f32 %v520, %v811
      %v813 = vpop.f32.mrf.mxu0
      %v814 = vpop.f32.mrf.mxu0
      %v815 = vadd.f32 %v520, %v814
      %v816 = vpop.f32.mrf.mxu0
      %817 = vmatprep.mubr.bf16.mxu0 0
      %818 = vmatmul.mubr.bf16.gmra.mxu0 %v583
      %v819 = vpop.f32.mrf.mxu0
      %v820 = vadd.f32 %v520, %v819
      %v821 = vpop.f32.mrf.mxu0
      %v822 = vpop.f32.mrf.mxu0
      %v823 = vadd.f32 %v520, %v822
      %v824 = vpop.f32.mrf.mxu0
      %825 = vmatprep.mubr.bf16.mxu0 0
      %826 = vmatmul.mubr.bf16.gmra.mxu0 %v586
      %v827 = vpop.f32.mrf.mxu0
      %v828 = vadd.f32 %v520, %v827
      %v829 = vpop.f32.mrf.mxu0
      %v830 = vpop.f32.mrf.mxu0
      %v831 = vadd.f32 %v520, %v830
      %v832 = vpop.f32.mrf.mxu0
      %833 = vmatprep.mubr.bf16.mxu0 0
      %834 = vmatmul.mubr.bf16.gmra.mxu0 %v589
      %v835 = vpop.f32.mrf.mxu0
      %v836 = vadd.f32 %v520, %v835
      %v837 = vpop.f32.mrf.mxu0
      %v838 = vpop.f32.mrf.mxu0
      %v839 = vadd.f32 %v520, %v838
      %v840 = vpop.f32.mrf.mxu0
      %841 = vmatprep.mubr.bf16.mxu0 0
      %842 = vmatmul.mubr.bf16.gmra.mxu0 %v592
      %v843 = vpop.f32.mrf.mxu0
      %v844 = vadd.f32 %v520, %v843
      %v845 = vpop.f32.mrf.mxu0
      %v846 = vpop.f32.mrf.mxu0
      %v847 = vadd.f32 %v520, %v846
      %v848 = vpop.f32.mrf.mxu0
      %849 = vmatprep.mubr.bf16.mxu0 0
      %850 = vmatmul.mubr.bf16.gmra.mxu0 %v595
      %v851 = vpop.f32.mrf.mxu0
      %v852 = vadd.f32 %v520, %v851
      %v853 = vpop.f32.mrf.mxu0
      %v854 = vpop.f32.mrf.mxu0
      %v855 = vadd.f32 %v520, %v854
      %v856 = vpop.f32.mrf.mxu0
      %857 = vmatprep.mubr.bf16.mxu0 0
      %858 = vmatmul.mubr.bf16.gmra.mxu0 %v598
      %v859 = vpop.f32.mrf.mxu0
      %v860 = vadd.f32 %v520, %v859
      %v861 = vpop.f32.mrf.mxu0
      %v862 = vpop.f32.mrf.mxu0
      %v863 = vadd.f32 %v520, %v862
      %v864 = vpop.f32.mrf.mxu0
      %865 = vmatprep.mubr.bf16.mxu0 0
      %866 = vmatmul.mubr.bf16.gmra.mxu0 %v601
      %v867 = vpop.f32.mrf.mxu0
      %v868 = vadd.f32 %v520, %v867
      %v869 = vpop.f32.mrf.mxu0
      %v870 = vpop.f32.mrf.mxu0
      %v871 = vadd.f32 %v520, %v870
      %v872 = vpop.f32.mrf.mxu0
      %873 = vmatprep.mubr.bf16.mxu0 0
      %874 = vmatmul.mubr.bf16.gmra.mxu0 %v604
      %v875 = vpop.f32.mrf.mxu0
      %v876 = vadd.f32 %v520, %v875
      %v877 = vpop.f32.mrf.mxu0
      %v878 = vpop.f32.mrf.mxu0
      %v879 = vadd.f32 %v520, %v878
      %v880 = vpop.f32.mrf.mxu0
      %881 = vmatprep.mubr.bf16.mxu0 0
      %882 = vmatmul.mubr.bf16.gmra.mxu0 %v607
      %v883 = vpop.f32.mrf.mxu0
      %v884 = vadd.f32 %v520, %v883
      %v885 = vpop.f32.mrf.mxu0
      %v886 = vpop.f32.mrf.mxu0
      %v887 = vadd.f32 %v520, %v886
      %v888 = vpop.f32.mrf.mxu0
      %889 = vmatprep.mubr.bf16.mxu0 0
      %890 = vmatmul.mubr.bf16.gmra.mxu0 %v610
      %v891 = vpop.f32.mrf.mxu0
      %v892 = vadd.f32 %v520, %v891
      %v893 = vpop.f32.mrf.mxu0
      %v894 = vpop.f32.mrf.mxu0
      %v895 = vadd.f32 %v520, %v894
      %v896 = vpop.f32.mrf.mxu0
      %897 = vmatprep.mubr.bf16.mxu0 0
      %898 = vmatmul.mubr.bf16.gmra.mxu0 %v613
      %v899 = vpop.f32.mrf.mxu0
      %v900 = vadd.f32 %v520, %v899
      %v901 = vpop.f32.mrf.mxu0
      %v902 = vpop.f32.mrf.mxu0
      %v903 = vadd.f32 %v520, %v902
      %v904 = vpop.f32.mrf.mxu0
      %905 = vmatprep.mubr.bf16.mxu0 0
      %906 = vmatmul.mubr.bf16.gmra.mxu0 %v616
      %v907 = vpop.f32.mrf.mxu0
      %v908 = vadd.f32 %v520, %v907
      %v909 = vpop.f32.mrf.mxu0
      %v910 = vpop.f32.mrf.mxu0
      %v911 = vadd.f32 %v520, %v910
      %v912 = vpop.f32.mrf.mxu0
      %913 = vdwg.mxu0
      %vm914 = vcmp.gt.f32.partialorder %v660, 0.0
      %vm915 = vcmp.gt.f32.partialorder %v663, 0.0
      %vm916 = vcmp.gt.f32.partialorder %v668, 0.0
      %vm917 = vcmp.gt.f32.partialorder %v671, 0.0
      %vm918 = vcmp.gt.f32.partialorder %v676, 0.0
      %vm919 = vcmp.gt.f32.partialorder %v679, 0.0
      %vm920 = vcmp.gt.f32.partialorder %v684, 0.0
      %vm921 = vcmp.gt.f32.partialorder %v687, 0.0
      %vm922 = vcmp.gt.f32.partialorder %v692, 0.0
      %vm923 = vcmp.gt.f32.partialorder %v695, 0.0
      %vm924 = vcmp.gt.f32.partialorder %v700, 0.0
      %vm925 = vcmp.gt.f32.partialorder %v703, 0.0
      %vm926 = vcmp.gt.f32.partialorder %v708, 0.0
      %vm927 = vcmp.gt.f32.partialorder %v711, 0.0
      %vm928 = vcmp.gt.f32.partialorder %v716, 0.0
      %vm929 = vcmp.gt.f32.partialorder %v719, 0.0
      %vm930 = vcmp.gt.f32.partialorder %v724, 0.0
      %vm931 = vcmp.gt.f32.partialorder %v727, 0.0
      %vm932 = vcmp.gt.f32.partialorder %v732, 0.0
      %vm933 = vcmp.gt.f32.partialorder %v735, 0.0
      %vm934 = vcmp.gt.f32.partialorder %v740, 0.0
      %vm935 = vcmp.gt.f32.partialorder %v743, 0.0
      %vm936 = vcmp.gt.f32.partialorder %v748, 0.0
      %vm937 = vcmp.gt.f32.partialorder %v751, 0.0
      %vm938 = vcmp.gt.f32.partialorder %v756, 0.0
      %vm939 = vcmp.gt.f32.partialorder %v759, 0.0
      %vm940 = vcmp.gt.f32.partialorder %v764, 0.0
      %vm941 = vcmp.gt.f32.partialorder %v767, 0.0
      %vm942 = vcmp.gt.f32.partialorder %v772, 0.0
      %vm943 = vcmp.gt.f32.partialorder %v775, 0.0
      %vm944 = vcmp.gt.f32.partialorder %v780, 0.0
      %vm945 = vcmp.gt.f32.partialorder %v783, 0.0
      %vm946 = vcmp.gt.f32.partialorder %v788, 0.0
      %vm947 = vcmp.gt.f32.partialorder %v791, 0.0
      %vm948 = vcmp.gt.f32.partialorder %v796, 0.0
      %vm949 = vcmp.gt.f32.partialorder %v799, 0.0
      %vm950 = vcmp.gt.f32.partialorder %v804, 0.0
      %vm951 = vcmp.gt.f32.partialorder %v807, 0.0
      %vm952 = vcmp.gt.f32.partialorder %v812, 0.0
      %vm953 = vcmp.gt.f32.partialorder %v815, 0.0
      %vm954 = vcmp.gt.f32.partialorder %v820, 0.0
      %vm955 = vcmp.gt.f32.partialorder %v823, 0.0
      %vm956 = vcmp.gt.f32.partialorder %v828, 0.0
      %vm957 = vcmp.gt.f32.partialorder %v831, 0.0
      %vm958 = vcmp.gt.f32.partialorder %v836, 0.0
      %vm959 = vcmp.gt.f32.partialorder %v839, 0.0
      %vm960 = vcmp.gt.f32.partialorder %v844, 0.0
      %vm961 = vcmp.gt.f32.partialorder %v847, 0.0
      %vm962 = vcmp.gt.f32.partialorder %v852, 0.0
      %vm963 = vcmp.gt.f32.partialorder %v855, 0.0
      %vm964 = vcmp.gt.f32.partialorder %v860, 0.0
      %vm965 = vcmp.gt.f32.partialorder %v863, 0.0
      %vm966 = vcmp.gt.f32.partialorder %v868, 0.0
      %vm967 = vcmp.gt.f32.partialorder %v871, 0.0
      %vm968 = vcmp.gt.f32.partialorder %v876, 0.0
      %vm969 = vcmp.gt.f32.partialorder %v879, 0.0
      %vm970 = vcmp.gt.f32.partialorder %v884, 0.0
      %vm971 = vcmp.gt.f32.partialorder %v887, 0.0
      %vm972 = vcmp.gt.f32.partialorder %v892, 0.0
      %vm973 = vcmp.gt.f32.partialorder %v895, 0.0
      %vm974 = vcmp.gt.f32.partialorder %v900, 0.0
      %vm975 = vcmp.gt.f32.partialorder %v903, 0.0
      %vm976 = vcmp.gt.f32.partialorder %v908, 0.0
      %vm977 = vcmp.gt.f32.partialorder %v911, 0.0
      %v978 = vmul.f32 %v660, 0.2
      %v979 = vmul.f32 %v663, 0.2
      %v980 = vmul.f32 %v668, 0.2
      %v981 = vmul.f32 %v671, 0.2
      %v982 = vmul.f32 %v676, 0.2
      %v983 = vmul.f32 %v679, 0.2
      %v984 = vmul.f32 %v684, 0.2
      %v985 = vmul.f32 %v687, 0.2
      %v986 = vmul.f32 %v692, 0.2
      %v987 = vmul.f32 %v695, 0.2
      %v988 = vmul.f32 %v700, 0.2
      %v989 = vmul.f32 %v703, 0.2
      %v990 = vmul.f32 %v708, 0.2
      %v991 = vmul.f32 %v711, 0.2
      %v992 = vmul.f32 %v716, 0.2
      %v993 = vmul.f32 %v719, 0.2
      %v994 = vmul.f32 %v724, 0.2
      %v995 = vmul.f32 %v727, 0.2
      %v996 = vmul.f32 %v732, 0.2
      %v997 = vmul.f32 %v735, 0.2
      %v998 = vmul.f32 %v740, 0.2
      %v999 = vmul.f32 %v743, 0.2
      %v1000 = vmul.f32 %v748, 0.2
      %v1001 = vmul.f32 %v751, 0.2
      %v1002 = vmul.f32 %v756, 0.2
      %v1003 = vmul.f32 %v759, 0.2
      %v1004 = vmul.f32 %v764, 0.2
      %v1005 = vmul.f32 %v767, 0.2
      %v1006 = vmul.f32 %v772, 0.2
      %v1007 = vmul.f32 %v775, 0.2
      %v1008 = vmul.f32 %v780, 0.2
      %v1009 = vmul.f32 %v783, 0.2
      %v1010 = vmul.f32 %v788, 0.2
      %v1011 = vmul.f32 %v791, 0.2
      %v1012 = vmul.f32 %v796, 0.2
      %v1013 = vmul.f32 %v799, 0.2
      %v1014 = vmul.f32 %v804, 0.2
      %v1015 = vmul.f32 %v807, 0.2
      %v1016 = vmul.f32 %v812, 0.2
      %v1017 = vmul.f32 %v815, 0.2
      %v1018 = vmul.f32 %v820, 0.2
      %v1019 = vmul.f32 %v823, 0.2
      %v1020 = vmul.f32 %v828, 0.2
      %v1021 = vmul.f32 %v831, 0.2
      %v1022 = vmul.f32 %v836, 0.2
      %v1023 = vmul.f32 %v839, 0.2
      %v1024 = vmul.f32 %v844, 0.2
      %v1025 = vmul.f32 %v847, 0.2
      %v1026 = vmul.f32 %v852, 0.2
      %v1027 = vmul.f32 %v855, 0.2
      %v1028 = vmul.f32 %v860, 0.2
      %v1029 = vmul.f32 %v863, 0.2
      %v1030 = vmul.f32 %v868, 0.2
      %v1031 = vmul.f32 %v871, 0.2
      %v1032 = vmul.f32 %v876, 0.2
      %v1033 = vmul.f32 %v879, 0.2
      %v1034 = vmul.f32 %v884, 0.2
      %v1035 = vmul.f32 %v887, 0.2
      %v1036 = vmul.f32 %v892, 0.2
      %v1037 = vmul.f32 %v895, 0.2
      %v1038 = vmul.f32 %v900, 0.2
      %v1039 = vmul.f32 %v903, 0.2
      %v1040 = vmul.f32 %v908, 0.2
      %v1041 = vmul.f32 %v911, 0.2
      %v1042 = vsel %vm914, %v660, %v978
      %v1043 = vsel %vm915, %v663, %v979
      %v1044 = vsel %vm916, %v668, %v980
      %v1045 = vsel %vm917, %v671, %v981
      %v1046 = vsel %vm918, %v676, %v982
      %v1047 = vsel %vm919, %v679, %v983
      %v1048 = vsel %vm920, %v684, %v984
      %v1049 = vsel %vm921, %v687, %v985
      %v1050 = vsel %vm922, %v692, %v986
      %v1051 = vsel %vm923, %v695, %v987
      %v1052 = vsel %vm924, %v700, %v988
      %v1053 = vsel %vm925, %v703, %v989
      %v1054 = vsel %vm926, %v708, %v990
      %v1055 = vsel %vm927, %v711, %v991
      %v1056 = vsel %vm928, %v716, %v992
      %v1057 = vsel %vm929, %v719, %v993
      %v1058 = vsel %vm930, %v724, %v994
      %v1059 = vsel %vm931, %v727, %v995
      %v1060 = vsel %vm932, %v732, %v996
      %v1061 = vsel %vm933, %v735, %v997
      %v1062 = vsel %vm934, %v740, %v998
      %v1063 = vsel %vm935, %v743, %v999
      %v1064 = vsel %vm936, %v748, %v1000
      %v1065 = vsel %vm937, %v751, %v1001
      %v1066 = vsel %vm938, %v756, %v1002
      %v1067 = vsel %vm939, %v759, %v1003
      %v1068 = vsel %vm940, %v764, %v1004
      %v1069 = vsel %vm941, %v767, %v1005
      %v1070 = vsel %vm942, %v772, %v1006
      %v1071 = vsel %vm943, %v775, %v1007
      %v1072 = vsel %vm944, %v780, %v1008
      %v1073 = vsel %vm945, %v783, %v1009
      %v1074 = vsel %vm946, %v788, %v1010
      %v1075 = vsel %vm947, %v791, %v1011
      %v1076 = vsel %vm948, %v796, %v1012
      %v1077 = vsel %vm949, %v799, %v1013
      %v1078 = vsel %vm950, %v804, %v1014
      %v1079 = vsel %vm951, %v807, %v1015
      %v1080 = vsel %vm952, %v812, %v1016
      %v1081 = vsel %vm953, %v815, %v1017
      %v1082 = vsel %vm954, %v820, %v1018
      %v1083 = vsel %vm955, %v823, %v1019
      %v1084 = vsel %vm956, %v828, %v1020
      %v1085 = vsel %vm957, %v831, %v1021
      %v1086 = vsel %vm958, %v836, %v1022
      %v1087 = vsel %vm959, %v839, %v1023
      %v1088 = vsel %vm960, %v844, %v1024
      %v1089 = vsel %vm961, %v847, %v1025
      %v1090 = vsel %vm962, %v852, %v1026
      %v1091 = vsel %vm963, %v855, %v1027
      %v1092 = vsel %vm964, %v860, %v1028
      %v1093 = vsel %vm965, %v863, %v1029
      %v1094 = vsel %vm966, %v868, %v1030
      %v1095 = vsel %vm967, %v871, %v1031
      %v1096 = vsel %vm968, %v876, %v1032
      %v1097 = vsel %vm969, %v879, %v1033
      %v1098 = vsel %vm970, %v884, %v1034
      %v1099 = vsel %vm971, %v887, %v1035
      %v1100 = vsel %vm972, %v892, %v1036
      %v1101 = vsel %vm973, %v895, %v1037
      %v1102 = vsel %vm974, %v900, %v1038
      %v1103 = vsel %vm975, %v903, %v1039
      %v1104 = vsel %vm976, %v908, %v1040
      %v1105 = vsel %vm977, %v911, %v1041
      %v1107 = vcombine.high %v417, %v417
      %v1109 = vunpack.c.l.s4 1966171168
      %v1110 = vunpack.c.0.s8 %v1109
      %v1111 = vlaneseq
      %v1112 = vshrl.u32 %v1111, 7
      %v1113 = vsub.s32 %v1110, %v1112
      %v1114 = vrot.slane %v417, %v1113
      %v1116 = vunpack.c.l.s4 1966171168
      %v1117 = vunpack.c.0.s8 %v1116
      %v1118 = vlaneseq
      %v1119 = vshrl.u32 %v1118, 7
      %v1120 = vsub.s32 %v1117, %v1119
      %v1121 = vrot.slane %v1107, %v1120
      %v1122 = vcombine.high %v1114, %v1114
      %v1123 = vcombine.high %v1121, %v1121
      %v1125 = vunpack.c.l.s4 1966171168
      %v1126 = vunpack.c.0.s8 %v1125
      %v1127 = vlaneseq
      %v1128 = vshrl.u32 %v1127, 7
      %v1129 = vsub.s32 %v1126, %v1128
      %v1130 = vrot.slane %v1114, %v1129
      %v1132 = vunpack.c.l.s4 1966171168
      %v1133 = vunpack.c.0.s8 %v1132
      %v1134 = vlaneseq
      %v1135 = vshrl.u32 %v1134, 7
      %v1136 = vsub.s32 %v1133, %v1135
      %v1137 = vrot.slane %v1121, %v1136
      %v1139 = vunpack.c.l.s4 1966171168
      %v1140 = vunpack.c.0.s8 %v1139
      %v1141 = vlaneseq
      %v1142 = vshrl.u32 %v1141, 7
      %v1143 = vsub.s32 %v1140, %v1142
      %v1144 = vrot.slane %v1122, %v1143
      %v1146 = vunpack.c.l.s4 1966171168
      %v1147 = vunpack.c.0.s8 %v1146
      %v1148 = vlaneseq
      %v1149 = vshrl.u32 %v1148, 7
      %v1150 = vsub.s32 %v1147, %v1149
      %v1151 = vrot.slane %v1123, %v1150
      %v1152 = vcombine.high %v1130, %v1130
      %v1153 = vcombine.high %v1137, %v1137
      %v1154 = vcombine.high %v1144, %v1144
      %v1155 = vcombine.high %v1151, %v1151
      %v1156 = vlaneseq
      %v1157 = vshrl.u32 %v1156, 7
      %v1158 = vsub.s32 0, %v1157
      %v1159 = vrot.slane %v1130, %v1158
      %v1160 = vlaneseq
      %v1161 = vshrl.u32 %v1160, 7
      %v1162 = vsub.s32 0, %v1161
      %v1163 = vrot.slane %v1144, %v1162
      %v1164 = vlaneseq
      %v1165 = vshrl.u32 %v1164, 7
      %v1166 = vsub.s32 0, %v1165
      %v1167 = vrot.slane %v1152, %v1166
      %v1168 = vlaneseq
      %v1169 = vshrl.u32 %v1168, 7
      %v1170 = vsub.s32 0, %v1169
      %v1171 = vrot.slane %v1154, %v1170
      %v1172 = vlaneseq
      %v1173 = vshrl.u32 %v1172, 7
      %v1174 = vsub.s32 0, %v1173
      %v1175 = vrot.slane %v1137, %v1174
      %v1176 = vlaneseq
      %v1177 = vshrl.u32 %v1176, 7
      %v1178 = vsub.s32 0, %v1177
      %v1179 = vrot.slane %v1151, %v1178
      %v1180 = vlaneseq
      %v1181 = vshrl.u32 %v1180, 7
      %v1182 = vsub.s32 0, %v1181
      %v1183 = vrot.slane %v1153, %v1182
      %v1184 = vlaneseq
      %v1185 = vshrl.u32 %v1184, 7
      %v1186 = vsub.s32 0, %v1185
      %v1187 = vrot.slane %v1155, %v1186
      %v1196 = vsub.f32 %v418, %v1159
      %v1197 = vsub.f32 %v419, %v1159
      %v1198 = vsub.f32 %v420, %v1159
      %v1199 = vsub.f32 %v421, %v1159
      %v1200 = vsub.f32 %v422, %v1159
      %v1201 = vsub.f32 %v423, %v1159
      %v1202 = vsub.f32 %v424, %v1159
      %v1203 = vsub.f32 %v425, %v1159
      %v1204 = vsub.f32 %v426, %v1163
      %v1205 = vsub.f32 %v427, %v1163
      %v1206 = vsub.f32 %v428, %v1163
      %v1207 = vsub.f32 %v429, %v1163
      %v1208 = vsub.f32 %v430, %v1163
      %v1209 = vsub.f32 %v431, %v1163
      %v1210 = vsub.f32 %v432, %v1163
      %v1211 = vsub.f32 %v433, %v1163
      %v1212 = vsub.f32 %v434, %v1167
      %v1213 = vsub.f32 %v435, %v1167
      %v1214 = vsub.f32 %v436, %v1167
      %v1215 = vsub.f32 %v437, %v1167
      %v1216 = vsub.f32 %v438, %v1167
      %v1217 = vsub.f32 %v439, %v1167
      %v1218 = vsub.f32 %v440, %v1167
      %v1219 = vsub.f32 %v441, %v1167
      %v1220 = vsub.f32 %v442, %v1171
      %v1221 = vsub.f32 %v443, %v1171
      %v1222 = vsub.f32 %v444, %v1171
      %v1223 = vsub.f32 %v445, %v1171
      %v1224 = vsub.f32 %v446, %v1171
      %v1225 = vsub.f32 %v447, %v1171
      %v1226 = vsub.f32 %v448, %v1171
      %v1227 = vsub.f32 %v449, %v1171
      %v1228 = vsub.f32 %v450, %v1175
      %v1229 = vsub.f32 %v451, %v1175
      %v1230 = vsub.f32 %v452, %v1175
      %v1231 = vsub.f32 %v453, %v1175
      %v1232 = vsub.f32 %v454, %v1175
      %v1233 = vsub.f32 %v455, %v1175
      %v1234 = vsub.f32 %v456, %v1175
      %v1235 = vsub.f32 %v457, %v1175
      %v1236 = vsub.f32 %v458, %v1179
      %v1237 = vsub.f32 %v459, %v1179
      %v1238 = vsub.f32 %v460, %v1179
      %v1239 = vsub.f32 %v461, %v1179
      %v1240 = vsub.f32 %v462, %v1179
      %v1241 = vsub.f32 %v463, %v1179
      %v1242 = vsub.f32 %v464, %v1179
      %v1243 = vsub.f32 %v465, %v1179
      %v1244 = vsub.f32 %v466, %v1183
      %v1245 = vsub.f32 %v467, %v1183
      %v1246 = vsub.f32 %v468, %v1183
      %v1247 = vsub.f32 %v469, %v1183
      %v1248 = vsub.f32 %v470, %v1183
      %v1249 = vsub.f32 %v471, %v1183
      %v1250 = vsub.f32 %v472, %v1183
      %v1251 = vsub.f32 %v473, %v1183
      %v1252 = vsub.f32 %v474, %v1187
      %v1253 = vsub.f32 %v475, %v1187
      %v1254 = vsub.f32 %v476, %v1187
      %v1255 = vsub.f32 %v477, %v1187
      %v1256 = vsub.f32 %v478, %v1187
      %v1257 = vsub.f32 %v479, %v1187
      %v1258 = vsub.f32 %v480, %v1187
      %v1259 = vsub.f32 %v481, %v1187
      %v1260 = vmul.f32 %v1196, %v1196
      %v1261 = vmul.f32 %v1197, %v1197
      %v1262 = vmul.f32 %v1198, %v1198
      %v1263 = vmul.f32 %v1199, %v1199
      %v1264 = vmul.f32 %v1200, %v1200
      %v1265 = vmul.f32 %v1201, %v1201
      %v1266 = vmul.f32 %v1202, %v1202
      %v1267 = vmul.f32 %v1203, %v1203
      %v1268 = vmul.f32 %v1204, %v1204
      %v1269 = vmul.f32 %v1205, %v1205
      %v1270 = vmul.f32 %v1206, %v1206
      %v1271 = vmul.f32 %v1207, %v1207
      %v1272 = vmul.f32 %v1208, %v1208
      %v1273 = vmul.f32 %v1209, %v1209
      %v1274 = vmul.f32 %v1210, %v1210
      %v1275 = vmul.f32 %v1211, %v1211
      %v1276 = vmul.f32 %v1212, %v1212
      %v1277 = vmul.f32 %v1213, %v1213
      %v1278 = vmul.f32 %v1214, %v1214
      %v1279 = vmul.f32 %v1215, %v1215
      %v1280 = vmul.f32 %v1216, %v1216
      %v1281 = vmul.f32 %v1217, %v1217
      %v1282 = vmul.f32 %v1218, %v1218
      %v1283 = vmul.f32 %v1219, %v1219
      %v1284 = vmul.f32 %v1220, %v1220
      %v1285 = vmul.f32 %v1221, %v1221
      %v1286 = vmul.f32 %v1222, %v1222
      %v1287 = vmul.f32 %v1223, %v1223
      %v1288 = vmul.f32 %v1224, %v1224
      %v1289 = vmul.f32 %v1225, %v1225
      %v1290 = vmul.f32 %v1226, %v1226
      %v1291 = vmul.f32 %v1227, %v1227
      %v1292 = vmul.f32 %v1228, %v1228
      %v1293 = vmul.f32 %v1229, %v1229
      %v1294 = vmul.f32 %v1230, %v1230
      %v1295 = vmul.f32 %v1231, %v1231
      %v1296 = vmul.f32 %v1232, %v1232
      %v1297 = vmul.f32 %v1233, %v1233
      %v1298 = vmul.f32 %v1234, %v1234
      %v1299 = vmul.f32 %v1235, %v1235
      %v1300 = vmul.f32 %v1236, %v1236
      %v1301 = vmul.f32 %v1237, %v1237
      %v1302 = vmul.f32 %v1238, %v1238
      %v1303 = vmul.f32 %v1239, %v1239
      %v1304 = vmul.f32 %v1240, %v1240
      %v1305 = vmul.f32 %v1241, %v1241
      %v1306 = vmul.f32 %v1242, %v1242
      %v1307 = vmul.f32 %v1243, %v1243
      %v1308 = vmul.f32 %v1244, %v1244
      %v1309 = vmul.f32 %v1245, %v1245
      %v1310 = vmul.f32 %v1246, %v1246
      %v1311 = vmul.f32 %v1247, %v1247
      %v1312 = vmul.f32 %v1248, %v1248
      %v1313 = vmul.f32 %v1249, %v1249
      %v1314 = vmul.f32 %v1250, %v1250
      %v1315 = vmul.f32 %v1251, %v1251
      %v1316 = vmul.f32 %v1252, %v1252
      %v1317 = vmul.f32 %v1253, %v1253
      %v1318 = vmul.f32 %v1254, %v1254
      %v1319 = vmul.f32 %v1255, %v1255
      %v1320 = vmul.f32 %v1256, %v1256
      %v1321 = vmul.f32 %v1257, %v1257
      %v1322 = vmul.f32 %v1258, %v1258
      %v1323 = vmul.f32 %v1259, %v1259
      %v1324 = vsel %vm521, %v1260, 0.0
      %1325 = vadd.xlane.f32.xlu0 %v1324
      %v1326 = vpop.xlane.xlu0 %1325
      %v1327 = vsel %vm521, %v1261, 0.0
      %1328 = vadd.xlane.f32.xlu0 %v1327
      %v1329 = vpop.xlane.xlu0 %1328
      %v1330 = vsel %vm521, %v1262, 0.0
      %1331 = vadd.xlane.f32.xlu0 %v1330
      %v1332 = vpop.xlane.xlu0 %1331
      %v1333 = vsel %vm521, %v1263, 0.0
      %1334 = vadd.xlane.f32.xlu0 %v1333
      %v1335 = vpop.xlane.xlu0 %1334
      %v1336 = vsel %vm521, %v1264, 0.0
      %1337 = vadd.xlane.f32.xlu0 %v1336
      %v1338 = vpop.xlane.xlu0 %1337
      %v1339 = vsel %vm521, %v1265, 0.0
      %1340 = vadd.xlane.f32.xlu0 %v1339
      %v1341 = vpop.xlane.xlu0 %1340
      %v1342 = vsel %vm521, %v1266, 0.0
      %1343 = vadd.xlane.f32.xlu0 %v1342
      %v1344 = vpop.xlane.xlu0 %1343
      %v1345 = vsel %vm521, %v1267, 0.0
      %1346 = vadd.xlane.f32.xlu0 %v1345
      %v1347 = vpop.xlane.xlu0 %1346
      %v1348 = vsel %vm521, %v1268, 0.0
      %1349 = vadd.xlane.f32.xlu0 %v1348
      %v1350 = vpop.xlane.xlu0 %1349
      %v1351 = vsel %vm521, %v1269, 0.0
      %1352 = vadd.xlane.f32.xlu0 %v1351
      %v1353 = vpop.xlane.xlu0 %1352
      %v1354 = vsel %vm521, %v1270, 0.0
      %1355 = vadd.xlane.f32.xlu0 %v1354
      %v1356 = vpop.xlane.xlu0 %1355
      %v1357 = vsel %vm521, %v1271, 0.0
      %1358 = vadd.xlane.f32.xlu0 %v1357
      %v1359 = vpop.xlane.xlu0 %1358
      %v1360 = vsel %vm521, %v1272, 0.0
      %1361 = vadd.xlane.f32.xlu0 %v1360
      %v1362 = vpop.xlane.xlu0 %1361
      %v1363 = vsel %vm521, %v1273, 0.0
      %1364 = vadd.xlane.f32.xlu0 %v1363
      %v1365 = vpop.xlane.xlu0 %1364
      %v1366 = vsel %vm521, %v1274, 0.0
      %1367 = vadd.xlane.f32.xlu0 %v1366
      %v1368 = vpop.xlane.xlu0 %1367
      %v1369 = vsel %vm521, %v1275, 0.0
      %1370 = vadd.xlane.f32.xlu0 %v1369
      %v1371 = vpop.xlane.xlu0 %1370
      %v1372 = vsel %vm521, %v1276, 0.0
      %1373 = vadd.xlane.f32.xlu0 %v1372
      %v1374 = vpop.xlane.xlu0 %1373
      %v1375 = vsel %vm521, %v1277, 0.0
      %1376 = vadd.xlane.f32.xlu0 %v1375
      %v1377 = vpop.xlane.xlu0 %1376
      %v1378 = vsel %vm521, %v1278, 0.0
      %1379 = vadd.xlane.f32.xlu0 %v1378
      %v1380 = vpop.xlane.xlu0 %1379
      %v1381 = vsel %vm521, %v1279, 0.0
      %1382 = vadd.xlane.f32.xlu0 %v1381
      %v1383 = vpop.xlane.xlu0 %1382
      %v1384 = vsel %vm521, %v1280, 0.0
      %1385 = vadd.xlane.f32.xlu0 %v1384
      %v1386 = vpop.xlane.xlu0 %1385
      %v1387 = vsel %vm521, %v1281, 0.0
      %1388 = vadd.xlane.f32.xlu0 %v1387
      %v1389 = vpop.xlane.xlu0 %1388
      %v1390 = vsel %vm521, %v1282, 0.0
      %1391 = vadd.xlane.f32.xlu0 %v1390
      %v1392 = vpop.xlane.xlu0 %1391
      %v1393 = vsel %vm521, %v1283, 0.0
      %1394 = vadd.xlane.f32.xlu0 %v1393
      %v1395 = vpop.xlane.xlu0 %1394
      %v1396 = vsel %vm521, %v1284, 0.0
      %1397 = vadd.xlane.f32.xlu0 %v1396
      %v1398 = vpop.xlane.xlu0 %1397
      %v1399 = vsel %vm521, %v1285, 0.0
      %1400 = vadd.xlane.f32.xlu0 %v1399
      %v1401 = vpop.xlane.xlu0 %1400
      %v1402 = vsel %vm521, %v1286, 0.0
      %1403 = vadd.xlane.f32.xlu0 %v1402
      %v1404 = vpop.xlane.xlu0 %1403
      %v1405 = vsel %vm521, %v1287, 0.0
      %1406 = vadd.xlane.f32.xlu0 %v1405
      %v1407 = vpop.xlane.xlu0 %1406
      %v1408 = vsel %vm521, %v1288, 0.0
      %1409 = vadd.xlane.f32.xlu0 %v1408
      %v1410 = vpop.xlane.xlu0 %1409
      %v1411 = vsel %vm521, %v1289, 0.0
      %1412 = vadd.xlane.f32.xlu0 %v1411
      %v1413 = vpop.xlane.xlu0 %1412
      %v1414 = vsel %vm521, %v1290, 0.0
      %1415 = vadd.xlane.f32.xlu0 %v1414
      %v1416 = vpop.xlane.xlu0 %1415
      %v1417 = vsel %vm521, %v1291, 0.0
      %1418 = vadd.xlane.f32.xlu0 %v1417
      %v1419 = vpop.xlane.xlu0 %1418
      %v1420 = vsel %vm521, %v1292, 0.0
      %1421 = vadd.xlane.f32.xlu0 %v1420
      %v1422 = vpop.xlane.xlu0 %1421
      %v1423 = vsel %vm521, %v1293, 0.0
      %1424 = vadd.xlane.f32.xlu0 %v1423
      %v1425 = vpop.xlane.xlu0 %1424
      %v1426 = vsel %vm521, %v1294, 0.0
      %1427 = vadd.xlane.f32.xlu0 %v1426
      %v1428 = vpop.xlane.xlu0 %1427
      %v1429 = vsel %vm521, %v1295, 0.0
      %1430 = vadd.xlane.f32.xlu0 %v1429
      %v1431 = vpop.xlane.xlu0 %1430
      %v1432 = vsel %vm521, %v1296, 0.0
      %1433 = vadd.xlane.f32.xlu0 %v1432
      %v1434 = vpop.xlane.xlu0 %1433
      %v1435 = vsel %vm521, %v1297, 0.0
      %1436 = vadd.xlane.f32.xlu0 %v1435
      %v1437 = vpop.xlane.xlu0 %1436
      %v1438 = vsel %vm521, %v1298, 0.0
      %1439 = vadd.xlane.f32.xlu0 %v1438
      %v1440 = vpop.xlane.xlu0 %1439
      %v1441 = vsel %vm521, %v1299, 0.0
      %1442 = vadd.xlane.f32.xlu0 %v1441
      %v1443 = vpop.xlane.xlu0 %1442
      %v1444 = vsel %vm521, %v1300, 0.0
      %1445 = vadd.xlane.f32.xlu0 %v1444
      %v1446 = vpop.xlane.xlu0 %1445
      %v1447 = vsel %vm521, %v1301, 0.0
      %1448 = vadd.xlane.f32.xlu0 %v1447
      %v1449 = vpop.xlane.xlu0 %1448
      %v1450 = vsel %vm521, %v1302, 0.0
      %1451 = vadd.xlane.f32.xlu0 %v1450
      %v1452 = vpop.xlane.xlu0 %1451
      %v1453 = vsel %vm521, %v1303, 0.0
      %1454 = vadd.xlane.f32.xlu0 %v1453
      %v1455 = vpop.xlane.xlu0 %1454
      %v1456 = vsel %vm521, %v1304, 0.0
      %1457 = vadd.xlane.f32.xlu0 %v1456
      %v1458 = vpop.xlane.xlu0 %1457
      %v1459 = vsel %vm521, %v1305, 0.0
      %1460 = vadd.xlane.f32.xlu0 %v1459
      %v1461 = vpop.xlane.xlu0 %1460
      %v1462 = vsel %vm521, %v1306, 0.0
      %1463 = vadd.xlane.f32.xlu0 %v1462
      %v1464 = vpop.xlane.xlu0 %1463
      %v1465 = vsel %vm521, %v1307, 0.0
      %1466 = vadd.xlane.f32.xlu0 %v1465
      %v1467 = vpop.xlane.xlu0 %1466
      %v1468 = vsel %vm521, %v1308, 0.0
      %1469 = vadd.xlane.f32.xlu0 %v1468
      %v1470 = vpop.xlane.xlu0 %1469
      %v1471 = vsel %vm521, %v1309, 0.0
      %1472 = vadd.xlane.f32.xlu0 %v1471
      %v1473 = vpop.xlane.xlu0 %1472
      %v1474 = vsel %vm521, %v1310, 0.0
      %1475 = vadd.xlane.f32.xlu0 %v1474
      %v1476 = vpop.xlane.xlu0 %1475
      %v1477 = vsel %vm521, %v1311, 0.0
      %1478 = vadd.xlane.f32.xlu0 %v1477
      %v1479 = vpop.xlane.xlu0 %1478
      %v1480 = vsel %vm521, %v1312, 0.0
      %1481 = vadd.xlane.f32.xlu0 %v1480
      %v1482 = vpop.xlane.xlu0 %1481
      %v1483 = vsel %vm521, %v1313, 0.0
      %1484 = vadd.xlane.f32.xlu0 %v1483
      %v1485 = vpop.xlane.xlu0 %1484
      %v1486 = vsel %vm521, %v1314, 0.0
      %1487 = vadd.xlane.f32.xlu0 %v1486
      %v1488 = vpop.xlane.xlu0 %1487
      %v1489 = vsel %vm521, %v1315, 0.0
      %1490 = vadd.xlane.f32.xlu0 %v1489
      %v1491 = vpop.xlane.xlu0 %1490
      %v1492 = vsel %vm521, %v1316, 0.0
      %1493 = vadd.xlane.f32.xlu0 %v1492
      %v1494 = vpop.xlane.xlu0 %1493
      %v1495 = vsel %vm521, %v1317, 0.0
      %1496 = vadd.xlane.f32.xlu0 %v1495
      %v1497 = vpop.xlane.xlu0 %1496
      %v1498 = vsel %vm521, %v1318, 0.0
      %1499 = vadd.xlane.f32.xlu0 %v1498
      %v1500 = vpop.xlane.xlu0 %1499
      %v1501 = vsel %vm521, %v1319, 0.0
      %1502 = vadd.xlane.f32.xlu0 %v1501
      %v1503 = vpop.xlane.xlu0 %1502
      %v1504 = vsel %vm521, %v1320, 0.0
      %1505 = vadd.xlane.f32.xlu0 %v1504
      %v1506 = vpop.xlane.xlu0 %1505
      %v1507 = vsel %vm521, %v1321, 0.0
      %1508 = vadd.xlane.f32.xlu0 %v1507
      %v1509 = vpop.xlane.xlu0 %1508
      %v1510 = vsel %vm521, %v1322, 0.0
      %1511 = vadd.xlane.f32.xlu0 %v1510
      %v1512 = vpop.xlane.xlu0 %1511
      %v1513 = vsel %vm521, %v1323, 0.0
      %1514 = vadd.xlane.f32.xlu0 %v1513
      %v1515 = vpop.xlane.xlu0 %1514
      %v1516 = vlaneseq
      %v1517 = vand.u32 %v1516, 127
      %v1518 = vmax.f32 %v1326, 0.0
      %v1519 = vmax.f32 %v1329, 0.0
      %v1520 = vmax.f32 %v1332, 0.0
      %v1521 = vmax.f32 %v1335, 0.0
      %v1522 = vmax.f32 %v1338, 0.0
      %v1523 = vmax.f32 %v1341, 0.0
      %v1524 = vmax.f32 %v1344, 0.0
      %v1525 = vmax.f32 %v1347, 0.0
      %v1526 = vmax.f32 %v1350, 0.0
      %v1527 = vmax.f32 %v1353, 0.0
      %v1528 = vmax.f32 %v1356, 0.0
      %v1529 = vmax.f32 %v1359, 0.0
      %v1530 = vmax.f32 %v1362, 0.0
      %v1531 = vmax.f32 %v1365, 0.0
      %v1532 = vmax.f32 %v1368, 0.0
      %v1533 = vmax.f32 %v1371, 0.0
      %v1534 = vmax.f32 %v1374, 0.0
      %v1535 = vmax.f32 %v1377, 0.0
      %v1536 = vmax.f32 %v1380, 0.0
      %v1537 = vmax.f32 %v1383, 0.0
      %v1538 = vmax.f32 %v1386, 0.0
      %v1539 = vmax.f32 %v1389, 0.0
      %v1540 = vmax.f32 %v1392, 0.0
      %v1541 = vmax.f32 %v1395, 0.0
      %v1542 = vmax.f32 %v1398, 0.0
      %v1543 = vmax.f32 %v1401, 0.0
      %v1544 = vmax.f32 %v1404, 0.0
      %v1545 = vmax.f32 %v1407, 0.0
      %v1546 = vmax.f32 %v1410, 0.0
      %v1547 = vmax.f32 %v1413, 0.0
      %v1548 = vmax.f32 %v1416, 0.0
      %v1549 = vmax.f32 %v1419, 0.0
      %v1550 = vmax.f32 %v1422, 0.0
      %v1551 = vmax.f32 %v1425, 0.0
      %v1552 = vmax.f32 %v1428, 0.0
      %v1553 = vmax.f32 %v1431, 0.0
      %v1554 = vmax.f32 %v1434, 0.0
      %v1555 = vmax.f32 %v1437, 0.0
      %v1556 = vmax.f32 %v1440, 0.0
      %v1557 = vmax.f32 %v1443, 0.0
      %v1558 = vmax.f32 %v1446, 0.0
      %v1559 = vmax.f32 %v1449, 0.0
      %v1560 = vmax.f32 %v1452, 0.0
      %v1561 = vmax.f32 %v1455, 0.0
      %v1562 = vmax.f32 %v1458, 0.0
      %v1563 = vmax.f32 %v1461, 0.0
      %v1564 = vmax.f32 %v1464, 0.0
      %v1565 = vmax.f32 %v1467, 0.0
      %v1566 = vmax.f32 %v1470, 0.0
      %v1567 = vmax.f32 %v1473, 0.0
      %v1568 = vmax.f32 %v1476, 0.0
      %v1569 = vmax.f32 %v1479, 0.0
      %v1570 = vmax.f32 %v1482, 0.0
      %v1571 = vmax.f32 %v1485, 0.0
      %v1572 = vmax.f32 %v1488, 0.0
      %v1573 = vmax.f32 %v1491, 0.0
      %v1574 = vmax.f32 %v1494, 0.0
      %v1575 = vmax.f32 %v1497, 0.0
      %v1576 = vmax.f32 %v1500, 0.0
      %v1577 = vmax.f32 %v1503, 0.0
      %v1578 = vmax.f32 %v1506, 0.0
      %v1579 = vmax.f32 %v1509, 0.0
      %v1580 = vmax.f32 %v1512, 0.0
      %v1581 = vmax.f32 %v1515, 0.0
      %v1646 = vand.u32 %v1518, 4294967232
      %v1647 = vand.u32 %v1519, 4294967232
      %v1648 = vand.u32 %v1520, 4294967232
      %v1649 = vand.u32 %v1521, 4294967232
      %v1650 = vand.u32 %v1522, 4294967232
      %v1651 = vand.u32 %v1523, 4294967232
      %v1652 = vand.u32 %v1524, 4294967232
      %v1653 = vand.u32 %v1525, 4294967232
      %v1654 = vand.u32 %v1526, 4294967232
      %v1655 = vand.u32 %v1527, 4294967232
      %v1656 = vand.u32 %v1528, 4294967232
      %v1657 = vand.u32 %v1529, 4294967232
      %v1658 = vand.u32 %v1530, 4294967232
      %v1659 = vand.u32 %v1531, 4294967232
      %v1660 = vand.u32 %v1532, 4294967232
      %v1661 = vand.u32 %v1533, 4294967232
      %v1662 = vand.u32 %v1534, 4294967232
      %v1663 = vand.u32 %v1535, 4294967232
      %v1664 = vand.u32 %v1536, 4294967232
      %v1665 = vand.u32 %v1537, 4294967232
      %v1666 = vand.u32 %v1538, 4294967232
      %v1667 = vand.u32 %v1539, 4294967232
      %v1668 = vand.u32 %v1540, 4294967232
      %v1669 = vand.u32 %v1541, 4294967232
      %v1670 = vand.u32 %v1542, 4294967232
      %v1671 = vand.u32 %v1543, 4294967232
      %v1672 = vand.u32 %v1544, 4294967232
      %v1673 = vand.u32 %v1545, 4294967232
      %v1674 = vand.u32 %v1546, 4294967232
      %v1675 = vand.u32 %v1547, 4294967232
      %v1676 = vand.u32 %v1548, 4294967232
      %v1677 = vand.u32 %v1549, 4294967232
      %v1678 = vand.u32 %v1550, 4294967232
      %v1679 = vand.u32 %v1551, 4294967232
      %v1680 = vand.u32 %v1552, 4294967232
      %v1681 = vand.u32 %v1553, 4294967232
      %v1682 = vand.u32 %v1554, 4294967232
      %v1683 = vand.u32 %v1555, 4294967232
      %v1684 = vand.u32 %v1556, 4294967232
      %v1685 = vand.u32 %v1557, 4294967232
      %v1686 = vand.u32 %v1558, 4294967232
      %v1687 = vand.u32 %v1559, 4294967232
      %v1688 = vand.u32 %v1560, 4294967232
      %v1689 = vand.u32 %v1561, 4294967232
      %v1690 = vand.u32 %v1562, 4294967232
      %v1691 = vand.u32 %v1563, 4294967232
      %v1692 = vand.u32 %v1564, 4294967232
      %v1693 = vand.u32 %v1565, 4294967232
      %v1694 = vand.u32 %v1566, 4294967232
      %v1695 = vand.u32 %v1567, 4294967232
      %v1696 = vand.u32 %v1568, 4294967232
      %v1697 = vand.u32 %v1569, 4294967232
      %v1698 = vand.u32 %v1570, 4294967232
      %v1699 = vand.u32 %v1571, 4294967232
      %v1700 = vand.u32 %v1572, 4294967232
      %v1701 = vand.u32 %v1573, 4294967232
      %v1702 = vand.u32 %v1574, 4294967232
      %v1703 = vand.u32 %v1575, 4294967232
      %v1704 = vand.u32 %v1576, 4294967232
      %v1705 = vand.u32 %v1577, 4294967232
      %v1706 = vand.u32 %v1578, 4294967232
      %v1707 = vand.u32 %v1579, 4294967232
      %v1708 = vand.u32 %v1580, 4294967232
      %v1709 = vand.u32 %v1581, 4294967232
      %1711 = vbcast.lane.b32.xlu0 %v1517, 256
      %v1712 = vpop.permute.xlu0 %1711
      %s1714 = sor.u32 256, 8
      %1715 = vbcast.lane.b32.xlu0 %v1517, %s1714
      %v1716 = vpop.permute.xlu0 %1715
      %s1718 = sor.u32 256, 16
      %1719 = vbcast.lane.b32.xlu0 %v1517, %s1718
      %v1720 = vpop.permute.xlu0 %1719
      %s1722 = sor.u32 256, 24
      %1723 = vbcast.lane.b32.xlu0 %v1517, %s1722
      %v1724 = vpop.permute.xlu0 %1723
      %s1726 = sor.u32 256, 32
      %1727 = vbcast.lane.b32.xlu0 %v1517, %s1726
      %v1728 = vpop.permute.xlu0 %1727
      %s1730 = sor.u32 256, 40
      %1731 = vbcast.lane.b32.xlu0 %v1517, %s1730
      %v1732 = vpop.permute.xlu0 %1731
      %s1734 = sor.u32 256, 48
      %1735 = vbcast.lane.b32.xlu0 %v1517, %s1734
      %v1736 = vpop.permute.xlu0 %1735
      %s1738 = sor.u32 256, 56
      %1739 = vbcast.lane.b32.xlu0 %v1517, %s1738
      %v1740 = vpop.permute.xlu0 %1739
      %v1741 = vor.u32 %v1646, %v1712
      %v1742 = vor.u32 %v1647, %v1716
      %v1743 = vor.u32 %v1648, %v1720
      %v1744 = vor.u32 %v1649, %v1724
      %v1745 = vor.u32 %v1650, %v1728
      %v1746 = vor.u32 %v1651, %v1732
      %v1747 = vor.u32 %v1652, %v1736
      %v1748 = vor.u32 %v1653, %v1740
      %v1749 = vor.u32 %v1654, %v1712
      %v1750 = vor.u32 %v1655, %v1716
      %v1751 = vor.u32 %v1656, %v1720
      %v1752 = vor.u32 %v1657, %v1724
      %v1753 = vor.u32 %v1658, %v1728
      %v1754 = vor.u32 %v1659, %v1732
      %v1755 = vor.u32 %v1660, %v1736
      %v1756 = vor.u32 %v1661, %v1740
      %v1757 = vor.u32 %v1662, %v1712
      %v1758 = vor.u32 %v1663, %v1716
      %v1759 = vor.u32 %v1664, %v1720
      %v1760 = vor.u32 %v1665, %v1724
      %v1761 = vor.u32 %v1666, %v1728
      %v1762 = vor.u32 %v1667, %v1732
      %v1763 = vor.u32 %v1668, %v1736
      %v1764 = vor.u32 %v1669, %v1740
      %v1765 = vor.u32 %v1670, %v1712
      %v1766 = vor.u32 %v1671, %v1716
      %v1767 = vor.u32 %v1672, %v1720
      %v1768 = vor.u32 %v1673, %v1724
      %v1769 = vor.u32 %v1674, %v1728
      %v1770 = vor.u32 %v1675, %v1732
      %v1771 = vor.u32 %v1676, %v1736
      %v1772 = vor.u32 %v1677, %v1740
      %v1773 = vor.u32 %v1678, %v1712
      %v1774 = vor.u32 %v1679, %v1716
      %v1775 = vor.u32 %v1680, %v1720
      %v1776 = vor.u32 %v1681, %v1724
      %v1777 = vor.u32 %v1682, %v1728
      %v1778 = vor.u32 %v1683, %v1732
      %v1779 = vor.u32 %v1684, %v1736
      %v1780 = vor.u32 %v1685, %v1740
      %v1781 = vor.u32 %v1686, %v1712
      %v1782 = vor.u32 %v1687, %v1716
      %v1783 = vor.u32 %v1688, %v1720
      %v1784 = vor.u32 %v1689, %v1724
      %v1785 = vor.u32 %v1690, %v1728
      %v1786 = vor.u32 %v1691, %v1732
      %v1787 = vor.u32 %v1692, %v1736
      %v1788 = vor.u32 %v1693, %v1740
      %v1789 = vor.u32 %v1694, %v1712
      %v1790 = vor.u32 %v1695, %v1716
      %v1791 = vor.u32 %v1696, %v1720
      %v1792 = vor.u32 %v1697, %v1724
      %v1793 = vor.u32 %v1698, %v1728
      %v1794 = vor.u32 %v1699, %v1732
      %v1795 = vor.u32 %v1700, %v1736
      %v1796 = vor.u32 %v1701, %v1740
      %v1797 = vor.u32 %v1702, %v1712
      %v1798 = vor.u32 %v1703, %v1716
      %v1799 = vor.u32 %v1704, %v1720
      %v1800 = vor.u32 %v1705, %v1724
      %v1801 = vor.u32 %v1706, %v1728
      %v1802 = vor.u32 %v1707, %v1732
      %v1803 = vor.u32 %v1708, %v1736
      %v1804 = vor.u32 %v1709, %v1740
      %1805 = vset.pattern.permute.xlu0 0
      %1806 = vperm.xlu0 %1805, %v1741
      %v1807 = vpop.permute.xlu0 %1806
      %1808 = vset.pattern.permute.xlu0 0
      %1809 = vperm.xlu0 %1808, %v1742
      %v1810 = vpop.permute.xlu0 %1809
      %1811 = vset.pattern.permute.xlu0 0
      %1812 = vperm.xlu0 %1811, %v1743
      %v1813 = vpop.permute.xlu0 %1812
      %1814 = vset.pattern.permute.xlu0 0
      %1815 = vperm.xlu0 %1814, %v1744
      %v1816 = vpop.permute.xlu0 %1815
      %1817 = vset.pattern.permute.xlu0 0
      %1818 = vperm.xlu0 %1817, %v1745
      %v1819 = vpop.permute.xlu0 %1818
      %1820 = vset.pattern.permute.xlu0 0
      %1821 = vperm.xlu0 %1820, %v1746
      %v1822 = vpop.permute.xlu0 %1821
      %1823 = vset.pattern.permute.xlu0 0
      %1824 = vperm.xlu0 %1823, %v1747
      %v1825 = vpop.permute.xlu0 %1824
      %1826 = vset.pattern.permute.xlu0 0
      %1827 = vperm.xlu0 %1826, %v1748
      %v1828 = vpop.permute.xlu0 %1827
      %1829 = vset.pattern.permute.xlu0 0
      %1830 = vperm.xlu0 %1829, %v1749
      %v1831 = vpop.permute.xlu0 %1830
      %1832 = vset.pattern.permute.xlu0 0
      %1833 = vperm.xlu0 %1832, %v1750
      %v1834 = vpop.permute.xlu0 %1833
      %1835 = vset.pattern.permute.xlu0 0
      %1836 = vperm.xlu0 %1835, %v1751
      %v1837 = vpop.permute.xlu0 %1836
      %1838 = vset.pattern.permute.xlu0 0
      %1839 = vperm.xlu0 %1838, %v1752
      %v1840 = vpop.permute.xlu0 %1839
      %1841 = vset.pattern.permute.xlu0 0
      %1842 = vperm.xlu0 %1841, %v1753
      %v1843 = vpop.permute.xlu0 %1842
      %1844 = vset.pattern.permute.xlu0 0
      %1845 = vperm.xlu0 %1844, %v1754
      %v1846 = vpop.permute.xlu0 %1845
      %1847 = vset.pattern.permute.xlu0 0
      %1848 = vperm.xlu0 %1847, %v1755
      %v1849 = vpop.permute.xlu0 %1848
      %1850 = vset.pattern.permute.xlu0 0
      %1851 = vperm.xlu0 %1850, %v1756
      %v1852 = vpop.permute.xlu0 %1851
      %1853 = vset.pattern.permute.xlu0 0
      %1854 = vperm.xlu0 %1853, %v1757
      %v1855 = vpop.permute.xlu0 %1854
      %1856 = vset.pattern.permute.xlu0 0
      %1857 = vperm.xlu0 %1856, %v1758
      %v1858 = vpop.permute.xlu0 %1857
      %1859 = vset.pattern.permute.xlu0 0
      %1860 = vperm.xlu0 %1859, %v1759
      %v1861 = vpop.permute.xlu0 %1860
      %1862 = vset.pattern.permute.xlu0 0
      %1863 = vperm.xlu0 %1862, %v1760
      %v1864 = vpop.permute.xlu0 %1863
      %1865 = vset.pattern.permute.xlu0 0
      %1866 = vperm.xlu0 %1865, %v1761
      %v1867 = vpop.permute.xlu0 %1866
      %1868 = vset.pattern.permute.xlu0 0
      %1869 = vperm.xlu0 %1868, %v1762
      %v1870 = vpop.permute.xlu0 %1869
      %1871 = vset.pattern.permute.xlu0 0
      %1872 = vperm.xlu0 %1871, %v1763
      %v1873 = vpop.permute.xlu0 %1872
      %1874 = vset.pattern.permute.xlu0 0
      %1875 = vperm.xlu0 %1874, %v1764
      %v1876 = vpop.permute.xlu0 %1875
      %1877 = vset.pattern.permute.xlu0 0
      %1878 = vperm.xlu0 %1877, %v1765
      %v1879 = vpop.permute.xlu0 %1878
      %1880 = vset.pattern.permute.xlu0 0
      %1881 = vperm.xlu0 %1880, %v1766
      %v1882 = vpop.permute.xlu0 %1881
      %1883 = vset.pattern.permute.xlu0 0
      %1884 = vperm.xlu0 %1883, %v1767
      %v1885 = vpop.permute.xlu0 %1884
      %1886 = vset.pattern.permute.xlu0 0
      %1887 = vperm.xlu0 %1886, %v1768
      %v1888 = vpop.permute.xlu0 %1887
      %1889 = vset.pattern.permute.xlu0 0
      %1890 = vperm.xlu0 %1889, %v1769
      %v1891 = vpop.permute.xlu0 %1890
      %1892 = vset.pattern.permute.xlu0 0
      %1893 = vperm.xlu0 %1892, %v1770
      %v1894 = vpop.permute.xlu0 %1893
      %1895 = vset.pattern.permute.xlu0 0
      %1896 = vperm.xlu0 %1895, %v1771
      %v1897 = vpop.permute.xlu0 %1896
      %1898 = vset.pattern.permute.xlu0 0
      %1899 = vperm.xlu0 %1898, %v1772
      %v1900 = vpop.permute.xlu0 %1899
      %1901 = vset.pattern.permute.xlu0 0
      %1902 = vperm.xlu0 %1901, %v1773
      %v1903 = vpop.permute.xlu0 %1902
      %1904 = vset.pattern.permute.xlu0 0
      %1905 = vperm.xlu0 %1904, %v1774
      %v1906 = vpop.permute.xlu0 %1905
      %1907 = vset.pattern.permute.xlu0 0
      %1908 = vperm.xlu0 %1907, %v1775
      %v1909 = vpop.permute.xlu0 %1908
      %1910 = vset.pattern.permute.xlu0 0
      %1911 = vperm.xlu0 %1910, %v1776
      %v1912 = vpop.permute.xlu0 %1911
      %1913 = vset.pattern.permute.xlu0 0
      %1914 = vperm.xlu0 %1913, %v1777
      %v1915 = vpop.permute.xlu0 %1914
      %1916 = vset.pattern.permute.xlu0 0
      %1917 = vperm.xlu0 %1916, %v1778
      %v1918 = vpop.permute.xlu0 %1917
      %1919 = vset.pattern.permute.xlu0 0
      %1920 = vperm.xlu0 %1919, %v1779
      %v1921 = vpop.permute.xlu0 %1920
      %1922 = vset.pattern.permute.xlu0 0
      %1923 = vperm.xlu0 %1922, %v1780
      %v1924 = vpop.permute.xlu0 %1923
      %1925 = vset.pattern.permute.xlu0 0
      %1926 = vperm.xlu0 %1925, %v1781
      %v1927 = vpop.permute.xlu0 %1926
      %1928 = vset.pattern.permute.xlu0 0
      %1929 = vperm.xlu0 %1928, %v1782
      %v1930 = vpop.permute.xlu0 %1929
      %1931 = vset.pattern.permute.xlu0 0
      %1932 = vperm.xlu0 %1931, %v1783
      %v1933 = vpop.permute.xlu0 %1932
      %1934 = vset.pattern.permute.xlu0 0
      %1935 = vperm.xlu0 %1934, %v1784
      %v1936 = vpop.permute.xlu0 %1935
      %1937 = vset.pattern.permute.xlu0 0
      %1938 = vperm.xlu0 %1937, %v1785
      %v1939 = vpop.permute.xlu0 %1938
      %1940 = vset.pattern.permute.xlu0 0
      %1941 = vperm.xlu0 %1940, %v1786
      %v1942 = vpop.permute.xlu0 %1941
      %1943 = vset.pattern.permute.xlu0 0
      %1944 = vperm.xlu0 %1943, %v1787
      %v1945 = vpop.permute.xlu0 %1944
      %1946 = vset.pattern.permute.xlu0 0
      %1947 = vperm.xlu0 %1946, %v1788
      %v1948 = vpop.permute.xlu0 %1947
      %1949 = vset.pattern.permute.xlu0 0
      %1950 = vperm.xlu0 %1949, %v1789
      %v1951 = vpop.permute.xlu0 %1950
      %1952 = vset.pattern.permute.xlu0 0
      %1953 = vperm.xlu0 %1952, %v1790
      %v1954 = vpop.permute.xlu0 %1953
      %1955 = vset.pattern.permute.xlu0 0
      %1956 = vperm.xlu0 %1955, %v1791
      %v1957 = vpop.permute.xlu0 %1956
      %1958 = vset.pattern.permute.xlu0 0
      %1959 = vperm.xlu0 %1958, %v1792
      %v1960 = vpop.permute.xlu0 %1959
      %1961 = vset.pattern.permute.xlu0 0
      %1962 = vperm.xlu0 %1961, %v1793
      %v1963 = vpop.permute.xlu0 %1962
      %1964 = vset.pattern.permute.xlu0 0
      %1965 = vperm.xlu0 %1964, %v1794
      %v1966 = vpop.permute.xlu0 %1965
      %1967 = vset.pattern.permute.xlu0 0
      %1968 = vperm.xlu0 %1967, %v1795
      %v1969 = vpop.permute.xlu0 %1968
      %1970 = vset.pattern.permute.xlu0 0
      %1971 = vperm.xlu0 %1970, %v1796
      %v1972 = vpop.permute.xlu0 %1971
      %1973 = vset.pattern.permute.xlu0 0
      %1974 = vperm.xlu0 %1973, %v1797
      %v1975 = vpop.permute.xlu0 %1974
      %1976 = vset.pattern.permute.xlu0 0
      %1977 = vperm.xlu0 %1976, %v1798
      %v1978 = vpop.permute.xlu0 %1977
      %1979 = vset.pattern.permute.xlu0 0
      %1980 = vperm.xlu0 %1979, %v1799
      %v1981 = vpop.permute.xlu0 %1980
      %1982 = vset.pattern.permute.xlu0 0
      %1983 = vperm.xlu0 %1982, %v1800
      %v1984 = vpop.permute.xlu0 %1983
      %1985 = vset.pattern.permute.xlu0 0
      %1986 = vperm.xlu0 %1985, %v1801
      %v1987 = vpop.permute.xlu0 %1986
      %1988 = vset.pattern.permute.xlu0 0
      %1989 = vperm.xlu0 %1988, %v1802
      %v1990 = vpop.permute.xlu0 %1989
      %1991 = vset.pattern.permute.xlu0 0
      %1992 = vperm.xlu0 %1991, %v1803
      %v1993 = vpop.permute.xlu0 %1992
      %1994 = vset.pattern.permute.xlu0 0
      %1995 = vperm.xlu0 %1994, %v1804
      %v1996 = vpop.permute.xlu0 %1995
      %v1997 = vlaneseq
      %v1998 = vshrl.u32 %v1997, 7
      %v1999 = vsub.s32 %v1517, %v1998
      %v2000 = vrot.slane %v1807, %v1999
      %v2001 = vadd.s32 %v1517, 4294967288
      %v2002 = vlaneseq
      %v2003 = vshrl.u32 %v2002, 7
      %v2004 = vsub.s32 %v2001, %v2003
      %v2005 = vrot.slane %v1810, %v2004
      %vm2006 = vcmask 130112
      %v2007 = vsel %vm2006, %v2005, %v2000
      %v2008 = vadd.s32 %v1517, 4294967280
      %v2009 = vlaneseq
      %v2010 = vshrl.u32 %v2009, 7
      %v2011 = vsub.s32 %v2008, %v2010
      %v2012 = vrot.slane %v1813, %v2011
      %vm2013 = vcmask 195712
      %v2014 = vsel %vm2013, %v2012, %v2007
      %v2015 = vadd.s32 %v1517, 4294967272
      %v2016 = vlaneseq
      %v2017 = vshrl.u32 %v2016, 7
      %v2018 = vsub.s32 %v2015, %v2017
      %v2019 = vrot.slane %v1816, %v2018
      %vm2020 = vcmask 261312
      %v2021 = vsel %vm2020, %v2019, %v2014
      %v2022 = vadd.s32 %v1517, 4294967264
      %v2023 = vlaneseq
      %v2024 = vshrl.u32 %v2023, 7
      %v2025 = vsub.s32 %v2022, %v2024
      %v2026 = vrot.slane %v1819, %v2025
      %vm2027 = vcmask 326912
      %v2028 = vsel %vm2027, %v2026, %v2021
      %v2029 = vadd.s32 %v1517, 4294967256
      %v2030 = vlaneseq
      %v2031 = vshrl.u32 %v2030, 7
      %v2032 = vsub.s32 %v2029, %v2031
      %v2033 = vrot.slane %v1822, %v2032
      %vm2034 = vcmask 392512
      %v2035 = vsel %vm2034, %v2033, %v2028
      %v2036 = vadd.s32 %v1517, 4294967248
      %v2037 = vlaneseq
      %v2038 = vshrl.u32 %v2037, 7
      %v2039 = vsub.s32 %v2036, %v2038
      %v2040 = vrot.slane %v1825, %v2039
      %vm2041 = vcmask 458112
      %v2042 = vsel %vm2041, %v2040, %v2035
      %v2043 = vadd.s32 %v1517, 4294967240
      %v2044 = vlaneseq
      %v2045 = vshrl.u32 %v2044, 7
      %v2046 = vsub.s32 %v2043, %v2045
      %v2047 = vrot.slane %v1828, %v2046
      %vm2048 = vcmask 523712
      %v2049 = vsel %vm2048, %v2047, %v2042
      %v2050 = vlaneseq
      %v2051 = vshrl.u32 %v2050, 7
      %v2052 = vsub.s32 %v1517, %v2051
      %v2053 = vrot.slane %v1831, %v2052
      %v2054 = vlaneseq
      %v2055 = vshrl.u32 %v2054, 7
      %v2056 = vsub.s32 %v2001, %v2055
      %v2057 = vrot.slane %v1834, %v2056
      %v2058 = vsel %vm2006, %v2057, %v2053
      %v2059 = vlaneseq
      %v2060 = vshrl.u32 %v2059, 7
      %v2061 = vsub.s32 %v2008, %v2060
      %v2062 = vrot.slane %v1837, %v2061
      %v2063 = vsel %vm2013, %v2062, %v2058
      %v2064 = vlaneseq
      %v2065 = vshrl.u32 %v2064, 7
      %v2066 = vsub.s32 %v2015, %v2065
      %v2067 = vrot.slane %v1840, %v2066
      %v2068 = vsel %vm2020, %v2067, %v2063
      %v2069 = vlaneseq
      %v2070 = vshrl.u32 %v2069, 7
      %v2071 = vsub.s32 %v2022, %v2070
      %v2072 = vrot.slane %v1843, %v2071
      %v2073 = vsel %vm2027, %v2072, %v2068
      %v2074 = vlaneseq
      %v2075 = vshrl.u32 %v2074, 7
      %v2076 = vsub.s32 %v2029, %v2075
      %v2077 = vrot.slane %v1846, %v2076
      %v2078 = vsel %vm2034, %v2077, %v2073
      %v2079 = vlaneseq
      %v2080 = vshrl.u32 %v2079, 7
      %v2081 = vsub.s32 %v2036, %v2080
      %v2082 = vrot.slane %v1849, %v2081
      %v2083 = vsel %vm2041, %v2082, %v2078
      %v2084 = vlaneseq
      %v2085 = vshrl.u32 %v2084, 7
      %v2086 = vsub.s32 %v2043, %v2085
      %v2087 = vrot.slane %v1852, %v2086
      %v2088 = vsel %vm2048, %v2087, %v2083
      %v2089 = vlaneseq
      %v2090 = vshrl.u32 %v2089, 7
      %v2091 = vsub.s32 %v1517, %v2090
      %v2092 = vrot.slane %v1855, %v2091
      %v2093 = vlaneseq
      %v2094 = vshrl.u32 %v2093, 7
      %v2095 = vsub.s32 %v2001, %v2094
      %v2096 = vrot.slane %v1858, %v2095
      %v2097 = vsel %vm2006, %v2096, %v2092
      %v2098 = vlaneseq
      %v2099 = vshrl.u32 %v2098, 7
      %v2100 = vsub.s32 %v2008, %v2099
      %v2101 = vrot.slane %v1861, %v2100
      %v2102 = vsel %vm2013, %v2101, %v2097
      %v2103 = vlaneseq
      %v2104 = vshrl.u32 %v2103, 7
      %v2105 = vsub.s32 %v2015, %v2104
      %v2106 = vrot.slane %v1864, %v2105
      %v2107 = vsel %vm2020, %v2106, %v2102
      %v2108 = vlaneseq
      %v2109 = vshrl.u32 %v2108, 7
      %v2110 = vsub.s32 %v2022, %v2109
      %v2111 = vrot.slane %v1867, %v2110
      %v2112 = vsel %vm2027, %v2111, %v2107
      %v2113 = vlaneseq
      %v2114 = vshrl.u32 %v2113, 7
      %v2115 = vsub.s32 %v2029, %v2114
      %v2116 = vrot.slane %v1870, %v2115
      %v2117 = vsel %vm2034, %v2116, %v2112
      %v2118 = vlaneseq
      %v2119 = vshrl.u32 %v2118, 7
      %v2120 = vsub.s32 %v2036, %v2119
      %v2121 = vrot.slane %v1873, %v2120
      %v2122 = vsel %vm2041, %v2121, %v2117
      %v2123 = vlaneseq
      %v2124 = vshrl.u32 %v2123, 7
      %v2125 = vsub.s32 %v2043, %v2124
      %v2126 = vrot.slane %v1876, %v2125
      %v2127 = vsel %vm2048, %v2126, %v2122
      %v2128 = vlaneseq
      %v2129 = vshrl.u32 %v2128, 7
      %v2130 = vsub.s32 %v1517, %v2129
      %v2131 = vrot.slane %v1879, %v2130
      %v2132 = vlaneseq
      %v2133 = vshrl.u32 %v2132, 7
      %v2134 = vsub.s32 %v2001, %v2133
      %v2135 = vrot.slane %v1882, %v2134
      %v2136 = vsel %vm2006, %v2135, %v2131
      %v2137 = vlaneseq
      %v2138 = vshrl.u32 %v2137, 7
      %v2139 = vsub.s32 %v2008, %v2138
      %v2140 = vrot.slane %v1885, %v2139
      %v2141 = vsel %vm2013, %v2140, %v2136
      %v2142 = vlaneseq
      %v2143 = vshrl.u32 %v2142, 7
      %v2144 = vsub.s32 %v2015, %v2143
      %v2145 = vrot.slane %v1888, %v2144
      %v2146 = vsel %vm2020, %v2145, %v2141
      %v2147 = vlaneseq
      %v2148 = vshrl.u32 %v2147, 7
      %v2149 = vsub.s32 %v2022, %v2148
      %v2150 = vrot.slane %v1891, %v2149
      %v2151 = vsel %vm2027, %v2150, %v2146
      %v2152 = vlaneseq
      %v2153 = vshrl.u32 %v2152, 7
      %v2154 = vsub.s32 %v2029, %v2153
      %v2155 = vrot.slane %v1894, %v2154
      %v2156 = vsel %vm2034, %v2155, %v2151
      %v2157 = vlaneseq
      %v2158 = vshrl.u32 %v2157, 7
      %v2159 = vsub.s32 %v2036, %v2158
      %v2160 = vrot.slane %v1897, %v2159
      %v2161 = vsel %vm2041, %v2160, %v2156
      %v2162 = vlaneseq
      %v2163 = vshrl.u32 %v2162, 7
      %v2164 = vsub.s32 %v2043, %v2163
      %v2165 = vrot.slane %v1900, %v2164
      %v2166 = vsel %vm2048, %v2165, %v2161
      %v2167 = vlaneseq
      %v2168 = vshrl.u32 %v2167, 7
      %v2169 = vsub.s32 %v1517, %v2168
      %v2170 = vrot.slane %v1903, %v2169
      %v2171 = vlaneseq
      %v2172 = vshrl.u32 %v2171, 7
      %v2173 = vsub.s32 %v2001, %v2172
      %v2174 = vrot.slane %v1906, %v2173
      %v2175 = vsel %vm2006, %v2174, %v2170
      %v2176 = vlaneseq
      %v2177 = vshrl.u32 %v2176, 7
      %v2178 = vsub.s32 %v2008, %v2177
      %v2179 = vrot.slane %v1909, %v2178
      %v2180 = vsel %vm2013, %v2179, %v2175
      %v2181 = vlaneseq
      %v2182 = vshrl.u32 %v2181, 7
      %v2183 = vsub.s32 %v2015, %v2182
      %v2184 = vrot.slane %v1912, %v2183
      %v2185 = vsel %vm2020, %v2184, %v2180
      %v2186 = vlaneseq
      %v2187 = vshrl.u32 %v2186, 7
      %v2188 = vsub.s32 %v2022, %v2187
      %v2189 = vrot.slane %v1915, %v2188
      %v2190 = vsel %vm2027, %v2189, %v2185
      %v2191 = vlaneseq
      %v2192 = vshrl.u32 %v2191, 7
      %v2193 = vsub.s32 %v2029, %v2192
      %v2194 = vrot.slane %v1918, %v2193
      %v2195 = vsel %vm2034, %v2194, %v2190
      %v2196 = vlaneseq
      %v2197 = vshrl.u32 %v2196, 7
      %v2198 = vsub.s32 %v2036, %v2197
      %v2199 = vrot.slane %v1921, %v2198
      %v2200 = vsel %vm2041, %v2199, %v2195
      %v2201 = vlaneseq
      %v2202 = vshrl.u32 %v2201, 7
      %v2203 = vsub.s32 %v2043, %v2202
      %v2204 = vrot.slane %v1924, %v2203
      %v2205 = vsel %vm2048, %v2204, %v2200
      %v2206 = vlaneseq
      %v2207 = vshrl.u32 %v2206, 7
      %v2208 = vsub.s32 %v1517, %v2207
      %v2209 = vrot.slane %v1927, %v2208
      %v2210 = vlaneseq
      %v2211 = vshrl.u32 %v2210, 7
      %v2212 = vsub.s32 %v2001, %v2211
      %v2213 = vrot.slane %v1930, %v2212
      %v2214 = vsel %vm2006, %v2213, %v2209
      %v2215 = vlaneseq
      %v2216 = vshrl.u32 %v2215, 7
      %v2217 = vsub.s32 %v2008, %v2216
      %v2218 = vrot.slane %v1933, %v2217
      %v2219 = vsel %vm2013, %v2218, %v2214
      %v2220 = vlaneseq
      %v2221 = vshrl.u32 %v2220, 7
      %v2222 = vsub.s32 %v2015, %v2221
      %v2223 = vrot.slane %v1936, %v2222
      %v2224 = vsel %vm2020, %v2223, %v2219
      %v2225 = vlaneseq
      %v2226 = vshrl.u32 %v2225, 7
      %v2227 = vsub.s32 %v2022, %v2226
      %v2228 = vrot.slane %v1939, %v2227
      %v2229 = vsel %vm2027, %v2228, %v2224
      %v2230 = vlaneseq
      %v2231 = vshrl.u32 %v2230, 7
      %v2232 = vsub.s32 %v2029, %v2231
      %v2233 = vrot.slane %v1942, %v2232
      %v2234 = vsel %vm2034, %v2233, %v2229
      %v2235 = vlaneseq
      %v2236 = vshrl.u32 %v2235, 7
      %v2237 = vsub.s32 %v2036, %v2236
      %v2238 = vrot.slane %v1945, %v2237
      %v2239 = vsel %vm2041, %v2238, %v2234
      %v2240 = vlaneseq
      %v2241 = vshrl.u32 %v2240, 7
      %v2242 = vsub.s32 %v2043, %v2241
      %v2243 = vrot.slane %v1948, %v2242
      %v2244 = vsel %vm2048, %v2243, %v2239
      %v2245 = vlaneseq
      %v2246 = vshrl.u32 %v2245, 7
      %v2247 = vsub.s32 %v1517, %v2246
      %v2248 = vrot.slane %v1951, %v2247
      %v2249 = vlaneseq
      %v2250 = vshrl.u32 %v2249, 7
      %v2251 = vsub.s32 %v2001, %v2250
      %v2252 = vrot.slane %v1954, %v2251
      %v2253 = vsel %vm2006, %v2252, %v2248
      %v2254 = vlaneseq
      %v2255 = vshrl.u32 %v2254, 7
      %v2256 = vsub.s32 %v2008, %v2255
      %v2257 = vrot.slane %v1957, %v2256
      %v2258 = vsel %vm2013, %v2257, %v2253
      %v2259 = vlaneseq
      %v2260 = vshrl.u32 %v2259, 7
      %v2261 = vsub.s32 %v2015, %v2260
      %v2262 = vrot.slane %v1960, %v2261
      %v2263 = vsel %vm2020, %v2262, %v2258
      %v2264 = vlaneseq
      %v2265 = vshrl.u32 %v2264, 7
      %v2266 = vsub.s32 %v2022, %v2265
      %v2267 = vrot.slane %v1963, %v2266
      %v2268 = vsel %vm2027, %v2267, %v2263
      %v2269 = vlaneseq
      %v2270 = vshrl.u32 %v2269, 7
      %v2271 = vsub.s32 %v2029, %v2270
      %v2272 = vrot.slane %v1966, %v2271
      %v2273 = vsel %vm2034, %v2272, %v2268
      %v2274 = vlaneseq
      %v2275 = vshrl.u32 %v2274, 7
      %v2276 = vsub.s32 %v2036, %v2275
      %v2277 = vrot.slane %v1969, %v2276
      %v2278 = vsel %vm2041, %v2277, %v2273
      %v2279 = vlaneseq
      %v2280 = vshrl.u32 %v2279, 7
      %v2281 = vsub.s32 %v2043, %v2280
      %v2282 = vrot.slane %v1972, %v2281
      %v2283 = vsel %vm2048, %v2282, %v2278
      %v2284 = vlaneseq
      %v2285 = vshrl.u32 %v2284, 7
      %v2286 = vsub.s32 %v1517, %v2285
      %v2287 = vrot.slane %v1975, %v2286
      %v2288 = vlaneseq
      %v2289 = vshrl.u32 %v2288, 7
      %v2290 = vsub.s32 %v2001, %v2289
      %v2291 = vrot.slane %v1978, %v2290
      %v2292 = vsel %vm2006, %v2291, %v2287
      %v2293 = vlaneseq
      %v2294 = vshrl.u32 %v2293, 7
      %v2295 = vsub.s32 %v2008, %v2294
      %v2296 = vrot.slane %v1981, %v2295
      %v2297 = vsel %vm2013, %v2296, %v2292
      %v2298 = vlaneseq
      %v2299 = vshrl.u32 %v2298, 7
      %v2300 = vsub.s32 %v2015, %v2299
      %v2301 = vrot.slane %v1984, %v2300
      %v2302 = vsel %vm2020, %v2301, %v2297
      %v2303 = vlaneseq
      %v2304 = vshrl.u32 %v2303, 7
      %v2305 = vsub.s32 %v2022, %v2304
      %v2306 = vrot.slane %v1987, %v2305
      %v2307 = vsel %vm2027, %v2306, %v2302
      %v2308 = vlaneseq
      %v2309 = vshrl.u32 %v2308, 7
      %v2310 = vsub.s32 %v2029, %v2309
      %v2311 = vrot.slane %v1990, %v2310
      %v2312 = vsel %vm2034, %v2311, %v2307
      %v2313 = vlaneseq
      %v2314 = vshrl.u32 %v2313, 7
      %v2315 = vsub.s32 %v2036, %v2314
      %v2316 = vrot.slane %v1993, %v2315
      %v2317 = vsel %vm2041, %v2316, %v2312
      %v2318 = vlaneseq
      %v2319 = vshrl.u32 %v2318, 7
      %v2320 = vsub.s32 %v2043, %v2319
      %v2321 = vrot.slane %v1996, %v2320
      %v2322 = vsel %vm2048, %v2321, %v2317
      %vm2323 = vcmask 1041409
      %v2324 = vsel %vm2323, %v2088, %v2049
      %vm2325 = vcmask 1042434
      %v2326 = vsel %vm2325, %v2127, %v2324
      %vm2327 = vcmask 1043459
      %v2328 = vsel %vm2327, %v2166, %v2326
      %vm2329 = vcmask 1044484
      %v2330 = vsel %vm2329, %v2205, %v2328
      %vm2331 = vcmask 1045509
      %v2332 = vsel %vm2331, %v2244, %v2330
      %vm2333 = vcmask 1046534
      %v2334 = vsel %vm2333, %v2283, %v2332
      %vm2335 = vcmask 1047559
      %v2336 = vsel %vm2335, %v2322, %v2334
      %vm2338 = vcmask 523264
      %v2339 = vsel %vm2338, %v2336, inf
      %2340 = vmin.xlane.f32.xlu0 %v2339
      %v2341 = vpop.xlane.xlu0 %2340
      %v2343 = vand.u32 %v2341, 63
      %vm2344 = vcmp.eq.s32.totalorder %v1517, %v2343
      %v2345 = vsel %vm2344, 1, 0
      %v2346 = vcvt.s32.f32 %v2345
      %v2348 = vcombine.high %v2346, %v2346
      %v2350 = vunpack.c.l.s4 1966171168
      %v2351 = vunpack.c.0.s8 %v2350
      %v2352 = vlaneseq
      %v2353 = vshrl.u32 %v2352, 7
      %v2354 = vsub.s32 %v2351, %v2353
      %v2355 = vrot.slane %v2346, %v2354
      %v2357 = vunpack.c.l.s4 1966171168
      %v2358 = vunpack.c.0.s8 %v2357
      %v2359 = vlaneseq
      %v2360 = vshrl.u32 %v2359, 7
      %v2361 = vsub.s32 %v2358, %v2360
      %v2362 = vrot.slane %v2348, %v2361
      %v2363 = vcombine.high %v2355, %v2355
      %v2364 = vcombine.high %v2362, %v2362
      %v2366 = vunpack.c.l.s4 1966171168
      %v2367 = vunpack.c.0.s8 %v2366
      %v2368 = vlaneseq
      %v2369 = vshrl.u32 %v2368, 7
      %v2370 = vsub.s32 %v2367, %v2369
      %v2371 = vrot.slane %v2355, %v2370
      %v2373 = vunpack.c.l.s4 1966171168
      %v2374 = vunpack.c.0.s8 %v2373
      %v2375 = vlaneseq
      %v2376 = vshrl.u32 %v2375, 7
      %v2377 = vsub.s32 %v2374, %v2376
      %v2378 = vrot.slane %v2362, %v2377
      %v2380 = vunpack.c.l.s4 1966171168
      %v2381 = vunpack.c.0.s8 %v2380
      %v2382 = vlaneseq
      %v2383 = vshrl.u32 %v2382, 7
      %v2384 = vsub.s32 %v2381, %v2383
      %v2385 = vrot.slane %v2363, %v2384
      %v2387 = vunpack.c.l.s4 1966171168
      %v2388 = vunpack.c.0.s8 %v2387
      %v2389 = vlaneseq
      %v2390 = vshrl.u32 %v2389, 7
      %v2391 = vsub.s32 %v2388, %v2390
      %v2392 = vrot.slane %v2364, %v2391
      %v2393 = vcombine.high %v2371, %v2371
      %v2394 = vcombine.high %v2378, %v2378
      %v2395 = vcombine.high %v2385, %v2385
      %v2396 = vcombine.high %v2392, %v2392
      %vm2405 = vcmask 516096
      %2406 = vst.msk [vmem:[#allocation2] sm:$0x1] %vm2405, %v2371
      %2407 = vst.msk [vmem:[#allocation2 + $0x10] sm:$0x1] %vm2405, %v2385
      %2408 = vst.msk [vmem:[#allocation2 + $0x20] sm:$0x1] %vm2405, %v2393
      %2409 = vst.msk [vmem:[#allocation2 + $0x30] sm:$0x1] %vm2405, %v2395
      %2410 = vst.msk [vmem:[#allocation2 + $0x40] sm:$0x1] %vm2405, %v2378
      %2411 = vst.msk [vmem:[#allocation2 + $0x50] sm:$0x1] %vm2405, %v2392
      %2412 = vst.msk [vmem:[#allocation2 + $0x60] sm:$0x1] %vm2405, %v2394
      %2413 = vst.msk [vmem:[#allocation2 + $0x70] sm:$0x1] %vm2405, %v2396
      %v2414 = vsel %vm2344, 3.4028235e+38, %v2336
      %v2415 = vsel %vm2338, %v2414, inf
      %2416 = vmin.xlane.f32.xlu0 %v2415
      %v2417 = vpop.xlane.xlu0 %2416
      %v2419 = vand.u32 %v2417, 63
      %vm2420 = vcmp.eq.s32.totalorder %v1517, %v2419
      %v2421 = vsel %vm2420, 1, 0
      %v2422 = vcvt.s32.f32 %v2421
      %v2424 = vcombine.high %v2422, %v2422
      %v2426 = vunpack.c.l.s4 1966171168
      %v2427 = vunpack.c.0.s8 %v2426
      %v2428 = vlaneseq
      %v2429 = vshrl.u32 %v2428, 7
      %v2430 = vsub.s32 %v2427, %v2429
      %v2431 = vrot.slane %v2422, %v2430
      %v2433 = vunpack.c.l.s4 1966171168
      %v2434 = vunpack.c.0.s8 %v2433
      %v2435 = vlaneseq
      %v2436 = vshrl.u32 %v2435, 7
      %v2437 = vsub.s32 %v2434, %v2436
      %v2438 = vrot.slane %v2424, %v2437
      %v2439 = vcombine.high %v2431, %v2431
      %v2440 = vcombine.high %v2438, %v2438
      %v2442 = vunpack.c.l.s4 1966171168
      %v2443 = vunpack.c.0.s8 %v2442
      %v2444 = vlaneseq
      %v2445 = vshrl.u32 %v2444, 7
      %v2446 = vsub.s32 %v2443, %v2445
      %v2447 = vrot.slane %v2431, %v2446
      %v2449 = vunpack.c.l.s4 1966171168
      %v2450 = vunpack.c.0.s8 %v2449
      %v2451 = vlaneseq
      %v2452 = vshrl.u32 %v2451, 7
      %v2453 = vsub.s32 %v2450, %v2452
      %v2454 = vrot.slane %v2438, %v2453
      %v2456 = vunpack.c.l.s4 1966171168
      %v2457 = vunpack.c.0.s8 %v2456
      %v2458 = vlaneseq
      %v2459 = vshrl.u32 %v2458, 7
      %v2460 = vsub.s32 %v2457, %v2459
      %v2461 = vrot.slane %v2439, %v2460
      %v2463 = vunpack.c.l.s4 1966171168
      %v2464 = vunpack.c.0.s8 %v2463
      %v2465 = vlaneseq
      %v2466 = vshrl.u32 %v2465, 7
      %v2467 = vsub.s32 %v2464, %v2466
      %v2468 = vrot.slane %v2440, %v2467
      %v2469 = vcombine.high %v2447, %v2447
      %v2470 = vcombine.high %v2454, %v2454
      %v2471 = vcombine.high %v2461, %v2461
      %v2472 = vcombine.high %v2468, %v2468
      %2481 = vst.msk [vmem:[#allocation2 + $0x1] sm:$0x1] %vm2405, %v2447
      %2482 = vst.msk [vmem:[#allocation2 + $0x11] sm:$0x1] %vm2405, %v2461
      %2483 = vst.msk [vmem:[#allocation2 + $0x21] sm:$0x1] %vm2405, %v2469
      %2484 = vst.msk [vmem:[#allocation2 + $0x31] sm:$0x1] %vm2405, %v2471
      %2485 = vst.msk [vmem:[#allocation2 + $0x41] sm:$0x1] %vm2405, %v2454
      %2486 = vst.msk [vmem:[#allocation2 + $0x51] sm:$0x1] %vm2405, %v2468
      %2487 = vst.msk [vmem:[#allocation2 + $0x61] sm:$0x1] %vm2405, %v2470
      %2488 = vst.msk [vmem:[#allocation2 + $0x71] sm:$0x1] %vm2405, %v2472
      %v2489 = vsel %vm2420, 3.4028235e+38, %v2414
      %v2490 = vsel %vm2338, %v2489, inf
      %2491 = vmin.xlane.f32.xlu0 %v2490
      %v2492 = vpop.xlane.xlu0 %2491
      %v2494 = vand.u32 %v2492, 63
      %vm2495 = vcmp.eq.s32.totalorder %v1517, %v2494
      %v2496 = vsel %vm2495, 1, 0
      %v2497 = vcvt.s32.f32 %v2496
      %v2499 = vcombine.high %v2497, %v2497
      %v2501 = vunpack.c.l.s4 1966171168
      %v2502 = vunpack.c.0.s8 %v2501
      %v2503 = vlaneseq
      %v2504 = vshrl.u32 %v2503, 7
      %v2505 = vsub.s32 %v2502, %v2504
      %v2506 = vrot.slane %v2497, %v2505
      %v2508 = vunpack.c.l.s4 1966171168
      %v2509 = vunpack.c.0.s8 %v2508
      %v2510 = vlaneseq
      %v2511 = vshrl.u32 %v2510, 7
      %v2512 = vsub.s32 %v2509, %v2511
      %v2513 = vrot.slane %v2499, %v2512
      %v2514 = vcombine.high %v2506, %v2506
      %v2515 = vcombine.high %v2513, %v2513
      %v2517 = vunpack.c.l.s4 1966171168
      %v2518 = vunpack.c.0.s8 %v2517
      %v2519 = vlaneseq
      %v2520 = vshrl.u32 %v2519, 7
      %v2521 = vsub.s32 %v2518, %v2520
      %v2522 = vrot.slane %v2506, %v2521
      %v2524 = vunpack.c.l.s4 1966171168
      %v2525 = vunpack.c.0.s8 %v2524
      %v2526 = vlaneseq
      %v2527 = vshrl.u32 %v2526, 7
      %v2528 = vsub.s32 %v2525, %v2527
      %v2529 = vrot.slane %v2513, %v2528
      %v2531 = vunpack.c.l.s4 1966171168
      %v2532 = vunpack.c.0.s8 %v2531
      %v2533 = vlaneseq
      %v2534 = vshrl.u32 %v2533, 7
      %v2535 = vsub.s32 %v2532, %v2534
      %v2536 = vrot.slane %v2514, %v2535
      %v2538 = vunpack.c.l.s4 1966171168
      %v2539 = vunpack.c.0.s8 %v2538
      %v2540 = vlaneseq
      %v2541 = vshrl.u32 %v2540, 7
      %v2542 = vsub.s32 %v2539, %v2541
      %v2543 = vrot.slane %v2515, %v2542
      %v2544 = vcombine.high %v2522, %v2522
      %v2545 = vcombine.high %v2529, %v2529
      %v2546 = vcombine.high %v2536, %v2536
      %v2547 = vcombine.high %v2543, %v2543
      %2556 = vst.msk [vmem:[#allocation2 + $0x2] sm:$0x1] %vm2405, %v2522
      %2557 = vst.msk [vmem:[#allocation2 + $0x12] sm:$0x1] %vm2405, %v2536
      %2558 = vst.msk [vmem:[#allocation2 + $0x22] sm:$0x1] %vm2405, %v2544
      %2559 = vst.msk [vmem:[#allocation2 + $0x32] sm:$0x1] %vm2405, %v2546
      %2560 = vst.msk [vmem:[#allocation2 + $0x42] sm:$0x1] %vm2405, %v2529
      %2561 = vst.msk [vmem:[#allocation2 + $0x52] sm:$0x1] %vm2405, %v2543
      %2562 = vst.msk [vmem:[#allocation2 + $0x62] sm:$0x1] %vm2405, %v2545
      %2563 = vst.msk [vmem:[#allocation2 + $0x72] sm:$0x1] %vm2405, %v2547
      %v2564 = vsel %vm2495, 3.4028235e+38, %v2489
      %v2565 = vsel %vm2338, %v2564, inf
      %2566 = vmin.xlane.f32.xlu0 %v2565
      %v2567 = vpop.xlane.xlu0 %2566
      %v2569 = vand.u32 %v2567, 63
      %vm2570 = vcmp.eq.s32.totalorder %v1517, %v2569
      %v2571 = vsel %vm2570, 1, 0
      %v2572 = vcvt.s32.f32 %v2571
      %v2574 = vcombine.high %v2572, %v2572
      %v2576 = vunpack.c.l.s4 1966171168
      %v2577 = vunpack.c.0.s8 %v2576
      %v2578 = vlaneseq
      %v2579 = vshrl.u32 %v2578, 7
      %v2580 = vsub.s32 %v2577, %v2579
      %v2581 = vrot.slane %v2572, %v2580
      %v2583 = vunpack.c.l.s4 1966171168
      %v2584 = vunpack.c.0.s8 %v2583
      %v2585 = vlaneseq
      %v2586 = vshrl.u32 %v2585, 7
      %v2587 = vsub.s32 %v2584, %v2586
      %v2588 = vrot.slane %v2574, %v2587
      %v2589 = vcombine.high %v2581, %v2581
      %v2590 = vcombine.high %v2588, %v2588
      %v2592 = vunpack.c.l.s4 1966171168
      %v2593 = vunpack.c.0.s8 %v2592
      %v2594 = vlaneseq
      %v2595 = vshrl.u32 %v2594, 7
      %v2596 = vsub.s32 %v2593, %v2595
      %v2597 = vrot.slane %v2581, %v2596
      %v2599 = vunpack.c.l.s4 1966171168
      %v2600 = vunpack.c.0.s8 %v2599
      %v2601 = vlaneseq
      %v2602 = vshrl.u32 %v2601, 7
      %v2603 = vsub.s32 %v2600, %v2602
      %v2604 = vrot.slane %v2588, %v2603
      %v2606 = vunpack.c.l.s4 1966171168
      %v2607 = vunpack.c.0.s8 %v2606
      %v2608 = vlaneseq
      %v2609 = vshrl.u32 %v2608, 7
      %v2610 = vsub.s32 %v2607, %v2609
      %v2611 = vrot.slane %v2589, %v2610
      %v2613 = vunpack.c.l.s4 1966171168
      %v2614 = vunpack.c.0.s8 %v2613
      %v2615 = vlaneseq
      %v2616 = vshrl.u32 %v2615, 7
      %v2617 = vsub.s32 %v2614, %v2616
      %v2618 = vrot.slane %v2590, %v2617
      %v2619 = vcombine.high %v2597, %v2597
      %v2620 = vcombine.high %v2604, %v2604
      %v2621 = vcombine.high %v2611, %v2611
      %v2622 = vcombine.high %v2618, %v2618
      %2631 = vst.msk [vmem:[#allocation2 + $0x3] sm:$0x1] %vm2405, %v2597
      %2632 = vst.msk [vmem:[#allocation2 + $0x13] sm:$0x1] %vm2405, %v2611
      %2633 = vst.msk [vmem:[#allocation2 + $0x23] sm:$0x1] %vm2405, %v2619
      %2634 = vst.msk [vmem:[#allocation2 + $0x33] sm:$0x1] %vm2405, %v2621
      %2635 = vst.msk [vmem:[#allocation2 + $0x43] sm:$0x1] %vm2405, %v2604
      %2636 = vst.msk [vmem:[#allocation2 + $0x53] sm:$0x1] %vm2405, %v2618
      %2637 = vst.msk [vmem:[#allocation2 + $0x63] sm:$0x1] %vm2405, %v2620
      %2638 = vst.msk [vmem:[#allocation2 + $0x73] sm:$0x1] %vm2405, %v2622
      %v2639 = vsel %vm2570, 3.4028235e+38, %v2564
      %v2640 = vsel %vm2338, %v2639, inf
      %2641 = vmin.xlane.f32.xlu0 %v2640
      %v2642 = vpop.xlane.xlu0 %2641
      %v2644 = vand.u32 %v2642, 63
      %vm2645 = vcmp.eq.s32.totalorder %v1517, %v2644
      %v2646 = vsel %vm2645, 1, 0
      %v2647 = vcvt.s32.f32 %v2646
      %v2649 = vcombine.high %v2647, %v2647
      %v2651 = vunpack.c.l.s4 1966171168
      %v2652 = vunpack.c.0.s8 %v2651
      %v2653 = vlaneseq
      %v2654 = vshrl.u32 %v2653, 7
      %v2655 = vsub.s32 %v2652, %v2654
      %v2656 = vrot.slane %v2647, %v2655
      %v2658 = vunpack.c.l.s4 1966171168
      %v2659 = vunpack.c.0.s8 %v2658
      %v2660 = vlaneseq
      %v2661 = vshrl.u32 %v2660, 7
      %v2662 = vsub.s32 %v2659, %v2661
      %v2663 = vrot.slane %v2649, %v2662
      %v2664 = vcombine.high %v2656, %v2656
      %v2665 = vcombine.high %v2663, %v2663
      %v2667 = vunpack.c.l.s4 1966171168
      %v2668 = vunpack.c.0.s8 %v2667
      %v2669 = vlaneseq
      %v2670 = vshrl.u32 %v2669, 7
      %v2671 = vsub.s32 %v2668, %v2670
      %v2672 = vrot.slane %v2656, %v2671
      %v2674 = vunpack.c.l.s4 1966171168
      %v2675 = vunpack.c.0.s8 %v2674
      %v2676 = vlaneseq
      %v2677 = vshrl.u32 %v2676, 7
      %v2678 = vsub.s32 %v2675, %v2677
      %v2679 = vrot.slane %v2663, %v2678
      %v2681 = vunpack.c.l.s4 1966171168
      %v2682 = vunpack.c.0.s8 %v2681
      %v2683 = vlaneseq
      %v2684 = vshrl.u32 %v2683, 7
      %v2685 = vsub.s32 %v2682, %v2684
      %v2686 = vrot.slane %v2664, %v2685
      %v2688 = vunpack.c.l.s4 1966171168
      %v2689 = vunpack.c.0.s8 %v2688
      %v2690 = vlaneseq
      %v2691 = vshrl.u32 %v2690, 7
      %v2692 = vsub.s32 %v2689, %v2691
      %v2693 = vrot.slane %v2665, %v2692
      %v2694 = vcombine.high %v2672, %v2672
      %v2695 = vcombine.high %v2679, %v2679
      %v2696 = vcombine.high %v2686, %v2686
      %v2697 = vcombine.high %v2693, %v2693
      %2706 = vst.msk [vmem:[#allocation2 + $0x4] sm:$0x1] %vm2405, %v2672
      %2707 = vst.msk [vmem:[#allocation2 + $0x14] sm:$0x1] %vm2405, %v2686
      %2708 = vst.msk [vmem:[#allocation2 + $0x24] sm:$0x1] %vm2405, %v2694
      %2709 = vst.msk [vmem:[#allocation2 + $0x34] sm:$0x1] %vm2405, %v2696
      %2710 = vst.msk [vmem:[#allocation2 + $0x44] sm:$0x1] %vm2405, %v2679
      %2711 = vst.msk [vmem:[#allocation2 + $0x54] sm:$0x1] %vm2405, %v2693
      %2712 = vst.msk [vmem:[#allocation2 + $0x64] sm:$0x1] %vm2405, %v2695
      %2713 = vst.msk [vmem:[#allocation2 + $0x74] sm:$0x1] %vm2405, %v2697
      %v2714 = vsel %vm2645, 3.4028235e+38, %v2639
      %v2715 = vsel %vm2338, %v2714, inf
      %2716 = vmin.xlane.f32.xlu0 %v2715
      %v2717 = vpop.xlane.xlu0 %2716
      %v2719 = vand.u32 %v2717, 63
      %vm2720 = vcmp.eq.s32.totalorder %v1517, %v2719
      %v2721 = vsel %vm2720, 1, 0
      %v2722 = vcvt.s32.f32 %v2721
      %v2724 = vcombine.high %v2722, %v2722
      %v2726 = vunpack.c.l.s4 1966171168
      %v2727 = vunpack.c.0.s8 %v2726
      %v2728 = vlaneseq
      %v2729 = vshrl.u32 %v2728, 7
      %v2730 = vsub.s32 %v2727, %v2729
      %v2731 = vrot.slane %v2722, %v2730
      %v2733 = vunpack.c.l.s4 1966171168
      %v2734 = vunpack.c.0.s8 %v2733
      %v2735 = vlaneseq
      %v2736 = vshrl.u32 %v2735, 7
      %v2737 = vsub.s32 %v2734, %v2736
      %v2738 = vrot.slane %v2724, %v2737
      %v2739 = vcombine.high %v2731, %v2731
      %v2740 = vcombine.high %v2738, %v2738
      %v2742 = vunpack.c.l.s4 1966171168
      %v2743 = vunpack.c.0.s8 %v2742
      %v2744 = vlaneseq
      %v2745 = vshrl.u32 %v2744, 7
      %v2746 = vsub.s32 %v2743, %v2745
      %v2747 = vrot.slane %v2731, %v2746
      %v2749 = vunpack.c.l.s4 1966171168
      %v2750 = vunpack.c.0.s8 %v2749
      %v2751 = vlaneseq
      %v2752 = vshrl.u32 %v2751, 7
      %v2753 = vsub.s32 %v2750, %v2752
      %v2754 = vrot.slane %v2738, %v2753
      %v2756 = vunpack.c.l.s4 1966171168
      %v2757 = vunpack.c.0.s8 %v2756
      %v2758 = vlaneseq
      %v2759 = vshrl.u32 %v2758, 7
      %v2760 = vsub.s32 %v2757, %v2759
      %v2761 = vrot.slane %v2739, %v2760
      %v2763 = vunpack.c.l.s4 1966171168
      %v2764 = vunpack.c.0.s8 %v2763
      %v2765 = vlaneseq
      %v2766 = vshrl.u32 %v2765, 7
      %v2767 = vsub.s32 %v2764, %v2766
      %v2768 = vrot.slane %v2740, %v2767
      %v2769 = vcombine.high %v2747, %v2747
      %v2770 = vcombine.high %v2754, %v2754
      %v2771 = vcombine.high %v2761, %v2761
      %v2772 = vcombine.high %v2768, %v2768
      %2781 = vst.msk [vmem:[#allocation2 + $0x5] sm:$0x1] %vm2405, %v2747
      %2782 = vst.msk [vmem:[#allocation2 + $0x15] sm:$0x1] %vm2405, %v2761
      %2783 = vst.msk [vmem:[#allocation2 + $0x25] sm:$0x1] %vm2405, %v2769
      %2784 = vst.msk [vmem:[#allocation2 + $0x35] sm:$0x1] %vm2405, %v2771
      %2785 = vst.msk [vmem:[#allocation2 + $0x45] sm:$0x1] %vm2405, %v2754
      %2786 = vst.msk [vmem:[#allocation2 + $0x55] sm:$0x1] %vm2405, %v2768
      %2787 = vst.msk [vmem:[#allocation2 + $0x65] sm:$0x1] %vm2405, %v2770
      %2788 = vst.msk [vmem:[#allocation2 + $0x75] sm:$0x1] %vm2405, %v2772
      %v2789 = vsel %vm2720, 3.4028235e+38, %v2714
      %v2790 = vsel %vm2338, %v2789, inf
      %2791 = vmin.xlane.f32.xlu0 %v2790
      %v2792 = vpop.xlane.xlu0 %2791
      %v2794 = vand.u32 %v2792, 63
      %vm2795 = vcmp.eq.s32.totalorder %v1517, %v2794
      %v2796 = vsel %vm2795, 1, 0
      %v2797 = vcvt.s32.f32 %v2796
      %v2799 = vcombine.high %v2797, %v2797
      %v2801 = vunpack.c.l.s4 1966171168
      %v2802 = vunpack.c.0.s8 %v2801
      %v2803 = vlaneseq
      %v2804 = vshrl.u32 %v2803, 7
      %v2805 = vsub.s32 %v2802, %v2804
      %v2806 = vrot.slane %v2797, %v2805
      %v2808 = vunpack.c.l.s4 1966171168
      %v2809 = vunpack.c.0.s8 %v2808
      %v2810 = vlaneseq
      %v2811 = vshrl.u32 %v2810, 7
      %v2812 = vsub.s32 %v2809, %v2811
      %v2813 = vrot.slane %v2799, %v2812
      %v2814 = vcombine.high %v2806, %v2806
      %v2815 = vcombine.high %v2813, %v2813
      %v2817 = vunpack.c.l.s4 1966171168
      %v2818 = vunpack.c.0.s8 %v2817
      %v2819 = vlaneseq
      %v2820 = vshrl.u32 %v2819, 7
      %v2821 = vsub.s32 %v2818, %v2820
      %v2822 = vrot.slane %v2806, %v2821
      %v2824 = vunpack.c.l.s4 1966171168
      %v2825 = vunpack.c.0.s8 %v2824
      %v2826 = vlaneseq
      %v2827 = vshrl.u32 %v2826, 7
      %v2828 = vsub.s32 %v2825, %v2827
      %v2829 = vrot.slane %v2813, %v2828
      %v2831 = vunpack.c.l.s4 1966171168
      %v2832 = vunpack.c.0.s8 %v2831
      %v2833 = vlaneseq
      %v2834 = vshrl.u32 %v2833, 7
      %v2835 = vsub.s32 %v2832, %v2834
      %v2836 = vrot.slane %v2814, %v2835
      %v2838 = vunpack.c.l.s4 1966171168
      %v2839 = vunpack.c.0.s8 %v2838
      %v2840 = vlaneseq
      %v2841 = vshrl.u32 %v2840, 7
      %v2842 = vsub.s32 %v2839, %v2841
      %v2843 = vrot.slane %v2815, %v2842
      %v2844 = vcombine.high %v2822, %v2822
      %v2845 = vcombine.high %v2829, %v2829
      %v2846 = vcombine.high %v2836, %v2836
      %v2847 = vcombine.high %v2843, %v2843
      %2856 = vst.msk [vmem:[#allocation2 + $0x6] sm:$0x1] %vm2405, %v2822
      %2857 = vst.msk [vmem:[#allocation2 + $0x16] sm:$0x1] %vm2405, %v2836
      %2858 = vst.msk [vmem:[#allocation2 + $0x26] sm:$0x1] %vm2405, %v2844
      %2859 = vst.msk [vmem:[#allocation2 + $0x36] sm:$0x1] %vm2405, %v2846
      %2860 = vst.msk [vmem:[#allocation2 + $0x46] sm:$0x1] %vm2405, %v2829
      %2861 = vst.msk [vmem:[#allocation2 + $0x56] sm:$0x1] %vm2405, %v2843
      %2862 = vst.msk [vmem:[#allocation2 + $0x66] sm:$0x1] %vm2405, %v2845
      %2863 = vst.msk [vmem:[#allocation2 + $0x76] sm:$0x1] %vm2405, %v2847
      %v2864 = vsel %vm2795, 3.4028235e+38, %v2789
      %v2865 = vsel %vm2338, %v2864, inf
      %2866 = vmin.xlane.f32.xlu0 %v2865
      %v2867 = vpop.xlane.xlu0 %2866
      %v2869 = vand.u32 %v2867, 63
      %vm2870 = vcmp.eq.s32.totalorder %v1517, %v2869
      %v2871 = vsel %vm2870, 1, 0
      %v2872 = vcvt.s32.f32 %v2871
      %v2874 = vcombine.high %v2872, %v2872
      %v2876 = vunpack.c.l.s4 1966171168
      %v2877 = vunpack.c.0.s8 %v2876
      %v2878 = vlaneseq
      %v2879 = vshrl.u32 %v2878, 7
      %v2880 = vsub.s32 %v2877, %v2879
      %v2881 = vrot.slane %v2872, %v2880
      %v2883 = vunpack.c.l.s4 1966171168
      %v2884 = vunpack.c.0.s8 %v2883
      %v2885 = vlaneseq
      %v2886 = vshrl.u32 %v2885, 7
      %v2887 = vsub.s32 %v2884, %v2886
      %v2888 = vrot.slane %v2874, %v2887
      %v2889 = vcombine.high %v2881, %v2881
      %v2890 = vcombine.high %v2888, %v2888
      %v2892 = vunpack.c.l.s4 1966171168
      %v2893 = vunpack.c.0.s8 %v2892
      %v2894 = vlaneseq
      %v2895 = vshrl.u32 %v2894, 7
      %v2896 = vsub.s32 %v2893, %v2895
      %v2897 = vrot.slane %v2881, %v2896
      %v2899 = vunpack.c.l.s4 1966171168
      %v2900 = vunpack.c.0.s8 %v2899
      %v2901 = vlaneseq
      %v2902 = vshrl.u32 %v2901, 7
      %v2903 = vsub.s32 %v2900, %v2902
      %v2904 = vrot.slane %v2888, %v2903
      %v2906 = vunpack.c.l.s4 1966171168
      %v2907 = vunpack.c.0.s8 %v2906
      %v2908 = vlaneseq
      %v2909 = vshrl.u32 %v2908, 7
      %v2910 = vsub.s32 %v2907, %v2909
      %v2911 = vrot.slane %v2889, %v2910
      %v2913 = vunpack.c.l.s4 1966171168
      %v2914 = vunpack.c.0.s8 %v2913
      %v2915 = vlaneseq
      %v2916 = vshrl.u32 %v2915, 7
      %v2917 = vsub.s32 %v2914, %v2916
      %v2918 = vrot.slane %v2890, %v2917
      %v2919 = vcombine.high %v2897, %v2897
      %v2920 = vcombine.high %v2904, %v2904
      %v2921 = vcombine.high %v2911, %v2911
      %v2922 = vcombine.high %v2918, %v2918
      %2931 = vst.msk [vmem:[#allocation2 + $0x7] sm:$0x1] %vm2405, %v2897
      %2932 = vst.msk [vmem:[#allocation2 + $0x17] sm:$0x1] %vm2405, %v2911
      %2933 = vst.msk [vmem:[#allocation2 + $0x27] sm:$0x1] %vm2405, %v2919
      %2934 = vst.msk [vmem:[#allocation2 + $0x37] sm:$0x1] %vm2405, %v2921
      %2935 = vst.msk [vmem:[#allocation2 + $0x47] sm:$0x1] %vm2405, %v2904
      %2936 = vst.msk [vmem:[#allocation2 + $0x57] sm:$0x1] %vm2405, %v2918
      %2937 = vst.msk [vmem:[#allocation2 + $0x67] sm:$0x1] %vm2405, %v2920
      %2938 = vst.msk [vmem:[#allocation2 + $0x77] sm:$0x1] %vm2405, %v2922
      %v2939 = vsel %vm2870, 3.4028235e+38, %v2864
      %v2940 = vsel %vm2338, %v2939, inf
      %2941 = vmin.xlane.f32.xlu0 %v2940
      %v2942 = vpop.xlane.xlu0 %2941
      %v2944 = vand.u32 %v2942, 63
      %vm2945 = vcmp.eq.s32.totalorder %v1517, %v2944
      %v2946 = vsel %vm2945, 1, 0
      %v2947 = vcvt.s32.f32 %v2946
      %v2949 = vcombine.high %v2947, %v2947
      %v2951 = vunpack.c.l.s4 1966171168
      %v2952 = vunpack.c.0.s8 %v2951
      %v2953 = vlaneseq
      %v2954 = vshrl.u32 %v2953, 7
      %v2955 = vsub.s32 %v2952, %v2954
      %v2956 = vrot.slane %v2947, %v2955
      %v2958 = vunpack.c.l.s4 1966171168
      %v2959 = vunpack.c.0.s8 %v2958
      %v2960 = vlaneseq
      %v2961 = vshrl.u32 %v2960, 7
      %v2962 = vsub.s32 %v2959, %v2961
      %v2963 = vrot.slane %v2949, %v2962
      %v2964 = vcombine.high %v2956, %v2956
      %v2965 = vcombine.high %v2963, %v2963
      %v2967 = vunpack.c.l.s4 1966171168
      %v2968 = vunpack.c.0.s8 %v2967
      %v2969 = vlaneseq
      %v2970 = vshrl.u32 %v2969, 7
      %v2971 = vsub.s32 %v2968, %v2970
      %v2972 = vrot.slane %v2956, %v2971
      %v2974 = vunpack.c.l.s4 1966171168
      %v2975 = vunpack.c.0.s8 %v2974
      %v2976 = vlaneseq
      %v2977 = vshrl.u32 %v2976, 7
      %v2978 = vsub.s32 %v2975, %v2977
      %v2979 = vrot.slane %v2963, %v2978
      %v2981 = vunpack.c.l.s4 1966171168
      %v2982 = vunpack.c.0.s8 %v2981
      %v2983 = vlaneseq
      %v2984 = vshrl.u32 %v2983, 7
      %v2985 = vsub.s32 %v2982, %v2984
      %v2986 = vrot.slane %v2964, %v2985
      %v2988 = vunpack.c.l.s4 1966171168
      %v2989 = vunpack.c.0.s8 %v2988
      %v2990 = vlaneseq
      %v2991 = vshrl.u32 %v2990, 7
      %v2992 = vsub.s32 %v2989, %v2991
      %v2993 = vrot.slane %v2965, %v2992
      %v2994 = vcombine.high %v2972, %v2972
      %v2995 = vcombine.high %v2979, %v2979
      %v2996 = vcombine.high %v2986, %v2986
      %v2997 = vcombine.high %v2993, %v2993
      %3006 = vst.msk [vmem:[#allocation2 + $0x8] sm:$0x1] %vm2405, %v2972
      %3007 = vst.msk [vmem:[#allocation2 + $0x18] sm:$0x1] %vm2405, %v2986
      %3008 = vst.msk [vmem:[#allocation2 + $0x28] sm:$0x1] %vm2405, %v2994
      %3009 = vst.msk [vmem:[#allocation2 + $0x38] sm:$0x1] %vm2405, %v2996
      %3010 = vst.msk [vmem:[#allocation2 + $0x48] sm:$0x1] %vm2405, %v2979
      %3011 = vst.msk [vmem:[#allocation2 + $0x58] sm:$0x1] %vm2405, %v2993
      %3012 = vst.msk [vmem:[#allocation2 + $0x68] sm:$0x1] %vm2405, %v2995
      %3013 = vst.msk [vmem:[#allocation2 + $0x78] sm:$0x1] %vm2405, %v2997
      %v3014 = vsel %vm2945, 3.4028235e+38, %v2939
      %v3015 = vsel %vm2338, %v3014, inf
      %3016 = vmin.xlane.f32.xlu0 %v3015
      %v3017 = vpop.xlane.xlu0 %3016
      %v3019 = vand.u32 %v3017, 63
      %vm3020 = vcmp.eq.s32.totalorder %v1517, %v3019
      %v3021 = vsel %vm3020, 1, 0
      %v3022 = vcvt.s32.f32 %v3021
      %v3024 = vcombine.high %v3022, %v3022
      %v3026 = vunpack.c.l.s4 1966171168
      %v3027 = vunpack.c.0.s8 %v3026
      %v3028 = vlaneseq
      %v3029 = vshrl.u32 %v3028, 7
      %v3030 = vsub.s32 %v3027, %v3029
      %v3031 = vrot.slane %v3022, %v3030
      %v3033 = vunpack.c.l.s4 1966171168
      %v3034 = vunpack.c.0.s8 %v3033
      %v3035 = vlaneseq
      %v3036 = vshrl.u32 %v3035, 7
      %v3037 = vsub.s32 %v3034, %v3036
      %v3038 = vrot.slane %v3024, %v3037
      %v3039 = vcombine.high %v3031, %v3031
      %v3040 = vcombine.high %v3038, %v3038
      %v3042 = vunpack.c.l.s4 1966171168
      %v3043 = vunpack.c.0.s8 %v3042
      %v3044 = vlaneseq
      %v3045 = vshrl.u32 %v3044, 7
      %v3046 = vsub.s32 %v3043, %v3045
      %v3047 = vrot.slane %v3031, %v3046
      %v3049 = vunpack.c.l.s4 1966171168
      %v3050 = vunpack.c.0.s8 %v3049
      %v3051 = vlaneseq
      %v3052 = vshrl.u32 %v3051, 7
      %v3053 = vsub.s32 %v3050, %v3052
      %v3054 = vrot.slane %v3038, %v3053
      %v3056 = vunpack.c.l.s4 1966171168
      %v3057 = vunpack.c.0.s8 %v3056
      %v3058 = vlaneseq
      %v3059 = vshrl.u32 %v3058, 7
      %v3060 = vsub.s32 %v3057, %v3059
      %v3061 = vrot.slane %v3039, %v3060
      %v3063 = vunpack.c.l.s4 1966171168
      %v3064 = vunpack.c.0.s8 %v3063
      %v3065 = vlaneseq
      %v3066 = vshrl.u32 %v3065, 7
      %v3067 = vsub.s32 %v3064, %v3066
      %v3068 = vrot.slane %v3040, %v3067
      %v3069 = vcombine.high %v3047, %v3047
      %v3070 = vcombine.high %v3054, %v3054
      %v3071 = vcombine.high %v3061, %v3061
      %v3072 = vcombine.high %v3068, %v3068
      %3081 = vst.msk [vmem:[#allocation2 + $0x9] sm:$0x1] %vm2405, %v3047
      %3082 = vst.msk [vmem:[#allocation2 + $0x19] sm:$0x1] %vm2405, %v3061
      %3083 = vst.msk [vmem:[#allocation2 + $0x29] sm:$0x1] %vm2405, %v3069
      %3084 = vst.msk [vmem:[#allocation2 + $0x39] sm:$0x1] %vm2405, %v3071
      %3085 = vst.msk [vmem:[#allocation2 + $0x49] sm:$0x1] %vm2405, %v3054
      %3086 = vst.msk [vmem:[#allocation2 + $0x59] sm:$0x1] %vm2405, %v3068
      %3087 = vst.msk [vmem:[#allocation2 + $0x69] sm:$0x1] %vm2405, %v3070
      %3088 = vst.msk [vmem:[#allocation2 + $0x79] sm:$0x1] %vm2405, %v3072
      %v3089 = vsel %vm3020, 3.4028235e+38, %v3014
      %v3090 = vsel %vm2338, %v3089, inf
      %3091 = vmin.xlane.f32.xlu0 %v3090
      %v3092 = vpop.xlane.xlu0 %3091
      %v3094 = vand.u32 %v3092, 63
      %vm3095 = vcmp.eq.s32.totalorder %v1517, %v3094
      %v3096 = vsel %vm3095, 1, 0
      %v3097 = vcvt.s32.f32 %v3096
      %v3099 = vcombine.high %v3097, %v3097
      %v3101 = vunpack.c.l.s4 1966171168
      %v3102 = vunpack.c.0.s8 %v3101
      %v3103 = vlaneseq
      %v3104 = vshrl.u32 %v3103, 7
      %v3105 = vsub.s32 %v3102, %v3104
      %v3106 = vrot.slane %v3097, %v3105
      %v3108 = vunpack.c.l.s4 1966171168
      %v3109 = vunpack.c.0.s8 %v3108
      %v3110 = vlaneseq
      %v3111 = vshrl.u32 %v3110, 7
      %v3112 = vsub.s32 %v3109, %v3111
      %v3113 = vrot.slane %v3099, %v3112
      %v3114 = vcombine.high %v3106, %v3106
      %v3115 = vcombine.high %v3113, %v3113
      %v3117 = vunpack.c.l.s4 1966171168
      %v3118 = vunpack.c.0.s8 %v3117
      %v3119 = vlaneseq
      %v3120 = vshrl.u32 %v3119, 7
      %v3121 = vsub.s32 %v3118, %v3120
      %v3122 = vrot.slane %v3106, %v3121
      %v3124 = vunpack.c.l.s4 1966171168
      %v3125 = vunpack.c.0.s8 %v3124
      %v3126 = vlaneseq
      %v3127 = vshrl.u32 %v3126, 7
      %v3128 = vsub.s32 %v3125, %v3127
      %v3129 = vrot.slane %v3113, %v3128
      %v3131 = vunpack.c.l.s4 1966171168
      %v3132 = vunpack.c.0.s8 %v3131
      %v3133 = vlaneseq
      %v3134 = vshrl.u32 %v3133, 7
      %v3135 = vsub.s32 %v3132, %v3134
      %v3136 = vrot.slane %v3114, %v3135
      %v3138 = vunpack.c.l.s4 1966171168
      %v3139 = vunpack.c.0.s8 %v3138
      %v3140 = vlaneseq
      %v3141 = vshrl.u32 %v3140, 7
      %v3142 = vsub.s32 %v3139, %v3141
      %v3143 = vrot.slane %v3115, %v3142
      %v3144 = vcombine.high %v3122, %v3122
      %v3145 = vcombine.high %v3129, %v3129
      %v3146 = vcombine.high %v3136, %v3136
      %v3147 = vcombine.high %v3143, %v3143
      %3156 = vst.msk [vmem:[#allocation2 + $0xa] sm:$0x1] %vm2405, %v3122
      %3157 = vst.msk [vmem:[#allocation2 + $0x1a] sm:$0x1] %vm2405, %v3136
      %3158 = vst.msk [vmem:[#allocation2 + $0x2a] sm:$0x1] %vm2405, %v3144
      %3159 = vst.msk [vmem:[#allocation2 + $0x3a] sm:$0x1] %vm2405, %v3146
      %3160 = vst.msk [vmem:[#allocation2 + $0x4a] sm:$0x1] %vm2405, %v3129
      %3161 = vst.msk [vmem:[#allocation2 + $0x5a] sm:$0x1] %vm2405, %v3143
      %3162 = vst.msk [vmem:[#allocation2 + $0x6a] sm:$0x1] %vm2405, %v3145
      %3163 = vst.msk [vmem:[#allocation2 + $0x7a] sm:$0x1] %vm2405, %v3147
      %v3164 = vsel %vm3095, 3.4028235e+38, %v3089
      %v3165 = vsel %vm2338, %v3164, inf
      %3166 = vmin.xlane.f32.xlu0 %v3165
      %v3167 = vpop.xlane.xlu0 %3166
      %v3169 = vand.u32 %v3167, 63
      %vm3170 = vcmp.eq.s32.totalorder %v1517, %v3169
      %v3171 = vsel %vm3170, 1, 0
      %v3172 = vcvt.s32.f32 %v3171
      %v3174 = vcombine.high %v3172, %v3172
      %v3176 = vunpack.c.l.s4 1966171168
      %v3177 = vunpack.c.0.s8 %v3176
      %v3178 = vlaneseq
      %v3179 = vshrl.u32 %v3178, 7
      %v3180 = vsub.s32 %v3177, %v3179
      %v3181 = vrot.slane %v3172, %v3180
      %v3183 = vunpack.c.l.s4 1966171168
      %v3184 = vunpack.c.0.s8 %v3183
      %v3185 = vlaneseq
      %v3186 = vshrl.u32 %v3185, 7
      %v3187 = vsub.s32 %v3184, %v3186
      %v3188 = vrot.slane %v3174, %v3187
      %v3189 = vcombine.high %v3181, %v3181
      %v3190 = vcombine.high %v3188, %v3188
      %v3192 = vunpack.c.l.s4 1966171168
      %v3193 = vunpack.c.0.s8 %v3192
      %v3194 = vlaneseq
      %v3195 = vshrl.u32 %v3194, 7
      %v3196 = vsub.s32 %v3193, %v3195
      %v3197 = vrot.slane %v3181, %v3196
      %v3199 = vunpack.c.l.s4 1966171168
      %v3200 = vunpack.c.0.s8 %v3199
      %v3201 = vlaneseq
      %v3202 = vshrl.u32 %v3201, 7
      %v3203 = vsub.s32 %v3200, %v3202
      %v3204 = vrot.slane %v3188, %v3203
      %v3206 = vunpack.c.l.s4 1966171168
      %v3207 = vunpack.c.0.s8 %v3206
      %v3208 = vlaneseq
      %v3209 = vshrl.u32 %v3208, 7
      %v3210 = vsub.s32 %v3207, %v3209
      %v3211 = vrot.slane %v3189, %v3210
      %v3213 = vunpack.c.l.s4 1966171168
      %v3214 = vunpack.c.0.s8 %v3213
      %v3215 = vlaneseq
      %v3216 = vshrl.u32 %v3215, 7
      %v3217 = vsub.s32 %v3214, %v3216
      %v3218 = vrot.slane %v3190, %v3217
      %v3219 = vcombine.high %v3197, %v3197
      %v3220 = vcombine.high %v3204, %v3204
      %v3221 = vcombine.high %v3211, %v3211
      %v3222 = vcombine.high %v3218, %v3218
      %3231 = vst.msk [vmem:[#allocation2 + $0xb] sm:$0x1] %vm2405, %v3197
      %3232 = vst.msk [vmem:[#allocation2 + $0x1b] sm:$0x1] %vm2405, %v3211
      %3233 = vst.msk [vmem:[#allocation2 + $0x2b] sm:$0x1] %vm2405, %v3219
      %3234 = vst.msk [vmem:[#allocation2 + $0x3b] sm:$0x1] %vm2405, %v3221
      %3235 = vst.msk [vmem:[#allocation2 + $0x4b] sm:$0x1] %vm2405, %v3204
      %3236 = vst.msk [vmem:[#allocation2 + $0x5b] sm:$0x1] %vm2405, %v3218
      %3237 = vst.msk [vmem:[#allocation2 + $0x6b] sm:$0x1] %vm2405, %v3220
      %3238 = vst.msk [vmem:[#allocation2 + $0x7b] sm:$0x1] %vm2405, %v3222
      %v3239 = vsel %vm3170, 3.4028235e+38, %v3164
      %v3240 = vsel %vm2338, %v3239, inf
      %3241 = vmin.xlane.f32.xlu0 %v3240
      %v3242 = vpop.xlane.xlu0 %3241
      %v3244 = vand.u32 %v3242, 63
      %vm3245 = vcmp.eq.s32.totalorder %v1517, %v3244
      %v3246 = vsel %vm3245, 1, 0
      %v3247 = vcvt.s32.f32 %v3246
      %v3249 = vcombine.high %v3247, %v3247
      %v3251 = vunpack.c.l.s4 1966171168
      %v3252 = vunpack.c.0.s8 %v3251
      %v3253 = vlaneseq
      %v3254 = vshrl.u32 %v3253, 7
      %v3255 = vsub.s32 %v3252, %v3254
      %v3256 = vrot.slane %v3247, %v3255
      %v3258 = vunpack.c.l.s4 1966171168
      %v3259 = vunpack.c.0.s8 %v3258
      %v3260 = vlaneseq
      %v3261 = vshrl.u32 %v3260, 7
      %v3262 = vsub.s32 %v3259, %v3261
      %v3263 = vrot.slane %v3249, %v3262
      %v3264 = vcombine.high %v3256, %v3256
      %v3265 = vcombine.high %v3263, %v3263
      %v3267 = vunpack.c.l.s4 1966171168
      %v3268 = vunpack.c.0.s8 %v3267
      %v3269 = vlaneseq
      %v3270 = vshrl.u32 %v3269, 7
      %v3271 = vsub.s32 %v3268, %v3270
      %v3272 = vrot.slane %v3256, %v3271
      %v3274 = vunpack.c.l.s4 1966171168
      %v3275 = vunpack.c.0.s8 %v3274
      %v3276 = vlaneseq
      %v3277 = vshrl.u32 %v3276, 7
      %v3278 = vsub.s32 %v3275, %v3277
      %v3279 = vrot.slane %v3263, %v3278
      %v3281 = vunpack.c.l.s4 1966171168
      %v3282 = vunpack.c.0.s8 %v3281
      %v3283 = vlaneseq
      %v3284 = vshrl.u32 %v3283, 7
      %v3285 = vsub.s32 %v3282, %v3284
      %v3286 = vrot.slane %v3264, %v3285
      %v3288 = vunpack.c.l.s4 1966171168
      %v3289 = vunpack.c.0.s8 %v3288
      %v3290 = vlaneseq
      %v3291 = vshrl.u32 %v3290, 7
      %v3292 = vsub.s32 %v3289, %v3291
      %v3293 = vrot.slane %v3265, %v3292
      %v3294 = vcombine.high %v3272, %v3272
      %v3295 = vcombine.high %v3279, %v3279
      %v3296 = vcombine.high %v3286, %v3286
      %v3297 = vcombine.high %v3293, %v3293
      %3306 = vst.msk [vmem:[#allocation2 + $0xc] sm:$0x1] %vm2405, %v3272
      %3307 = vst.msk [vmem:[#allocation2 + $0x1c] sm:$0x1] %vm2405, %v3286
      %3308 = vst.msk [vmem:[#allocation2 + $0x2c] sm:$0x1] %vm2405, %v3294
      %3309 = vst.msk [vmem:[#allocation2 + $0x3c] sm:$0x1] %vm2405, %v3296
      %3310 = vst.msk [vmem:[#allocation2 + $0x4c] sm:$0x1] %vm2405, %v3279
      %3311 = vst.msk [vmem:[#allocation2 + $0x5c] sm:$0x1] %vm2405, %v3293
      %3312 = vst.msk [vmem:[#allocation2 + $0x6c] sm:$0x1] %vm2405, %v3295
      %3313 = vst.msk [vmem:[#allocation2 + $0x7c] sm:$0x1] %vm2405, %v3297
      %v3314 = vsel %vm3245, 3.4028235e+38, %v3239
      %v3315 = vsel %vm2338, %v3314, inf
      %3316 = vmin.xlane.f32.xlu0 %v3315
      %v3317 = vpop.xlane.xlu0 %3316
      %v3319 = vand.u32 %v3317, 63
      %vm3320 = vcmp.eq.s32.totalorder %v1517, %v3319
      %v3321 = vsel %vm3320, 1, 0
      %v3322 = vcvt.s32.f32 %v3321
      %v3324 = vcombine.high %v3322, %v3322
      %v3326 = vunpack.c.l.s4 1966171168
      %v3327 = vunpack.c.0.s8 %v3326
      %v3328 = vlaneseq
      %v3329 = vshrl.u32 %v3328, 7
      %v3330 = vsub.s32 %v3327, %v3329
      %v3331 = vrot.slane %v3322, %v3330
      %v3333 = vunpack.c.l.s4 1966171168
      %v3334 = vunpack.c.0.s8 %v3333
      %v3335 = vlaneseq
      %v3336 = vshrl.u32 %v3335, 7
      %v3337 = vsub.s32 %v3334, %v3336
      %v3338 = vrot.slane %v3324, %v3337
      %v3339 = vcombine.high %v3331, %v3331
      %v3340 = vcombine.high %v3338, %v3338
      %v3342 = vunpack.c.l.s4 1966171168
      %v3343 = vunpack.c.0.s8 %v3342
      %v3344 = vlaneseq
      %v3345 = vshrl.u32 %v3344, 7
      %v3346 = vsub.s32 %v3343, %v3345
      %v3347 = vrot.slane %v3331, %v3346
      %v3349 = vunpack.c.l.s4 1966171168
      %v3350 = vunpack.c.0.s8 %v3349
      %v3351 = vlaneseq
      %v3352 = vshrl.u32 %v3351, 7
      %v3353 = vsub.s32 %v3350, %v3352
      %v3354 = vrot.slane %v3338, %v3353
      %v3356 = vunpack.c.l.s4 1966171168
      %v3357 = vunpack.c.0.s8 %v3356
      %v3358 = vlaneseq
      %v3359 = vshrl.u32 %v3358, 7
      %v3360 = vsub.s32 %v3357, %v3359
      %v3361 = vrot.slane %v3339, %v3360
      %v3363 = vunpack.c.l.s4 1966171168
      %v3364 = vunpack.c.0.s8 %v3363
      %v3365 = vlaneseq
      %v3366 = vshrl.u32 %v3365, 7
      %v3367 = vsub.s32 %v3364, %v3366
      %v3368 = vrot.slane %v3340, %v3367
      %v3369 = vcombine.high %v3347, %v3347
      %v3370 = vcombine.high %v3354, %v3354
      %v3371 = vcombine.high %v3361, %v3361
      %v3372 = vcombine.high %v3368, %v3368
      %3381 = vst.msk [vmem:[#allocation2 + $0xd] sm:$0x1] %vm2405, %v3347
      %3382 = vst.msk [vmem:[#allocation2 + $0x1d] sm:$0x1] %vm2405, %v3361
      %3383 = vst.msk [vmem:[#allocation2 + $0x2d] sm:$0x1] %vm2405, %v3369
      %3384 = vst.msk [vmem:[#allocation2 + $0x3d] sm:$0x1] %vm2405, %v3371
      %3385 = vst.msk [vmem:[#allocation2 + $0x4d] sm:$0x1] %vm2405, %v3354
      %3386 = vst.msk [vmem:[#allocation2 + $0x5d] sm:$0x1] %vm2405, %v3368
      %3387 = vst.msk [vmem:[#allocation2 + $0x6d] sm:$0x1] %vm2405, %v3370
      %3388 = vst.msk [vmem:[#allocation2 + $0x7d] sm:$0x1] %vm2405, %v3372
      %v3389 = vsel %vm3320, 3.4028235e+38, %v3314
      %v3390 = vsel %vm2338, %v3389, inf
      %3391 = vmin.xlane.f32.xlu0 %v3390
      %v3392 = vpop.xlane.xlu0 %3391
      %v3394 = vand.u32 %v3392, 63
      %vm3395 = vcmp.eq.s32.totalorder %v1517, %v3394
      %v3396 = vsel %vm3395, 1, 0
      %v3397 = vcvt.s32.f32 %v3396
      %v3399 = vcombine.high %v3397, %v3397
      %v3401 = vunpack.c.l.s4 1966171168
      %v3402 = vunpack.c.0.s8 %v3401
      %v3403 = vlaneseq
      %v3404 = vshrl.u32 %v3403, 7
      %v3405 = vsub.s32 %v3402, %v3404
      %v3406 = vrot.slane %v3397, %v3405
      %v3408 = vunpack.c.l.s4 1966171168
      %v3409 = vunpack.c.0.s8 %v3408
      %v3410 = vlaneseq
      %v3411 = vshrl.u32 %v3410, 7
      %v3412 = vsub.s32 %v3409, %v3411
      %v3413 = vrot.slane %v3399, %v3412
      %v3414 = vcombine.high %v3406, %v3406
      %v3415 = vcombine.high %v3413, %v3413
      %v3417 = vunpack.c.l.s4 1966171168
      %v3418 = vunpack.c.0.s8 %v3417
      %v3419 = vlaneseq
      %v3420 = vshrl.u32 %v3419, 7
      %v3421 = vsub.s32 %v3418, %v3420
      %v3422 = vrot.slane %v3406, %v3421
      %v3424 = vunpack.c.l.s4 1966171168
      %v3425 = vunpack.c.0.s8 %v3424
      %v3426 = vlaneseq
      %v3427 = vshrl.u32 %v3426, 7
      %v3428 = vsub.s32 %v3425, %v3427
      %v3429 = vrot.slane %v3413, %v3428
      %v3431 = vunpack.c.l.s4 1966171168
      %v3432 = vunpack.c.0.s8 %v3431
      %v3433 = vlaneseq
      %v3434 = vshrl.u32 %v3433, 7
      %v3435 = vsub.s32 %v3432, %v3434
      %v3436 = vrot.slane %v3414, %v3435
      %v3438 = vunpack.c.l.s4 1966171168
      %v3439 = vunpack.c.0.s8 %v3438
      %v3440 = vlaneseq
      %v3441 = vshrl.u32 %v3440, 7
      %v3442 = vsub.s32 %v3439, %v3441
      %v3443 = vrot.slane %v3415, %v3442
      %v3444 = vcombine.high %v3422, %v3422
      %v3445 = vcombine.high %v3429, %v3429
      %v3446 = vcombine.high %v3436, %v3436
      %v3447 = vcombine.high %v3443, %v3443
      %3456 = vst.msk [vmem:[#allocation2 + $0xe] sm:$0x1] %vm2405, %v3422
      %3457 = vst.msk [vmem:[#allocation2 + $0x1e] sm:$0x1] %vm2405, %v3436
      %3458 = vst.msk [vmem:[#allocation2 + $0x2e] sm:$0x1] %vm2405, %v3444
      %3459 = vst.msk [vmem:[#allocation2 + $0x3e] sm:$0x1] %vm2405, %v3446
      %3460 = vst.msk [vmem:[#allocation2 + $0x4e] sm:$0x1] %vm2405, %v3429
      %3461 = vst.msk [vmem:[#allocation2 + $0x5e] sm:$0x1] %vm2405, %v3443
      %3462 = vst.msk [vmem:[#allocation2 + $0x6e] sm:$0x1] %vm2405, %v3445
      %3463 = vst.msk [vmem:[#allocation2 + $0x7e] sm:$0x1] %vm2405, %v3447
      %v3464 = vsel %vm3395, 3.4028235e+38, %v3389
      %v3465 = vsel %vm2338, %v3464, inf
      %3466 = vmin.xlane.f32.xlu0 %v3465
      %v3467 = vpop.xlane.xlu0 %3466
      %v3469 = vand.u32 %v3467, 63
      %vm3470 = vcmp.eq.s32.totalorder %v1517, %v3469
      %v3471 = vsel %vm3470, 1, 0
      %v3472 = vcvt.s32.f32 %v3471
      %v3474 = vcombine.high %v3472, %v3472
      %v3476 = vunpack.c.l.s4 1966171168
      %v3477 = vunpack.c.0.s8 %v3476
      %v3478 = vlaneseq
      %v3479 = vshrl.u32 %v3478, 7
      %v3480 = vsub.s32 %v3477, %v3479
      %v3481 = vrot.slane %v3472, %v3480
      %v3483 = vunpack.c.l.s4 1966171168
      %v3484 = vunpack.c.0.s8 %v3483
      %v3485 = vlaneseq
      %v3486 = vshrl.u32 %v3485, 7
      %v3487 = vsub.s32 %v3484, %v3486
      %v3488 = vrot.slane %v3474, %v3487
      %v3489 = vcombine.high %v3481, %v3481
      %v3490 = vcombine.high %v3488, %v3488
      %v3492 = vunpack.c.l.s4 1966171168
      %v3493 = vunpack.c.0.s8 %v3492
      %v3494 = vlaneseq
      %v3495 = vshrl.u32 %v3494, 7
      %v3496 = vsub.s32 %v3493, %v3495
      %v3497 = vrot.slane %v3481, %v3496
      %v3499 = vunpack.c.l.s4 1966171168
      %v3500 = vunpack.c.0.s8 %v3499
      %v3501 = vlaneseq
      %v3502 = vshrl.u32 %v3501, 7
      %v3503 = vsub.s32 %v3500, %v3502
      %v3504 = vrot.slane %v3488, %v3503
      %v3506 = vunpack.c.l.s4 1966171168
      %v3507 = vunpack.c.0.s8 %v3506
      %v3508 = vlaneseq
      %v3509 = vshrl.u32 %v3508, 7
      %v3510 = vsub.s32 %v3507, %v3509
      %v3511 = vrot.slane %v3489, %v3510
      %v3513 = vunpack.c.l.s4 1966171168
      %v3514 = vunpack.c.0.s8 %v3513
      %v3515 = vlaneseq
      %v3516 = vshrl.u32 %v3515, 7
      %v3517 = vsub.s32 %v3514, %v3516
      %v3518 = vrot.slane %v3490, %v3517
      %v3519 = vcombine.high %v3497, %v3497
      %v3520 = vcombine.high %v3504, %v3504
      %v3521 = vcombine.high %v3511, %v3511
      %v3522 = vcombine.high %v3518, %v3518
      %3531 = vst.msk [vmem:[#allocation2 + $0xf] sm:$0x1] %vm2405, %v3497
      %3532 = vst.msk [vmem:[#allocation2 + $0x1f] sm:$0x1] %vm2405, %v3511
      %3533 = vst.msk [vmem:[#allocation2 + $0x2f] sm:$0x1] %vm2405, %v3519
      %3534 = vst.msk [vmem:[#allocation2 + $0x3f] sm:$0x1] %vm2405, %v3521
      %3535 = vst.msk [vmem:[#allocation2 + $0x4f] sm:$0x1] %vm2405, %v3504
      %3536 = vst.msk [vmem:[#allocation2 + $0x5f] sm:$0x1] %vm2405, %v3518
      %3537 = vst.msk [vmem:[#allocation2 + $0x6f] sm:$0x1] %vm2405, %v3520
      %3538 = vst.msk [vmem:[#allocation2 + $0x7f] sm:$0x1] %vm2405, %v3522
      %v3539 = vld [vmem:[#allocation2] sm:$0xff]
      %v3540 = vld [vmem:[#allocation2 + $0x8] sm:$0xff]
      %v3541 = vld [vmem:[#allocation2 + $0x10] sm:$0xff]
      %v3542 = vld [vmem:[#allocation2 + $0x18] sm:$0xff]
      %v3543 = vld [vmem:[#allocation2 + $0x20] sm:$0xff]
      %v3544 = vld [vmem:[#allocation2 + $0x28] sm:$0xff]
      %v3545 = vld [vmem:[#allocation2 + $0x30] sm:$0xff]
      %v3546 = vld [vmem:[#allocation2 + $0x38] sm:$0xff]
      %v3547 = vld [vmem:[#allocation2 + $0x40] sm:$0xff]
      %v3548 = vld [vmem:[#allocation2 + $0x48] sm:$0xff]
      %v3549 = vld [vmem:[#allocation2 + $0x50] sm:$0xff]
      %v3550 = vld [vmem:[#allocation2 + $0x58] sm:$0xff]
      %v3551 = vld [vmem:[#allocation2 + $0x60] sm:$0xff]
      %v3552 = vld [vmem:[#allocation2 + $0x68] sm:$0xff]
      %v3553 = vld [vmem:[#allocation2 + $0x70] sm:$0xff]
      %v3554 = vld [vmem:[#allocation2 + $0x78] sm:$0xff]
      %v3556 = vsel %vm2338, %v3539, 0
      %v3559 = vsel %vm2338, %v3540, 0
      %3561 = vmatprep.subr.mxu0 0.0
      %3562 = vmatpush1.msra.mxu0 0.0
      %3563 = vmatprep.subr.mxu0 0.0
      %3564 = vmatpush1.msra.mxu0 0.0
      %3565 = vmatprep.subr.mxu0 0.0
      %3566 = vmatpush1.msra.mxu0 0.0
      %3567 = vmatprep.subr.mxu0 0.0
      %3568 = vmatpush1.msra.mxu0 0.0
      %3569 = vmatprep.subr.mxu0 0.0
      %3570 = vmatpush1.msra.mxu0 0.0
      %3571 = vmatprep.subr.mxu0 0.0
      %3572 = vmatpush1.msra.mxu0 0.0
      %3573 = vmatprep.subr.mxu0 0.0
      %3574 = vmatpush1.msra.mxu0 0.0
      %3575 = vmatprep.subr.mxu0 0.0
      %3576 = vmatpush1.msra.mxu0 0.0
      %3577 = vmatprep.subr.mxu0 0.0
      %3578 = vmatpush1.msra.mxu0 %v425
      %3579 = vmatprep.subr.mxu0 0.0
      %3580 = vmatpush1.msra.mxu0 %v424
      %3581 = vmatprep.subr.mxu0 0.0
      %3582 = vmatpush1.msra.mxu0 %v423
      %3583 = vmatprep.subr.mxu0 0.0
      %3584 = vmatpush1.msra.mxu0 %v422
      %3585 = vmatprep.subr.mxu0 0.0
      %3586 = vmatpush1.msra.mxu0 %v421
      %3587 = vmatprep.subr.mxu0 0.0
      %3588 = vmatpush1.msra.mxu0 %v420
      %3589 = vmatprep.subr.mxu0 0.0
      %3590 = vmatpush1.msra.mxu0 %v419
      %3591 = vmatprep.subr.mxu0 0.0
      %3592 = vmatpush1.msra.mxu0 %v418
      %3593 = vmatprep.subr.mxu0 0.0
      %3594 = vmatpush2.msra.mxu0 0.0
      %3595 = vmatprep.subr.mxu0 0.0
      %3596 = vmatpush2.msra.mxu0 0.0
      %3597 = vmatprep.subr.mxu0 0.0
      %3598 = vmatpush2.msra.mxu0 0.0
      %3599 = vmatprep.subr.mxu0 0.0
      %3600 = vmatpush2.msra.mxu0 0.0
      %3601 = vmatprep.subr.mxu0 0.0
      %3602 = vmatpush2.msra.mxu0 0.0
      %3603 = vmatprep.subr.mxu0 0.0
      %3604 = vmatpush2.msra.mxu0 0.0
      %3605 = vmatprep.subr.mxu0 0.0
      %3606 = vmatpush2.msra.mxu0 0.0
      %3607 = vmatprep.subr.mxu0 0.0
      %3608 = vmatpush2.msra.mxu0 0.0
      %3609 = vmatprep.subr.mxu0 0.0
      %3610 = vmatpush2.msra.mxu0 0.0
      %3611 = vmatprep.subr.mxu0 0.0
      %3612 = vmatpush2.msra.mxu0 0.0
      %3613 = vmatprep.subr.mxu0 0.0
      %3614 = vmatpush2.msra.mxu0 0.0
      %3615 = vmatprep.subr.mxu0 0.0
      %3616 = vmatpush2.msra.mxu0 0.0
      %3617 = vmatprep.subr.mxu0 0.0
      %3618 = vmatpush2.msra.mxu0 0.0
      %3619 = vmatprep.subr.mxu0 0.0
      %3620 = vmatpush2.msra.mxu0 0.0
      %3621 = vmatprep.subr.mxu0 0.0
      %3622 = vmatpush2.msra.mxu0 0.0
      %3623 = vmatprep.subr.mxu0 0.0
      %3624 = vmatpush2.msra.mxu0 0.0
      %3625 = vmatprep.mubr.f32.mxu0 0.0
      %3626 = vmatmul.mubr.f32.gmra.mxu0 %v3556
      %v3627 = vpop.f32.mrf.mxu0
      %v3628 = vadd.f32 0.0, %v3627
      %v3629 = vpop.f32.mrf.mxu0
      %3630 = vmatprep.mubr.f32.mxu0 0.0
      %3631 = vmatmul.mubr.f32.gmra.mxu0 %v3559
      %v3632 = vpop.f32.mrf.mxu0
      %v3633 = vadd.f32 0.0, %v3632
      %v3634 = vpop.f32.mrf.mxu0
      %3635 = vdwg.mxu0
      %v3637 = vsel %vm2338, %v3541, 0
      %v3640 = vsel %vm2338, %v3542, 0
      %3642 = vmatprep.subr.mxu0 0.0
      %3643 = vmatpush1.msra.mxu0 0.0
      %3644 = vmatprep.subr.mxu0 0.0
      %3645 = vmatpush1.msra.mxu0 0.0
      %3646 = vmatprep.subr.mxu0 0.0
      %3647 = vmatpush1.msra.mxu0 0.0
      %3648 = vmatprep.subr.mxu0 0.0
      %3649 = vmatpush1.msra.mxu0 0.0
      %3650 = vmatprep.subr.mxu0 0.0
      %3651 = vmatpush1.msra.mxu0 0.0
      %3652 = vmatprep.subr.mxu0 0.0
      %3653 = vmatpush1.msra.mxu0 0.0
      %3654 = vmatprep.subr.mxu0 0.0
      %3655 = vmatpush1.msra.mxu0 0.0
      %3656 = vmatprep.subr.mxu0 0.0
      %3657 = vmatpush1.msra.mxu0 0.0
      %3658 = vmatprep.subr.mxu0 0.0
      %3659 = vmatpush1.msra.mxu0 %v433
      %3660 = vmatprep.subr.mxu0 0.0
      %3661 = vmatpush1.msra.mxu0 %v432
      %3662 = vmatprep.subr.mxu0 0.0
      %3663 = vmatpush1.msra.mxu0 %v431
      %3664 = vmatprep.subr.mxu0 0.0
      %3665 = vmatpush1.msra.mxu0 %v430
      %3666 = vmatprep.subr.mxu0 0.0
      %3667 = vmatpush1.msra.mxu0 %v429
      %3668 = vmatprep.subr.mxu0 0.0
      %3669 = vmatpush1.msra.mxu0 %v428
      %3670 = vmatprep.subr.mxu0 0.0
      %3671 = vmatpush1.msra.mxu0 %v427
      %3672 = vmatprep.subr.mxu0 0.0
      %3673 = vmatpush1.msra.mxu0 %v426
      %3674 = vmatprep.subr.mxu0 0.0
      %3675 = vmatpush2.msra.mxu0 0.0
      %3676 = vmatprep.subr.mxu0 0.0
      %3677 = vmatpush2.msra.mxu0 0.0
      %3678 = vmatprep.subr.mxu0 0.0
      %3679 = vmatpush2.msra.mxu0 0.0
      %3680 = vmatprep.subr.mxu0 0.0
      %3681 = vmatpush2.msra.mxu0 0.0
      %3682 = vmatprep.subr.mxu0 0.0
      %3683 = vmatpush2.msra.mxu0 0.0
      %3684 = vmatprep.subr.mxu0 0.0
      %3685 = vmatpush2.msra.mxu0 0.0
      %3686 = vmatprep.subr.mxu0 0.0
      %3687 = vmatpush2.msra.mxu0 0.0
      %3688 = vmatprep.subr.mxu0 0.0
      %3689 = vmatpush2.msra.mxu0 0.0
      %3690 = vmatprep.subr.mxu0 0.0
      %3691 = vmatpush2.msra.mxu0 0.0
      %3692 = vmatprep.subr.mxu0 0.0
      %3693 = vmatpush2.msra.mxu0 0.0
      %3694 = vmatprep.subr.mxu0 0.0
      %3695 = vmatpush2.msra.mxu0 0.0
      %3696 = vmatprep.subr.mxu0 0.0
      %3697 = vmatpush2.msra.mxu0 0.0
      %3698 = vmatprep.subr.mxu0 0.0
      %3699 = vmatpush2.msra.mxu0 0.0
      %3700 = vmatprep.subr.mxu0 0.0
      %3701 = vmatpush2.msra.mxu0 0.0
      %3702 = vmatprep.subr.mxu0 0.0
      %3703 = vmatpush2.msra.mxu0 0.0
      %3704 = vmatprep.subr.mxu0 0.0
      %3705 = vmatpush2.msra.mxu0 0.0
      %3706 = vmatprep.mubr.f32.mxu0 0.0
      %3707 = vmatmul.mubr.f32.gmra.mxu0 %v3637
      %v3708 = vpop.f32.mrf.mxu0
      %v3709 = vadd.f32 0.0, %v3708
      %v3710 = vpop.f32.mrf.mxu0
      %3711 = vmatprep.mubr.f32.mxu0 0.0
      %3712 = vmatmul.mubr.f32.gmra.mxu0 %v3640
      %v3713 = vpop.f32.mrf.mxu0
      %v3714 = vadd.f32 0.0, %v3713
      %v3715 = vpop.f32.mrf.mxu0
      %3716 = vdwg.mxu0
      %v3718 = vsel %vm2338, %v3543, 0
      %v3721 = vsel %vm2338, %v3544, 0
      %3723 = vmatprep.subr.mxu0 0.0
      %3724 = vmatpush1.msra.mxu0 0.0
      %3725 = vmatprep.subr.mxu0 0.0
      %3726 = vmatpush1.msra.mxu0 0.0
      %3727 = vmatprep.subr.mxu0 0.0
      %3728 = vmatpush1.msra.mxu0 0.0
      %3729 = vmatprep.subr.mxu0 0.0
      %3730 = vmatpush1.msra.mxu0 0.0
      %3731 = vmatprep.subr.mxu0 0.0
      %3732 = vmatpush1.msra.mxu0 0.0
      %3733 = vmatprep.subr.mxu0 0.0
      %3734 = vmatpush1.msra.mxu0 0.0
      %3735 = vmatprep.subr.mxu0 0.0
      %3736 = vmatpush1.msra.mxu0 0.0
      %3737 = vmatprep.subr.mxu0 0.0
      %3738 = vmatpush1.msra.mxu0 0.0
      %3739 = vmatprep.subr.mxu0 0.0
      %3740 = vmatpush1.msra.mxu0 %v441
      %3741 = vmatprep.subr.mxu0 0.0
      %3742 = vmatpush1.msra.mxu0 %v440
      %3743 = vmatprep.subr.mxu0 0.0
      %3744 = vmatpush1.msra.mxu0 %v439
      %3745 = vmatprep.subr.mxu0 0.0
      %3746 = vmatpush1.msra.mxu0 %v438
      %3747 = vmatprep.subr.mxu0 0.0
      %3748 = vmatpush1.msra.mxu0 %v437
      %3749 = vmatprep.subr.mxu0 0.0
      %3750 = vmatpush1.msra.mxu0 %v436
      %3751 = vmatprep.subr.mxu0 0.0
      %3752 = vmatpush1.msra.mxu0 %v435
      %3753 = vmatprep.subr.mxu0 0.0
      %3754 = vmatpush1.msra.mxu0 %v434
      %3755 = vmatprep.subr.mxu0 0.0
      %3756 = vmatpush2.msra.mxu0 0.0
      %3757 = vmatprep.subr.mxu0 0.0
      %3758 = vmatpush2.msra.mxu0 0.0
      %3759 = vmatprep.subr.mxu0 0.0
      %3760 = vmatpush2.msra.mxu0 0.0
      %3761 = vmatprep.subr.mxu0 0.0
      %3762 = vmatpush2.msra.mxu0 0.0
      %3763 = vmatprep.subr.mxu0 0.0
      %3764 = vmatpush2.msra.mxu0 0.0
      %3765 = vmatprep.subr.mxu0 0.0
      %3766 = vmatpush2.msra.mxu0 0.0
      %3767 = vmatprep.subr.mxu0 0.0
      %3768 = vmatpush2.msra.mxu0 0.0
      %3769 = vmatprep.subr.mxu0 0.0
      %3770 = vmatpush2.msra.mxu0 0.0
      %3771 = vmatprep.subr.mxu0 0.0
      %3772 = vmatpush2.msra.mxu0 0.0
      %3773 = vmatprep.subr.mxu0 0.0
      %3774 = vmatpush2.msra.mxu0 0.0
      %3775 = vmatprep.subr.mxu0 0.0
      %3776 = vmatpush2.msra.mxu0 0.0
      %3777 = vmatprep.subr.mxu0 0.0
      %3778 = vmatpush2.msra.mxu0 0.0
      %3779 = vmatprep.subr.mxu0 0.0
      %3780 = vmatpush2.msra.mxu0 0.0
      %3781 = vmatprep.subr.mxu0 0.0
      %3782 = vmatpush2.msra.mxu0 0.0
      %3783 = vmatprep.subr.mxu0 0.0
      %3784 = vmatpush2.msra.mxu0 0.0
      %3785 = vmatprep.subr.mxu0 0.0
      %3786 = vmatpush2.msra.mxu0 0.0
      %3787 = vmatprep.mubr.f32.mxu0 0.0
      %3788 = vmatmul.mubr.f32.gmra.mxu0 %v3718
      %v3789 = vpop.f32.mrf.mxu0
      %v3790 = vadd.f32 0.0, %v3789
      %v3791 = vpop.f32.mrf.mxu0
      %3792 = vmatprep.mubr.f32.mxu0 0.0
      %3793 = vmatmul.mubr.f32.gmra.mxu0 %v3721
      %v3794 = vpop.f32.mrf.mxu0
      %v3795 = vadd.f32 0.0, %v3794
      %v3796 = vpop.f32.mrf.mxu0
      %3797 = vdwg.mxu0
      %v3799 = vsel %vm2338, %v3545, 0
      %v3802 = vsel %vm2338, %v3546, 0
      %3804 = vmatprep.subr.mxu0 0.0
      %3805 = vmatpush1.msra.mxu0 0.0
      %3806 = vmatprep.subr.mxu0 0.0
      %3807 = vmatpush1.msra.mxu0 0.0
      %3808 = vmatprep.subr.mxu0 0.0
      %3809 = vmatpush1.msra.mxu0 0.0
      %3810 = vmatprep.subr.mxu0 0.0
      %3811 = vmatpush1.msra.mxu0 0.0
      %3812 = vmatprep.subr.mxu0 0.0
      %3813 = vmatpush1.msra.mxu0 0.0
      %3814 = vmatprep.subr.mxu0 0.0
      %3815 = vmatpush1.msra.mxu0 0.0
      %3816 = vmatprep.subr.mxu0 0.0
      %3817 = vmatpush1.msra.mxu0 0.0
      %3818 = vmatprep.subr.mxu0 0.0
      %3819 = vmatpush1.msra.mxu0 0.0
      %3820 = vmatprep.subr.mxu0 0.0
      %3821 = vmatpush1.msra.mxu0 %v449
      %3822 = vmatprep.subr.mxu0 0.0
      %3823 = vmatpush1.msra.mxu0 %v448
      %3824 = vmatprep.subr.mxu0 0.0
      %3825 = vmatpush1.msra.mxu0 %v447
      %3826 = vmatprep.subr.mxu0 0.0
      %3827 = vmatpush1.msra.mxu0 %v446
      %3828 = vmatprep.subr.mxu0 0.0
      %3829 = vmatpush1.msra.mxu0 %v445
      %3830 = vmatprep.subr.mxu0 0.0
      %3831 = vmatpush1.msra.mxu0 %v444
      %3832 = vmatprep.subr.mxu0 0.0
      %3833 = vmatpush1.msra.mxu0 %v443
      %3834 = vmatprep.subr.mxu0 0.0
      %3835 = vmatpush1.msra.mxu0 %v442
      %3836 = vmatprep.subr.mxu0 0.0
      %3837 = vmatpush2.msra.mxu0 0.0
      %3838 = vmatprep.subr.mxu0 0.0
      %3839 = vmatpush2.msra.mxu0 0.0
      %3840 = vmatprep.subr.mxu0 0.0
      %3841 = vmatpush2.msra.mxu0 0.0
      %3842 = vmatprep.subr.mxu0 0.0
      %3843 = vmatpush2.msra.mxu0 0.0
      %3844 = vmatprep.subr.mxu0 0.0
      %3845 = vmatpush2.msra.mxu0 0.0
      %3846 = vmatprep.subr.mxu0 0.0
      %3847 = vmatpush2.msra.mxu0 0.0
      %3848 = vmatprep.subr.mxu0 0.0
      %3849 = vmatpush2.msra.mxu0 0.0
      %3850 = vmatprep.subr.mxu0 0.0
      %3851 = vmatpush2.msra.mxu0 0.0
      %3852 = vmatprep.subr.mxu0 0.0
      %3853 = vmatpush2.msra.mxu0 0.0
      %3854 = vmatprep.subr.mxu0 0.0
      %3855 = vmatpush2.msra.mxu0 0.0
      %3856 = vmatprep.subr.mxu0 0.0
      %3857 = vmatpush2.msra.mxu0 0.0
      %3858 = vmatprep.subr.mxu0 0.0
      %3859 = vmatpush2.msra.mxu0 0.0
      %3860 = vmatprep.subr.mxu0 0.0
      %3861 = vmatpush2.msra.mxu0 0.0
      %3862 = vmatprep.subr.mxu0 0.0
      %3863 = vmatpush2.msra.mxu0 0.0
      %3864 = vmatprep.subr.mxu0 0.0
      %3865 = vmatpush2.msra.mxu0 0.0
      %3866 = vmatprep.subr.mxu0 0.0
      %3867 = vmatpush2.msra.mxu0 0.0
      %3868 = vmatprep.mubr.f32.mxu0 0.0
      %3869 = vmatmul.mubr.f32.gmra.mxu0 %v3799
      %v3870 = vpop.f32.mrf.mxu0
      %v3871 = vadd.f32 0.0, %v3870
      %v3872 = vpop.f32.mrf.mxu0
      %3873 = vmatprep.mubr.f32.mxu0 0.0
      %3874 = vmatmul.mubr.f32.gmra.mxu0 %v3802
      %v3875 = vpop.f32.mrf.mxu0
      %v3876 = vadd.f32 0.0, %v3875
      %v3877 = vpop.f32.mrf.mxu0
      %3878 = vdwg.mxu0
      %v3880 = vsel %vm2338, %v3547, 0
      %v3883 = vsel %vm2338, %v3548, 0
      %3885 = vmatprep.subr.mxu0 0.0
      %3886 = vmatpush1.msra.mxu0 0.0
      %3887 = vmatprep.subr.mxu0 0.0
      %3888 = vmatpush1.msra.mxu0 0.0
      %3889 = vmatprep.subr.mxu0 0.0
      %3890 = vmatpush1.msra.mxu0 0.0
      %3891 = vmatprep.subr.mxu0 0.0
      %3892 = vmatpush1.msra.mxu0 0.0
      %3893 = vmatprep.subr.mxu0 0.0
      %3894 = vmatpush1.msra.mxu0 0.0
      %3895 = vmatprep.subr.mxu0 0.0
      %3896 = vmatpush1.msra.mxu0 0.0
      %3897 = vmatprep.subr.mxu0 0.0
      %3898 = vmatpush1.msra.mxu0 0.0
      %3899 = vmatprep.subr.mxu0 0.0
      %3900 = vmatpush1.msra.mxu0 0.0
      %3901 = vmatprep.subr.mxu0 0.0
      %3902 = vmatpush1.msra.mxu0 %v457
      %3903 = vmatprep.subr.mxu0 0.0
      %3904 = vmatpush1.msra.mxu0 %v456
      %3905 = vmatprep.subr.mxu0 0.0
      %3906 = vmatpush1.msra.mxu0 %v455
      %3907 = vmatprep.subr.mxu0 0.0
      %3908 = vmatpush1.msra.mxu0 %v454
      %3909 = vmatprep.subr.mxu0 0.0
      %3910 = vmatpush1.msra.mxu0 %v453
      %3911 = vmatprep.subr.mxu0 0.0
      %3912 = vmatpush1.msra.mxu0 %v452
      %3913 = vmatprep.subr.mxu0 0.0
      %3914 = vmatpush1.msra.mxu0 %v451
      %3915 = vmatprep.subr.mxu0 0.0
      %3916 = vmatpush1.msra.mxu0 %v450
      %3917 = vmatprep.subr.mxu0 0.0
      %3918 = vmatpush2.msra.mxu0 0.0
      %3919 = vmatprep.subr.mxu0 0.0
      %3920 = vmatpush2.msra.mxu0 0.0
      %3921 = vmatprep.subr.mxu0 0.0
      %3922 = vmatpush2.msra.mxu0 0.0
      %3923 = vmatprep.subr.mxu0 0.0
      %3924 = vmatpush2.msra.mxu0 0.0
      %3925 = vmatprep.subr.mxu0 0.0
      %3926 = vmatpush2.msra.mxu0 0.0
      %3927 = vmatprep.subr.mxu0 0.0
      %3928 = vmatpush2.msra.mxu0 0.0
      %3929 = vmatprep.subr.mxu0 0.0
      %3930 = vmatpush2.msra.mxu0 0.0
      %3931 = vmatprep.subr.mxu0 0.0
      %3932 = vmatpush2.msra.mxu0 0.0
      %3933 = vmatprep.subr.mxu0 0.0
      %3934 = vmatpush2.msra.mxu0 0.0
      %3935 = vmatprep.subr.mxu0 0.0
      %3936 = vmatpush2.msra.mxu0 0.0
      %3937 = vmatprep.subr.mxu0 0.0
      %3938 = vmatpush2.msra.mxu0 0.0
      %3939 = vmatprep.subr.mxu0 0.0
      %3940 = vmatpush2.msra.mxu0 0.0
      %3941 = vmatprep.subr.mxu0 0.0
      %3942 = vmatpush2.msra.mxu0 0.0
      %3943 = vmatprep.subr.mxu0 0.0
      %3944 = vmatpush2.msra.mxu0 0.0
      %3945 = vmatprep.subr.mxu0 0.0
      %3946 = vmatpush2.msra.mxu0 0.0
      %3947 = vmatprep.subr.mxu0 0.0
      %3948 = vmatpush2.msra.mxu0 0.0
      %3949 = vmatprep.mubr.f32.mxu0 0.0
      %3950 = vmatmul.mubr.f32.gmra.mxu0 %v3880
      %v3951 = vpop.f32.mrf.mxu0
      %v3952 = vadd.f32 0.0, %v3951
      %v3953 = vpop.f32.mrf.mxu0
      %3954 = vmatprep.mubr.f32.mxu0 0.0
      %3955 = vmatmul.mubr.f32.gmra.mxu0 %v3883
      %v3956 = vpop.f32.mrf.mxu0
      %v3957 = vadd.f32 0.0, %v3956
      %v3958 = vpop.f32.mrf.mxu0
      %3959 = vdwg.mxu0
      %v3961 = vsel %vm2338, %v3549, 0
      %v3964 = vsel %vm2338, %v3550, 0
      %3966 = vmatprep.subr.mxu0 0.0
      %3967 = vmatpush1.msra.mxu0 0.0
      %3968 = vmatprep.subr.mxu0 0.0
      %3969 = vmatpush1.msra.mxu0 0.0
      %3970 = vmatprep.subr.mxu0 0.0
      %3971 = vmatpush1.msra.mxu0 0.0
      %3972 = vmatprep.subr.mxu0 0.0
      %3973 = vmatpush1.msra.mxu0 0.0
      %3974 = vmatprep.subr.mxu0 0.0
      %3975 = vmatpush1.msra.mxu0 0.0
      %3976 = vmatprep.subr.mxu0 0.0
      %3977 = vmatpush1.msra.mxu0 0.0
      %3978 = vmatprep.subr.mxu0 0.0
      %3979 = vmatpush1.msra.mxu0 0.0
      %3980 = vmatprep.subr.mxu0 0.0
      %3981 = vmatpush1.msra.mxu0 0.0
      %3982 = vmatprep.subr.mxu0 0.0
      %3983 = vmatpush1.msra.mxu0 %v465
      %3984 = vmatprep.subr.mxu0 0.0
      %3985 = vmatpush1.msra.mxu0 %v464
      %3986 = vmatprep.subr.mxu0 0.0
      %3987 = vmatpush1.msra.mxu0 %v463
      %3988 = vmatprep.subr.mxu0 0.0
      %3989 = vmatpush1.msra.mxu0 %v462
      %3990 = vmatprep.subr.mxu0 0.0
      %3991 = vmatpush1.msra.mxu0 %v461
      %3992 = vmatprep.subr.mxu0 0.0
      %3993 = vmatpush1.msra.mxu0 %v460
      %3994 = vmatprep.subr.mxu0 0.0
      %3995 = vmatpush1.msra.mxu0 %v459
      %3996 = vmatprep.subr.mxu0 0.0
      %3997 = vmatpush1.msra.mxu0 %v458
      %3998 = vmatprep.subr.mxu0 0.0
      %3999 = vmatpush2.msra.mxu0 0.0
      %4000 = vmatprep.subr.mxu0 0.0
      %4001 = vmatpush2.msra.mxu0 0.0
      %4002 = vmatprep.subr.mxu0 0.0
      %4003 = vmatpush2.msra.mxu0 0.0
      %4004 = vmatprep.subr.mxu0 0.0
      %4005 = vmatpush2.msra.mxu0 0.0
      %4006 = vmatprep.subr.mxu0 0.0
      %4007 = vmatpush2.msra.mxu0 0.0
      %4008 = vmatprep.subr.mxu0 0.0
      %4009 = vmatpush2.msra.mxu0 0.0
      %4010 = vmatprep.subr.mxu0 0.0
      %4011 = vmatpush2.msra.mxu0 0.0
      %4012 = vmatprep.subr.mxu0 0.0
      %4013 = vmatpush2.msra.mxu0 0.0
      %4014 = vmatprep.subr.mxu0 0.0
      %4015 = vmatpush2.msra.mxu0 0.0
      %4016 = vmatprep.subr.mxu0 0.0
      %4017 = vmatpush2.msra.mxu0 0.0
      %4018 = vmatprep.subr.mxu0 0.0
      %4019 = vmatpush2.msra.mxu0 0.0
      %4020 = vmatprep.subr.mxu0 0.0
      %4021 = vmatpush2.msra.mxu0 0.0
      %4022 = vmatprep.subr.mxu0 0.0
      %4023 = vmatpush2.msra.mxu0 0.0
      %4024 = vmatprep.subr.mxu0 0.0
      %4025 = vmatpush2.msra.mxu0 0.0
      %4026 = vmatprep.subr.mxu0 0.0
      %4027 = vmatpush2.msra.mxu0 0.0
      %4028 = vmatprep.subr.mxu0 0.0
      %4029 = vmatpush2.msra.mxu0 0.0
      %4030 = vmatprep.mubr.f32.mxu0 0.0
      %4031 = vmatmul.mubr.f32.gmra.mxu0 %v3961
      %v4032 = vpop.f32.mrf.mxu0
      %v4033 = vadd.f32 0.0, %v4032
      %v4034 = vpop.f32.mrf.mxu0
      %4035 = vmatprep.mubr.f32.mxu0 0.0
      %4036 = vmatmul.mubr.f32.gmra.mxu0 %v3964
      %v4037 = vpop.f32.mrf.mxu0
      %v4038 = vadd.f32 0.0, %v4037
      %v4039 = vpop.f32.mrf.mxu0
      %4040 = vdwg.mxu0
      %v4042 = vsel %vm2338, %v3551, 0
      %v4045 = vsel %vm2338, %v3552, 0
      %4047 = vmatprep.subr.mxu0 0.0
      %4048 = vmatpush1.msra.mxu0 0.0
      %4049 = vmatprep.subr.mxu0 0.0
      %4050 = vmatpush1.msra.mxu0 0.0
      %4051 = vmatprep.subr.mxu0 0.0
      %4052 = vmatpush1.msra.mxu0 0.0
      %4053 = vmatprep.subr.mxu0 0.0
      %4054 = vmatpush1.msra.mxu0 0.0
      %4055 = vmatprep.subr.mxu0 0.0
      %4056 = vmatpush1.msra.mxu0 0.0
      %4057 = vmatprep.subr.mxu0 0.0
      %4058 = vmatpush1.msra.mxu0 0.0
      %4059 = vmatprep.subr.mxu0 0.0
      %4060 = vmatpush1.msra.mxu0 0.0
      %4061 = vmatprep.subr.mxu0 0.0
      %4062 = vmatpush1.msra.mxu0 0.0
      %4063 = vmatprep.subr.mxu0 0.0
      %4064 = vmatpush1.msra.mxu0 %v473
      %4065 = vmatprep.subr.mxu0 0.0
      %4066 = vmatpush1.msra.mxu0 %v472
      %4067 = vmatprep.subr.mxu0 0.0
      %4068 = vmatpush1.msra.mxu0 %v471
      %4069 = vmatprep.subr.mxu0 0.0
      %4070 = vmatpush1.msra.mxu0 %v470
      %4071 = vmatprep.subr.mxu0 0.0
      %4072 = vmatpush1.msra.mxu0 %v469
      %4073 = vmatprep.subr.mxu0 0.0
      %4074 = vmatpush1.msra.mxu0 %v468
      %4075 = vmatprep.subr.mxu0 0.0
      %4076 = vmatpush1.msra.mxu0 %v467
      %4077 = vmatprep.subr.mxu0 0.0
      %4078 = vmatpush1.msra.mxu0 %v466
      %4079 = vmatprep.subr.mxu0 0.0
      %4080 = vmatpush2.msra.mxu0 0.0
      %4081 = vmatprep.subr.mxu0 0.0
      %4082 = vmatpush2.msra.mxu0 0.0
      %4083 = vmatprep.subr.mxu0 0.0
      %4084 = vmatpush2.msra.mxu0 0.0
      %4085 = vmatprep.subr.mxu0 0.0
      %4086 = vmatpush2.msra.mxu0 0.0
      %4087 = vmatprep.subr.mxu0 0.0
      %4088 = vmatpush2.msra.mxu0 0.0
      %4089 = vmatprep.subr.mxu0 0.0
      %4090 = vmatpush2.msra.mxu0 0.0
      %4091 = vmatprep.subr.mxu0 0.0
      %4092 = vmatpush2.msra.mxu0 0.0
      %4093 = vmatprep.subr.mxu0 0.0
      %4094 = vmatpush2.msra.mxu0 0.0
      %4095 = vmatprep.subr.mxu0 0.0
      %4096 = vmatpush2.msra.mxu0 0.0
      %4097 = vmatprep.subr.mxu0 0.0
      %4098 = vmatpush2.msra.mxu0 0.0
      %4099 = vmatprep.subr.mxu0 0.0
      %4100 = vmatpush2.msra.mxu0 0.0
      %4101 = vmatprep.subr.mxu0 0.0
      %4102 = vmatpush2.msra.mxu0 0.0
      %4103 = vmatprep.subr.mxu0 0.0
      %4104 = vmatpush2.msra.mxu0 0.0
      %4105 = vmatprep.subr.mxu0 0.0
      %4106 = vmatpush2.msra.mxu0 0.0
      %4107 = vmatprep.subr.mxu0 0.0
      %4108 = vmatpush2.msra.mxu0 0.0
      %4109 = vmatprep.subr.mxu0 0.0
      %4110 = vmatpush2.msra.mxu0 0.0
      %4111 = vmatprep.mubr.f32.mxu0 0.0
      %4112 = vmatmul.mubr.f32.gmra.mxu0 %v4042
      %v4113 = vpop.f32.mrf.mxu0
      %v4114 = vadd.f32 0.0, %v4113
      %v4115 = vpop.f32.mrf.mxu0
      %4116 = vmatprep.mubr.f32.mxu0 0.0
      %4117 = vmatmul.mubr.f32.gmra.mxu0 %v4045
      %v4118 = vpop.f32.mrf.mxu0
      %v4119 = vadd.f32 0.0, %v4118
      %v4120 = vpop.f32.mrf.mxu0
      %4121 = vdwg.mxu0
      %v4123 = vsel %vm2338, %v3553, 0
      %v4126 = vsel %vm2338, %v3554, 0
      %4128 = vmatprep.subr.mxu0 0.0
      %4129 = vmatpush1.msra.mxu0 0.0
      %4130 = vmatprep.subr.mxu0 0.0
      %4131 = vmatpush1.msra.mxu0 0.0
      %4132 = vmatprep.subr.mxu0 0.0
      %4133 = vmatpush1.msra.mxu0 0.0
      %4134 = vmatprep.subr.mxu0 0.0
      %4135 = vmatpush1.msra.mxu0 0.0
      %4136 = vmatprep.subr.mxu0 0.0
      %4137 = vmatpush1.msra.mxu0 0.0
      %4138 = vmatprep.subr.mxu0 0.0
      %4139 = vmatpush1.msra.mxu0 0.0
      %4140 = vmatprep.subr.mxu0 0.0
      %4141 = vmatpush1.msra.mxu0 0.0
      %4142 = vmatprep.subr.mxu0 0.0
      %4143 = vmatpush1.msra.mxu0 0.0
      %4144 = vmatprep.subr.mxu0 0.0
      %4145 = vmatpush1.msra.mxu0 %v481
      %4146 = vmatprep.subr.mxu0 0.0
      %4147 = vmatpush1.msra.mxu0 %v480
      %4148 = vmatprep.subr.mxu0 0.0
      %4149 = vmatpush1.msra.mxu0 %v479
      %4150 = vmatprep.subr.mxu0 0.0
      %4151 = vmatpush1.msra.mxu0 %v478
      %4152 = vmatprep.subr.mxu0 0.0
      %4153 = vmatpush1.msra.mxu0 %v477
      %4154 = vmatprep.subr.mxu0 0.0
      %4155 = vmatpush1.msra.mxu0 %v476
      %4156 = vmatprep.subr.mxu0 0.0
      %4157 = vmatpush1.msra.mxu0 %v475
      %4158 = vmatprep.subr.mxu0 0.0
      %4159 = vmatpush1.msra.mxu0 %v474
      %4160 = vmatprep.subr.mxu0 0.0
      %4161 = vmatpush2.msra.mxu0 0.0
      %4162 = vmatprep.subr.mxu0 0.0
      %4163 = vmatpush2.msra.mxu0 0.0
      %4164 = vmatprep.subr.mxu0 0.0
      %4165 = vmatpush2.msra.mxu0 0.0
      %4166 = vmatprep.subr.mxu0 0.0
      %4167 = vmatpush2.msra.mxu0 0.0
      %4168 = vmatprep.subr.mxu0 0.0
      %4169 = vmatpush2.msra.mxu0 0.0
      %4170 = vmatprep.subr.mxu0 0.0
      %4171 = vmatpush2.msra.mxu0 0.0
      %4172 = vmatprep.subr.mxu0 0.0
      %4173 = vmatpush2.msra.mxu0 0.0
      %4174 = vmatprep.subr.mxu0 0.0
      %4175 = vmatpush2.msra.mxu0 0.0
      %4176 = vmatprep.subr.mxu0 0.0
      %4177 = vmatpush2.msra.mxu0 0.0
      %4178 = vmatprep.subr.mxu0 0.0
      %4179 = vmatpush2.msra.mxu0 0.0
      %4180 = vmatprep.subr.mxu0 0.0
      %4181 = vmatpush2.msra.mxu0 0.0
      %4182 = vmatprep.subr.mxu0 0.0
      %4183 = vmatpush2.msra.mxu0 0.0
      %4184 = vmatprep.subr.mxu0 0.0
      %4185 = vmatpush2.msra.mxu0 0.0
      %4186 = vmatprep.subr.mxu0 0.0
      %4187 = vmatpush2.msra.mxu0 0.0
      %4188 = vmatprep.subr.mxu0 0.0
      %4189 = vmatpush2.msra.mxu0 0.0
      %4190 = vmatprep.subr.mxu0 0.0
      %4191 = vmatpush2.msra.mxu0 0.0
      %4192 = vmatprep.mubr.f32.mxu0 0.0
      %4193 = vmatmul.mubr.f32.gmra.mxu0 %v4123
      %v4194 = vpop.f32.mrf.mxu0
      %v4195 = vadd.f32 0.0, %v4194
      %v4196 = vpop.f32.mrf.mxu0
      %4197 = vmatprep.mubr.f32.mxu0 0.0
      %4198 = vmatmul.mubr.f32.gmra.mxu0 %v4126
      %v4199 = vpop.f32.mrf.mxu0
      %v4200 = vadd.f32 0.0, %v4199
      %v4201 = vpop.f32.mrf.mxu0
      %4202 = vdwg.mxu0
      %v4203 = vsub.f32 %v1159, %v3628
      %v4204 = vsub.f32 %v1159, %v3633
      %v4205 = vsub.f32 %v1163, %v3709
      %v4206 = vsub.f32 %v1163, %v3714
      %v4207 = vsub.f32 %v1167, %v3790
      %v4208 = vsub.f32 %v1167, %v3795
      %v4209 = vsub.f32 %v1171, %v3871
      %v4210 = vsub.f32 %v1171, %v3876
      %v4211 = vsub.f32 %v1175, %v3952
      %v4212 = vsub.f32 %v1175, %v3957
      %v4213 = vsub.f32 %v1179, %v4033
      %v4214 = vsub.f32 %v1179, %v4038
      %v4215 = vsub.f32 %v1183, %v4114
      %v4216 = vsub.f32 %v1183, %v4119
      %v4217 = vsub.f32 %v1187, %v4195
      %v4218 = vsub.f32 %v1187, %v4200
      %v4219 = vpack.c.bf16 %v3540, %v3539
      %v4220 = vpack.c.bf16 %v3542, %v3541
      %v4221 = vpack.c.bf16 %v3544, %v3543
      %v4222 = vpack.c.bf16 %v3546, %v3545
      %v4223 = vpack.c.bf16 %v3548, %v3547
      %v4224 = vpack.c.bf16 %v3550, %v3549
      %v4225 = vpack.c.bf16 %v3552, %v3551
      %v4226 = vpack.c.bf16 %v3554, %v3553
      %v4227 = vpack.c.bf16 %v1043, %v1042
      %v4228 = vpack.c.bf16 %v1045, %v1044
      %v4229 = vpack.c.bf16 %v1047, %v1046
      %v4230 = vpack.c.bf16 %v1049, %v1048
      %v4231 = vpack.c.bf16 %v1051, %v1050
      %v4232 = vpack.c.bf16 %v1053, %v1052
      %v4233 = vpack.c.bf16 %v1055, %v1054
      %v4234 = vpack.c.bf16 %v1057, %v1056
      %v4235 = vpack.c.bf16 %v1059, %v1058
      %v4236 = vpack.c.bf16 %v1061, %v1060
      %v4237 = vpack.c.bf16 %v1063, %v1062
      %v4238 = vpack.c.bf16 %v1065, %v1064
      %v4239 = vpack.c.bf16 %v1067, %v1066
      %v4240 = vpack.c.bf16 %v1069, %v1068
      %v4241 = vpack.c.bf16 %v1071, %v1070
      %v4242 = vpack.c.bf16 %v1073, %v1072
      %v4243 = vpack.c.bf16 %v1075, %v1074
      %v4244 = vpack.c.bf16 %v1077, %v1076
      %v4245 = vpack.c.bf16 %v1079, %v1078
      %v4246 = vpack.c.bf16 %v1081, %v1080
      %v4247 = vpack.c.bf16 %v1083, %v1082
      %v4248 = vpack.c.bf16 %v1085, %v1084
      %v4249 = vpack.c.bf16 %v1087, %v1086
      %v4250 = vpack.c.bf16 %v1089, %v1088
      %v4251 = vpack.c.bf16 %v1091, %v1090
      %v4252 = vpack.c.bf16 %v1093, %v1092
      %v4253 = vpack.c.bf16 %v1095, %v1094
      %v4254 = vpack.c.bf16 %v1097, %v1096
      %v4255 = vpack.c.bf16 %v1099, %v1098
      %v4256 = vpack.c.bf16 %v1101, %v1100
      %v4257 = vpack.c.bf16 %v1103, %v1102
      %v4258 = vpack.c.bf16 %v1105, %v1104
      %v4260 = vsel %vm2338, %v4219, 0
      %4262 = vmatprep.subr.bf16.mxu0 0
      %4263 = vmatpush1.bf16.msra.mxu0 0
      %4264 = vmatprep.subr.bf16.mxu0 0
      %4265 = vmatpush1.bf16.msra.mxu0 0
      %4266 = vmatprep.subr.bf16.mxu0 0
      %4267 = vmatpush1.bf16.msra.mxu0 0
      %4268 = vmatprep.subr.bf16.mxu0 0
      %4269 = vmatpush1.bf16.msra.mxu0 0
      %4270 = vmatprep.subr.bf16.mxu0 0
      %4271 = vmatpush1.bf16.msra.mxu0 %v4230
      %4272 = vmatprep.subr.bf16.mxu0 0
      %4273 = vmatpush1.bf16.msra.mxu0 %v4229
      %4274 = vmatprep.subr.bf16.mxu0 0
      %4275 = vmatpush1.bf16.msra.mxu0 %v4228
      %4276 = vmatprep.subr.bf16.mxu0 0
      %4277 = vmatpush1.bf16.msra.mxu0 %v4227
      %4278 = vmatprep.subr.bf16.mxu0 0
      %4279 = vmatpush2.bf16.msra.mxu0 0
      %4280 = vmatprep.subr.bf16.mxu0 0
      %4281 = vmatpush2.bf16.msra.mxu0 0
      %4282 = vmatprep.subr.bf16.mxu0 0
      %4283 = vmatpush2.bf16.msra.mxu0 0
      %4284 = vmatprep.subr.bf16.mxu0 0
      %4285 = vmatpush2.bf16.msra.mxu0 0
      %4286 = vmatprep.subr.bf16.mxu0 0
      %4287 = vmatpush2.bf16.msra.mxu0 0
      %4288 = vmatprep.subr.bf16.mxu0 0
      %4289 = vmatpush2.bf16.msra.mxu0 0
      %4290 = vmatprep.subr.bf16.mxu0 0
      %4291 = vmatpush2.bf16.msra.mxu0 0
      %4292 = vmatprep.subr.bf16.mxu0 0
      %4293 = vmatpush2.bf16.msra.mxu0 0
      %4294 = vmatprep.mubr.bf16.mxu0 0
      %4295 = vmatmul.mubr.bf16.gmra.mxu0 %v4260
      %v4296 = vpop.f32.mrf.mxu0
      %v4297 = vadd.f32 0.0, %v4296
      %v4298 = vpop.f32.mrf.mxu0
      %v4299 = vpop.f32.mrf.mxu0
      %v4300 = vadd.f32 0.0, %v4299
      %v4301 = vpop.f32.mrf.mxu0
      %4302 = vdwg.mxu0
      %v4304 = vsel %vm2338, %v4220, 0
      %4306 = vmatprep.subr.bf16.mxu0 0
      %4307 = vmatpush1.bf16.msra.mxu0 0
      %4308 = vmatprep.subr.bf16.mxu0 0
      %4309 = vmatpush1.bf16.msra.mxu0 0
      %4310 = vmatprep.subr.bf16.mxu0 0
      %4311 = vmatpush1.bf16.msra.mxu0 0
      %4312 = vmatprep.subr.bf16.mxu0 0
      %4313 = vmatpush1.bf16.msra.mxu0 0
      %4314 = vmatprep.subr.bf16.mxu0 0
      %4315 = vmatpush1.bf16.msra.mxu0 %v4234
      %4316 = vmatprep.subr.bf16.mxu0 0
      %4317 = vmatpush1.bf16.msra.mxu0 %v4233
      %4318 = vmatprep.subr.bf16.mxu0 0
      %4319 = vmatpush1.bf16.msra.mxu0 %v4232
      %4320 = vmatprep.subr.bf16.mxu0 0
      %4321 = vmatpush1.bf16.msra.mxu0 %v4231
      %4322 = vmatprep.subr.bf16.mxu0 0
      %4323 = vmatpush2.bf16.msra.mxu0 0
      %4324 = vmatprep.subr.bf16.mxu0 0
      %4325 = vmatpush2.bf16.msra.mxu0 0
      %4326 = vmatprep.subr.bf16.mxu0 0
      %4327 = vmatpush2.bf16.msra.mxu0 0
      %4328 = vmatprep.subr.bf16.mxu0 0
      %4329 = vmatpush2.bf16.msra.mxu0 0
      %4330 = vmatprep.subr.bf16.mxu0 0
      %4331 = vmatpush2.bf16.msra.mxu0 0
      %4332 = vmatprep.subr.bf16.mxu0 0
      %4333 = vmatpush2.bf16.msra.mxu0 0
      %4334 = vmatprep.subr.bf16.mxu0 0
      %4335 = vmatpush2.bf16.msra.mxu0 0
      %4336 = vmatprep.subr.bf16.mxu0 0
      %4337 = vmatpush2.bf16.msra.mxu0 0
      %4338 = vmatprep.mubr.bf16.mxu0 0
      %4339 = vmatmul.mubr.bf16.gmra.mxu0 %v4304
      %v4340 = vpop.f32.mrf.mxu0
      %v4341 = vadd.f32 0.0, %v4340
      %v4342 = vpop.f32.mrf.mxu0
      %v4343 = vpop.f32.mrf.mxu0
      %v4344 = vadd.f32 0.0, %v4343
      %v4345 = vpop.f32.mrf.mxu0
      %4346 = vdwg.mxu0
      %v4348 = vsel %vm2338, %v4221, 0
      %4350 = vmatprep.subr.bf16.mxu0 0
      %4351 = vmatpush1.bf16.msra.mxu0 0
      %4352 = vmatprep.subr.bf16.mxu0 0
      %4353 = vmatpush1.bf16.msra.mxu0 0
      %4354 = vmatprep.subr.bf16.mxu0 0
      %4355 = vmatpush1.bf16.msra.mxu0 0
      %4356 = vmatprep.subr.bf16.mxu0 0
      %4357 = vmatpush1.bf16.msra.mxu0 0
      %4358 = vmatprep.subr.bf16.mxu0 0
      %4359 = vmatpush1.bf16.msra.mxu0 %v4238
      %4360 = vmatprep.subr.bf16.mxu0 0
      %4361 = vmatpush1.bf16.msra.mxu0 %v4237
      %4362 = vmatprep.subr.bf16.mxu0 0
      %4363 = vmatpush1.bf16.msra.mxu0 %v4236
      %4364 = vmatprep.subr.bf16.mxu0 0
      %4365 = vmatpush1.bf16.msra.mxu0 %v4235
      %4366 = vmatprep.subr.bf16.mxu0 0
      %4367 = vmatpush2.bf16.msra.mxu0 0
      %4368 = vmatprep.subr.bf16.mxu0 0
      %4369 = vmatpush2.bf16.msra.mxu0 0
      %4370 = vmatprep.subr.bf16.mxu0 0
      %4371 = vmatpush2.bf16.msra.mxu0 0
      %4372 = vmatprep.subr.bf16.mxu0 0
      %4373 = vmatpush2.bf16.msra.mxu0 0
      %4374 = vmatprep.subr.bf16.mxu0 0
      %4375 = vmatpush2.bf16.msra.mxu0 0
      %4376 = vmatprep.subr.bf16.mxu0 0
      %4377 = vmatpush2.bf16.msra.mxu0 0
      %4378 = vmatprep.subr.bf16.mxu0 0
      %4379 = vmatpush2.bf16.msra.mxu0 0
      %4380 = vmatprep.subr.bf16.mxu0 0
      %4381 = vmatpush2.bf16.msra.mxu0 0
      %4382 = vmatprep.mubr.bf16.mxu0 0
      %4383 = vmatmul.mubr.bf16.gmra.mxu0 %v4348
      %v4384 = vpop.f32.mrf.mxu0
      %v4385 = vadd.f32 0.0, %v4384
      %v4386 = vpop.f32.mrf.mxu0
      %v4387 = vpop.f32.mrf.mxu0
      %v4388 = vadd.f32 0.0, %v4387
      %v4389 = vpop.f32.mrf.mxu0
      %4390 = vdwg.mxu0
      %v4392 = vsel %vm2338, %v4222, 0
      %4394 = vmatprep.subr.bf16.mxu0 0
      %4395 = vmatpush1.bf16.msra.mxu0 0
      %4396 = vmatprep.subr.bf16.mxu0 0
      %4397 = vmatpush1.bf16.msra.mxu0 0
      %4398 = vmatprep.subr.bf16.mxu0 0
      %4399 = vmatpush1.bf16.msra.mxu0 0
      %4400 = vmatprep.subr.bf16.mxu0 0
      %4401 = vmatpush1.bf16.msra.mxu0 0
      %4402 = vmatprep.subr.bf16.mxu0 0
      %4403 = vmatpush1.bf16.msra.mxu0 %v4242
      %4404 = vmatprep.subr.bf16.mxu0 0
      %4405 = vmatpush1.bf16.msra.mxu0 %v4241
      %4406 = vmatprep.subr.bf16.mxu0 0
      %4407 = vmatpush1.bf16.msra.mxu0 %v4240
      %4408 = vmatprep.subr.bf16.mxu0 0
      %4409 = vmatpush1.bf16.msra.mxu0 %v4239
      %4410 = vmatprep.subr.bf16.mxu0 0
      %4411 = vmatpush2.bf16.msra.mxu0 0
      %4412 = vmatprep.subr.bf16.mxu0 0
      %4413 = vmatpush2.bf16.msra.mxu0 0
      %4414 = vmatprep.subr.bf16.mxu0 0
      %4415 = vmatpush2.bf16.msra.mxu0 0
      %4416 = vmatprep.subr.bf16.mxu0 0
      %4417 = vmatpush2.bf16.msra.mxu0 0
      %4418 = vmatprep.subr.bf16.mxu0 0
      %4419 = vmatpush2.bf16.msra.mxu0 0
      %4420 = vmatprep.subr.bf16.mxu0 0
      %4421 = vmatpush2.bf16.msra.mxu0 0
      %4422 = vmatprep.subr.bf16.mxu0 0
      %4423 = vmatpush2.bf16.msra.mxu0 0
      %4424 = vmatprep.subr.bf16.mxu0 0
      %4425 = vmatpush2.bf16.msra.mxu0 0
      %4426 = vmatprep.mubr.bf16.mxu0 0
      %4427 = vmatmul.mubr.bf16.gmra.mxu0 %v4392
      %v4428 = vpop.f32.mrf.mxu0
      %v4429 = vadd.f32 0.0, %v4428
      %v4430 = vpop.f32.mrf.mxu0
      %v4431 = vpop.f32.mrf.mxu0
      %v4432 = vadd.f32 0.0, %v4431
      %v4433 = vpop.f32.mrf.mxu0
      %4434 = vdwg.mxu0
      %v4436 = vsel %vm2338, %v4223, 0
      %4438 = vmatprep.subr.bf16.mxu0 0
      %4439 = vmatpush1.bf16.msra.mxu0 0
      %4440 = vmatprep.subr.bf16.mxu0 0
      %4441 = vmatpush1.bf16.msra.mxu0 0
      %4442 = vmatprep.subr.bf16.mxu0 0
      %4443 = vmatpush1.bf16.msra.mxu0 0
      %4444 = vmatprep.subr.bf16.mxu0 0
      %4445 = vmatpush1.bf16.msra.mxu0 0
      %4446 = vmatprep.subr.bf16.mxu0 0
      %4447 = vmatpush1.bf16.msra.mxu0 %v4246
      %4448 = vmatprep.subr.bf16.mxu0 0
      %4449 = vmatpush1.bf16.msra.mxu0 %v4245
      %4450 = vmatprep.subr.bf16.mxu0 0
      %4451 = vmatpush1.bf16.msra.mxu0 %v4244
      %4452 = vmatprep.subr.bf16.mxu0 0
      %4453 = vmatpush1.bf16.msra.mxu0 %v4243
      %4454 = vmatprep.subr.bf16.mxu0 0
      %4455 = vmatpush2.bf16.msra.mxu0 0
      %4456 = vmatprep.subr.bf16.mxu0 0
      %4457 = vmatpush2.bf16.msra.mxu0 0
      %4458 = vmatprep.subr.bf16.mxu0 0
      %4459 = vmatpush2.bf16.msra.mxu0 0
      %4460 = vmatprep.subr.bf16.mxu0 0
      %4461 = vmatpush2.bf16.msra.mxu0 0
      %4462 = vmatprep.subr.bf16.mxu0 0
      %4463 = vmatpush2.bf16.msra.mxu0 0
      %4464 = vmatprep.subr.bf16.mxu0 0
      %4465 = vmatpush2.bf16.msra.mxu0 0
      %4466 = vmatprep.subr.bf16.mxu0 0
      %4467 = vmatpush2.bf16.msra.mxu0 0
      %4468 = vmatprep.subr.bf16.mxu0 0
      %4469 = vmatpush2.bf16.msra.mxu0 0
      %4470 = vmatprep.mubr.bf16.mxu0 0
      %4471 = vmatmul.mubr.bf16.gmra.mxu0 %v4436
      %v4472 = vpop.f32.mrf.mxu0
      %v4473 = vadd.f32 0.0, %v4472
      %v4474 = vpop.f32.mrf.mxu0
      %v4475 = vpop.f32.mrf.mxu0
      %v4476 = vadd.f32 0.0, %v4475
      %v4477 = vpop.f32.mrf.mxu0
      %4478 = vdwg.mxu0
      %v4480 = vsel %vm2338, %v4224, 0
      %4482 = vmatprep.subr.bf16.mxu0 0
      %4483 = vmatpush1.bf16.msra.mxu0 0
      %4484 = vmatprep.subr.bf16.mxu0 0
      %4485 = vmatpush1.bf16.msra.mxu0 0
      %4486 = vmatprep.subr.bf16.mxu0 0
      %4487 = vmatpush1.bf16.msra.mxu0 0
      %4488 = vmatprep.subr.bf16.mxu0 0
      %4489 = vmatpush1.bf16.msra.mxu0 0
      %4490 = vmatprep.subr.bf16.mxu0 0
      %4491 = vmatpush1.bf16.msra.mxu0 %v4250
      %4492 = vmatprep.subr.bf16.mxu0 0
      %4493 = vmatpush1.bf16.msra.mxu0 %v4249
      %4494 = vmatprep.subr.bf16.mxu0 0
      %4495 = vmatpush1.bf16.msra.mxu0 %v4248
      %4496 = vmatprep.subr.bf16.mxu0 0
      %4497 = vmatpush1.bf16.msra.mxu0 %v4247
      %4498 = vmatprep.subr.bf16.mxu0 0
      %4499 = vmatpush2.bf16.msra.mxu0 0
      %4500 = vmatprep.subr.bf16.mxu0 0
      %4501 = vmatpush2.bf16.msra.mxu0 0
      %4502 = vmatprep.subr.bf16.mxu0 0
      %4503 = vmatpush2.bf16.msra.mxu0 0
      %4504 = vmatprep.subr.bf16.mxu0 0
      %4505 = vmatpush2.bf16.msra.mxu0 0
      %4506 = vmatprep.subr.bf16.mxu0 0
      %4507 = vmatpush2.bf16.msra.mxu0 0
      %4508 = vmatprep.subr.bf16.mxu0 0
      %4509 = vmatpush2.bf16.msra.mxu0 0
      %4510 = vmatprep.subr.bf16.mxu0 0
      %4511 = vmatpush2.bf16.msra.mxu0 0
      %4512 = vmatprep.subr.bf16.mxu0 0
      %4513 = vmatpush2.bf16.msra.mxu0 0
      %4514 = vmatprep.mubr.bf16.mxu0 0
      %4515 = vmatmul.mubr.bf16.gmra.mxu0 %v4480
      %v4516 = vpop.f32.mrf.mxu0
      %v4517 = vadd.f32 0.0, %v4516
      %v4518 = vpop.f32.mrf.mxu0
      %v4519 = vpop.f32.mrf.mxu0
      %v4520 = vadd.f32 0.0, %v4519
      %v4521 = vpop.f32.mrf.mxu0
      %4522 = vdwg.mxu0
      %v4524 = vsel %vm2338, %v4225, 0
      %4526 = vmatprep.subr.bf16.mxu0 0
      %4527 = vmatpush1.bf16.msra.mxu0 0
      %4528 = vmatprep.subr.bf16.mxu0 0
      %4529 = vmatpush1.bf16.msra.mxu0 0
      %4530 = vmatprep.subr.bf16.mxu0 0
      %4531 = vmatpush1.bf16.msra.mxu0 0
      %4532 = vmatprep.subr.bf16.mxu0 0
      %4533 = vmatpush1.bf16.msra.mxu0 0
      %4534 = vmatprep.subr.bf16.mxu0 0
      %4535 = vmatpush1.bf16.msra.mxu0 %v4254
      %4536 = vmatprep.subr.bf16.mxu0 0
      %4537 = vmatpush1.bf16.msra.mxu0 %v4253
      %4538 = vmatprep.subr.bf16.mxu0 0
      %4539 = vmatpush1.bf16.msra.mxu0 %v4252
      %4540 = vmatprep.subr.bf16.mxu0 0
      %4541 = vmatpush1.bf16.msra.mxu0 %v4251
      %4542 = vmatprep.subr.bf16.mxu0 0
      %4543 = vmatpush2.bf16.msra.mxu0 0
      %4544 = vmatprep.subr.bf16.mxu0 0
      %4545 = vmatpush2.bf16.msra.mxu0 0
      %4546 = vmatprep.subr.bf16.mxu0 0
      %4547 = vmatpush2.bf16.msra.mxu0 0
      %4548 = vmatprep.subr.bf16.mxu0 0
      %4549 = vmatpush2.bf16.msra.mxu0 0
      %4550 = vmatprep.subr.bf16.mxu0 0
      %4551 = vmatpush2.bf16.msra.mxu0 0
      %4552 = vmatprep.subr.bf16.mxu0 0
      %4553 = vmatpush2.bf16.msra.mxu0 0
      %4554 = vmatprep.subr.bf16.mxu0 0
      %4555 = vmatpush2.bf16.msra.mxu0 0
      %4556 = vmatprep.subr.bf16.mxu0 0
      %4557 = vmatpush2.bf16.msra.mxu0 0
      %4558 = vmatprep.mubr.bf16.mxu0 0
      %4559 = vmatmul.mubr.bf16.gmra.mxu0 %v4524
      %v4560 = vpop.f32.mrf.mxu0
      %v4561 = vadd.f32 0.0, %v4560
      %v4562 = vpop.f32.mrf.mxu0
      %v4563 = vpop.f32.mrf.mxu0
      %v4564 = vadd.f32 0.0, %v4563
      %v4565 = vpop.f32.mrf.mxu0
      %4566 = vdwg.mxu0
      %v4568 = vsel %vm2338, %v4226, 0
      %4570 = vmatprep.subr.bf16.mxu0 0
      %4571 = vmatpush1.bf16.msra.mxu0 0
      %4572 = vmatprep.subr.bf16.mxu0 0
      %4573 = vmatpush1.bf16.msra.mxu0 0
      %4574 = vmatprep.subr.bf16.mxu0 0
      %4575 = vmatpush1.bf16.msra.mxu0 0
      %4576 = vmatprep.subr.bf16.mxu0 0
      %4577 = vmatpush1.bf16.msra.mxu0 0
      %4578 = vmatprep.subr.bf16.mxu0 0
      %4579 = vmatpush1.bf16.msra.mxu0 %v4258
      %4580 = vmatprep.subr.bf16.mxu0 0
      %4581 = vmatpush1.bf16.msra.mxu0 %v4257
      %4582 = vmatprep.subr.bf16.mxu0 0
      %4583 = vmatpush1.bf16.msra.mxu0 %v4256
      %4584 = vmatprep.subr.bf16.mxu0 0
      %4585 = vmatpush1.bf16.msra.mxu0 %v4255
      %4586 = vmatprep.subr.bf16.mxu0 0
      %4587 = vmatpush2.bf16.msra.mxu0 0
      %4588 = vmatprep.subr.bf16.mxu0 0
      %4589 = vmatpush2.bf16.msra.mxu0 0
      %4590 = vmatprep.subr.bf16.mxu0 0
      %4591 = vmatpush2.bf16.msra.mxu0 0
      %4592 = vmatprep.subr.bf16.mxu0 0
      %4593 = vmatpush2.bf16.msra.mxu0 0
      %4594 = vmatprep.subr.bf16.mxu0 0
      %4595 = vmatpush2.bf16.msra.mxu0 0
      %4596 = vmatprep.subr.bf16.mxu0 0
      %4597 = vmatpush2.bf16.msra.mxu0 0
      %4598 = vmatprep.subr.bf16.mxu0 0
      %4599 = vmatpush2.bf16.msra.mxu0 0
      %4600 = vmatprep.subr.bf16.mxu0 0
      %4601 = vmatpush2.bf16.msra.mxu0 0
      %4602 = vmatprep.mubr.bf16.mxu0 0
      %4603 = vmatmul.mubr.bf16.gmra.mxu0 %v4568
      %v4604 = vpop.f32.mrf.mxu0
      %v4605 = vadd.f32 0.0, %v4604
      %v4606 = vpop.f32.mrf.mxu0
      %v4607 = vpop.f32.mrf.mxu0
      %v4608 = vadd.f32 0.0, %v4607
      %v4609 = vpop.f32.mrf.mxu0
      %4610 = vdwg.mxu0
      %v4611 = vpack.c.bf16 %v417, %v417
      %v4612 = vld [vmem:[%s5 + $0x4] sm:$0x3]
      %v4613 = vld [vmem:[%s5 + $0x4] sm:$0x2]
      %v4614 = vunpack.c.l.bf16 %v4613
      %v4615 = vlaneseq
      %v4616 = vshrl.u32 %v4615, 7
      %v4617 = vsub.s32 3, %v4616
      %v4618 = vrot.slane %v4614, %v4617
      %v4620 = vsel %vm521, %v4611, 0
      %v4623 = vand.u32 %v4612, %v621
      %4625 = vmatprep.subr.bf16.mxu0 0
      %4626 = vmatpush1.bf16.msra.mxu0 0
      %4627 = vmatprep.subr.bf16.mxu0 0
      %4628 = vmatpush1.bf16.msra.mxu0 0
      %4629 = vmatprep.subr.bf16.mxu0 0
      %4630 = vmatpush1.bf16.msra.mxu0 0
      %4631 = vmatprep.subr.bf16.mxu0 0
      %4632 = vmatpush1.bf16.msra.mxu0 0
      %4633 = vmatprep.subr.bf16.mxu0 0
      %4634 = vmatpush1.bf16.msra.mxu0 0
      %4635 = vmatprep.subr.bf16.mxu0 0
      %4636 = vmatpush1.bf16.msra.mxu0 0
      %4637 = vmatprep.subr.bf16.mxu0 0
      %4638 = vmatpush1.bf16.msra.mxu0 0
      %4639 = vmatprep.subr.bf16.mxu0 0
      %4640 = vmatpush1.bf16.msra.mxu0 %v4623
      %4641 = vmatprep.subr.bf16.mxu0 0
      %4642 = vmatpush2.bf16.msra.mxu0 0
      %4643 = vmatprep.subr.bf16.mxu0 0
      %4644 = vmatpush2.bf16.msra.mxu0 0
      %4645 = vmatprep.subr.bf16.mxu0 0
      %4646 = vmatpush2.bf16.msra.mxu0 0
      %4647 = vmatprep.subr.bf16.mxu0 0
      %4648 = vmatpush2.bf16.msra.mxu0 0
      %4649 = vmatprep.subr.bf16.mxu0 0
      %4650 = vmatpush2.bf16.msra.mxu0 0
      %4651 = vmatprep.subr.bf16.mxu0 0
      %4652 = vmatpush2.bf16.msra.mxu0 0
      %4653 = vmatprep.subr.bf16.mxu0 0
      %4654 = vmatpush2.bf16.msra.mxu0 0
      %4655 = vmatprep.subr.bf16.mxu0 0
      %4656 = vmatpush2.bf16.msra.mxu0 0
      %4657 = vmatprep.mubr.bf16.mxu0 0
      %4658 = vmatmul.mubr.bf16.gmra.mxu0 %v4620
      %v4659 = vpop.f32.mrf.mxu0
      %v4660 = vadd.f32 %v4618, %v4659
      %v4661 = vpop.f32.mrf.mxu0
      %v4662 = vpop.f32.mrf.mxu0
      %v4663 = vpop.f32.mrf.mxu0
      %4664 = vdwg.mxu0
      %vm4665 = vcmp.gt.f32.partialorder %v4660, 0.0
      %v4666 = vmul.f32 %v4660, 0.2
      %v4667 = vsel %vm4665, %v4660, %v4666
      %v4668 = vpack.c.bf16 %v4204, %v4203
      %v4669 = vpack.c.bf16 %v4206, %v4205
      %v4670 = vpack.c.bf16 %v4208, %v4207
      %v4671 = vpack.c.bf16 %v4210, %v4209
      %v4672 = vpack.c.bf16 %v4212, %v4211
      %v4673 = vpack.c.bf16 %v4214, %v4213
      %v4674 = vpack.c.bf16 %v4216, %v4215
      %v4675 = vpack.c.bf16 %v4218, %v4217
      %v4676 = vld [vmem:[%s5 + $0x4] sm:$0xc]
      %v4677 = vld [vmem:[%s5 + $0x4] sm:$0x8]
      %v4678 = vunpack.c.l.bf16 %v4677
      %v4679 = vlaneseq
      %v4680 = vshrl.u32 %v4679, 7
      %v4681 = vsub.s32 7, %v4680
      %v4682 = vrot.slane %v4678, %v4681
      %v4684 = vunpack.c.l.b16 %v4676
      %v4685 = vpack.c.b16 %v4684, %v4684
      %v4686 = vrot.slane %v4685, 2
      %v4688 = vsel %vm521, %v4668, 0
      %v4691 = vsel %vm521, %v4669, 0
      %v4694 = vsel %vm521, %v4670, 0
      %v4697 = vsel %vm521, %v4671, 0
      %v4700 = vsel %vm521, %v4672, 0
      %v4703 = vsel %vm521, %v4673, 0
      %v4706 = vsel %vm521, %v4674, 0
      %v4709 = vsel %vm521, %v4675, 0
      %v4712 = vand.u32 %v4686, %v621
      %4714 = vmatprep.subr.bf16.mxu0 0
      %4715 = vmatpush1.bf16.msra.mxu0 0
      %4716 = vmatprep.subr.bf16.mxu0 0
      %4717 = vmatpush1.bf16.msra.mxu0 0
      %4718 = vmatprep.subr.bf16.mxu0 0
      %4719 = vmatpush1.bf16.msra.mxu0 0
      %4720 = vmatprep.subr.bf16.mxu0 0
      %4721 = vmatpush1.bf16.msra.mxu0 0
      %4722 = vmatprep.subr.bf16.mxu0 0
      %4723 = vmatpush1.bf16.msra.mxu0 0
      %4724 = vmatprep.subr.bf16.mxu0 0
      %4725 = vmatpush1.bf16.msra.mxu0 0
      %4726 = vmatprep.subr.bf16.mxu0 0
      %4727 = vmatpush1.bf16.msra.mxu0 0
      %4728 = vmatprep.subr.bf16.mxu0 0
      %4729 = vmatpush1.bf16.msra.mxu0 %v4712
      %4730 = vmatprep.subr.bf16.mxu0 0
      %4731 = vmatpush2.bf16.msra.mxu0 0
      %4732 = vmatprep.subr.bf16.mxu0 0
      %4733 = vmatpush2.bf16.msra.mxu0 0
      %4734 = vmatprep.subr.bf16.mxu0 0
      %4735 = vmatpush2.bf16.msra.mxu0 0
      %4736 = vmatprep.subr.bf16.mxu0 0
      %4737 = vmatpush2.bf16.msra.mxu0 0
      %4738 = vmatprep.subr.bf16.mxu0 0
      %4739 = vmatpush2.bf16.msra.mxu0 0
      %4740 = vmatprep.subr.bf16.mxu0 0
      %4741 = vmatpush2.bf16.msra.mxu0 0
      %4742 = vmatprep.subr.bf16.mxu0 0
      %4743 = vmatpush2.bf16.msra.mxu0 0
      %4744 = vmatprep.subr.bf16.mxu0 0
      %4745 = vmatpush2.bf16.msra.mxu0 0
      %4746 = vmatprep.mubr.bf16.mxu0 0
      %4747 = vmatmul.mubr.bf16.gmra.mxu0 %v4688
      %v4748 = vpop.f32.mrf.mxu0
      %v4749 = vadd.f32 %v4682, %v4748
      %v4750 = vpop.f32.mrf.mxu0
      %v4751 = vpop.f32.mrf.mxu0
      %v4752 = vadd.f32 %v4682, %v4751
      %v4753 = vpop.f32.mrf.mxu0
      %4754 = vmatprep.mubr.bf16.mxu0 0
      %4755 = vmatmul.mubr.bf16.gmra.mxu0 %v4691
      %v4756 = vpop.f32.mrf.mxu0
      %v4757 = vadd.f32 %v4682, %v4756
      %v4758 = vpop.f32.mrf.mxu0
      %v4759 = vpop.f32.mrf.mxu0
      %v4760 = vadd.f32 %v4682, %v4759
      %v4761 = vpop.f32.mrf.mxu0
      %4762 = vmatprep.mubr.bf16.mxu0 0
      %4763 = vmatmul.mubr.bf16.gmra.mxu0 %v4694
      %v4764 = vpop.f32.mrf.mxu0
      %v4765 = vadd.f32 %v4682, %v4764
      %v4766 = vpop.f32.mrf.mxu0
      %v4767 = vpop.f32.mrf.mxu0
      %v4768 = vadd.f32 %v4682, %v4767
      %v4769 = vpop.f32.mrf.mxu0
      %4770 = vmatprep.mubr.bf16.mxu0 0
      %4771 = vmatmul.mubr.bf16.gmra.mxu0 %v4697
      %v4772 = vpop.f32.mrf.mxu0
      %v4773 = vadd.f32 %v4682, %v4772
      %v4774 = vpop.f32.mrf.mxu0
      %v4775 = vpop.f32.mrf.mxu0
      %v4776 = vadd.f32 %v4682, %v4775
      %v4777 = vpop.f32.mrf.mxu0
      %4778 = vmatprep.mubr.bf16.mxu0 0
      %4779 = vmatmul.mubr.bf16.gmra.mxu0 %v4700
      %v4780 = vpop.f32.mrf.mxu0
      %v4781 = vadd.f32 %v4682, %v4780
      %v4782 = vpop.f32.mrf.mxu0
      %v4783 = vpop.f32.mrf.mxu0
      %v4784 = vadd.f32 %v4682, %v4783
      %v4785 = vpop.f32.mrf.mxu0
      %4786 = vmatprep.mubr.bf16.mxu0 0
      %4787 = vmatmul.mubr.bf16.gmra.mxu0 %v4703
      %v4788 = vpop.f32.mrf.mxu0
      %v4789 = vadd.f32 %v4682, %v4788
      %v4790 = vpop.f32.mrf.mxu0
      %v4791 = vpop.f32.mrf.mxu0
      %v4792 = vadd.f32 %v4682, %v4791
      %v4793 = vpop.f32.mrf.mxu0
      %4794 = vmatprep.mubr.bf16.mxu0 0
      %4795 = vmatmul.mubr.bf16.gmra.mxu0 %v4706
      %v4796 = vpop.f32.mrf.mxu0
      %v4797 = vadd.f32 %v4682, %v4796
      %v4798 = vpop.f32.mrf.mxu0
      %v4799 = vpop.f32.mrf.mxu0
      %v4800 = vadd.f32 %v4682, %v4799
      %v4801 = vpop.f32.mrf.mxu0
      %4802 = vmatprep.mubr.bf16.mxu0 0
      %4803 = vmatmul.mubr.bf16.gmra.mxu0 %v4709
      %v4804 = vpop.f32.mrf.mxu0
      %v4805 = vadd.f32 %v4682, %v4804
      %v4806 = vpop.f32.mrf.mxu0
      %v4807 = vpop.f32.mrf.mxu0
      %v4808 = vadd.f32 %v4682, %v4807
      %v4809 = vpop.f32.mrf.mxu0
      %4810 = vdwg.mxu0
      %vm4811 = vcmp.gt.f32.partialorder %v4749, 0.0
      %vm4812 = vcmp.gt.f32.partialorder %v4752, 0.0
      %vm4813 = vcmp.gt.f32.partialorder %v4757, 0.0
      %vm4814 = vcmp.gt.f32.partialorder %v4760, 0.0
      %vm4815 = vcmp.gt.f32.partialorder %v4765, 0.0
      %vm4816 = vcmp.gt.f32.partialorder %v4768, 0.0
      %vm4817 = vcmp.gt.f32.partialorder %v4773, 0.0
      %vm4818 = vcmp.gt.f32.partialorder %v4776, 0.0
      %vm4819 = vcmp.gt.f32.partialorder %v4781, 0.0
      %vm4820 = vcmp.gt.f32.partialorder %v4784, 0.0
      %vm4821 = vcmp.gt.f32.partialorder %v4789, 0.0
      %vm4822 = vcmp.gt.f32.partialorder %v4792, 0.0
      %vm4823 = vcmp.gt.f32.partialorder %v4797, 0.0
      %vm4824 = vcmp.gt.f32.partialorder %v4800, 0.0
      %vm4825 = vcmp.gt.f32.partialorder %v4805, 0.0
      %vm4826 = vcmp.gt.f32.partialorder %v4808, 0.0
      %v4827 = vmul.f32 %v4749, 0.2
      %v4828 = vmul.f32 %v4752, 0.2
      %v4829 = vmul.f32 %v4757, 0.2
      %v4830 = vmul.f32 %v4760, 0.2
      %v4831 = vmul.f32 %v4765, 0.2
      %v4832 = vmul.f32 %v4768, 0.2
      %v4833 = vmul.f32 %v4773, 0.2
      %v4834 = vmul.f32 %v4776, 0.2
      %v4835 = vmul.f32 %v4781, 0.2
      %v4836 = vmul.f32 %v4784, 0.2
      %v4837 = vmul.f32 %v4789, 0.2
      %v4838 = vmul.f32 %v4792, 0.2
      %v4839 = vmul.f32 %v4797, 0.2
      %v4840 = vmul.f32 %v4800, 0.2
      %v4841 = vmul.f32 %v4805, 0.2
      %v4842 = vmul.f32 %v4808, 0.2
      %v4843 = vsel %vm4811, %v4749, %v4827
      %v4844 = vsel %vm4812, %v4752, %v4828
      %v4845 = vsel %vm4813, %v4757, %v4829
      %v4846 = vsel %vm4814, %v4760, %v4830
      %v4847 = vsel %vm4815, %v4765, %v4831
      %v4848 = vsel %vm4816, %v4768, %v4832
      %v4849 = vsel %vm4817, %v4773, %v4833
      %v4850 = vsel %vm4818, %v4776, %v4834
      %v4851 = vsel %vm4819, %v4781, %v4835
      %v4852 = vsel %vm4820, %v4784, %v4836
      %v4853 = vsel %vm4821, %v4789, %v4837
      %v4854 = vsel %vm4822, %v4792, %v4838
      %v4855 = vsel %vm4823, %v4797, %v4839
      %v4856 = vsel %vm4824, %v4800, %v4840
      %v4857 = vsel %vm4825, %v4805, %v4841
      %v4858 = vsel %vm4826, %v4808, %v4842
      %v4859 = vmul.f32 %v4843, %v4297
      %v4860 = vmul.f32 %v4844, %v4300
      %v4861 = vmul.f32 %v4845, %v4341
      %v4862 = vmul.f32 %v4846, %v4344
      %v4863 = vmul.f32 %v4847, %v4385
      %v4864 = vmul.f32 %v4848, %v4388
      %v4865 = vmul.f32 %v4849, %v4429
      %v4866 = vmul.f32 %v4850, %v4432
      %v4867 = vmul.f32 %v4851, %v4473
      %v4868 = vmul.f32 %v4852, %v4476
      %v4869 = vmul.f32 %v4853, %v4517
      %v4870 = vmul.f32 %v4854, %v4520
      %v4871 = vmul.f32 %v4855, %v4561
      %v4872 = vmul.f32 %v4856, %v4564
      %v4873 = vmul.f32 %v4857, %v4605
      %v4874 = vmul.f32 %v4858, %v4608
      %4875 = vadd.xlane.f32.xlu0 %v4859
      %v4876 = vpop.xlane.xlu0 %4875
      %4877 = vadd.xlane.f32.xlu0 %v4860
      %v4878 = vpop.xlane.xlu0 %4877
      %4879 = vadd.xlane.f32.xlu0 %v4861
      %v4880 = vpop.xlane.xlu0 %4879
      %4881 = vadd.xlane.f32.xlu0 %v4862
      %v4882 = vpop.xlane.xlu0 %4881
      %4883 = vadd.xlane.f32.xlu0 %v4863
      %v4884 = vpop.xlane.xlu0 %4883
      %4885 = vadd.xlane.f32.xlu0 %v4864
      %v4886 = vpop.xlane.xlu0 %4885
      %4887 = vadd.xlane.f32.xlu0 %v4865
      %v4888 = vpop.xlane.xlu0 %4887
      %4889 = vadd.xlane.f32.xlu0 %v4866
      %v4890 = vpop.xlane.xlu0 %4889
      %4891 = vadd.xlane.f32.xlu0 %v4867
      %v4892 = vpop.xlane.xlu0 %4891
      %4893 = vadd.xlane.f32.xlu0 %v4868
      %v4894 = vpop.xlane.xlu0 %4893
      %4895 = vadd.xlane.f32.xlu0 %v4869
      %v4896 = vpop.xlane.xlu0 %4895
      %4897 = vadd.xlane.f32.xlu0 %v4870
      %v4898 = vpop.xlane.xlu0 %4897
      %4899 = vadd.xlane.f32.xlu0 %v4871
      %v4900 = vpop.xlane.xlu0 %4899
      %4901 = vadd.xlane.f32.xlu0 %v4872
      %v4902 = vpop.xlane.xlu0 %4901
      %4903 = vadd.xlane.f32.xlu0 %v4873
      %v4904 = vpop.xlane.xlu0 %4903
      %4905 = vadd.xlane.f32.xlu0 %v4874
      %v4906 = vpop.xlane.xlu0 %4905
      %v4907 = vmax.f32 %v4876, %v4878
      %v4908 = vrot.slane %v4907, 4
      %v4909 = vmax.f32 %v4907, %v4908
      %v4910 = vrot.slane %v4909, 2
      %v4911 = vmax.f32 %v4909, %v4910
      %v4912 = vrot.slane %v4911, 1
      %v4913 = vmax.f32 %v4911, %v4912
      %v4914 = vmax.f32 %v4880, %v4882
      %v4915 = vrot.slane %v4914, 4
      %v4916 = vmax.f32 %v4914, %v4915
      %v4917 = vrot.slane %v4916, 2
      %v4918 = vmax.f32 %v4916, %v4917
      %v4919 = vrot.slane %v4918, 1
      %v4920 = vmax.f32 %v4918, %v4919
      %v4921 = vmax.f32 %v4884, %v4886
      %v4922 = vrot.slane %v4921, 4
      %v4923 = vmax.f32 %v4921, %v4922
      %v4924 = vrot.slane %v4923, 2
      %v4925 = vmax.f32 %v4923, %v4924
      %v4926 = vrot.slane %v4925, 1
      %v4927 = vmax.f32 %v4925, %v4926
      %v4928 = vmax.f32 %v4888, %v4890
      %v4929 = vrot.slane %v4928, 4
      %v4930 = vmax.f32 %v4928, %v4929
      %v4931 = vrot.slane %v4930, 2
      %v4932 = vmax.f32 %v4930, %v4931
      %v4933 = vrot.slane %v4932, 1
      %v4934 = vmax.f32 %v4932, %v4933
      %v4935 = vmax.f32 %v4892, %v4894
      %v4936 = vrot.slane %v4935, 4
      %v4937 = vmax.f32 %v4935, %v4936
      %v4938 = vrot.slane %v4937, 2
      %v4939 = vmax.f32 %v4937, %v4938
      %v4940 = vrot.slane %v4939, 1
      %v4941 = vmax.f32 %v4939, %v4940
      %v4942 = vmax.f32 %v4896, %v4898
      %v4943 = vrot.slane %v4942, 4
      %v4944 = vmax.f32 %v4942, %v4943
      %v4945 = vrot.slane %v4944, 2
      %v4946 = vmax.f32 %v4944, %v4945
      %v4947 = vrot.slane %v4946, 1
      %v4948 = vmax.f32 %v4946, %v4947
      %v4949 = vmax.f32 %v4900, %v4902
      %v4950 = vrot.slane %v4949, 4
      %v4951 = vmax.f32 %v4949, %v4950
      %v4952 = vrot.slane %v4951, 2
      %v4953 = vmax.f32 %v4951, %v4952
      %v4954 = vrot.slane %v4953, 1
      %v4955 = vmax.f32 %v4953, %v4954
      %v4956 = vmax.f32 %v4904, %v4906
      %v4957 = vrot.slane %v4956, 4
      %v4958 = vmax.f32 %v4956, %v4957
      %v4959 = vrot.slane %v4958, 2
      %v4960 = vmax.f32 %v4958, %v4959
      %v4961 = vrot.slane %v4960, 1
      %v4962 = vmax.f32 %v4960, %v4961
      %v4963 = vsub.f32 %v4876, %v4913
      %v4964 = vsub.f32 %v4878, %v4913
      %v4965 = vsub.f32 %v4880, %v4920
      %v4966 = vsub.f32 %v4882, %v4920
      %v4967 = vsub.f32 %v4884, %v4927
      %v4968 = vsub.f32 %v4886, %v4927
      %v4969 = vsub.f32 %v4888, %v4934
      %v4970 = vsub.f32 %v4890, %v4934
      %v4971 = vsub.f32 %v4892, %v4941
      %v4972 = vsub.f32 %v4894, %v4941
      %v4973 = vsub.f32 %v4896, %v4948
      %v4974 = vsub.f32 %v4898, %v4948
      %v4975 = vsub.f32 %v4900, %v4955
      %v4976 = vsub.f32 %v4902, %v4955
      %v4977 = vsub.f32 %v4904, %v4962
      %v4978 = vsub.f32 %v4906, %v4962
      %v4979 = vmul.f32 %v4963, 1.442695
      %v4980 = vpow.pop %v4979
      %v4981 = vmul.f32 %v4964, 1.442695
      %v4982 = vpow.pop %v4981
      %v4983 = vmul.f32 %v4965, 1.442695
      %v4984 = vpow.pop %v4983
      %v4985 = vmul.f32 %v4966, 1.442695
      %v4986 = vpow.pop %v4985
      %v4987 = vmul.f32 %v4967, 1.442695
      %v4988 = vpow.pop %v4987
      %v4989 = vmul.f32 %v4968, 1.442695
      %v4990 = vpow.pop %v4989
      %v4991 = vmul.f32 %v4969, 1.442695
      %v4992 = vpow.pop %v4991
      %v4993 = vmul.f32 %v4970, 1.442695
      %v4994 = vpow.pop %v4993
      %v4995 = vmul.f32 %v4971, 1.442695
      %v4996 = vpow.pop %v4995
      %v4997 = vmul.f32 %v4972, 1.442695
      %v4998 = vpow.pop %v4997
      %v4999 = vmul.f32 %v4973, 1.442695
      %v5000 = vpow.pop %v4999
      %v5001 = vmul.f32 %v4974, 1.442695
      %v5002 = vpow.pop %v5001
      %v5003 = vmul.f32 %v4975, 1.442695
      %v5004 = vpow.pop %v5003
      %v5005 = vmul.f32 %v4976, 1.442695
      %v5006 = vpow.pop %v5005
      %v5007 = vmul.f32 %v4977, 1.442695
      %v5008 = vpow.pop %v5007
      %v5009 = vmul.f32 %v4978, 1.442695
      %v5010 = vpow.pop %v5009
      %v5011 = vadd.f32 %v4980, %v4982
      %v5012 = vrot.slane %v5011, 4
      %v5013 = vadd.f32 %v5011, %v5012
      %v5014 = vrot.slane %v5013, 2
      %v5015 = vadd.f32 %v5013, %v5014
      %v5016 = vrot.slane %v5015, 1
      %v5017 = vadd.f32 %v5015, %v5016
      %v5018 = vadd.f32 %v4984, %v4986
      %v5019 = vrot.slane %v5018, 4
      %v5020 = vadd.f32 %v5018, %v5019
      %v5021 = vrot.slane %v5020, 2
      %v5022 = vadd.f32 %v5020, %v5021
      %v5023 = vrot.slane %v5022, 1
      %v5024 = vadd.f32 %v5022, %v5023
      %v5025 = vadd.f32 %v4988, %v4990
      %v5026 = vrot.slane %v5025, 4
      %v5027 = vadd.f32 %v5025, %v5026
      %v5028 = vrot.slane %v5027, 2
      %v5029 = vadd.f32 %v5027, %v5028
      %v5030 = vrot.slane %v5029, 1
      %v5031 = vadd.f32 %v5029, %v5030
      %v5032 = vadd.f32 %v4992, %v4994
      %v5033 = vrot.slane %v5032, 4
      %v5034 = vadd.f32 %v5032, %v5033
      %v5035 = vrot.slane %v5034, 2
      %v5036 = vadd.f32 %v5034, %v5035
      %v5037 = vrot.slane %v5036, 1
      %v5038 = vadd.f32 %v5036, %v5037
      %v5039 = vadd.f32 %v4996, %v4998
      %v5040 = vrot.slane %v5039, 4
      %v5041 = vadd.f32 %v5039, %v5040
      %v5042 = vrot.slane %v5041, 2
      %v5043 = vadd.f32 %v5041, %v5042
      %v5044 = vrot.slane %v5043, 1
      %v5045 = vadd.f32 %v5043, %v5044
      %v5046 = vadd.f32 %v5000, %v5002
      %v5047 = vrot.slane %v5046, 4
      %v5048 = vadd.f32 %v5046, %v5047
      %v5049 = vrot.slane %v5048, 2
      %v5050 = vadd.f32 %v5048, %v5049
      %v5051 = vrot.slane %v5050, 1
      %v5052 = vadd.f32 %v5050, %v5051
      %v5053 = vadd.f32 %v5004, %v5006
      %v5054 = vrot.slane %v5053, 4
      %v5055 = vadd.f32 %v5053, %v5054
      %v5056 = vrot.slane %v5055, 2
      %v5057 = vadd.f32 %v5055, %v5056
      %v5058 = vrot.slane %v5057, 1
      %v5059 = vadd.f32 %v5057, %v5058
      %v5060 = vadd.f32 %v5008, %v5010
      %v5061 = vrot.slane %v5060, 4
      %v5062 = vadd.f32 %v5060, %v5061
      %v5063 = vrot.slane %v5062, 2
      %v5064 = vadd.f32 %v5062, %v5063
      %v5065 = vrot.slane %v5064, 1
      %v5066 = vadd.f32 %v5064, %v5065
      %v5067 = vrcp.pop %v5017
      %v5068 = vrcp.pop %v5024
      %v5069 = vrcp.pop %v5031
      %v5070 = vrcp.pop %v5038
      %v5071 = vrcp.pop %v5045
      %v5072 = vrcp.pop %v5052
      %v5073 = vrcp.pop %v5059
      %v5074 = vrcp.pop %v5066
      %v5075 = vmul.f32 %v4980, %v5067
      %v5076 = vmul.f32 %v4982, %v5067
      %v5077 = vmul.f32 %v4984, %v5068
      %v5078 = vmul.f32 %v4986, %v5068
      %v5079 = vmul.f32 %v4988, %v5069
      %v5080 = vmul.f32 %v4990, %v5069
      %v5081 = vmul.f32 %v4992, %v5070
      %v5082 = vmul.f32 %v4994, %v5070
      %v5083 = vmul.f32 %v4996, %v5071
      %v5084 = vmul.f32 %v4998, %v5071
      %v5085 = vmul.f32 %v5000, %v5072
      %v5086 = vmul.f32 %v5002, %v5072
      %v5087 = vmul.f32 %v5004, %v5073
      %v5088 = vmul.f32 %v5006, %v5073
      %v5089 = vmul.f32 %v5008, %v5074
      %v5090 = vmul.f32 %v5010, %v5074
      %v5091 = vmul.f32 %v5075, %v4297
      %v5092 = vmul.f32 %v5076, %v4300
      %v5093 = vmul.f32 %v5077, %v4341
      %v5094 = vmul.f32 %v5078, %v4344
      %v5095 = vmul.f32 %v5079, %v4385
      %v5096 = vmul.f32 %v5080, %v4388
      %v5097 = vmul.f32 %v5081, %v4429
      %v5098 = vmul.f32 %v5082, %v4432
      %v5099 = vmul.f32 %v5083, %v4473
      %v5100 = vmul.f32 %v5084, %v4476
      %v5101 = vmul.f32 %v5085, %v4517
      %v5102 = vmul.f32 %v5086, %v4520
      %v5103 = vmul.f32 %v5087, %v4561
      %v5104 = vmul.f32 %v5088, %v4564
      %v5105 = vmul.f32 %v5089, %v4605
      %v5106 = vmul.f32 %v5090, %v4608
      %v5107 = vadd.f32 %v5091, %v5092
      %v5108 = vrot.slane %v5107, 4
      %v5109 = vadd.f32 %v5107, %v5108
      %v5110 = vrot.slane %v5109, 2
      %v5111 = vadd.f32 %v5109, %v5110
      %v5112 = vrot.slane %v5111, 1
      %v5113 = vadd.f32 %v5111, %v5112
      %v5114 = vadd.f32 %v5093, %v5094
      %v5115 = vrot.slane %v5114, 4
      %v5116 = vadd.f32 %v5114, %v5115
      %v5117 = vrot.slane %v5116, 2
      %v5118 = vadd.f32 %v5116, %v5117
      %v5119 = vrot.slane %v5118, 1
      %v5120 = vadd.f32 %v5118, %v5119
      %v5121 = vadd.f32 %v5095, %v5096
      %v5122 = vrot.slane %v5121, 4
      %v5123 = vadd.f32 %v5121, %v5122
      %v5124 = vrot.slane %v5123, 2
      %v5125 = vadd.f32 %v5123, %v5124
      %v5126 = vrot.slane %v5125, 1
      %v5127 = vadd.f32 %v5125, %v5126
      %v5128 = vadd.f32 %v5097, %v5098
      %v5129 = vrot.slane %v5128, 4
      %v5130 = vadd.f32 %v5128, %v5129
      %v5131 = vrot.slane %v5130, 2
      %v5132 = vadd.f32 %v5130, %v5131
      %v5133 = vrot.slane %v5132, 1
      %v5134 = vadd.f32 %v5132, %v5133
      %v5135 = vadd.f32 %v5099, %v5100
      %v5136 = vrot.slane %v5135, 4
      %v5137 = vadd.f32 %v5135, %v5136
      %v5138 = vrot.slane %v5137, 2
      %v5139 = vadd.f32 %v5137, %v5138
      %v5140 = vrot.slane %v5139, 1
      %v5141 = vadd.f32 %v5139, %v5140
      %v5142 = vadd.f32 %v5101, %v5102
      %v5143 = vrot.slane %v5142, 4
      %v5144 = vadd.f32 %v5142, %v5143
      %v5145 = vrot.slane %v5144, 2
      %v5146 = vadd.f32 %v5144, %v5145
      %v5147 = vrot.slane %v5146, 1
      %v5148 = vadd.f32 %v5146, %v5147
      %v5149 = vadd.f32 %v5103, %v5104
      %v5150 = vrot.slane %v5149, 4
      %v5151 = vadd.f32 %v5149, %v5150
      %v5152 = vrot.slane %v5151, 2
      %v5153 = vadd.f32 %v5151, %v5152
      %v5154 = vrot.slane %v5153, 1
      %v5155 = vadd.f32 %v5153, %v5154
      %v5156 = vadd.f32 %v5105, %v5106
      %v5157 = vrot.slane %v5156, 4
      %v5158 = vadd.f32 %v5156, %v5157
      %v5159 = vrot.slane %v5158, 2
      %v5160 = vadd.f32 %v5158, %v5159
      %v5161 = vrot.slane %v5160, 1
      %v5162 = vadd.f32 %v5160, %v5161
      %v5163 = vld [vmem:[%s401] sm:$0xff]
      %v5164 = vld [vmem:[%s401 + $0x8] sm:$0xff]
      %v5165 = vld [vmem:[%s401 + $0x10] sm:$0xff]
      %v5166 = vld [vmem:[%s401 + $0x18] sm:$0xff]
      %v5167 = vld [vmem:[%s401 + $0x20] sm:$0xff]
      %v5168 = vld [vmem:[%s401 + $0x28] sm:$0xff]
      %v5169 = vld [vmem:[%s401 + $0x30] sm:$0xff]
      %v5170 = vld [vmem:[%s401 + $0x38] sm:$0xff]
      %v5171 = vld [vmem:[%s401 + $0x40] sm:$0xff]
      %v5172 = vld [vmem:[%s401 + $0x48] sm:$0xff]
      %v5173 = vld [vmem:[%s401 + $0x50] sm:$0xff]
      %v5174 = vld [vmem:[%s401 + $0x58] sm:$0xff]
      %v5175 = vld [vmem:[%s401 + $0x60] sm:$0xff]
      %v5176 = vld [vmem:[%s401 + $0x68] sm:$0xff]
      %v5177 = vld [vmem:[%s401 + $0x70] sm:$0xff]
      %v5178 = vld [vmem:[%s401 + $0x78] sm:$0xff]
      %v5179 = vld [vmem:[%s401 + $0x80] sm:$0xff]
      %v5180 = vld [vmem:[%s401 + $0x88] sm:$0xff]
      %v5181 = vld [vmem:[%s401 + $0x90] sm:$0xff]
      %v5182 = vld [vmem:[%s401 + $0x98] sm:$0xff]
      %v5183 = vld [vmem:[%s401 + $0xa0] sm:$0xff]
      %v5184 = vld [vmem:[%s401 + $0xa8] sm:$0xff]
      %v5185 = vld [vmem:[%s401 + $0xb0] sm:$0xff]
      %v5186 = vld [vmem:[%s401 + $0xb8] sm:$0xff]
      %v5187 = vld [vmem:[%s401 + $0xc0] sm:$0xff]
      %v5188 = vld [vmem:[%s401 + $0xc8] sm:$0xff]
      %v5189 = vld [vmem:[%s401 + $0xd0] sm:$0xff]
      %v5190 = vld [vmem:[%s401 + $0xd8] sm:$0xff]
      %v5191 = vld [vmem:[%s401 + $0xe0] sm:$0xff]
      %v5192 = vld [vmem:[%s401 + $0xe8] sm:$0xff]
      %v5193 = vld [vmem:[%s401 + $0xf0] sm:$0xff]
      %v5194 = vld [vmem:[%s401 + $0xf8] sm:$0xff]
      %v5195 = vpack.c.bf16 %v5164, %v5163
      %v5196 = vpack.c.bf16 %v5166, %v5165
      %v5197 = vpack.c.bf16 %v5168, %v5167
      %v5198 = vpack.c.bf16 %v5170, %v5169
      %v5199 = vpack.c.bf16 %v5172, %v5171
      %v5200 = vpack.c.bf16 %v5174, %v5173
      %v5201 = vpack.c.bf16 %v5176, %v5175
      %v5202 = vpack.c.bf16 %v5178, %v5177
      %v5203 = vpack.c.bf16 %v5180, %v5179
      %v5204 = vpack.c.bf16 %v5182, %v5181
      %v5205 = vpack.c.bf16 %v5184, %v5183
      %v5206 = vpack.c.bf16 %v5186, %v5185
      %v5207 = vpack.c.bf16 %v5188, %v5187
      %v5208 = vpack.c.bf16 %v5190, %v5189
      %v5209 = vpack.c.bf16 %v5192, %v5191
      %v5210 = vpack.c.bf16 %v5194, %v5193
      %v5211 = vld [vmem:[%s5] sm:$0xc]
      %v5212 = vld [vmem:[%s5] sm:$0x8]
      %v5213 = vunpack.c.l.bf16 %v5212
      %v5214 = vlaneseq
      %v5215 = vshrl.u32 %v5214, 7
      %v5216 = vsub.s32 7, %v5215
      %v5217 = vrot.slane %v5213, %v5216
      %v5219 = vunpack.c.l.b16 %v5211
      %v5220 = vpack.c.b16 %v5219, %v5219
      %v5221 = vrot.slane %v5220, 2
      %v5223 = vsel %vm521, %v5195, 0
      %v5226 = vsel %vm521, %v5196, 0
      %v5229 = vsel %vm521, %v5197, 0
      %v5232 = vsel %vm521, %v5198, 0
      %v5235 = vsel %vm521, %v5199, 0
      %v5238 = vsel %vm521, %v5200, 0
      %v5241 = vsel %vm521, %v5201, 0
      %v5244 = vsel %vm521, %v5202, 0
      %v5247 = vsel %vm521, %v5203, 0
      %v5250 = vsel %vm521, %v5204, 0
      %v5253 = vsel %vm521, %v5205, 0
      %v5256 = vsel %vm521, %v5206, 0
      %v5259 = vsel %vm521, %v5207, 0
      %v5262 = vsel %vm521, %v5208, 0
      %v5265 = vsel %vm521, %v5209, 0
      %v5268 = vsel %vm521, %v5210, 0
      %v5271 = vand.u32 %v5221, %v621
      %5273 = vmatprep.subr.bf16.mxu0 0
      %5274 = vmatpush1.bf16.msra.mxu0 0
      %5275 = vmatprep.subr.bf16.mxu0 0
      %5276 = vmatpush1.bf16.msra.mxu0 0
      %5277 = vmatprep.subr.bf16.mxu0 0
      %5278 = vmatpush1.bf16.msra.mxu0 0
      %5279 = vmatprep.subr.bf16.mxu0 0
      %5280 = vmatpush1.bf16.msra.mxu0 0
      %5281 = vmatprep.subr.bf16.mxu0 0
      %5282 = vmatpush1.bf16.msra.mxu0 0
      %5283 = vmatprep.subr.bf16.mxu0 0
      %5284 = vmatpush1.bf16.msra.mxu0 0
      %5285 = vmatprep.subr.bf16.mxu0 0
      %5286 = vmatpush1.bf16.msra.mxu0 0
      %5287 = vmatprep.subr.bf16.mxu0 0
      %5288 = vmatpush1.bf16.msra.mxu0 %v5271
      %5289 = vmatprep.subr.bf16.mxu0 0
      %5290 = vmatpush2.bf16.msra.mxu0 0
      %5291 = vmatprep.subr.bf16.mxu0 0
      %5292 = vmatpush2.bf16.msra.mxu0 0
      %5293 = vmatprep.subr.bf16.mxu0 0
      %5294 = vmatpush2.bf16.msra.mxu0 0
      %5295 = vmatprep.subr.bf16.mxu0 0
      %5296 = vmatpush2.bf16.msra.mxu0 0
      %5297 = vmatprep.subr.bf16.mxu0 0
      %5298 = vmatpush2.bf16.msra.mxu0 0
      %5299 = vmatprep.subr.bf16.mxu0 0
      %5300 = vmatpush2.bf16.msra.mxu0 0
      %5301 = vmatprep.subr.bf16.mxu0 0
      %5302 = vmatpush2.bf16.msra.mxu0 0
      %5303 = vmatprep.subr.bf16.mxu0 0
      %5304 = vmatpush2.bf16.msra.mxu0 0
      %5305 = vmatprep.mubr.bf16.mxu0 0
      %5306 = vmatmul.mubr.bf16.gmra.mxu0 %v5223
      %v5307 = vpop.f32.mrf.mxu0
      %v5308 = vadd.f32 %v5217, %v5307
      %v5309 = vpop.f32.mrf.mxu0
      %v5310 = vpop.f32.mrf.mxu0
      %v5311 = vadd.f32 %v5217, %v5310
      %v5312 = vpop.f32.mrf.mxu0
      %5313 = vmatprep.mubr.bf16.mxu0 0
      %5314 = vmatmul.mubr.bf16.gmra.mxu0 %v5226
      %v5315 = vpop.f32.mrf.mxu0
      %v5316 = vadd.f32 %v5217, %v5315
      %v5317 = vpop.f32.mrf.mxu0
      %v5318 = vpop.f32.mrf.mxu0
      %v5319 = vadd.f32 %v5217, %v5318
      %v5320 = vpop.f32.mrf.mxu0
      %5321 = vmatprep.mubr.bf16.mxu0 0
      %5322 = vmatmul.mubr.bf16.gmra.mxu0 %v5229
      %v5323 = vpop.f32.mrf.mxu0
      %v5324 = vadd.f32 %v5217, %v5323
      %v5325 = vpop.f32.mrf.mxu0
      %v5326 = vpop.f32.mrf.mxu0
      %v5327 = vadd.f32 %v5217, %v5326
      %v5328 = vpop.f32.mrf.mxu0
      %5329 = vmatprep.mubr.bf16.mxu0 0
      %5330 = vmatmul.mubr.bf16.gmra.mxu0 %v5232
      %v5331 = vpop.f32.mrf.mxu0
      %v5332 = vadd.f32 %v5217, %v5331
      %v5333 = vpop.f32.mrf.mxu0
      %v5334 = vpop.f32.mrf.mxu0
      %v5335 = vadd.f32 %v5217, %v5334
      %v5336 = vpop.f32.mrf.mxu0
      %5337 = vmatprep.mubr.bf16.mxu0 0
      %5338 = vmatmul.mubr.bf16.gmra.mxu0 %v5235
      %v5339 = vpop.f32.mrf.mxu0
      %v5340 = vadd.f32 %v5217, %v5339
      %v5341 = vpop.f32.mrf.mxu0
      %v5342 = vpop.f32.mrf.mxu0
      %v5343 = vadd.f32 %v5217, %v5342
      %v5344 = vpop.f32.mrf.mxu0
      %5345 = vmatprep.mubr.bf16.mxu0 0
      %5346 = vmatmul.mubr.bf16.gmra.mxu0 %v5238
      %v5347 = vpop.f32.mrf.mxu0
      %v5348 = vadd.f32 %v5217, %v5347
      %v5349 = vpop.f32.mrf.mxu0
      %v5350 = vpop.f32.mrf.mxu0
      %v5351 = vadd.f32 %v5217, %v5350
      %v5352 = vpop.f32.mrf.mxu0
      %5353 = vmatprep.mubr.bf16.mxu0 0
      %5354 = vmatmul.mubr.bf16.gmra.mxu0 %v5241
      %v5355 = vpop.f32.mrf.mxu0
      %v5356 = vadd.f32 %v5217, %v5355
      %v5357 = vpop.f32.mrf.mxu0
      %v5358 = vpop.f32.mrf.mxu0
      %v5359 = vadd.f32 %v5217, %v5358
      %v5360 = vpop.f32.mrf.mxu0
      %5361 = vmatprep.mubr.bf16.mxu0 0
      %5362 = vmatmul.mubr.bf16.gmra.mxu0 %v5244
      %v5363 = vpop.f32.mrf.mxu0
      %v5364 = vadd.f32 %v5217, %v5363
      %v5365 = vpop.f32.mrf.mxu0
      %v5366 = vpop.f32.mrf.mxu0
      %v5367 = vadd.f32 %v5217, %v5366
      %v5368 = vpop.f32.mrf.mxu0
      %5369 = vmatprep.mubr.bf16.mxu0 0
      %5370 = vmatmul.mubr.bf16.gmra.mxu0 %v5247
      %v5371 = vpop.f32.mrf.mxu0
      %v5372 = vadd.f32 %v5217, %v5371
      %v5373 = vpop.f32.mrf.mxu0
      %v5374 = vpop.f32.mrf.mxu0
      %v5375 = vadd.f32 %v5217, %v5374
      %v5376 = vpop.f32.mrf.mxu0
      %5377 = vmatprep.mubr.bf16.mxu0 0
      %5378 = vmatmul.mubr.bf16.gmra.mxu0 %v5250
      %v5379 = vpop.f32.mrf.mxu0
      %v5380 = vadd.f32 %v5217, %v5379
      %v5381 = vpop.f32.mrf.mxu0
      %v5382 = vpop.f32.mrf.mxu0
      %v5383 = vadd.f32 %v5217, %v5382
      %v5384 = vpop.f32.mrf.mxu0
      %5385 = vmatprep.mubr.bf16.mxu0 0
      %5386 = vmatmul.mubr.bf16.gmra.mxu0 %v5253
      %v5387 = vpop.f32.mrf.mxu0
      %v5388 = vadd.f32 %v5217, %v5387
      %v5389 = vpop.f32.mrf.mxu0
      %v5390 = vpop.f32.mrf.mxu0
      %v5391 = vadd.f32 %v5217, %v5390
      %v5392 = vpop.f32.mrf.mxu0
      %5393 = vmatprep.mubr.bf16.mxu0 0
      %5394 = vmatmul.mubr.bf16.gmra.mxu0 %v5256
      %v5395 = vpop.f32.mrf.mxu0
      %v5396 = vadd.f32 %v5217, %v5395
      %v5397 = vpop.f32.mrf.mxu0
      %v5398 = vpop.f32.mrf.mxu0
      %v5399 = vadd.f32 %v5217, %v5398
      %v5400 = vpop.f32.mrf.mxu0
      %5401 = vmatprep.mubr.bf16.mxu0 0
      %5402 = vmatmul.mubr.bf16.gmra.mxu0 %v5259
      %v5403 = vpop.f32.mrf.mxu0
      %v5404 = vadd.f32 %v5217, %v5403
      %v5405 = vpop.f32.mrf.mxu0
      %v5406 = vpop.f32.mrf.mxu0
      %v5407 = vadd.f32 %v5217, %v5406
      %v5408 = vpop.f32.mrf.mxu0
      %5409 = vmatprep.mubr.bf16.mxu0 0
      %5410 = vmatmul.mubr.bf16.gmra.mxu0 %v5262
      %v5411 = vpop.f32.mrf.mxu0
      %v5412 = vadd.f32 %v5217, %v5411
      %v5413 = vpop.f32.mrf.mxu0
      %v5414 = vpop.f32.mrf.mxu0
      %v5415 = vadd.f32 %v5217, %v5414
      %v5416 = vpop.f32.mrf.mxu0
      %5417 = vmatprep.mubr.bf16.mxu0 0
      %5418 = vmatmul.mubr.bf16.gmra.mxu0 %v5265
      %v5419 = vpop.f32.mrf.mxu0
      %v5420 = vadd.f32 %v5217, %v5419
      %v5421 = vpop.f32.mrf.mxu0
      %v5422 = vpop.f32.mrf.mxu0
      %v5423 = vadd.f32 %v5217, %v5422
      %v5424 = vpop.f32.mrf.mxu0
      %5425 = vmatprep.mubr.bf16.mxu0 0
      %5426 = vmatmul.mubr.bf16.gmra.mxu0 %v5268
      %v5427 = vpop.f32.mrf.mxu0
      %v5428 = vadd.f32 %v5217, %v5427
      %v5429 = vpop.f32.mrf.mxu0
      %v5430 = vpop.f32.mrf.mxu0
      %v5431 = vadd.f32 %v5217, %v5430
      %v5432 = vpop.f32.mrf.mxu0
      %5433 = vdwg.mxu0
      %vm5434 = vcmp.gt.f32.partialorder %v5308, 0.0
      %vm5435 = vcmp.gt.f32.partialorder %v5311, 0.0
      %vm5436 = vcmp.gt.f32.partialorder %v5316, 0.0
      %vm5437 = vcmp.gt.f32.partialorder %v5319, 0.0
      %vm5438 = vcmp.gt.f32.partialorder %v5324, 0.0
      %vm5439 = vcmp.gt.f32.partialorder %v5327, 0.0
      %vm5440 = vcmp.gt.f32.partialorder %v5332, 0.0
      %vm5441 = vcmp.gt.f32.partialorder %v5335, 0.0
      %vm5442 = vcmp.gt.f32.partialorder %v5340, 0.0
      %vm5443 = vcmp.gt.f32.partialorder %v5343, 0.0
      %vm5444 = vcmp.gt.f32.partialorder %v5348, 0.0
      %vm5445 = vcmp.gt.f32.partialorder %v5351, 0.0
      %vm5446 = vcmp.gt.f32.partialorder %v5356, 0.0
      %vm5447 = vcmp.gt.f32.partialorder %v5359, 0.0
      %vm5448 = vcmp.gt.f32.partialorder %v5364, 0.0
      %vm5449 = vcmp.gt.f32.partialorder %v5367, 0.0
      %vm5450 = vcmp.gt.f32.partialorder %v5372, 0.0
      %vm5451 = vcmp.gt.f32.partialorder %v5375, 0.0
      %vm5452 = vcmp.gt.f32.partialorder %v5380, 0.0
      %vm5453 = vcmp.gt.f32.partialorder %v5383, 0.0
      %vm5454 = vcmp.gt.f32.partialorder %v5388, 0.0
      %vm5455 = vcmp.gt.f32.partialorder %v5391, 0.0
      %vm5456 = vcmp.gt.f32.partialorder %v5396, 0.0
      %vm5457 = vcmp.gt.f32.partialorder %v5399, 0.0
      %vm5458 = vcmp.gt.f32.partialorder %v5404, 0.0
      %vm5459 = vcmp.gt.f32.partialorder %v5407, 0.0
      %vm5460 = vcmp.gt.f32.partialorder %v5412, 0.0
      %vm5461 = vcmp.gt.f32.partialorder %v5415, 0.0
      %vm5462 = vcmp.gt.f32.partialorder %v5420, 0.0
      %vm5463 = vcmp.gt.f32.partialorder %v5423, 0.0
      %vm5464 = vcmp.gt.f32.partialorder %v5428, 0.0
      %vm5465 = vcmp.gt.f32.partialorder %v5431, 0.0
      %v5466 = vmul.f32 %v5308, 0.2
      %v5467 = vmul.f32 %v5311, 0.2
      %v5468 = vmul.f32 %v5316, 0.2
      %v5469 = vmul.f32 %v5319, 0.2
      %v5470 = vmul.f32 %v5324, 0.2
      %v5471 = vmul.f32 %v5327, 0.2
      %v5472 = vmul.f32 %v5332, 0.2
      %v5473 = vmul.f32 %v5335, 0.2
      %v5474 = vmul.f32 %v5340, 0.2
      %v5475 = vmul.f32 %v5343, 0.2
      %v5476 = vmul.f32 %v5348, 0.2
      %v5477 = vmul.f32 %v5351, 0.2
      %v5478 = vmul.f32 %v5356, 0.2
      %v5479 = vmul.f32 %v5359, 0.2
      %v5480 = vmul.f32 %v5364, 0.2
      %v5481 = vmul.f32 %v5367, 0.2
      %v5482 = vmul.f32 %v5372, 0.2
      %v5483 = vmul.f32 %v5375, 0.2
      %v5484 = vmul.f32 %v5380, 0.2
      %v5485 = vmul.f32 %v5383, 0.2
      %v5486 = vmul.f32 %v5388, 0.2
      %v5487 = vmul.f32 %v5391, 0.2
      %v5488 = vmul.f32 %v5396, 0.2
      %v5489 = vmul.f32 %v5399, 0.2
      %v5490 = vmul.f32 %v5404, 0.2
      %v5491 = vmul.f32 %v5407, 0.2
      %v5492 = vmul.f32 %v5412, 0.2
      %v5493 = vmul.f32 %v5415, 0.2
      %v5494 = vmul.f32 %v5420, 0.2
      %v5495 = vmul.f32 %v5423, 0.2
      %v5496 = vmul.f32 %v5428, 0.2
      %v5497 = vmul.f32 %v5431, 0.2
      %v5498 = vsel %vm5434, %v5308, %v5466
      %v5499 = vsel %vm5435, %v5311, %v5467
      %v5500 = vsel %vm5436, %v5316, %v5468
      %v5501 = vsel %vm5437, %v5319, %v5469
      %v5502 = vsel %vm5438, %v5324, %v5470
      %v5503 = vsel %vm5439, %v5327, %v5471
      %v5504 = vsel %vm5440, %v5332, %v5472
      %v5505 = vsel %vm5441, %v5335, %v5473
      %v5506 = vsel %vm5442, %v5340, %v5474
      %v5507 = vsel %vm5443, %v5343, %v5475
      %v5508 = vsel %vm5444, %v5348, %v5476
      %v5509 = vsel %vm5445, %v5351, %v5477
      %v5510 = vsel %vm5446, %v5356, %v5478
      %v5511 = vsel %vm5447, %v5359, %v5479
      %v5512 = vsel %vm5448, %v5364, %v5480
      %v5513 = vsel %vm5449, %v5367, %v5481
      %v5514 = vsel %vm5450, %v5372, %v5482
      %v5515 = vsel %vm5451, %v5375, %v5483
      %v5516 = vsel %vm5452, %v5380, %v5484
      %v5517 = vsel %vm5453, %v5383, %v5485
      %v5518 = vsel %vm5454, %v5388, %v5486
      %v5519 = vsel %vm5455, %v5391, %v5487
      %v5520 = vsel %vm5456, %v5396, %v5488
      %v5521 = vsel %vm5457, %v5399, %v5489
      %v5522 = vsel %vm5458, %v5404, %v5490
      %v5523 = vsel %vm5459, %v5407, %v5491
      %v5524 = vsel %vm5460, %v5412, %v5492
      %v5525 = vsel %vm5461, %v5415, %v5493
      %v5526 = vsel %vm5462, %v5420, %v5494
      %v5527 = vsel %vm5463, %v5423, %v5495
      %v5528 = vsel %vm5464, %v5428, %v5496
      %v5529 = vsel %vm5465, %v5431, %v5497
      %v5530 = vmax.f32 %v5498, %v5499
      %v5531 = vmax.f32 %v5530, %v5500
      %v5532 = vmax.f32 %v5531, %v5501
      %v5533 = vrot.slane %v5532, 4
      %v5534 = vmax.f32 %v5532, %v5533
      %v5535 = vrot.slane %v5534, 2
      %v5536 = vmax.f32 %v5534, %v5535
      %v5537 = vrot.slane %v5536, 1
      %v5538 = vmax.f32 %v5536, %v5537
      %v5539 = vmax.f32 %v5502, %v5503
      %v5540 = vmax.f32 %v5539, %v5504
      %v5541 = vmax.f32 %v5540, %v5505
      %v5542 = vrot.slane %v5541, 4
      %v5543 = vmax.f32 %v5541, %v5542
      %v5544 = vrot.slane %v5543, 2
      %v5545 = vmax.f32 %v5543, %v5544
      %v5546 = vrot.slane %v5545, 1
      %v5547 = vmax.f32 %v5545, %v5546
      %v5548 = vmax.f32 %v5506, %v5507
      %v5549 = vmax.f32 %v5548, %v5508
      %v5550 = vmax.f32 %v5549, %v5509
      %v5551 = vrot.slane %v5550, 4
      %v5552 = vmax.f32 %v5550, %v5551
      %v5553 = vrot.slane %v5552, 2
      %v5554 = vmax.f32 %v5552, %v5553
      %v5555 = vrot.slane %v5554, 1
      %v5556 = vmax.f32 %v5554, %v5555
      %v5557 = vmax.f32 %v5510, %v5511
      %v5558 = vmax.f32 %v5557, %v5512
      %v5559 = vmax.f32 %v5558, %v5513
      %v5560 = vrot.slane %v5559, 4
      %v5561 = vmax.f32 %v5559, %v5560
      %v5562 = vrot.slane %v5561, 2
      %v5563 = vmax.f32 %v5561, %v5562
      %v5564 = vrot.slane %v5563, 1
      %v5565 = vmax.f32 %v5563, %v5564
      %v5566 = vmax.f32 %v5514, %v5515
      %v5567 = vmax.f32 %v5566, %v5516
      %v5568 = vmax.f32 %v5567, %v5517
      %v5569 = vrot.slane %v5568, 4
      %v5570 = vmax.f32 %v5568, %v5569
      %v5571 = vrot.slane %v5570, 2
      %v5572 = vmax.f32 %v5570, %v5571
      %v5573 = vrot.slane %v5572, 1
      %v5574 = vmax.f32 %v5572, %v5573
      %v5575 = vmax.f32 %v5518, %v5519
      %v5576 = vmax.f32 %v5575, %v5520
      %v5577 = vmax.f32 %v5576, %v5521
      %v5578 = vrot.slane %v5577, 4
      %v5579 = vmax.f32 %v5577, %v5578
      %v5580 = vrot.slane %v5579, 2
      %v5581 = vmax.f32 %v5579, %v5580
      %v5582 = vrot.slane %v5581, 1
      %v5583 = vmax.f32 %v5581, %v5582
      %v5584 = vmax.f32 %v5522, %v5523
      %v5585 = vmax.f32 %v5584, %v5524
      %v5586 = vmax.f32 %v5585, %v5525
      %v5587 = vrot.slane %v5586, 4
      %v5588 = vmax.f32 %v5586, %v5587
      %v5589 = vrot.slane %v5588, 2
      %v5590 = vmax.f32 %v5588, %v5589
      %v5591 = vrot.slane %v5590, 1
      %v5592 = vmax.f32 %v5590, %v5591
      %v5593 = vmax.f32 %v5526, %v5527
      %v5594 = vmax.f32 %v5593, %v5528
      %v5595 = vmax.f32 %v5594, %v5529
      %v5596 = vrot.slane %v5595, 4
      %v5597 = vmax.f32 %v5595, %v5596
      %v5598 = vrot.slane %v5597, 2
      %v5599 = vmax.f32 %v5597, %v5598
      %v5600 = vrot.slane %v5599, 1
      %v5601 = vmax.f32 %v5599, %v5600
      %v5602 = vld [vmem:[%s407] sm:$0xff]
      %v5603 = vld [vmem:[%s407 + $0x8] sm:$0xff]
      %v5604 = vld [vmem:[%s6] sm:$0xf]
      %v5605 = vld [vmem:[%s6 + $0x4] sm:$0xf]
      %v5606 = vld [vmem:[%s6 + $0x8] sm:$0xf]
      %v5607 = vld [vmem:[%s6 + $0xc] sm:$0xf]
      %v5608 = vld [vmem:[%s6 + $0x10] sm:$0xf]
      %v5609 = vld [vmem:[%s6 + $0x14] sm:$0xf]
      %v5610 = vld [vmem:[%s6 + $0x18] sm:$0xf]
      %v5611 = vld [vmem:[%s6 + $0x1c] sm:$0xf]
      %v5612 = vld [vmem:[%s6 + $0x20] sm:$0xf]
      %v5613 = vld [vmem:[%s6 + $0x24] sm:$0xf]
      %v5614 = vld [vmem:[%s6 + $0x28] sm:$0xf]
      %v5615 = vld [vmem:[%s6 + $0x2c] sm:$0xf]
      %v5616 = vld [vmem:[%s6 + $0x30] sm:$0xf]
      %v5617 = vld [vmem:[%s6 + $0x34] sm:$0xf]
      %v5618 = vld [vmem:[%s6 + $0x38] sm:$0xf]
      %v5619 = vld [vmem:[%s6 + $0x3c] sm:$0xf]
      %v5620 = vld [vmem:[%s6 + $0x40] sm:$0xf]
      %v5621 = vld [vmem:[%s6 + $0x44] sm:$0xf]
      %v5622 = vld [vmem:[%s6 + $0x48] sm:$0xf]
      %v5623 = vld [vmem:[%s6 + $0x4c] sm:$0xf]
      %v5624 = vld [vmem:[%s6 + $0x50] sm:$0xf]
      %v5625 = vld [vmem:[%s6 + $0x54] sm:$0xf]
      %v5626 = vld [vmem:[%s6 + $0x58] sm:$0xf]
      %v5627 = vld [vmem:[%s6 + $0x5c] sm:$0xf]
      %v5628 = vld [vmem:[%s6 + $0x60] sm:$0xf]
      %v5629 = vld [vmem:[%s6 + $0x64] sm:$0xf]
      %v5630 = vld [vmem:[%s6 + $0x68] sm:$0xf]
      %v5631 = vld [vmem:[%s6 + $0x6c] sm:$0xf]
      %v5632 = vld [vmem:[%s6 + $0x70] sm:$0xf]
      %v5633 = vld [vmem:[%s6 + $0x74] sm:$0xf]
      %v5634 = vld [vmem:[%s6 + $0x78] sm:$0xf]
      %v5635 = vld [vmem:[%s6 + $0x7c] sm:$0xf]
      %v5636 = vld [vmem:[%s6 + $0x80] sm:$0xf]
      %v5637 = vld [vmem:[%s6 + $0x84] sm:$0xf]
      %v5638 = vld [vmem:[%s6 + $0x88] sm:$0xf]
      %v5639 = vld [vmem:[%s6 + $0x8c] sm:$0xf]
      %v5640 = vld [vmem:[%s6 + $0x90] sm:$0xf]
      %v5641 = vld [vmem:[%s6 + $0x94] sm:$0xf]
      %v5642 = vld [vmem:[%s6 + $0x98] sm:$0xf]
      %v5643 = vld [vmem:[%s6 + $0x9c] sm:$0xf]
      %v5644 = vld [vmem:[%s6 + $0xa0] sm:$0xf]
      %v5645 = vld [vmem:[%s6 + $0xa4] sm:$0xf]
      %v5646 = vld [vmem:[%s6 + $0xa8] sm:$0xf]
      %v5647 = vld [vmem:[%s6 + $0xac] sm:$0xf]
      %v5648 = vld [vmem:[%s6 + $0xb0] sm:$0xf]
      %v5649 = vld [vmem:[%s6 + $0xb4] sm:$0xf]
      %v5650 = vld [vmem:[%s6 + $0xb8] sm:$0xf]
      %v5651 = vld [vmem:[%s6 + $0xbc] sm:$0xf]
      %v5652 = vld [vmem:[%s6 + $0xc0] sm:$0xf]
      %v5653 = vld [vmem:[%s6 + $0xc4] sm:$0xf]
      %v5654 = vld [vmem:[%s6 + $0xc8] sm:$0xf]
      %v5655 = vld [vmem:[%s6 + $0xcc] sm:$0xf]
      %v5656 = vld [vmem:[%s6 + $0xd0] sm:$0xf]
      %v5657 = vld [vmem:[%s6 + $0xd4] sm:$0xf]
      %v5658 = vld [vmem:[%s6 + $0xd8] sm:$0xf]
      %v5659 = vld [vmem:[%s6 + $0xdc] sm:$0xf]
      %v5660 = vld [vmem:[%s6 + $0xe0] sm:$0xf]
      %v5661 = vld [vmem:[%s6 + $0xe4] sm:$0xf]
      %v5662 = vld [vmem:[%s6 + $0xe8] sm:$0xf]
      %v5663 = vld [vmem:[%s6 + $0xec] sm:$0xf]
      %v5664 = vld [vmem:[%s6 + $0xf0] sm:$0xf]
      %v5665 = vld [vmem:[%s6 + $0xf4] sm:$0xf]
      %v5666 = vld [vmem:[%s6 + $0xf8] sm:$0xf]
      %v5667 = vld [vmem:[%s6 + $0xfc] sm:$0xf]
      %v5668 = vld [vmem:[%s5 + $0x8] sm:$0x1]
      %v5669 = vunpack.c.l.bf16 %v5668
      %v5670 = vlaneseq
      %v5671 = vshrl.u32 %v5670, 7
      %v5672 = vsub.s32 0, %v5671
      %v5673 = vrot.slane %v5669, %v5672
      %v5676 = vunpack.c.l.b16 %v5602
      %v5677 = vunpack.c.h.b16 %v5602
      %v5678 = vunpack.c.l.b16 %v5603
      %v5679 = vunpack.c.h.b16 %v5603
      %v5680 = vpack.c.b16 %v5676, %v5676
      %v5681 = vpack.c.b16 %v5677, %v5677
      %v5682 = vpack.c.b16 %v5678, %v5678
      %v5683 = vpack.c.b16 %v5679, %v5679
      %v5752 = vunpack.c.l.b16 %v5604
      %v5753 = vunpack.c.l.b16 %v5605
      %v5754 = vunpack.c.l.b16 %v5606
      %v5755 = vunpack.c.l.b16 %v5607
      %v5756 = vunpack.c.l.b16 %v5608
      %v5757 = vunpack.c.l.b16 %v5609
      %v5758 = vunpack.c.l.b16 %v5610
      %v5759 = vunpack.c.l.b16 %v5611
      %v5760 = vunpack.c.l.b16 %v5612
      %v5761 = vunpack.c.l.b16 %v5613
      %v5762 = vunpack.c.l.b16 %v5614
      %v5763 = vunpack.c.l.b16 %v5615
      %v5764 = vunpack.c.l.b16 %v5616
      %v5765 = vunpack.c.l.b16 %v5617
      %v5766 = vunpack.c.l.b16 %v5618
      %v5767 = vunpack.c.l.b16 %v5619
      %v5768 = vunpack.c.l.b16 %v5620
      %v5769 = vunpack.c.l.b16 %v5621
      %v5770 = vunpack.c.l.b16 %v5622
      %v5771 = vunpack.c.l.b16 %v5623
      %v5772 = vunpack.c.l.b16 %v5624
      %v5773 = vunpack.c.l.b16 %v5625
      %v5774 = vunpack.c.l.b16 %v5626
      %v5775 = vunpack.c.l.b16 %v5627
      %v5776 = vunpack.c.l.b16 %v5628
      %v5777 = vunpack.c.l.b16 %v5629
      %v5778 = vunpack.c.l.b16 %v5630
      %v5779 = vunpack.c.l.b16 %v5631
      %v5780 = vunpack.c.l.b16 %v5632
      %v5781 = vunpack.c.l.b16 %v5633
      %v5782 = vunpack.c.l.b16 %v5634
      %v5783 = vunpack.c.l.b16 %v5635
      %v5784 = vunpack.c.l.b16 %v5636
      %v5785 = vunpack.c.l.b16 %v5637
      %v5786 = vunpack.c.l.b16 %v5638
      %v5787 = vunpack.c.l.b16 %v5639
      %v5788 = vunpack.c.l.b16 %v5640
      %v5789 = vunpack.c.l.b16 %v5641
      %v5790 = vunpack.c.l.b16 %v5642
      %v5791 = vunpack.c.l.b16 %v5643
      %v5792 = vunpack.c.l.b16 %v5644
      %v5793 = vunpack.c.l.b16 %v5645
      %v5794 = vunpack.c.l.b16 %v5646
      %v5795 = vunpack.c.l.b16 %v5647
      %v5796 = vunpack.c.l.b16 %v5648
      %v5797 = vunpack.c.l.b16 %v5649
      %v5798 = vunpack.c.l.b16 %v5650
      %v5799 = vunpack.c.l.b16 %v5651
      %v5800 = vunpack.c.l.b16 %v5652
      %v5801 = vunpack.c.l.b16 %v5653
      %v5802 = vunpack.c.l.b16 %v5654
      %v5803 = vunpack.c.l.b16 %v5655
      %v5804 = vunpack.c.l.b16 %v5656
      %v5805 = vunpack.c.l.b16 %v5657
      %v5806 = vunpack.c.l.b16 %v5658
      %v5807 = vunpack.c.l.b16 %v5659
      %v5808 = vunpack.c.l.b16 %v5660
      %v5809 = vunpack.c.l.b16 %v5661
      %v5810 = vunpack.c.l.b16 %v5662
      %v5811 = vunpack.c.l.b16 %v5663
      %v5812 = vunpack.c.l.b16 %v5664
      %v5813 = vunpack.c.l.b16 %v5665
      %v5814 = vunpack.c.l.b16 %v5666
      %v5815 = vunpack.c.l.b16 %v5667
      %v5816 = vpack.c.b16 %v5753, %v5752
      %v5817 = vpack.c.b16 %v5755, %v5754
      %v5818 = vpack.c.b16 %v5757, %v5756
      %v5819 = vpack.c.b16 %v5759, %v5758
      %v5820 = vpack.c.b16 %v5761, %v5760
      %v5821 = vpack.c.b16 %v5763, %v5762
      %v5822 = vpack.c.b16 %v5765, %v5764
      %v5823 = vpack.c.b16 %v5767, %v5766
      %v5824 = vpack.c.b16 %v5769, %v5768
      %v5825 = vpack.c.b16 %v5771, %v5770
      %v5826 = vpack.c.b16 %v5773, %v5772
      %v5827 = vpack.c.b16 %v5775, %v5774
      %v5828 = vpack.c.b16 %v5777, %v5776
      %v5829 = vpack.c.b16 %v5779, %v5778
      %v5830 = vpack.c.b16 %v5781, %v5780
      %v5831 = vpack.c.b16 %v5783, %v5782
      %v5832 = vpack.c.b16 %v5785, %v5784
      %v5833 = vpack.c.b16 %v5787, %v5786
      %v5834 = vpack.c.b16 %v5789, %v5788
      %v5835 = vpack.c.b16 %v5791, %v5790
      %v5836 = vpack.c.b16 %v5793, %v5792
      %v5837 = vpack.c.b16 %v5795, %v5794
      %v5838 = vpack.c.b16 %v5797, %v5796
      %v5839 = vpack.c.b16 %v5799, %v5798
      %v5840 = vpack.c.b16 %v5801, %v5800
      %v5841 = vpack.c.b16 %v5803, %v5802
      %v5842 = vpack.c.b16 %v5805, %v5804
      %v5843 = vpack.c.b16 %v5807, %v5806
      %v5844 = vpack.c.b16 %v5809, %v5808
      %v5845 = vpack.c.b16 %v5811, %v5810
      %v5846 = vpack.c.b16 %v5813, %v5812
      %v5847 = vpack.c.b16 %v5815, %v5814
      %5880 = vmatprep.subr.bf16.mxu0 0
      %5881 = vmatpush1.bf16.msra.mxu0 %v5823
      %5882 = vmatprep.subr.bf16.mxu0 0
      %5883 = vmatpush1.bf16.msra.mxu0 %v5822
      %5884 = vmatprep.subr.bf16.mxu0 0
      %5885 = vmatpush1.bf16.msra.mxu0 %v5821
      %5886 = vmatprep.subr.bf16.mxu0 0
      %5887 = vmatpush1.bf16.msra.mxu0 %v5820
      %5888 = vmatprep.subr.bf16.mxu0 0
      %5889 = vmatpush1.bf16.msra.mxu0 %v5819
      %5890 = vmatprep.subr.bf16.mxu0 0
      %5891 = vmatpush1.bf16.msra.mxu0 %v5818
      %5892 = vmatprep.subr.bf16.mxu0 0
      %5893 = vmatpush1.bf16.msra.mxu0 %v5817
      %5894 = vmatprep.subr.bf16.mxu0 0
      %5895 = vmatpush1.bf16.msra.mxu0 %v5816
      %5896 = vmatprep.subr.bf16.mxu0 0
      %5897 = vmatpush2.bf16.msra.mxu0 %v5831
      %5898 = vmatprep.subr.bf16.mxu0 0
      %5899 = vmatpush2.bf16.msra.mxu0 %v5830
      %5900 = vmatprep.subr.bf16.mxu0 0
      %5901 = vmatpush2.bf16.msra.mxu0 %v5829
      %5902 = vmatprep.subr.bf16.mxu0 0
      %5903 = vmatpush2.bf16.msra.mxu0 %v5828
      %5904 = vmatprep.subr.bf16.mxu0 0
      %5905 = vmatpush2.bf16.msra.mxu0 %v5827
      %5906 = vmatprep.subr.bf16.mxu0 0
      %5907 = vmatpush2.bf16.msra.mxu0 %v5826
      %5908 = vmatprep.subr.bf16.mxu0 0
      %5909 = vmatpush2.bf16.msra.mxu0 %v5825
      %5910 = vmatprep.subr.bf16.mxu0 0
      %5911 = vmatpush2.bf16.msra.mxu0 %v5824
      %5912 = vmatprep.mubr.bf16.mxu0 %v5681
      %5913 = vmatmul.mubr.bf16.gmra.mxu0 %v5680
      %v5914 = vpop.f32.mrf.mxu0
      %v5915 = vadd.f32 %v5673, %v5914
      %v5916 = vpop.f32.mrf.mxu0
      %v5917 = vpop.f32.mrf.mxu0
      %v5918 = vpop.f32.mrf.mxu0
      %5919 = vdwg.mxu0
      %5920 = vmatprep.subr.bf16.mxu0 0
      %5921 = vmatpush1.bf16.msra.mxu0 %v5839
      %5922 = vmatprep.subr.bf16.mxu0 0
      %5923 = vmatpush1.bf16.msra.mxu0 %v5838
      %5924 = vmatprep.subr.bf16.mxu0 0
      %5925 = vmatpush1.bf16.msra.mxu0 %v5837
      %5926 = vmatprep.subr.bf16.mxu0 0
      %5927 = vmatpush1.bf16.msra.mxu0 %v5836
      %5928 = vmatprep.subr.bf16.mxu0 0
      %5929 = vmatpush1.bf16.msra.mxu0 %v5835
      %5930 = vmatprep.subr.bf16.mxu0 0
      %5931 = vmatpush1.bf16.msra.mxu0 %v5834
      %5932 = vmatprep.subr.bf16.mxu0 0
      %5933 = vmatpush1.bf16.msra.mxu0 %v5833
      %5934 = vmatprep.subr.bf16.mxu0 0
      %5935 = vmatpush1.bf16.msra.mxu0 %v5832
      %5936 = vmatprep.subr.bf16.mxu0 0
      %5937 = vmatpush2.bf16.msra.mxu0 %v5847
      %5938 = vmatprep.subr.bf16.mxu0 0
      %5939 = vmatpush2.bf16.msra.mxu0 %v5846
      %5940 = vmatprep.subr.bf16.mxu0 0
      %5941 = vmatpush2.bf16.msra.mxu0 %v5845
      %5942 = vmatprep.subr.bf16.mxu0 0
      %5943 = vmatpush2.bf16.msra.mxu0 %v5844
      %5944 = vmatprep.subr.bf16.mxu0 0
      %5945 = vmatpush2.bf16.msra.mxu0 %v5843
      %5946 = vmatprep.subr.bf16.mxu0 0
      %5947 = vmatpush2.bf16.msra.mxu0 %v5842
      %5948 = vmatprep.subr.bf16.mxu0 0
      %5949 = vmatpush2.bf16.msra.mxu0 %v5841
      %5950 = vmatprep.subr.bf16.mxu0 0
      %5951 = vmatpush2.bf16.msra.mxu0 %v5840
      %5952 = vmatprep.mubr.bf16.mxu0 %v5683
      %5953 = vmatmul.mubr.bf16.gmra.mxu0 %v5682
      %v5954 = vpop.f32.mrf.mxu0
      %v5955 = vadd.f32 %v5915, %v5954
      %v5956 = vpop.f32.mrf.mxu0
      %v5957 = vpop.f32.mrf.mxu0
      %v5958 = vpop.f32.mrf.mxu0
      %5959 = vdwg.mxu0
      %vm5960 = vcmp.gt.f32.partialorder %v5955, 0.0
      %v5961 = vmul.f32 %v5955, 0.2
      %v5962 = vsel %vm5960, %v5955, %v5961
      %v5963 = vld [vmem:[%s412] sm:$0xff]
      %v5964 = vld [vmem:[%s412 + $0x8] sm:$0xff]
      %v5965 = vld [vmem:[%s7] sm:$0xf]
      %v5966 = vld [vmem:[%s7 + $0x4] sm:$0xf]
      %v5967 = vld [vmem:[%s7 + $0x8] sm:$0xf]
      %v5968 = vld [vmem:[%s7 + $0xc] sm:$0xf]
      %v5969 = vld [vmem:[%s7 + $0x10] sm:$0xf]
      %v5970 = vld [vmem:[%s7 + $0x14] sm:$0xf]
      %v5971 = vld [vmem:[%s7 + $0x18] sm:$0xf]
      %v5972 = vld [vmem:[%s7 + $0x1c] sm:$0xf]
      %v5973 = vld [vmem:[%s7 + $0x20] sm:$0xf]
      %v5974 = vld [vmem:[%s7 + $0x24] sm:$0xf]
      %v5975 = vld [vmem:[%s7 + $0x28] sm:$0xf]
      %v5976 = vld [vmem:[%s7 + $0x2c] sm:$0xf]
      %v5977 = vld [vmem:[%s7 + $0x30] sm:$0xf]
      %v5978 = vld [vmem:[%s7 + $0x34] sm:$0xf]
      %v5979 = vld [vmem:[%s7 + $0x38] sm:$0xf]
      %v5980 = vld [vmem:[%s7 + $0x3c] sm:$0xf]
      %v5981 = vld [vmem:[%s7 + $0x40] sm:$0xf]
      %v5982 = vld [vmem:[%s7 + $0x44] sm:$0xf]
      %v5983 = vld [vmem:[%s7 + $0x48] sm:$0xf]
      %v5984 = vld [vmem:[%s7 + $0x4c] sm:$0xf]
      %v5985 = vld [vmem:[%s7 + $0x50] sm:$0xf]
      %v5986 = vld [vmem:[%s7 + $0x54] sm:$0xf]
      %v5987 = vld [vmem:[%s7 + $0x58] sm:$0xf]
      %v5988 = vld [vmem:[%s7 + $0x5c] sm:$0xf]
      %v5989 = vld [vmem:[%s7 + $0x60] sm:$0xf]
      %v5990 = vld [vmem:[%s7 + $0x64] sm:$0xf]
      %v5991 = vld [vmem:[%s7 + $0x68] sm:$0xf]
      %v5992 = vld [vmem:[%s7 + $0x6c] sm:$0xf]
      %v5993 = vld [vmem:[%s7 + $0x70] sm:$0xf]
      %v5994 = vld [vmem:[%s7 + $0x74] sm:$0xf]
      %v5995 = vld [vmem:[%s7 + $0x78] sm:$0xf]
      %v5996 = vld [vmem:[%s7 + $0x7c] sm:$0xf]
      %v5997 = vld [vmem:[%s7 + $0x80] sm:$0xf]
      %v5998 = vld [vmem:[%s7 + $0x84] sm:$0xf]
      %v5999 = vld [vmem:[%s7 + $0x88] sm:$0xf]
      %v6000 = vld [vmem:[%s7 + $0x8c] sm:$0xf]
      %v6001 = vld [vmem:[%s7 + $0x90] sm:$0xf]
      %v6002 = vld [vmem:[%s7 + $0x94] sm:$0xf]
      %v6003 = vld [vmem:[%s7 + $0x98] sm:$0xf]
      %v6004 = vld [vmem:[%s7 + $0x9c] sm:$0xf]
      %v6005 = vld [vmem:[%s7 + $0xa0] sm:$0xf]
      %v6006 = vld [vmem:[%s7 + $0xa4] sm:$0xf]
      %v6007 = vld [vmem:[%s7 + $0xa8] sm:$0xf]
      %v6008 = vld [vmem:[%s7 + $0xac] sm:$0xf]
      %v6009 = vld [vmem:[%s7 + $0xb0] sm:$0xf]
      %v6010 = vld [vmem:[%s7 + $0xb4] sm:$0xf]
      %v6011 = vld [vmem:[%s7 + $0xb8] sm:$0xf]
      %v6012 = vld [vmem:[%s7 + $0xbc] sm:$0xf]
      %v6013 = vld [vmem:[%s7 + $0xc0] sm:$0xf]
      %v6014 = vld [vmem:[%s7 + $0xc4] sm:$0xf]
      %v6015 = vld [vmem:[%s7 + $0xc8] sm:$0xf]
      %v6016 = vld [vmem:[%s7 + $0xcc] sm:$0xf]
      %v6017 = vld [vmem:[%s7 + $0xd0] sm:$0xf]
      %v6018 = vld [vmem:[%s7 + $0xd4] sm:$0xf]
      %v6019 = vld [vmem:[%s7 + $0xd8] sm:$0xf]
      %v6020 = vld [vmem:[%s7 + $0xdc] sm:$0xf]
      %v6021 = vld [vmem:[%s7 + $0xe0] sm:$0xf]
      %v6022 = vld [vmem:[%s7 + $0xe4] sm:$0xf]
      %v6023 = vld [vmem:[%s7 + $0xe8] sm:$0xf]
      %v6024 = vld [vmem:[%s7 + $0xec] sm:$0xf]
      %v6025 = vld [vmem:[%s7 + $0xf0] sm:$0xf]
      %v6026 = vld [vmem:[%s7 + $0xf4] sm:$0xf]
      %v6027 = vld [vmem:[%s7 + $0xf8] sm:$0xf]
      %v6028 = vld [vmem:[%s7 + $0xfc] sm:$0xf]
      %v6029 = vlaneseq
      %v6030 = vshrl.u32 %v6029, 7
      %v6031 = vsub.s32 1, %v6030
      %v6032 = vrot.slane %v5669, %v6031
      %v6035 = vunpack.c.l.b16 %v5963
      %v6036 = vunpack.c.h.b16 %v5963
      %v6037 = vunpack.c.l.b16 %v5964
      %v6038 = vunpack.c.h.b16 %v5964
      %v6039 = vpack.c.b16 %v6035, %v6035
      %v6040 = vpack.c.b16 %v6036, %v6036
      %v6041 = vpack.c.b16 %v6037, %v6037
      %v6042 = vpack.c.b16 %v6038, %v6038
      %v6111 = vunpack.c.l.b16 %v5965
      %v6112 = vunpack.c.l.b16 %v5966
      %v6113 = vunpack.c.l.b16 %v5967
      %v6114 = vunpack.c.l.b16 %v5968
      %v6115 = vunpack.c.l.b16 %v5969
      %v6116 = vunpack.c.l.b16 %v5970
      %v6117 = vunpack.c.l.b16 %v5971
      %v6118 = vunpack.c.l.b16 %v5972
      %v6119 = vunpack.c.l.b16 %v5973
      %v6120 = vunpack.c.l.b16 %v5974
      %v6121 = vunpack.c.l.b16 %v5975
      %v6122 = vunpack.c.l.b16 %v5976
      %v6123 = vunpack.c.l.b16 %v5977
      %v6124 = vunpack.c.l.b16 %v5978
      %v6125 = vunpack.c.l.b16 %v5979
      %v6126 = vunpack.c.l.b16 %v5980
      %v6127 = vunpack.c.l.b16 %v5981
      %v6128 = vunpack.c.l.b16 %v5982
      %v6129 = vunpack.c.l.b16 %v5983
      %v6130 = vunpack.c.l.b16 %v5984
      %v6131 = vunpack.c.l.b16 %v5985
      %v6132 = vunpack.c.l.b16 %v5986
      %v6133 = vunpack.c.l.b16 %v5987
      %v6134 = vunpack.c.l.b16 %v5988
      %v6135 = vunpack.c.l.b16 %v5989
      %v6136 = vunpack.c.l.b16 %v5990
      %v6137 = vunpack.c.l.b16 %v5991
      %v6138 = vunpack.c.l.b16 %v5992
      %v6139 = vunpack.c.l.b16 %v5993
      %v6140 = vunpack.c.l.b16 %v5994
      %v6141 = vunpack.c.l.b16 %v5995
      %v6142 = vunpack.c.l.b16 %v5996
      %v6143 = vunpack.c.l.b16 %v5997
      %v6144 = vunpack.c.l.b16 %v5998
      %v6145 = vunpack.c.l.b16 %v5999
      %v6146 = vunpack.c.l.b16 %v6000
      %v6147 = vunpack.c.l.b16 %v6001
      %v6148 = vunpack.c.l.b16 %v6002
      %v6149 = vunpack.c.l.b16 %v6003
      %v6150 = vunpack.c.l.b16 %v6004
      %v6151 = vunpack.c.l.b16 %v6005
      %v6152 = vunpack.c.l.b16 %v6006
      %v6153 = vunpack.c.l.b16 %v6007
      %v6154 = vunpack.c.l.b16 %v6008
      %v6155 = vunpack.c.l.b16 %v6009
      %v6156 = vunpack.c.l.b16 %v6010
      %v6157 = vunpack.c.l.b16 %v6011
      %v6158 = vunpack.c.l.b16 %v6012
      %v6159 = vunpack.c.l.b16 %v6013
      %v6160 = vunpack.c.l.b16 %v6014
      %v6161 = vunpack.c.l.b16 %v6015
      %v6162 = vunpack.c.l.b16 %v6016
      %v6163 = vunpack.c.l.b16 %v6017
      %v6164 = vunpack.c.l.b16 %v6018
      %v6165 = vunpack.c.l.b16 %v6019
      %v6166 = vunpack.c.l.b16 %v6020
      %v6167 = vunpack.c.l.b16 %v6021
      %v6168 = vunpack.c.l.b16 %v6022
      %v6169 = vunpack.c.l.b16 %v6023
      %v6170 = vunpack.c.l.b16 %v6024
      %v6171 = vunpack.c.l.b16 %v6025
      %v6172 = vunpack.c.l.b16 %v6026
      %v6173 = vunpack.c.l.b16 %v6027
      %v6174 = vunpack.c.l.b16 %v6028
      %v6175 = vpack.c.b16 %v6112, %v6111
      %v6176 = vpack.c.b16 %v6114, %v6113
      %v6177 = vpack.c.b16 %v6116, %v6115
      %v6178 = vpack.c.b16 %v6118, %v6117
      %v6179 = vpack.c.b16 %v6120, %v6119
      %v6180 = vpack.c.b16 %v6122, %v6121
      %v6181 = vpack.c.b16 %v6124, %v6123
      %v6182 = vpack.c.b16 %v6126, %v6125
      %v6183 = vpack.c.b16 %v6128, %v6127
      %v6184 = vpack.c.b16 %v6130, %v6129
      %v6185 = vpack.c.b16 %v6132, %v6131
      %v6186 = vpack.c.b16 %v6134, %v6133
      %v6187 = vpack.c.b16 %v6136, %v6135
      %v6188 = vpack.c.b16 %v6138, %v6137
      %v6189 = vpack.c.b16 %v6140, %v6139
      %v6190 = vpack.c.b16 %v6142, %v6141
      %v6191 = vpack.c.b16 %v6144, %v6143
      %v6192 = vpack.c.b16 %v6146, %v6145
      %v6193 = vpack.c.b16 %v6148, %v6147
      %v6194 = vpack.c.b16 %v6150, %v6149
      %v6195 = vpack.c.b16 %v6152, %v6151
      %v6196 = vpack.c.b16 %v6154, %v6153
      %v6197 = vpack.c.b16 %v6156, %v6155
      %v6198 = vpack.c.b16 %v6158, %v6157
      %v6199 = vpack.c.b16 %v6160, %v6159
      %v6200 = vpack.c.b16 %v6162, %v6161
      %v6201 = vpack.c.b16 %v6164, %v6163
      %v6202 = vpack.c.b16 %v6166, %v6165
      %v6203 = vpack.c.b16 %v6168, %v6167
      %v6204 = vpack.c.b16 %v6170, %v6169
      %v6205 = vpack.c.b16 %v6172, %v6171
      %v6206 = vpack.c.b16 %v6174, %v6173
      %6239 = vmatprep.subr.bf16.mxu0 0
      %6240 = vmatpush1.bf16.msra.mxu0 %v6182
      %6241 = vmatprep.subr.bf16.mxu0 0
      %6242 = vmatpush1.bf16.msra.mxu0 %v6181
      %6243 = vmatprep.subr.bf16.mxu0 0
      %6244 = vmatpush1.bf16.msra.mxu0 %v6180
      %6245 = vmatprep.subr.bf16.mxu0 0
      %6246 = vmatpush1.bf16.msra.mxu0 %v6179
      %6247 = vmatprep.subr.bf16.mxu0 0
      %6248 = vmatpush1.bf16.msra.mxu0 %v6178
      %6249 = vmatprep.subr.bf16.mxu0 0
      %6250 = vmatpush1.bf16.msra.mxu0 %v6177
      %6251 = vmatprep.subr.bf16.mxu0 0
      %6252 = vmatpush1.bf16.msra.mxu0 %v6176
      %6253 = vmatprep.subr.bf16.mxu0 0
      %6254 = vmatpush1.bf16.msra.mxu0 %v6175
      %6255 = vmatprep.subr.bf16.mxu0 0
      %6256 = vmatpush2.bf16.msra.mxu0 %v6190
      %6257 = vmatprep.subr.bf16.mxu0 0
      %6258 = vmatpush2.bf16.msra.mxu0 %v6189
      %6259 = vmatprep.subr.bf16.mxu0 0
      %6260 = vmatpush2.bf16.msra.mxu0 %v6188
      %6261 = vmatprep.subr.bf16.mxu0 0
      %6262 = vmatpush2.bf16.msra.mxu0 %v6187
      %6263 = vmatprep.subr.bf16.mxu0 0
      %6264 = vmatpush2.bf16.msra.mxu0 %v6186
      %6265 = vmatprep.subr.bf16.mxu0 0
      %6266 = vmatpush2.bf16.msra.mxu0 %v6185
      %6267 = vmatprep.subr.bf16.mxu0 0
      %6268 = vmatpush2.bf16.msra.mxu0 %v6184
      %6269 = vmatprep.subr.bf16.mxu0 0
      %6270 = vmatpush2.bf16.msra.mxu0 %v6183
      %6271 = vmatprep.mubr.bf16.mxu0 %v6040
      %6272 = vmatmul.mubr.bf16.gmra.mxu0 %v6039
      %v6273 = vpop.f32.mrf.mxu0
      %v6274 = vadd.f32 %v6032, %v6273
      %v6275 = vpop.f32.mrf.mxu0
      %v6276 = vpop.f32.mrf.mxu0
      %v6277 = vpop.f32.mrf.mxu0
      %6278 = vdwg.mxu0
      %6279 = vmatprep.subr.bf16.mxu0 0
      %6280 = vmatpush1.bf16.msra.mxu0 %v6198
      %6281 = vmatprep.subr.bf16.mxu0 0
      %6282 = vmatpush1.bf16.msra.mxu0 %v6197
      %6283 = vmatprep.subr.bf16.mxu0 0
      %6284 = vmatpush1.bf16.msra.mxu0 %v6196
      %6285 = vmatprep.subr.bf16.mxu0 0
      %6286 = vmatpush1.bf16.msra.mxu0 %v6195
      %6287 = vmatprep.subr.bf16.mxu0 0
      %6288 = vmatpush1.bf16.msra.mxu0 %v6194
      %6289 = vmatprep.subr.bf16.mxu0 0
      %6290 = vmatpush1.bf16.msra.mxu0 %v6193
      %6291 = vmatprep.subr.bf16.mxu0 0
      %6292 = vmatpush1.bf16.msra.mxu0 %v6192
      %6293 = vmatprep.subr.bf16.mxu0 0
      %6294 = vmatpush1.bf16.msra.mxu0 %v6191
      %6295 = vmatprep.subr.bf16.mxu0 0
      %6296 = vmatpush2.bf16.msra.mxu0 %v6206
      %6297 = vmatprep.subr.bf16.mxu0 0
      %6298 = vmatpush2.bf16.msra.mxu0 %v6205
      %6299 = vmatprep.subr.bf16.mxu0 0
      %6300 = vmatpush2.bf16.msra.mxu0 %v6204
      %6301 = vmatprep.subr.bf16.mxu0 0
      %6302 = vmatpush2.bf16.msra.mxu0 %v6203
      %6303 = vmatprep.subr.bf16.mxu0 0
      %6304 = vmatpush2.bf16.msra.mxu0 %v6202
      %6305 = vmatprep.subr.bf16.mxu0 0
      %6306 = vmatpush2.bf16.msra.mxu0 %v6201
      %6307 = vmatprep.subr.bf16.mxu0 0
      %6308 = vmatpush2.bf16.msra.mxu0 %v6200
      %6309 = vmatprep.subr.bf16.mxu0 0
      %6310 = vmatpush2.bf16.msra.mxu0 %v6199
      %6311 = vmatprep.mubr.bf16.mxu0 %v6042
      %6312 = vmatmul.mubr.bf16.gmra.mxu0 %v6041
      %v6313 = vpop.f32.mrf.mxu0
      %v6314 = vadd.f32 %v6274, %v6313
      %v6315 = vpop.f32.mrf.mxu0
      %v6316 = vpop.f32.mrf.mxu0
      %v6317 = vpop.f32.mrf.mxu0
      %6318 = vdwg.mxu0
      %vm6319 = vcmp.gt.f32.partialorder %v6314, 0.0
      %v6320 = vmul.f32 %v6314, 0.2
      %v6321 = vsel %vm6319, %v6314, %v6320
      %v6330 = vsel %vm2323, %v5547, %v5538
      %v6331 = vsel %vm2325, %v5556, %v6330
      %v6332 = vsel %vm2327, %v5565, %v6331
      %v6333 = vsel %vm2329, %v5574, %v6332
      %v6334 = vsel %vm2331, %v5583, %v6333
      %v6335 = vsel %vm2333, %v5592, %v6334
      %v6336 = vsel %vm2335, %v5601, %v6335
      %v6346 = vsel %vm2323, %v5120, %v5113
      %v6347 = vsel %vm2325, %v5127, %v6346
      %v6348 = vsel %vm2327, %v5134, %v6347
      %v6349 = vsel %vm2329, %v5141, %v6348
      %v6350 = vsel %vm2331, %v5148, %v6349
      %v6351 = vsel %vm2333, %v5155, %v6350
      %v6352 = vsel %vm2335, %v5162, %v6351
      %v6354 = vld [vmem:[%s8] ss:$2 sm:$0x1f]
      %v6356 = vlaneseq
      %v6357 = vshrl.u32 %v6356, 7
      %v6358 = vsub.s32 0, %v6357
      %v6359 = vrot.slane %v6354, %v6358
      %v6360 = vlaneseq
      %v6361 = vshrl.u32 %v6360, 7
      %v6362 = vsub.s32 1, %v6361
      %v6363 = vrot.slane %v6354, %v6362
      %v6364 = vlaneseq
      %v6365 = vshrl.u32 %v6364, 7
      %v6366 = vsub.s32 2, %v6365
      %v6367 = vrot.slane %v6354, %v6366
      %v6368 = vlaneseq
      %v6369 = vshrl.u32 %v6368, 7
      %v6370 = vsub.s32 3, %v6369
      %v6371 = vrot.slane %v6354, %v6370
      %v6372 = vlaneseq
      %v6373 = vshrl.u32 %v6372, 7
      %v6374 = vsub.s32 4, %v6373
      %v6375 = vrot.slane %v6354, %v6374
      %v6381 = vmul.f32 %v5962, %v6359
      %v6382 = vmul.f32 %v6336, %v6363
      %v6383 = vmul.f32 %v6352, %v6367
      %v6384 = vmul.f32 %v4667, %v6371
      %v6385 = vmul.f32 %v6321, %v6375
      %v6386 = vadd.f32 %v6381, %v6382
      %v6387 = vadd.f32 %v6386, %v6383
      %v6388 = vadd.f32 %v6387, %v6384
      %v6389 = vadd.f32 %v6388, %v6385
      %6390 = vadd.xlane.f32.xlu0 %v6389
      %v6391 = vpop.xlane.xlu0 %6390
      %v6392 = vld [vmem:[%s8 + $0x1] sm:$0x1]
      %v6393 = vlaneseq
      %v6394 = vshrl.u32 %v6393, 7
      %v6395 = vsub.s32 0, %v6394
      %v6396 = vrot.slane %v6392, %v6395
      %v6397 = vadd.f32 %v6391, %v6396
      %v6398 = vlaneseq
      %v6399 = vshrl.u32 %v6398, 7
      %vm6400 = vcmp.eq.s32.totalorder %v6399, %v1517
      %v6401 = vsel %vm6400, 1, 0
      %v6402 = vcvt.s32.f32 %v6401
      %6404 = vset.pattern.permute.xlu0 0
      %6405 = vperm.xlu0 %6404, %v6397
      %v6406 = vpop.permute.xlu0 %6405
      %v6408 = vmul.f32 %v6406, %v6402
      %vm6409 = vcmask 64512
      %v6410 = vsel %vm6409, %v6408, 0.0
      %v6411 = vrot.slane %v6410, 4
      %v6412 = vadd.f32 %v6410, %v6411
      %v6413 = vrot.slane %v6412, 2
      %v6414 = vadd.f32 %v6412, %v6413
      %v6415 = vrot.slane %v6414, 1
      %v6416 = vadd.f32 %v6414, %v6415
      %vm6417 = vcmask 57344
      %6418 = vst.msk [vmem:[%s415] sm:$0x1] %vm6417, %v6416
      %p6419 = scmp.lt.s32.totalorder %s20, 1
      %s6420 = scalar_select %p6419, %s20, 1
      %s6421 = scalar_lea.vmem %s9, %s6420
      // Predicated region
      $region57: #{onet_plus_plus_forward.1} parent=55 // pred_check
        %p6422 = pneg %p252
      $region58: #{onet_plus_plus_forward.1} parent=55 // pred_check_branch
        %6424 = sbr.rel (%p6422) target = $region60
      $region59: #{onet_plus_plus_forward.1} parent=55 // pred_region
        _
      $region60: #{onet_plus_plus_forward.1} parent=55 // pred_fallthru
        _
    $region56: #{onet_plus_plus_forward.1} parent=5 // pred_fallthru
      _
    %p6425 = scmp.le.s32.totalorder 2, %s15
    // Predicated region
    $region61: #{onet_plus_plus_forward.1} parent=5 // pred_check
      %p6426 = pneg %p6425
    $region62: #{onet_plus_plus_forward.1} parent=5 // pred_check_branch
      %6428 = sbr.rel (%p6426) target = $region64
    $region63: #{onet_plus_plus_forward.1} parent=5 // pred_region
      %s6429 = ssub.s32 %s15, 2
      // Predicated region
      $region65: #{onet_plus_plus_forward.1} parent=63 // pred_check
        %p6430 = pneg %p258
      $region66: #{onet_plus_plus_forward.1} parent=63 // pred_check_branch
        %6432 = sbr.rel (%p6430) target = $region68
      $region67: #{onet_plus_plus_forward.1} parent=63 // pred_region
        %p6433 = scmp.lt.s32.totalorder %s21, 1
        %s6434 = scalar_select %p6433, %s21, 1
        %s6435 = scalar_lea.vmem %s9, %s6434
      $region68: #{onet_plus_plus_forward.1} parent=63 // pred_fallthru
        _
    $region64: #{onet_plus_plus_forward.1} parent=5 // pred_fallthru
      _
  $region6: #{onet_plus_plus_forward.1} parent=0 // loop_footer
    %s19 = sadd.s32 1, %s15
  $region7: #{onet_plus_plus_forward.1} parent=0 // loop_footer_branch
    %14 = sbr.rel target = $region3
  $region8: #{onet_plus_plus_forward.1} parent=0 // loop_exit
    _

</llo_original>
